<compile_context>
chip_gen: v7x
topology: tpu7x:2x2x1
jax: 0.10.0
libtpu: 0.0.40
codegen_flags: <defaults>
</compile_context>

<pallas_src>
import functools

import numpy as np
import jax
import jax.numpy as jnp
from jax.experimental import pallas as pl
from jax.experimental.pallas import tpu as pltpu


_VMEM_LIMIT = 48 * 1024 * 1024  # keep comfortably under v7x's 64 MiB physical VMEM


def _pick_tb(B):
    # output blocks use tb as the second-minor dim, so tb must be a multiple
    # of 8 or equal to the full batch.
    for cand in (16, 8):
        if B % cand == 0:
            return cand
    return B


def _pick_tk(C):
    tk = min(512, C)
    assert C % tk == 0
    return tk


# ------------------------- Pallas kernels -------------------------

def _at_head_kernel(x_ref, w1_ref, b1_ref, w2_ref, b2_ref, rpn_ref, acc_ref,
                    *, taps_off, npos):
    """Fused atConv1 (3x3, K-tiled, 9-tap accumulation) + ReLU + atConv2 (1x1).

    x_ref:  (tb, L, tk)  bf16   padded+flattened feature map, one K tile
    w1_ref: (9, tk, 256) bf16   per-tap weight slices for this K tile
    rpn_ref:(tb, npos, 2) f32   rpn logits over the over-allocated position grid
    acc_ref:(tb, npos, 256) f32 resident accumulator across the K axis
    """
    k = pl.program_id(1)
    nk = pl.num_programs(1)

    @pl.when(k == 0)
    def _():
        acc_ref[...] = jnp.zeros_like(acc_ref)

    tb = acc_ref.shape[0]
    for i in range(tb):
        part = None
        for t, off in enumerate(taps_off):
            xt = x_ref[i, pl.ds(off, npos), :]               # (npos, tk) bf16
            d = jnp.dot(xt, w1_ref[t], preferred_element_type=jnp.float32)
            part = d if part is None else part + d
        acc_ref[i, :, :] += part

    @pl.when(k == nk - 1)
    def _():
        for i in range(tb):
            h1 = jnp.maximum(acc_ref[i, :, :] + b1_ref[...], 0.0)   # (npos, 256)
            rpn = jnp.dot(h1, w2_ref[...],
                          preferred_element_type=jnp.float32) + b2_ref[...]
            rpn_ref[i, :, :] = rpn


def _cls_head_kernel(x_ref, m_ref, w1_ref, b1_ref, fcw_ref, fcb_ref,
                     out_ref, acc_ref, *, taps_off, npos, wp, wf, hf):
    """Fused gate * clsConv1 (3x3) + ReLU + global-avg-pool + fc.

    The 0/1 attention mask (over padded flat positions) is applied to every
    loaded input tap, so the gated (M, 2048) tensor never exists in HBM.
    """
    k = pl.program_id(1)
    nk = pl.num_programs(1)

    @pl.when(k == 0)
    def _():
        acc_ref[...] = jnp.zeros_like(acc_ref)

    tb = acc_ref.shape[0]
    for i in range(tb):
        part = None
        for t, off in enumerate(taps_off):
            xt = x_ref[i, pl.ds(off, npos), :]               # (npos, tk) bf16
            mt = m_ref[i, pl.ds(off, npos), :]               # (npos, 1)  bf16
            xg = xt * mt                                     # gated tap
            d = jnp.dot(xg, w1_ref[t], preferred_element_type=jnp.float32)
            part = d if part is None else part + d
        acc_ref[i, :, :] += part

    @pl.when(k == nk - 1)
    def _():
        # only columns with (pos % Wp) < Wf are real pixels
        pos = jax.lax.broadcasted_iota(jnp.int32, (npos, 1), 0)
        valid = (pos % wp) < wf
        inv_hw = 1.0 / float(hf * wf)
        pooled = []
        for i in range(tb):
            h2 = jnp.maximum(acc_ref[i, :, :] + b1_ref[...], 0.0)   # (npos, 512)
            h2 = jnp.where(valid, h2, 0.0)
            pooled.append(jnp.sum(h2, axis=0, keepdims=True) * inv_hw)  # (1, 512)
        pooled = jnp.concatenate(pooled, axis=0)                    # (tb, 512)
        out_ref[...] = (jnp.dot(pooled, fcw_ref[...],
                                preferred_element_type=jnp.float32)
                        + fcb_ref[...])


def at_head(xp_flat, w1, b1, w2, b2, *, hf, wf):
    """rpn_full = atConv2(relu(atConv1(bbf))) over the padded position grid."""
    B, L, C = xp_flat.shape
    wp = wf + 2
    npos = hf * wp
    cmid = w1.shape[2]
    nout = w2.shape[1]
    tb = _pick_tb(B)
    tk = _pick_tk(C)
    taps_off = tuple((t // 3) * wp + (t % 3) for t in range(9))
    kern = functools.partial(_at_head_kernel, taps_off=taps_off, npos=npos)
    return pl.pallas_call(
        kern,
        out_shape=jax.ShapeDtypeStruct((B, npos, nout), jnp.float32),
        grid_spec=pltpu.PrefetchScalarGridSpec(
            num_scalar_prefetch=0,
            grid=(B // tb, C // tk),
            in_specs=[
                pl.BlockSpec((tb, L, tk), lambda b, k: (b, 0, k)),
                pl.BlockSpec((9, tk, cmid), lambda b, k: (0, k, 0)),
                pl.BlockSpec((1, cmid), lambda b, k: (0, 0)),
                pl.BlockSpec((cmid, nout), lambda b, k: (0, 0)),
                pl.BlockSpec((1, nout), lambda b, k: (0, 0)),
            ],
            out_specs=pl.BlockSpec((tb, npos, nout), lambda b, k: (b, 0, 0)),
            scratch_shapes=[pltpu.VMEM((tb, npos, cmid), jnp.float32)]),
        compiler_params=pltpu.CompilerParams(
            dimension_semantics=("parallel", "arbitrary"),
            vmem_limit_bytes=_VMEM_LIMIT),
    )(xp_flat, w1, b1, w2, b2)


def cls_head(xp_flat, maskp, w1, b1, fcw, fcb, *, hf, wf):
    """clsout = fc(GAP(relu(clsConv1(bbf * mask))))."""
    B, L, C = xp_flat.shape
    wp = wf + 2
    npos = hf * wp
    cmid = w1.shape[2]
    nout = fcw.shape[1]
    tb = _pick_tb(B)
    tk = _pick_tk(C)
    taps_off = tuple((t // 3) * wp + (t % 3) for t in range(9))
    kern = functools.partial(_cls_head_kernel, taps_off=taps_off, npos=npos,
                             wp=wp, wf=wf, hf=hf)
    return pl.pallas_call(
        kern,
        out_shape=jax.ShapeDtypeStruct((B, nout), jnp.float32),
        grid_spec=pltpu.PrefetchScalarGridSpec(
            num_scalar_prefetch=0,
            grid=(B // tb, C // tk),
            in_specs=[
                pl.BlockSpec((tb, L, tk), lambda b, k: (b, 0, k)),
                pl.BlockSpec((tb, L, 1), lambda b, k: (b, 0, 0)),
                pl.BlockSpec((9, tk, cmid), lambda b, k: (0, k, 0)),
                pl.BlockSpec((1, cmid), lambda b, k: (0, 0)),
                pl.BlockSpec((cmid, nout), lambda b, k: (0, 0)),
                pl.BlockSpec((1, nout), lambda b, k: (0, 0)),
            ],
            out_specs=pl.BlockSpec((tb, nout), lambda b, k: (b, 0)),
            scratch_shapes=[pltpu.VMEM((tb, npos, cmid), jnp.float32)]),
        compiler_params=pltpu.CompilerParams(
            dimension_semantics=("parallel", "arbitrary"),
            vmem_limit_bytes=_VMEM_LIMIT),
    )(xp_flat, maskp, w1, b1, fcw, fcb)


# ------------------------- plain-JAX glue -------------------------

_BN_EPS = 1e-5


def conv2d(x, w, stride=1, padding=0):
    return jax.lax.conv_general_dilated(
        x, w, (stride, stride),
        [(padding, padding), (padding, padding)],
        dimension_numbers=('NCHW', 'OIHW', 'NCHW'))


def bn_eval(x):
    # eval-mode BatchNorm with default params (gamma=1, beta=0, mean=0, var=1)
    return x / np.sqrt(1.0 + _BN_EPS)


def maxpool_3x3_s2(x):
    return jax.lax.reduce_window(
        x, -jnp.inf, jax.lax.max,
        window_dimensions=(1, 1, 3, 3), window_strides=(1, 1, 2, 2),
        padding=((0, 0), (0, 0), (1, 1), (1, 1)))


def bottleneck(x, blk):
    out = jax.nn.relu(bn_eval(conv2d(x, blk['w1'])))
    out = jax.nn.relu(bn_eval(conv2d(out, blk['w2'],
                                     stride=blk['stride'], padding=1)))
    out = bn_eval(conv2d(out, blk['w3']))
    if 'wd' in blk:
        idn = bn_eval(conv2d(x, blk['wd'], stride=blk['stride']))
    else:
        idn = x
    return jax.nn.relu(out + idn)


def conv3x3_w_to_taps(w):
    # (cout, cin, 3, 3) -> (9, cin, cout), tap index t = kh*3 + kw
    cout, cin, kh, kw = w.shape
    return jnp.transpose(w, (2, 3, 1, 0)).reshape(kh * kw, cin, cout)


def pad_flatten_nhwc(x_nhwc):
    # pad: top 1 (conv halo), bottom 2 (halo + flat-offset margin), left/right 1,
    # then flatten spatial -> (B, (Hf+3)*(Wf+2), C)
    B, Hf, Wf, C = x_nhwc.shape
    xp = jnp.pad(x_nhwc, ((0, 0), (1, 2), (1, 1), (0, 0)))
    return xp.reshape(B, (Hf + 3) * (Wf + 2), C)


def init_params(key):
    keys = iter(jax.random.split(key, 128))

    def conv_w(cout, cin, kh, kw):
        std = 1.0 / np.sqrt(cin * kh * kw)
        return (std * jax.random.normal(next(keys),
                                        (cout, cin, kh, kw))).astype(jnp.float32)

    def bias(n):
        return (0.01 * jax.random.normal(next(keys), (n,))).astype(jnp.float32)

    p = {'conv1': conv_w(64, 3, 7, 7)}
    blocks = []
    inplanes = 64
    for planes, nblk, stride in [(64, 3, 1), (128, 4, 2), (256, 6, 2), (512, 3, 2)]:
        for i in range(nblk):
            s = stride if i == 0 else 1
            blk = {'w1': conv_w(planes, inplanes, 1, 1),
                   'w2': conv_w(planes, planes, 3, 3),
                   'w3': conv_w(planes * 4, planes, 1, 1),
                   'stride': s}
            if i == 0:
                blk['wd'] = conv_w(planes * 4, inplanes, 1, 1)
            blocks.append(blk)
            inplanes = planes * 4
    p['blocks'] = blocks

    # Head weights in PyTorch layout, reordered ONCE here to kernel layouts
    # (feedback: hoist weight reorders out of the forward pass; bf16 for MXU).
    atConv1_w = conv_w(256, 2048, 3, 3); atConv1_b = bias(256)
    atConv2_w = conv_w(2, 256, 1, 1);    atConv2_b = bias(2)
    clsConv1_w = conv_w(512, 2048, 3, 3); clsConv1_b = bias(512)
    fc_w = ((1.0 / np.sqrt(512)) *
            jax.random.normal(next(keys), (2, 512))).astype(jnp.float32)
    fc_b = bias(2)

    p['at_w1'] = conv3x3_w_to_taps(atConv1_w).astype(jnp.bfloat16)   # (9,2048,256)
    p['at_b1'] = atConv1_b.reshape(1, 256)
    p['at_w2'] = jnp.transpose(atConv2_w[:, :, 0, 0], (1, 0))        # (256,2) f32
    p['at_b2'] = atConv2_b.reshape(1, 2)
    p['cls_w1'] = conv3x3_w_to_taps(clsConv1_w).astype(jnp.bfloat16)  # (9,2048,512)
    p['cls_b1'] = clsConv1_b.reshape(1, 512)
    p['fc_wT'] = jnp.transpose(fc_w)                                  # (512,2)
    p['fc_b2d'] = fc_b.reshape(1, 2)
    return p


def atclass_forward(params, x, rpn_th=0.1):
    # ResNet50 feature extractor (resnet_layer = resnet.children()[:-2])
    # TODO(synk): backbone kept as plain-JAX lax.conv glue (53 convs); only the
    # ATClass / ATRestNet-head hot path is implemented as Pallas kernels.
    y = jax.nn.relu(bn_eval(conv2d(x, params['conv1'], stride=2, padding=3)))
    y = maxpool_3x3_s2(y)
    for blk in params['blocks']:
        y = bottleneck(y, blk)
    bbf = y                                            # (B, 2048, Hf, Wf) NCHW

    B, C, Hf, Wf = bbf.shape
    Wp = Wf + 2
    bbf_nhwc = jnp.transpose(bbf, (0, 2, 3, 1))        # (B, Hf, Wf, 2048)
    # single padded + flattened bf16 copy of bbf, shared by BOTH head convs
    xp_flat = pad_flatten_nhwc(bbf_nhwc).astype(jnp.bfloat16)  # (B, (Hf+3)*Wp, 2048)

    # --- ATRestNet head: fused atConv1(3x3)+ReLU+atConv2(1x1) -> rpn ---
    rpn_full = at_head(xp_flat, params['at_w1'], params['at_b1'],
                       params['at_w2'], params['at_b2'], hf=Hf, wf=Wf)
    rpn_nhwc = rpn_full.reshape(B, Hf, Wp, 2)[:, :, :Wf, :]      # drop invalid cols
    rpn = jnp.transpose(rpn_nhwc, (0, 3, 1, 2))                  # (B, 2, Hf, Wf)

    # --- attention gate (logit space == softmax(rpn,ch)[:,1] >= th) ---
    logit_th = float(np.log(rpn_th / (1.0 - rpn_th)))
    mask = (rpn_nhwc[..., 1] - rpn_nhwc[..., 0] >= logit_th).astype(jnp.bfloat16)
    maskp = jnp.pad(mask, ((0, 0), (1, 2), (1, 1)))              # padded-flat layout
    maskp = maskp.reshape(B, (Hf + 3) * Wp, 1)

    # --- classifier head: gate * clsConv1(3x3) + ReLU -> GAP -> fc (all fused) ---
    clsout = cls_head(xp_flat, maskp, params['cls_w1'], params['cls_b1'],
                      params['fc_wT'], params['fc_b2d'], hf=Hf, wf=Wf)   # (B, 2)
    return clsout, rpn


if __name__ == "__main__":
    key = jax.random.PRNGKey(0)
    pkey, xkey = jax.random.split(key)
    params = init_params(pkey)
    # small NCHW image; ResNet50 downsamples by 32 -> 2x2 feature map
    x = jax.random.normal(xkey, (2, 3, 64, 64), jnp.float32)
    clsout, rpn = atclass_forward(params, x)
    jax.block_until_ready((clsout, rpn))
    assert clsout.shape == (2, 2)
    assert rpn.shape == (2, 2, 2, 2)
    assert jnp.all(jnp.isfinite(clsout)) and jnp.all(jnp.isfinite(rpn))
    print("KERNEL_OK")
</pallas_src>

<mosaic_0001>
module attributes {stable_mosaic.version = 11 : i64} {
  func.func @_at_head_kernel(%arg0: i32, %arg1: i32, %arg2: memref<2x20x512xbf16, #tpu.memory_space<vmem>>, %arg3: memref<9x512x256xbf16, #tpu.memory_space<vmem>>, %arg4: memref<1x256xf32, #tpu.memory_space<vmem>>, %arg5: memref<256x2xf32, #tpu.memory_space<vmem>>, %arg6: memref<1x2xf32, #tpu.memory_space<vmem>>, %arg7: memref<2x8x2xf32, #tpu.memory_space<vmem>>, %arg8: memref<2x8x256xf32, #tpu.memory_space<vmem>>) attributes {dimension_semantics = [#tpu.dimension_semantics<parallel>, #tpu.dimension_semantics<arbitrary>], iteration_bounds = array<i64: 1, 4>, scalar_prefetch = 0 : i64, scratch_operands = 1 : i64, tpu.core_type = #tpu.core_type<tc>, window_params = [{transform_indices = @transform_0, window_bounds = array<i64: 2, 20, 512>}, {transform_indices = @transform_1, window_bounds = array<i64: 9, 512, 256>}, {pipeline_mode = #tpu.pipeline_mode<synchronous>, transform_indices = @transform_2, window_bounds = array<i64: 1, 256>}, {pipeline_mode = #tpu.pipeline_mode<synchronous>, transform_indices = @transform_3, window_bounds = array<i64: 256, 2>}, {pipeline_mode = #tpu.pipeline_mode<synchronous>, transform_indices = @transform_4, window_bounds = array<i64: 1, 2>}, {transform_indices = @transform_5, window_bounds = array<i64: 2, 8, 2>}]} {
    %c0_i32 = arith.constant 0 : i32
    %0 = arith.cmpi eq, %arg1, %c0_i32 : i32
    %1 = arith.extui %0 : i1 to i32
    %c0_i32_0 = arith.constant 0 : i32
    %2 = arith.cmpi ne, %1, %c0_i32_0 : i32
    scf.if %2 {
      %cst_128 = arith.constant 0.000000e+00 : f32
      %124 = vector.broadcast %cst_128 : f32 to vector<2x8x256xf32>
      %c0_129 = arith.constant 0 : index
      %c0_130 = arith.constant 0 : index
      %c0_131 = arith.constant 0 : index
      %125 = vector.load %arg8[%c0_129, %c0_130, %c0_131] : memref<2x8x256xf32, #tpu.memory_space<vmem>>, vector<2x8x256xf32>
      tpu.vector_store %arg8[%c0_129, %c0_130, %c0_131], %124 {strides = array<i32>} : memref<2x8x256xf32, #tpu.memory_space<vmem>>, vector<2x8x256xf32>,
    } else {
    }
    %c0 = arith.constant 0 : index
    %c0_1 = arith.constant 0 : index
    %c0_2 = arith.constant 0 : index
    %3 = vector.load %arg2[%c0, %c0_1, %c0_2] : memref<2x20x512xbf16, #tpu.memory_space<vmem>>, vector<1x8x512xbf16>
    %4 = vector.shape_cast %3 : vector<1x8x512xbf16> to vector<8x512xbf16>
    %c0_3 = arith.constant 0 : index
    %c0_4 = arith.constant 0 : index
    %c0_5 = arith.constant 0 : index
    %5 = vector.load %arg3[%c0_3, %c0_4, %c0_5] : memref<9x512x256xbf16, #tpu.memory_space<vmem>>, vector<1x512x256xbf16>
    %6 = vector.shape_cast %5 : vector<1x512x256xbf16> to vector<512x256xbf16>
    %cst = arith.constant dense<0.000000e+00> : vector<8x256xf32>
    %7 = tpu.matmul %4, %6, %cst {dimension_numbers = #tpu.dot_dimension_numbers<[1], [0], [0], [1], [0, 0, 1, 1], [], []>} : vector<8x512xbf16>, vector<512x256xbf16>, vector<8x256xf32> -> vector<8x256xf32>
    %c0_6 = arith.constant 0 : index
    %c1 = arith.constant 1 : index
    %c0_7 = arith.constant 0 : index
    %8 = vector.load %arg2[%c0_6, %c1, %c0_7] : memref<2x20x512xbf16, #tpu.memory_space<vmem>>, vector<1x8x512xbf16>
    %9 = vector.shape_cast %8 : vector<1x8x512xbf16> to vector<8x512xbf16>
    %c1_8 = arith.constant 1 : index
    %c0_9 = arith.constant 0 : index
    %c0_10 = arith.constant 0 : index
    %10 = vector.load %arg3[%c1_8, %c0_9, %c0_10] : memref<9x512x256xbf16, #tpu.memory_space<vmem>>, vector<1x512x256xbf16>
    %11 = vector.shape_cast %10 : vector<1x512x256xbf16> to vector<512x256xbf16>
    %cst_11 = arith.constant dense<0.000000e+00> : vector<8x256xf32>
    %12 = tpu.matmul %9, %11, %cst_11 {dimension_numbers = #tpu.dot_dimension_numbers<[1], [0], [0], [1], [0, 0, 1, 1], [], []>} : vector<8x512xbf16>, vector<512x256xbf16>, vector<8x256xf32> -> vector<8x256xf32>
    %13 = arith.addf %7, %12 : vector<8x256xf32>
    %c0_12 = arith.constant 0 : index
    %c2 = arith.constant 2 : index
    %c0_13 = arith.constant 0 : index
    %14 = vector.load %arg2[%c0_12, %c2, %c0_13] : memref<2x20x512xbf16, #tpu.memory_space<vmem>>, vector<1x8x512xbf16>
    %15 = vector.shape_cast %14 : vector<1x8x512xbf16> to vector<8x512xbf16>
    %c2_14 = arith.constant 2 : index
    %c0_15 = arith.constant 0 : index
    %c0_16 = arith.constant 0 : index
    %16 = vector.load %arg3[%c2_14, %c0_15, %c0_16] : memref<9x512x256xbf16, #tpu.memory_space<vmem>>, vector<1x512x256xbf16>
    %17 = vector.shape_cast %16 : vector<1x512x256xbf16> to vector<512x256xbf16>
    %cst_17 = arith.constant dense<0.000000e+00> : vector<8x256xf32>
    %18 = tpu.matmul %15, %17, %cst_17 {dimension_numbers = #tpu.dot_dimension_numbers<[1], [0], [0], [1], [0, 0, 1, 1], [], []>} : vector<8x512xbf16>, vector<512x256xbf16>, vector<8x256xf32> -> vector<8x256xf32>
    %19 = arith.addf %13, %18 : vector<8x256xf32>
    %c0_18 = arith.constant 0 : index
    %c4 = arith.constant 4 : index
    %c0_19 = arith.constant 0 : index
    %20 = vector.load %arg2[%c0_18, %c4, %c0_19] : memref<2x20x512xbf16, #tpu.memory_space<vmem>>, vector<1x8x512xbf16>
    %21 = vector.shape_cast %20 : vector<1x8x512xbf16> to vector<8x512xbf16>
    %c3 = arith.constant 3 : index
    %c0_20 = arith.constant 0 : index
    %c0_21 = arith.constant 0 : index
    %22 = vector.load %arg3[%c3, %c0_20, %c0_21] : memref<9x512x256xbf16, #tpu.memory_space<vmem>>, vector<1x512x256xbf16>
    %23 = vector.shape_cast %22 : vector<1x512x256xbf16> to vector<512x256xbf16>
    %cst_22 = arith.constant dense<0.000000e+00> : vector<8x256xf32>
    %24 = tpu.matmul %21, %23, %cst_22 {dimension_numbers = #tpu.dot_dimension_numbers<[1], [0], [0], [1], [0, 0, 1, 1], [], []>} : vector<8x512xbf16>, vector<512x256xbf16>, vector<8x256xf32> -> vector<8x256xf32>
    %25 = arith.addf %19, %24 : vector<8x256xf32>
    %c0_23 = arith.constant 0 : index
    %c5 = arith.constant 5 : index
    %c0_24 = arith.constant 0 : index
    %26 = vector.load %arg2[%c0_23, %c5, %c0_24] : memref<2x20x512xbf16, #tpu.memory_space<vmem>>, vector<1x8x512xbf16>
    %27 = vector.shape_cast %26 : vector<1x8x512xbf16> to vector<8x512xbf16>
    %c4_25 = arith.constant 4 : index
    %c0_26 = arith.constant 0 : index
    %c0_27 = arith.constant 0 : index
    %28 = vector.load %arg3[%c4_25, %c0_26, %c0_27] : memref<9x512x256xbf16, #tpu.memory_space<vmem>>, vector<1x512x256xbf16>
    %29 = vector.shape_cast %28 : vector<1x512x256xbf16> to vector<512x256xbf16>
    %cst_28 = arith.constant dense<0.000000e+00> : vector<8x256xf32>
    %30 = tpu.matmul %27, %29, %cst_28 {dimension_numbers = #tpu.dot_dimension_numbers<[1], [0], [0], [1], [0, 0, 1, 1], [], []>} : vector<8x512xbf16>, vector<512x256xbf16>, vector<8x256xf32> -> vector<8x256xf32>
    %31 = arith.addf %25, %30 : vector<8x256xf32>
    %c0_29 = arith.constant 0 : index
    %c6 = arith.constant 6 : index
    %c0_30 = arith.constant 0 : index
    %32 = vector.load %arg2[%c0_29, %c6, %c0_30] : memref<2x20x512xbf16, #tpu.memory_space<vmem>>, vector<1x8x512xbf16>
    %33 = vector.shape_cast %32 : vector<1x8x512xbf16> to vector<8x512xbf16>
    %c5_31 = arith.constant 5 : index
    %c0_32 = arith.constant 0 : index
    %c0_33 = arith.constant 0 : index
    %34 = vector.load %arg3[%c5_31, %c0_32, %c0_33] : memref<9x512x256xbf16, #tpu.memory_space<vmem>>, vector<1x512x256xbf16>
    %35 = vector.shape_cast %34 : vector<1x512x256xbf16> to vector<512x256xbf16>
    %cst_34 = arith.constant dense<0.000000e+00> : vector<8x256xf32>
    %36 = tpu.matmul %33, %35, %cst_34 {dimension_numbers = #tpu.dot_dimension_numbers<[1], [0], [0], [1], [0, 0, 1, 1], [], []>} : vector<8x512xbf16>, vector<512x256xbf16>, vector<8x256xf32> -> vector<8x256xf32>
    %37 = arith.addf %31, %36 : vector<8x256xf32>
    %c0_35 = arith.constant 0 : index
    %c8 = arith.constant 8 : index
    %c0_36 = arith.constant 0 : index
    %38 = vector.load %arg2[%c0_35, %c8, %c0_36] : memref<2x20x512xbf16, #tpu.memory_space<vmem>>, vector<1x8x512xbf16>
    %39 = vector.shape_cast %38 : vector<1x8x512xbf16> to vector<8x512xbf16>
    %c6_37 = arith.constant 6 : index
    %c0_38 = arith.constant 0 : index
    %c0_39 = arith.constant 0 : index
    %40 = vector.load %arg3[%c6_37, %c0_38, %c0_39] : memref<9x512x256xbf16, #tpu.memory_space<vmem>>, vector<1x512x256xbf16>
    %41 = vector.shape_cast %40 : vector<1x512x256xbf16> to vector<512x256xbf16>
    %cst_40 = arith.constant dense<0.000000e+00> : vector<8x256xf32>
    %42 = tpu.matmul %39, %41, %cst_40 {dimension_numbers = #tpu.dot_dimension_numbers<[1], [0], [0], [1], [0, 0, 1, 1], [], []>} : vector<8x512xbf16>, vector<512x256xbf16>, vector<8x256xf32> -> vector<8x256xf32>
    %43 = arith.addf %37, %42 : vector<8x256xf32>
    %c0_41 = arith.constant 0 : index
    %c9 = arith.constant 9 : index
    %c0_42 = arith.constant 0 : index
    %44 = vector.load %arg2[%c0_41, %c9, %c0_42] : memref<2x20x512xbf16, #tpu.memory_space<vmem>>, vector<1x8x512xbf16>
    %45 = vector.shape_cast %44 : vector<1x8x512xbf16> to vector<8x512xbf16>
    %c7 = arith.constant 7 : index
    %c0_43 = arith.constant 0 : index
    %c0_44 = arith.constant 0 : index
    %46 = vector.load %arg3[%c7, %c0_43, %c0_44] : memref<9x512x256xbf16, #tpu.memory_space<vmem>>, vector<1x512x256xbf16>
    %47 = vector.shape_cast %46 : vector<1x512x256xbf16> to vector<512x256xbf16>
    %cst_45 = arith.constant dense<0.000000e+00> : vector<8x256xf32>
    %48 = tpu.matmul %45, %47, %cst_45 {dimension_numbers = #tpu.dot_dimension_numbers<[1], [0], [0], [1], [0, 0, 1, 1], [], []>} : vector<8x512xbf16>, vector<512x256xbf16>, vector<8x256xf32> -> vector<8x256xf32>
    %49 = arith.addf %43, %48 : vector<8x256xf32>
    %c0_46 = arith.constant 0 : index
    %c10 = arith.constant 10 : index
    %c0_47 = arith.constant 0 : index
    %50 = vector.load %arg2[%c0_46, %c10, %c0_47] : memref<2x20x512xbf16, #tpu.memory_space<vmem>>, vector<1x8x512xbf16>
    %51 = vector.shape_cast %50 : vector<1x8x512xbf16> to vector<8x512xbf16>
    %c8_48 = arith.constant 8 : index
    %c0_49 = arith.constant 0 : index
    %c0_50 = arith.constant 0 : index
    %52 = vector.load %arg3[%c8_48, %c0_49, %c0_50] : memref<9x512x256xbf16, #tpu.memory_space<vmem>>, vector<1x512x256xbf16>
    %53 = vector.shape_cast %52 : vector<1x512x256xbf16> to vector<512x256xbf16>
    %cst_51 = arith.constant dense<0.000000e+00> : vector<8x256xf32>
    %54 = tpu.matmul %51, %53, %cst_51 {dimension_numbers = #tpu.dot_dimension_numbers<[1], [0], [0], [1], [0, 0, 1, 1], [], []>} : vector<8x512xbf16>, vector<512x256xbf16>, vector<8x256xf32> -> vector<8x256xf32>
    %55 = arith.addf %49, %54 : vector<8x256xf32>
    %c0_52 = arith.constant 0 : index
    %c0_53 = arith.constant 0 : index
    %c0_54 = arith.constant 0 : index
    %56 = vector.load %arg8[%c0_52, %c0_53, %c0_54] : memref<2x8x256xf32, #tpu.memory_space<vmem>>, vector<1x8x256xf32>
    %57 = vector.shape_cast %56 : vector<1x8x256xf32> to vector<8x256xf32>
    %58 = arith.addf %57, %55 : vector<8x256xf32>
    %c0_55 = arith.constant 0 : index
    %c0_56 = arith.constant 0 : index
    %c0_57 = arith.constant 0 : index
    %59 = vector.load %arg8[%c0_55, %c0_56, %c0_57] : memref<2x8x256xf32, #tpu.memory_space<vmem>>, vector<1x8x256xf32>
    %60 = vector.shape_cast %59 : vector<1x8x256xf32> to vector<8x256xf32>
    %61 = vector.shape_cast %58 : vector<8x256xf32> to vector<1x8x256xf32>
    tpu.vector_store %arg8[%c0_55, %c0_56, %c0_57], %61 {strides = array<i32>} : memref<2x8x256xf32, #tpu.memory_space<vmem>>, vector<1x8x256xf32>,
    %c1_58 = arith.constant 1 : index
    %c0_59 = arith.constant 0 : index
    %c0_60 = arith.constant 0 : index
    %62 = vector.load %arg2[%c1_58, %c0_59, %c0_60] : memref<2x20x512xbf16, #tpu.memory_space<vmem>>, vector<1x8x512xbf16>
    %63 = vector.shape_cast %62 : vector<1x8x512xbf16> to vector<8x512xbf16>
    %c0_61 = arith.constant 0 : index
    %c0_62 = arith.constant 0 : index
    %c0_63 = arith.constant 0 : index
    %64 = vector.load %arg3[%c0_61, %c0_62, %c0_63] : memref<9x512x256xbf16, #tpu.memory_space<vmem>>, vector<1x512x256xbf16>
    %65 = vector.shape_cast %64 : vector<1x512x256xbf16> to vector<512x256xbf16>
    %cst_64 = arith.constant dense<0.000000e+00> : vector<8x256xf32>
    %66 = tpu.matmul %63, %65, %cst_64 {dimension_numbers = #tpu.dot_dimension_numbers<[1], [0], [0], [1], [0, 0, 1, 1], [], []>} : vector<8x512xbf16>, vector<512x256xbf16>, vector<8x256xf32> -> vector<8x256xf32>
    %c1_65 = arith.constant 1 : index
    %c1_66 = arith.constant 1 : index
    %c0_67 = arith.constant 0 : index
    %67 = vector.load %arg2[%c1_65, %c1_66, %c0_67] : memref<2x20x512xbf16, #tpu.memory_space<vmem>>, vector<1x8x512xbf16>
    %68 = vector.shape_cast %67 : vector<1x8x512xbf16> to vector<8x512xbf16>
    %c1_68 = arith.constant 1 : index
    %c0_69 = arith.constant 0 : index
    %c0_70 = arith.constant 0 : index
    %69 = vector.load %arg3[%c1_68, %c0_69, %c0_70] : memref<9x512x256xbf16, #tpu.memory_space<vmem>>, vector<1x512x256xbf16>
    %70 = vector.shape_cast %69 : vector<1x512x256xbf16> to vector<512x256xbf16>
    %cst_71 = arith.constant dense<0.000000e+00> : vector<8x256xf32>
    %71 = tpu.matmul %68, %70, %cst_71 {dimension_numbers = #tpu.dot_dimension_numbers<[1], [0], [0], [1], [0, 0, 1, 1], [], []>} : vector<8x512xbf16>, vector<512x256xbf16>, vector<8x256xf32> -> vector<8x256xf32>
    %72 = arith.addf %66, %71 : vector<8x256xf32>
    %c1_72 = arith.constant 1 : index
    %c2_73 = arith.constant 2 : index
    %c0_74 = arith.constant 0 : index
    %73 = vector.load %arg2[%c1_72, %c2_73, %c0_74] : memref<2x20x512xbf16, #tpu.memory_space<vmem>>, vector<1x8x512xbf16>
    %74 = vector.shape_cast %73 : vector<1x8x512xbf16> to vector<8x512xbf16>
    %c2_75 = arith.constant 2 : index
    %c0_76 = arith.constant 0 : index
    %c0_77 = arith.constant 0 : index
    %75 = vector.load %arg3[%c2_75, %c0_76, %c0_77] : memref<9x512x256xbf16, #tpu.memory_space<vmem>>, vector<1x512x256xbf16>
    %76 = vector.shape_cast %75 : vector<1x512x256xbf16> to vector<512x256xbf16>
    %cst_78 = arith.constant dense<0.000000e+00> : vector<8x256xf32>
    %77 = tpu.matmul %74, %76, %cst_78 {dimension_numbers = #tpu.dot_dimension_numbers<[1], [0], [0], [1], [0, 0, 1, 1], [], []>} : vector<8x512xbf16>, vector<512x256xbf16>, vector<8x256xf32> -> vector<8x256xf32>
    %78 = arith.addf %72, %77 : vector<8x256xf32>
    %c1_79 = arith.constant 1 : index
    %c4_80 = arith.constant 4 : index
    %c0_81 = arith.constant 0 : index
    %79 = vector.load %arg2[%c1_79, %c4_80, %c0_81] : memref<2x20x512xbf16, #tpu.memory_space<vmem>>, vector<1x8x512xbf16>
    %80 = vector.shape_cast %79 : vector<1x8x512xbf16> to vector<8x512xbf16>
    %c3_82 = arith.constant 3 : index
    %c0_83 = arith.constant 0 : index
    %c0_84 = arith.constant 0 : index
    %81 = vector.load %arg3[%c3_82, %c0_83, %c0_84] : memref<9x512x256xbf16, #tpu.memory_space<vmem>>, vector<1x512x256xbf16>
    %82 = vector.shape_cast %81 : vector<1x512x256xbf16> to vector<512x256xbf16>
    %cst_85 = arith.constant dense<0.000000e+00> : vector<8x256xf32>
    %83 = tpu.matmul %80, %82, %cst_85 {dimension_numbers = #tpu.dot_dimension_numbers<[1], [0], [0], [1], [0, 0, 1, 1], [], []>} : vector<8x512xbf16>, vector<512x256xbf16>, vector<8x256xf32> -> vector<8x256xf32>
    %84 = arith.addf %78, %83 : vector<8x256xf32>
    %c1_86 = arith.constant 1 : index
    %c5_87 = arith.constant 5 : index
    %c0_88 = arith.constant 0 : index
    %85 = vector.load %arg2[%c1_86, %c5_87, %c0_88] : memref<2x20x512xbf16, #tpu.memory_space<vmem>>, vector<1x8x512xbf16>
    %86 = vector.shape_cast %85 : vector<1x8x512xbf16> to vector<8x512xbf16>
    %c4_89 = arith.constant 4 : index
    %c0_90 = arith.constant 0 : index
    %c0_91 = arith.constant 0 : index
    %87 = vector.load %arg3[%c4_89, %c0_90, %c0_91] : memref<9x512x256xbf16, #tpu.memory_space<vmem>>, vector<1x512x256xbf16>
    %88 = vector.shape_cast %87 : vector<1x512x256xbf16> to vector<512x256xbf16>
    %cst_92 = arith.constant dense<0.000000e+00> : vector<8x256xf32>
    %89 = tpu.matmul %86, %88, %cst_92 {dimension_numbers = #tpu.dot_dimension_numbers<[1], [0], [0], [1], [0, 0, 1, 1], [], []>} : vector<8x512xbf16>, vector<512x256xbf16>, vector<8x256xf32> -> vector<8x256xf32>
    %90 = arith.addf %84, %89 : vector<8x256xf32>
    %c1_93 = arith.constant 1 : index
    %c6_94 = arith.constant 6 : index
    %c0_95 = arith.constant 0 : index
    %91 = vector.load %arg2[%c1_93, %c6_94, %c0_95] : memref<2x20x512xbf16, #tpu.memory_space<vmem>>, vector<1x8x512xbf16>
    %92 = vector.shape_cast %91 : vector<1x8x512xbf16> to vector<8x512xbf16>
    %c5_96 = arith.constant 5 : index
    %c0_97 = arith.constant 0 : index
    %c0_98 = arith.constant 0 : index
    %93 = vector.load %arg3[%c5_96, %c0_97, %c0_98] : memref<9x512x256xbf16, #tpu.memory_space<vmem>>, vector<1x512x256xbf16>
    %94 = vector.shape_cast %93 : vector<1x512x256xbf16> to vector<512x256xbf16>
    %cst_99 = arith.constant dense<0.000000e+00> : vector<8x256xf32>
    %95 = tpu.matmul %92, %94, %cst_99 {dimension_numbers = #tpu.dot_dimension_numbers<[1], [0], [0], [1], [0, 0, 1, 1], [], []>} : vector<8x512xbf16>, vector<512x256xbf16>, vector<8x256xf32> -> vector<8x256xf32>
    %96 = arith.addf %90, %95 : vector<8x256xf32>
    %c1_100 = arith.constant 1 : index
    %c8_101 = arith.constant 8 : index
    %c0_102 = arith.constant 0 : index
    %97 = vector.load %arg2[%c1_100, %c8_101, %c0_102] : memref<2x20x512xbf16, #tpu.memory_space<vmem>>, vector<1x8x512xbf16>
    %98 = vector.shape_cast %97 : vector<1x8x512xbf16> to vector<8x512xbf16>
    %c6_103 = arith.constant 6 : index
    %c0_104 = arith.constant 0 : index
    %c0_105 = arith.constant 0 : index
    %99 = vector.load %arg3[%c6_103, %c0_104, %c0_105] : memref<9x512x256xbf16, #tpu.memory_space<vmem>>, vector<1x512x256xbf16>
    %100 = vector.shape_cast %99 : vector<1x512x256xbf16> to vector<512x256xbf16>
    %cst_106 = arith.constant dense<0.000000e+00> : vector<8x256xf32>
    %101 = tpu.matmul %98, %100, %cst_106 {dimension_numbers = #tpu.dot_dimension_numbers<[1], [0], [0], [1], [0, 0, 1, 1], [], []>} : vector<8x512xbf16>, vector<512x256xbf16>, vector<8x256xf32> -> vector<8x256xf32>
    %102 = arith.addf %96, %101 : vector<8x256xf32>
    %c1_107 = arith.constant 1 : index
    %c9_108 = arith.constant 9 : index
    %c0_109 = arith.constant 0 : index
    %103 = vector.load %arg2[%c1_107, %c9_108, %c0_109] : memref<2x20x512xbf16, #tpu.memory_space<vmem>>, vector<1x8x512xbf16>
    %104 = vector.shape_cast %103 : vector<1x8x512xbf16> to vector<8x512xbf16>
    %c7_110 = arith.constant 7 : index
    %c0_111 = arith.constant 0 : index
    %c0_112 = arith.constant 0 : index
    %105 = vector.load %arg3[%c7_110, %c0_111, %c0_112] : memref<9x512x256xbf16, #tpu.memory_space<vmem>>, vector<1x512x256xbf16>
    %106 = vector.shape_cast %105 : vector<1x512x256xbf16> to vector<512x256xbf16>
    %cst_113 = arith.constant dense<0.000000e+00> : vector<8x256xf32>
    %107 = tpu.matmul %104, %106, %cst_113 {dimension_numbers = #tpu.dot_dimension_numbers<[1], [0], [0], [1], [0, 0, 1, 1], [], []>} : vector<8x512xbf16>, vector<512x256xbf16>, vector<8x256xf32> -> vector<8x256xf32>
    %108 = arith.addf %102, %107 : vector<8x256xf32>
    %c1_114 = arith.constant 1 : index
    %c10_115 = arith.constant 10 : index
    %c0_116 = arith.constant 0 : index
    %109 = vector.load %arg2[%c1_114, %c10_115, %c0_116] : memref<2x20x512xbf16, #tpu.memory_space<vmem>>, vector<1x8x512xbf16>
    %110 = vector.shape_cast %109 : vector<1x8x512xbf16> to vector<8x512xbf16>
    %c8_117 = arith.constant 8 : index
    %c0_118 = arith.constant 0 : index
    %c0_119 = arith.constant 0 : index
    %111 = vector.load %arg3[%c8_117, %c0_118, %c0_119] : memref<9x512x256xbf16, #tpu.memory_space<vmem>>, vector<1x512x256xbf16>
    %112 = vector.shape_cast %111 : vector<1x512x256xbf16> to vector<512x256xbf16>
    %cst_120 = arith.constant dense<0.000000e+00> : vector<8x256xf32>
    %113 = tpu.matmul %110, %112, %cst_120 {dimension_numbers = #tpu.dot_dimension_numbers<[1], [0], [0], [1], [0, 0, 1, 1], [], []>} : vector<8x512xbf16>, vector<512x256xbf16>, vector<8x256xf32> -> vector<8x256xf32>
    %114 = arith.addf %108, %113 : vector<8x256xf32>
    %c1_121 = arith.constant 1 : index
    %c0_122 = arith.constant 0 : index
    %c0_123 = arith.constant 0 : index
    %115 = vector.load %arg8[%c1_121, %c0_122, %c0_123] : memref<2x8x256xf32, #tpu.memory_space<vmem>>, vector<1x8x256xf32>
    %116 = vector.shape_cast %115 : vector<1x8x256xf32> to vector<8x256xf32>
    %117 = arith.addf %116, %114 : vector<8x256xf32>
    %c1_124 = arith.constant 1 : index
    %c0_125 = arith.constant 0 : index
    %c0_126 = arith.constant 0 : index
    %118 = vector.load %arg8[%c1_124, %c0_125, %c0_126] : memref<2x8x256xf32, #tpu.memory_space<vmem>>, vector<1x8x256xf32>
    %119 = vector.shape_cast %118 : vector<1x8x256xf32> to vector<8x256xf32>
    %120 = vector.shape_cast %117 : vector<8x256xf32> to vector<1x8x256xf32>
    tpu.vector_store %arg8[%c1_124, %c0_125, %c0_126], %120 {strides = array<i32>} : memref<2x8x256xf32, #tpu.memory_space<vmem>>, vector<1x8x256xf32>,
    %c3_i32 = arith.constant 3 : i32
    %121 = arith.cmpi eq, %arg1, %c3_i32 : i32
    %122 = arith.extui %121 : i1 to i32
    %c0_i32_127 = arith.constant 0 : i32
    %123 = arith.cmpi ne, %122, %c0_i32_127 : i32
    scf.if %123 {
      %c0_128 = arith.constant 0 : index
      %c0_129 = arith.constant 0 : index
      %c0_130 = arith.constant 0 : index
      %124 = vector.load %arg8[%c0_128, %c0_129, %c0_130] : memref<2x8x256xf32, #tpu.memory_space<vmem>>, vector<1x8x256xf32>
      %125 = vector.shape_cast %124 : vector<1x8x256xf32> to vector<8x256xf32>
      %c0_131 = arith.constant 0 : index
      %c0_132 = arith.constant 0 : index
      %126 = vector.load %arg4[%c0_131, %c0_132] : memref<1x256xf32, #tpu.memory_space<vmem>>, vector<1x256xf32>
      %127 = vector.broadcast %126 : vector<1x256xf32> to vector<8x256xf32>
      %128 = arith.addf %125, %127 : vector<8x256xf32>
      %cst_133 = arith.constant 0.000000e+00 : f32
      %129 = vector.broadcast %cst_133 : f32 to vector<8x256xf32>
      %130 = arith.maximumf %128, %129 : vector<8x256xf32>
      %c0_134 = arith.constant 0 : index
      %c0_135 = arith.constant 0 : index
      %131 = vector.load %arg5[%c0_134, %c0_135] : memref<256x2xf32, #tpu.memory_space<vmem>>, vector<256x2xf32>
      %cst_136 = arith.constant dense<0.000000e+00> : vector<8x2xf32>
      %132 = tpu.matmul %130, %131, %cst_136 {dimension_numbers = #tpu.dot_dimension_numbers<[1], [0], [0], [1], [0, 0, 1, 1], [], []>} : vector<8x256xf32>, vector<256x2xf32>, vector<8x2xf32> -> vector<8x2xf32>
      %c0_137 = arith.constant 0 : index
      %c0_138 = arith.constant 0 : index
      %133 = vector.load %arg6[%c0_137, %c0_138] : memref<1x2xf32, #tpu.memory_space<vmem>>, vector<1x2xf32>
      %134 = vector.broadcast %133 : vector<1x2xf32> to vector<8x2xf32>
      %135 = arith.addf %132, %134 : vector<8x2xf32>
      %c0_139 = arith.constant 0 : index
      %c0_140 = arith.constant 0 : index
      %c0_141 = arith.constant 0 : index
      %136 = vector.load %arg7[%c0_139, %c0_140, %c0_141] : memref<2x8x2xf32, #tpu.memory_space<vmem>>, vector<1x8x2xf32>
      %137 = vector.shape_cast %136 : vector<1x8x2xf32> to vector<8x2xf32>
      %138 = vector.shape_cast %135 : vector<8x2xf32> to vector<1x8x2xf32>
      tpu.vector_store %arg7[%c0_139, %c0_140, %c0_141], %138 {strides = array<i32>} : memref<2x8x2xf32, #tpu.memory_space<vmem>>, vector<1x8x2xf32>,
      %c1_142 = arith.constant 1 : index
      %c0_143 = arith.constant 0 : index
      %c0_144 = arith.constant 0 : index
      %139 = vector.load %arg8[%c1_142, %c0_143, %c0_144] : memref<2x8x256xf32, #tpu.memory_space<vmem>>, vector<1x8x256xf32>
      %140 = vector.shape_cast %139 : vector<1x8x256xf32> to vector<8x256xf32>
      %c0_145 = arith.constant 0 : index
      %c0_146 = arith.constant 0 : index
      %141 = vector.load %arg4[%c0_145, %c0_146] : memref<1x256xf32, #tpu.memory_space<vmem>>, vector<1x256xf32>
      %142 = vector.broadcast %141 : vector<1x256xf32> to vector<8x256xf32>
      %143 = arith.addf %140, %142 : vector<8x256xf32>
      %cst_147 = arith.constant 0.000000e+00 : f32
      %144 = vector.broadcast %cst_147 : f32 to vector<8x256xf32>
      %145 = arith.maximumf %143, %144 : vector<8x256xf32>
      %c0_148 = arith.constant 0 : index
      %c0_149 = arith.constant 0 : index
      %146 = vector.load %arg5[%c0_148, %c0_149] : memref<256x2xf32, #tpu.memory_space<vmem>>, vector<256x2xf32>
      %cst_150 = arith.constant dense<0.000000e+00> : vector<8x2xf32>
      %147 = tpu.matmul %145, %146, %cst_150 {dimension_numbers = #tpu.dot_dimension_numbers<[1], [0], [0], [1], [0, 0, 1, 1], [], []>} : vector<8x256xf32>, vector<256x2xf32>, vector<8x2xf32> -> vector<8x2xf32>
      %c0_151 = arith.constant 0 : index
      %c0_152 = arith.constant 0 : index
      %148 = vector.load %arg6[%c0_151, %c0_152] : memref<1x2xf32, #tpu.memory_space<vmem>>, vector<1x2xf32>
      %149 = vector.broadcast %148 : vector<1x2xf32> to vector<8x2xf32>
      %150 = arith.addf %147, %149 : vector<8x2xf32>
      %c1_153 = arith.constant 1 : index
      %c0_154 = arith.constant 0 : index
      %c0_155 = arith.constant 0 : index
      %151 = vector.load %arg7[%c1_153, %c0_154, %c0_155] : memref<2x8x2xf32, #tpu.memory_space<vmem>>, vector<1x8x2xf32>
      %152 = vector.shape_cast %151 : vector<1x8x2xf32> to vector<8x2xf32>
      %153 = vector.shape_cast %150 : vector<8x2xf32> to vector<1x8x2xf32>
      tpu.vector_store %arg7[%c1_153, %c0_154, %c0_155], %153 {strides = array<i32>} : memref<2x8x2xf32, #tpu.memory_space<vmem>>, vector<1x8x2xf32>,
    } else {
    }
    return
  }
  func.func @transform_0(%arg0: i32, %arg1: i32) -> (i32, i32, i32) {
    %c0_i32 = arith.constant 0 : i32
    %c0_i32_0 = arith.constant 0 : i32
    return %arg0, %c0_i32, %arg1 : i32, i32, i32
  }
  func.func @transform_1(%arg0: i32, %arg1: i32) -> (i32, i32, i32) {
    %c0_i32 = arith.constant 0 : i32
    %c0_i32_0 = arith.constant 0 : i32
    %c0_i32_1 = arith.constant 0 : i32
    return %c0_i32, %arg1, %c0_i32_0 : i32, i32, i32
  }
  func.func @transform_2(%arg0: i32, %arg1: i32) -> (i32, i32) {
    %c0_i32 = arith.constant 0 : i32
    %c0_i32_0 = arith.constant 0 : i32
    %c0_i32_1 = arith.constant 0 : i32
    return %c0_i32, %c0_i32_0 : i32, i32
  }
  func.func @transform_3(%arg0: i32, %arg1: i32) -> (i32, i32) {
    %c0_i32 = arith.constant 0 : i32
    %c0_i32_0 = arith.constant 0 : i32
    %c0_i32_1 = arith.constant 0 : i32
    return %c0_i32, %c0_i32_0 : i32, i32
  }
  func.func @transform_4(%arg0: i32, %arg1: i32) -> (i32, i32) {
    %c0_i32 = arith.constant 0 : i32
    %c0_i32_0 = arith.constant 0 : i32
    %c0_i32_1 = arith.constant 0 : i32
    return %c0_i32, %c0_i32_0 : i32, i32
  }
  func.func @transform_5(%arg0: i32, %arg1: i32) -> (i32, i32, i32) {
    %c0_i32 = arith.constant 0 : i32
    %c0_i32_0 = arith.constant 0 : i32
    %c0_i32_1 = arith.constant 0 : i32
    return %arg0, %c0_i32, %c0_i32_0 : i32, i32, i32
  }
}

</mosaic_0001>

<llo_original>
// kernel: tpu_custom_call.1
$region0: #{tpu_custom_call.1}
  #allocation0 [shape = 'u32[]', space=smem, size = 0x4, offset = 0x4, fixed_abs, tag = 'smem constant byte address 0x4 - core index']
  #allocation1 [shape = 'u32[144,128]{1,0:T(1,128)}', space=vmem, size = 0x12000, scoped, tag = 'internal scratch']
  #allocation2 [shape = 'f32[2,8,256]{2,1,0:T(8,128)}', space=vmem, size = 0x4000, scoped, tag = 'scratch operand']
  #allocation9 [shape = 's32[]', space=sflag, size = 0x4, offset = 0, fixed_abs, tag = 'sflag constant byte address 0x0 - dummy sync flag']
  %s0 = inlined_call_operand.vmem [shape: bf16[2,20,2048], index: 0, kind: input, shape index: {}]
  %s1 = inlined_call_operand.hbm [shape: bf16[9,2048,256], index: 1, kind: input, shape index: {}]
  %s2 = inlined_call_operand.hbm [shape: f32[1,256], index: 2, kind: input, shape index: {}]
  %s3 = inlined_call_operand.vmem [shape: f32[256,2], index: 3, kind: input, shape index: {}]
  %s4 = inlined_call_operand.hbm [shape: f32[1,2], index: 4, kind: input, shape index: {}]
  %s5 = inlined_call_operand.vmem [shape: f32[2,8,2], index: 5, kind: output, shape index: {}]
  %s6 = sld [smem:[#allocation0]]
  $region96: #{tpu_custom_call.1} parent=0
    _
  %s8 = ssub.s32 1, %s6
  %s9 = scalar_select 0, %s8, %s6
  $region1: #{tpu_custom_call.1} parent=0
    #allocation3 [shape = 'u8[98304]{0}', space=vmem, size = 0x18000, scoped, tag = 'input window, operand 0']
    #allocation4 [shape = 'u8[4718592]{0}', space=vmem, size = 0x480000, scoped, tag = 'input window, operand 1']
    #allocation5 [shape = 's32[2]{0}', space=sflag, size = 0x8, scoped, tag = 'scoped memory for tpu_custom_call.1']
    #allocation6 [shape = 'u8[1024]{0}', space=vmem, size = 0x400, scoped, tag = 'input window, operand 2, single buffered']
    #allocation7 [shape = 's32[1]{0}', space=sflag, size = 0x4, scoped, tag = 'scoped memory for tpu_custom_call.1']
    #allocation8 [shape = 'u8[512]{0}', space=vmem, size = 0x400, scoped, tag = 'input window, operand 4, single buffered']
    %10 = vsyncpa [#allocation5], 0
    %s11 = scalar_lea.sflag [#allocation5], 1
    %12 = vsyncpa %s11, 0
    %13 = vsyncpa [#allocation7], 0
    loop: start=0, step=1, limit=6
    $region2: #{tpu_custom_call.1} parent=1 // loop_pre_header
      _
    $region3: #{tpu_custom_call.1} parent=1 // loop_header
      %s15 = sphi 0, %s19
      %p16 = scmp.ge.s32.totalorder %s15, 6
      %s22 = sphi 0, %s34
      %s23 = sphi 0, %s30
      %s24 = sphi 0, %s22
      %s25 = sphi 0, %s23
      %s26 = sphi 0, %s24
      %s27 = sphi 0, %s25
      %s39 = sphi 0, %s41
      %s42 = sphi 0, %s39
      %s43 = sphi 0, %s42
      %s59 = sphi 0, %s43
      %s65 = sphi 0, %s67
      %s68 = sphi 0, %s65
      %s69 = sphi 0, %s68
      %s85 = sphi 0, %s69
      %s89 = sphi 0, %s89
      %s91 = sphi 0, %s89
      %s92 = sphi 0, %s91
      %s106 = sphi 0, %s92
      %s110 = sphi 0, %s110
      %s112 = sphi 0, %s110
      %s113 = sphi 0, %s112
      %s127 = sphi 0, %s113
      %s131 = sphi 0, %s131
      %s133 = sphi 0, %s131
      %s134 = sphi 0, %s133
      %s148 = sphi 0, %s134
      %s154 = sphi 0, %s156
      %s157 = sphi 0, %s154
      %s158 = sphi 0, %s157
      %s174 = sphi 0, %s158
    $region4: #{tpu_custom_call.1} parent=1 // loop_header_branch
      %18 = sbr.rel (%p16) target = $region8
    $region5: #{tpu_custom_call.1} parent=1 // loop_body
      %s20 = ssub.s32 %s15, 1
      %s21 = ssub.s32 %s15, 2
      %s28 = sadd.s32 1, %s23
      %p29 = scmp.ge.s32.totalorder %s28, 4
      %s30 = scalar_select %p29, 0, %s28
      %s31 = sadd.s32 1, %s22
      %s32 = scalar_select %p29, %s31, %s22
      %p33 = scmp.ge.s32.totalorder %s32, 1
      %s34 = scalar_select %p33, 0, %s32
      %s35 = ssub.s32 %s22, %s34
      %s36 = ssub.s32 %s23, %s30
      %s37 = sor.u32 %s35, %s36
      %p38 = scmp.eq.s32.totalorder %s37, 0
      %s40 = sadd.s32 %s39, 1
      %s41 = scalar_select %p38, %s39, %s40
      %p44 = pneg %p38
      %p45 = scmp.eq.s32.totalorder %s15, 3
      %p46 = por %p44, %p45
      %p47 = scmp.ne.s32.totalorder %s39, %s42
      %p48 = scmp.eq.s32.totalorder %s15, 0
      %p49 = por %p47, %p48
      %p50 = scmp.ne.s32.totalorder %s39, %s42
      %p51 = scmp.eq.s32.totalorder %s20, 3
      %p52 = por %p50, %p51
      %p53 = scmp.ne.s32.totalorder %s42, %s43
      %p54 = scmp.eq.s32.totalorder %s20, 0
      %p55 = por %p53, %p54
      %p56 = scmp.ne.s32.totalorder %s42, %s43
      %p57 = scmp.eq.s32.totalorder %s21, 3
      %p58 = por %p56, %p57
      %p60 = scmp.ne.s32.totalorder %s43, %s59
      %p61 = scmp.eq.s32.totalorder %s21, 0
      %p62 = por %p60, %p61
      %s63 = ssub.s32 %s23, %s30
      %p64 = scmp.eq.s32.totalorder %s63, 0
      %s66 = sadd.s32 %s65, 1
      %s67 = scalar_select %p64, %s65, %s66
      %p70 = pneg %p64
      %p71 = scmp.eq.s32.totalorder %s15, 3
      %p72 = por %p70, %p71
      %p73 = scmp.ne.s32.totalorder %s65, %s68
      %p74 = scmp.eq.s32.totalorder %s15, 0
      %p75 = por %p73, %p74
      %p76 = scmp.ne.s32.totalorder %s65, %s68
      %p77 = scmp.eq.s32.totalorder %s20, 3
      %p78 = por %p76, %p77
      %p79 = scmp.ne.s32.totalorder %s68, %s69
      %p80 = scmp.eq.s32.totalorder %s20, 0
      %p81 = por %p79, %p80
      %p82 = scmp.ne.s32.totalorder %s68, %s69
      %p83 = scmp.eq.s32.totalorder %s21, 3
      %p84 = por %p82, %p83
      %p86 = scmp.ne.s32.totalorder %s69, %s85
      %p87 = scmp.eq.s32.totalorder %s21, 0
      %p88 = por %p86, %p87
      %s90 = sadd.s32 %s89, 1
      %p93 = scmp.eq.s32.totalorder %s15, 3
      %p94 = scmp.ne.s32.totalorder %s89, %s91
      %p95 = scmp.eq.s32.totalorder %s15, 0
      %p96 = por %p94, %p95
      %p97 = scmp.ne.s32.totalorder %s89, %s91
      %p98 = scmp.eq.s32.totalorder %s20, 3
      %p99 = por %p97, %p98
      %p100 = scmp.ne.s32.totalorder %s91, %s92
      %p101 = scmp.eq.s32.totalorder %s20, 0
      %p102 = por %p100, %p101
      %p103 = scmp.ne.s32.totalorder %s91, %s92
      %p104 = scmp.eq.s32.totalorder %s21, 3
      %p105 = por %p103, %p104
      %p107 = scmp.ne.s32.totalorder %s92, %s106
      %p108 = scmp.eq.s32.totalorder %s21, 0
      %p109 = por %p107, %p108
      %s111 = sadd.s32 %s110, 1
      %p114 = scmp.eq.s32.totalorder %s15, 3
      %p115 = scmp.ne.s32.totalorder %s110, %s112
      %p116 = scmp.eq.s32.totalorder %s15, 0
      %p117 = por %p115, %p116
      %p118 = scmp.ne.s32.totalorder %s110, %s112
      %p119 = scmp.eq.s32.totalorder %s20, 3
      %p120 = por %p118, %p119
      %p121 = scmp.ne.s32.totalorder %s112, %s113
      %p122 = scmp.eq.s32.totalorder %s20, 0
      %p123 = por %p121, %p122
      %p124 = scmp.ne.s32.totalorder %s112, %s113
      %p125 = scmp.eq.s32.totalorder %s21, 3
      %p126 = por %p124, %p125
      %p128 = scmp.ne.s32.totalorder %s113, %s127
      %p129 = scmp.eq.s32.totalorder %s21, 0
      %p130 = por %p128, %p129
      %s132 = sadd.s32 %s131, 1
      %p135 = scmp.eq.s32.totalorder %s15, 3
      %p136 = scmp.ne.s32.totalorder %s131, %s133
      %p137 = scmp.eq.s32.totalorder %s15, 0
      %p138 = por %p136, %p137
      %p139 = scmp.ne.s32.totalorder %s131, %s133
      %p140 = scmp.eq.s32.totalorder %s20, 3
      %p141 = por %p139, %p140
      %p142 = scmp.ne.s32.totalorder %s133, %s134
      %p143 = scmp.eq.s32.totalorder %s20, 0
      %p144 = por %p142, %p143
      %p145 = scmp.ne.s32.totalorder %s133, %s134
      %p146 = scmp.eq.s32.totalorder %s21, 3
      %p147 = por %p145, %p146
      %p149 = scmp.ne.s32.totalorder %s134, %s148
      %p150 = scmp.eq.s32.totalorder %s21, 0
      %p151 = por %p149, %p150
      %s152 = ssub.s32 %s22, %s34
      %p153 = scmp.eq.s32.totalorder %s152, 0
      %s155 = sadd.s32 %s154, 1
      %s156 = scalar_select %p153, %s154, %s155
      %p159 = pneg %p153
      %p160 = scmp.eq.s32.totalorder %s15, 3
      %p161 = por %p159, %p160
      %p162 = scmp.ne.s32.totalorder %s154, %s157
      %p163 = scmp.eq.s32.totalorder %s15, 0
      %p164 = por %p162, %p163
      %p165 = scmp.ne.s32.totalorder %s154, %s157
      %p166 = scmp.eq.s32.totalorder %s20, 3
      %p167 = por %p165, %p166
      %p168 = scmp.ne.s32.totalorder %s157, %s158
      %p169 = scmp.eq.s32.totalorder %s20, 0
      %p170 = por %p168, %p169
      %p171 = scmp.ne.s32.totalorder %s157, %s158
      %p172 = scmp.eq.s32.totalorder %s21, 3
      %p173 = por %p171, %p172
      %p175 = scmp.ne.s32.totalorder %s158, %s174
      %p176 = scmp.eq.s32.totalorder %s21, 0
      %p177 = por %p175, %p176
      %p178 = scmp.le.s32.totalorder 1, %s15
      %p179 = scmp.lt.s32.totalorder %s15, 5
      %p180 = pnand %p178, %p179
      %p181 = pneg %p180
      // Predicated region
      $region9: #{tpu_custom_call.1} parent=5 // pred_check
        _
      $region10: #{tpu_custom_call.1} parent=5 // pred_check_branch
        %183 = sbr.rel (%p180) target = $region12
      $region11: #{tpu_custom_call.1} parent=5 // pred_region
        %s184 = ssub.s32 %s15, 1
        // Predicated region
        $region13: #{tpu_custom_call.1} parent=11 // pred_check
          %p185 = pneg %p102
        $region14: #{tpu_custom_call.1} parent=11 // pred_check_branch
          %187 = sbr.rel (%p185) target = $region16
        $region15: #{tpu_custom_call.1} parent=11 // pred_region
          %s189 = ssub.s32 32, 32
          %190 = vsyncadd [#allocation7], %s189
          %s192 = sshll.u32 [#allocation6], 4
          %s193 = int_to_ptr.vmem [resolvable:$true] %s192
          %195 = dma.hbm_to_vmem [thread:$0]  %s2, 32, %s193, [#allocation7]
        $region16: #{tpu_custom_call.1} parent=11 // pred_fallthru
          _
        // Predicated region
        $region17: #{tpu_custom_call.1} parent=11 // pred_check
          %p196 = pneg %p123
        $region18: #{tpu_custom_call.1} parent=11 // pred_check_branch
          %198 = sbr.rel (%p196) target = $region20
        $region19: #{tpu_custom_call.1} parent=11 // pred_region
          _
        $region20: #{tpu_custom_call.1} parent=11 // pred_fallthru
          _
        // Predicated region
        $region21: #{tpu_custom_call.1} parent=11 // pred_check
          %p199 = pneg %p144
        $region22: #{tpu_custom_call.1} parent=11 // pred_check_branch
          %201 = sbr.rel (%p199) target = $region24
        $region23: #{tpu_custom_call.1} parent=11 // pred_region
          %s203 = ssub.s32 16, 16
          %204 = vsyncadd [#allocation7], %s203
          %s206 = sshll.u32 [#allocation8], 4
          %s207 = int_to_ptr.vmem [resolvable:$true] %s206
          %209 = dma.hbm_to_vmem [thread:$0]  %s4, 16, %s207, [#allocation7]
        $region24: #{tpu_custom_call.1} parent=11 // pred_fallthru
          _
      $region12: #{tpu_custom_call.1} parent=5 // pred_fallthru
        _
      %p210 = scmp.lt.s32.totalorder %s15, 4
      // Predicated region
      $region25: #{tpu_custom_call.1} parent=5 // pred_check
        %p211 = pneg %p210
      $region26: #{tpu_custom_call.1} parent=5 // pred_check_branch
        %213 = sbr.rel (%p211) target = $region28
      $region27: #{tpu_custom_call.1} parent=5 // pred_region
        // Predicated region
        $region29: #{tpu_custom_call.1} parent=27 // pred_check
          %p214 = pneg %p49
        $region30: #{tpu_custom_call.1} parent=27 // pred_check_branch
          %216 = sbr.rel (%p214) target = $region32
        $region31: #{tpu_custom_call.1} parent=27 // pred_region
          %s217 = sand.u32 %s39, 1
          %s218 = sand.u32 %s39, 1
          %s219 = smul.addr %s218, 96
          %s220 = scalar_lea.vmem [#allocation3], %s219
          %s221 = smul.u32 2, %s22
          %s222 = smul.u32 4, %s23
          %s223 = smul.addr %s221, 48
          %s224 = sadd.s32 %s222, %s223
          %s225 = smul.addr %s224, 4
          %s226 = scalar_lea.vmem %s0, %s225
          // Predicated region
          $region33: #{tpu_custom_call.1} parent=31 // pred_check
            _
          $region34: #{tpu_custom_call.1} parent=31 // pred_check_branch
            %228 = sbr.rel (0) target = $region36
          $region35: #{tpu_custom_call.1} parent=31 // pred_region
            // Predicated region
            $region37: #{tpu_custom_call.1} parent=35 // pred_check
              _
            $region38: #{tpu_custom_call.1} parent=35 // pred_check_branch
              %230 = sbr.rel (0) target = $region40
            $region39: #{tpu_custom_call.1} parent=35 // pred_region
              loop: start=0, step=1, limit=1
              $region41: #{tpu_custom_call.1} parent=39 // loop_pre_header
                _
              $region42: #{tpu_custom_call.1} parent=39 // loop_header
                %s232 = sphi 0, %s236
                %p233 = scmp.ge.s32.totalorder %s232, 1
                %s237 = sphi %s226, %s226
                %s238 = sphi %s220, %s220
              $region43: #{tpu_custom_call.1} parent=39 // loop_header_branch
                %235 = sbr.rel (%p233) target = $region47
              $region44: #{tpu_custom_call.1} parent=39 // loop_body
                %v239 = vld [vmem:[%s237] sm:$0xff]
                %240 = vst [vmem:[%s238] sm:$0xff] %v239
                %v241 = vld [vmem:[%s237 + $0x8] sm:$0xff]
                %242 = vst [vmem:[%s238 + $0x8] sm:$0xff] %v241
                %v243 = vld [vmem:[%s237 + $0x40] sm:$0xff]
                %244 = vst [vmem:[%s238 + $0x10] sm:$0xff] %v243
                %v245 = vld [vmem:[%s237 + $0x48] sm:$0xff]
                %246 = vst [vmem:[%s238 + $0x18] sm:$0xff] %v245
                %v247 = vld [vmem:[%s237 + $0x80] sm:$0xff]
                %248 = vst [vmem:[%s238 + $0x20] sm:$0xff] %v247
                %v249 = vld [vmem:[%s237 + $0x88] sm:$0xff]
                %250 = vst [vmem:[%s238 + $0x28] sm:$0xff] %v249
                %v251 = vld [vmem:[%s237 + $0xc0] sm:$0xff]
                %252 = vst [vmem:[%s238 + $0x30] sm:$0xff] %v251
                %v253 = vld [vmem:[%s237 + $0xc8] sm:$0xff]
                %254 = vst [vmem:[%s238 + $0x38] sm:$0xff] %v253
                %v255 = vld [vmem:[%s237 + $0x100] sm:$0xff]
                %256 = vst [vmem:[%s238 + $0x40] sm:$0xff] %v255
                %v257 = vld [vmem:[%s237 + $0x108] sm:$0xff]
                %258 = vst [vmem:[%s238 + $0x48] sm:$0xff] %v257
                %v259 = vld [vmem:[%s237 + $0x140] sm:$0xff]
                %260 = vst [vmem:[%s238 + $0x50] sm:$0xff] %v259
                %v261 = vld [vmem:[%s237 + $0x148] sm:$0xff]
                %262 = vst [vmem:[%s238 + $0x58] sm:$0xff] %v261
              $region45: #{tpu_custom_call.1} parent=39 // loop_footer
                %s236 = sadd.s32 1, %s232
              $region46: #{tpu_custom_call.1} parent=39 // loop_footer_branch
                %231 = sbr.rel target = $region42
              $region47: #{tpu_custom_call.1} parent=39 // loop_exit
                _
            $region40: #{tpu_custom_call.1} parent=35 // pred_fallthru
              _
            // Predicated region
            $region48: #{tpu_custom_call.1} parent=35 // pred_check
              _
            $region49: #{tpu_custom_call.1} parent=35 // pred_check_branch
              %264 = sbr.rel target = $region51
            $region50: #{tpu_custom_call.1} parent=35 // pred_region
              _
            $region51: #{tpu_custom_call.1} parent=35 // pred_fallthru
              _
          $region36: #{tpu_custom_call.1} parent=31 // pred_fallthru
            _
          %265 = vnop
        $region32: #{tpu_custom_call.1} parent=27 // pred_fallthru
          _
        // Predicated region
        $region52: #{tpu_custom_call.1} parent=27 // pred_check
          %p266 = pneg %p75
        $region53: #{tpu_custom_call.1} parent=27 // pred_check_branch
          %268 = sbr.rel (%p266) target = $region55
        $region54: #{tpu_custom_call.1} parent=27 // pred_region
          #allocation10 [shape = 'u32[6]{0}', space=smem, size = 0x18, scoped, tag = 'DMA stride descriptor']
          %s269 = sand.u32 %s65, 1
          %s270 = scalar_lea.sflag [#allocation5], %s269
          %s271 = sand.u32 %s65, 1
          %s272 = smul.addr %s271, 4608
          %s273 = scalar_lea.vmem [#allocation4], %s272
          %s274 = smul.u32 64, %s23
          %s276 = ssub.s32 73728, 73728
          %277 = vsyncadd %s270, %s276
          %s278 = smul.addr %s274, 2
          %s279 = smul.addr %s278, 64
          %s280 = scalar_lea.hbm %s1, %s279
          %s282 = sshll.u32 1, 14
          %s283 = sxor.u32 4294967295, %s282
          %s285 = sld [smem:[#allocation0]]
          %s286 = sadd.s32 2, %s285
          %s288 = sshll.u32 7, 26
          %s289 = sxor.u32 4294967295, %s288
          %s290 = sand.u32 0, %s289
          %s291 = sshll.u32 %s286, 26
          %s292 = sor.u32 %s290, %s291
          %s293 = sshll.u32 %s273, 4
          %s294 = int_to_ptr.vmem [resolvable:$true] %s293
          %300 = sst [smem:[#allocation10]] 32768
          %s301 = scalar_lea.smem [#allocation10], 1
          %302 = sst [smem:[%s301]] 8192
          %s303 = scalar_lea.smem [#allocation10], 2
          %304 = sst [smem:[%s303]] 64
          %s305 = scalar_lea.smem [#allocation10], 3
          %306 = sst [smem:[%s305]] 128
          %s307 = scalar_lea.smem [#allocation10], 4
          %308 = sst [smem:[%s307]] 128
          %s309 = scalar_lea.smem [#allocation10], 5
          %310 = sst [smem:[%s309]] 8
          %312 = dma.general %s280, 73728, %s294, %s270, [#allocation9], [#allocation10], %s292, 0
        $region55: #{tpu_custom_call.1} parent=27 // pred_fallthru
          _
      $region28: #{tpu_custom_call.1} parent=5 // pred_fallthru
        _
      %p313 = scmp.le.s32.totalorder 1, %s15
      %p314 = scmp.lt.s32.totalorder %s15, 5
      %p315 = pnand %p313, %p314
      %p316 = pneg %p315
      // Predicated region
      $region56: #{tpu_custom_call.1} parent=5 // pred_check
        _
      $region57: #{tpu_custom_call.1} parent=5 // pred_check_branch
        %318 = sbr.rel (%p315) target = $region59
      $region58: #{tpu_custom_call.1} parent=5 // pred_region
        %s319 = ssub.s32 %s15, 1
        %s320 = sand.u32 %s42, 1
        %s321 = sand.u32 %s42, 1
        %s322 = smul.addr %s321, 96
        %s323 = scalar_lea.vmem [#allocation3], %s322
        // Predicated region
        $region60: #{tpu_custom_call.1} parent=58 // pred_check
          %p324 = pneg %p55
        $region61: #{tpu_custom_call.1} parent=58 // pred_check_branch
          %326 = sbr.rel (%p324) target = $region63
        $region62: #{tpu_custom_call.1} parent=58 // pred_region
          _
        $region63: #{tpu_custom_call.1} parent=58 // pred_fallthru
          _
        %s327 = sand.u32 %s68, 1
        %s328 = scalar_lea.sflag [#allocation5], %s327
        %s329 = sand.u32 %s68, 1
        %s330 = smul.addr %s329, 4608
        %s331 = scalar_lea.vmem [#allocation4], %s330
        // Predicated region
        $region64: #{tpu_custom_call.1} parent=58 // pred_check
          %p332 = pneg %p81
        $region65: #{tpu_custom_call.1} parent=58 // pred_check_branch
          %334 = sbr.rel (%p332) target = $region67
        $region66: #{tpu_custom_call.1} parent=58 // pred_region
          %335 = dma.done %s328, 73728
        $region67: #{tpu_custom_call.1} parent=58 // pred_fallthru
          _
        // Predicated region
        $region68: #{tpu_custom_call.1} parent=58 // pred_check
          %p336 = pneg %p102
        $region69: #{tpu_custom_call.1} parent=58 // pred_check_branch
          %338 = sbr.rel (%p336) target = $region71
        $region70: #{tpu_custom_call.1} parent=58 // pred_region
          %339 = dma.done [#allocation7], 32
        $region71: #{tpu_custom_call.1} parent=58 // pred_fallthru
          _
        // Predicated region
        $region72: #{tpu_custom_call.1} parent=58 // pred_check
          %p340 = pneg %p144
        $region73: #{tpu_custom_call.1} parent=58 // pred_check_branch
          %342 = sbr.rel (%p340) target = $region75
        $region74: #{tpu_custom_call.1} parent=58 // pred_region
          %343 = dma.done [#allocation7], 16
        $region75: #{tpu_custom_call.1} parent=58 // pred_fallthru
          _
        %s344 = sand.u32 %s42, 1
        %s345 = sand.u32 %s42, 1
        %s346 = smul.addr %s345, 96
        %s347 = scalar_lea.vmem [#allocation3], %s346
        %p348 = pneg %p55
        %p349 = pneg %p52
        %s350 = sand.u32 %s68, 1
        %s351 = scalar_lea.sflag [#allocation5], %s350
        %s352 = sand.u32 %s68, 1
        %s353 = smul.addr %s352, 4608
        %s354 = scalar_lea.vmem [#allocation4], %s353
        %p355 = pneg %p81
        %p356 = pneg %p78
        %p357 = pneg %p102
        %p358 = pneg %p99
        %p359 = pneg %p123
        %p360 = pneg %p120
        %p361 = pneg %p144
        %p362 = pneg %p141
        %p363 = pneg %p170
        %p364 = pneg %p167
        %s365 = smul.u32 2, %s24
        %p366 = scmp.lt.s32.totalorder %s365, 1
        %s367 = scalar_select %p366, %s365, 1
        %s368 = smul.addr %s367, 8
        %s369 = scalar_lea.vmem %s5, %s368
        %s370 = smul.u32 2, %s24
        %s371 = smul.u32 4, %s25
        %s372 = smul.u32 64, %s25
        %s373 = smul.u32 2, %s24
        %p374 = scmp.lt.s32.totalorder %s373, 1
        %s375 = scalar_select %p374, %s373, 1
        %s376 = smul.addr %s375, 8
        %s377 = scalar_lea.vmem %s5, %s376
        %s378 = smul.u32 2, %s24
        %p379 = scmp.eq.s32.totalorder %s25, 0
        // Predicated region
        $region76: #{tpu_custom_call.1} parent=58 // pred_check
          %p380 = pneg %p379
        $region77: #{tpu_custom_call.1} parent=58 // pred_check_branch
          %382 = sbr.rel (%p380) target = $region79
        $region78: #{tpu_custom_call.1} parent=58 // pred_region
          %383 = vst [vmem:[#allocation2] sm:$0xff] 0.0
          %384 = vst [vmem:[#allocation2 + $0x8] sm:$0xff] 0.0
          %385 = vst [vmem:[#allocation2 + $0x10] sm:$0xff] 0.0
          %386 = vst [vmem:[#allocation2 + $0x18] sm:$0xff] 0.0
        $region79: #{tpu_custom_call.1} parent=58 // pred_fallthru
          _
        %v387 = vld [vmem:[%s323] sm:$0xff]
        %v388 = vld [vmem:[%s323 + $0x8] sm:$0xff]
        %v389 = vld [vmem:[%s331] sm:$0xff]
        %v390 = vld [vmem:[%s331 + $0x8] sm:$0xff]
        %v391 = vld [vmem:[%s331 + $0x10] sm:$0xff]
        %v392 = vld [vmem:[%s331 + $0x18] sm:$0xff]
        %v393 = vld [vmem:[%s331 + $0x20] sm:$0xff]
        %v394 = vld [vmem:[%s331 + $0x28] sm:$0xff]
        %v395 = vld [vmem:[%s331 + $0x30] sm:$0xff]
        %v396 = vld [vmem:[%s331 + $0x38] sm:$0xff]
        %v397 = vld [vmem:[%s331 + $0x40] sm:$0xff]
        %v398 = vld [vmem:[%s331 + $0x48] sm:$0xff]
        %v399 = vld [vmem:[%s331 + $0x50] sm:$0xff]
        %v400 = vld [vmem:[%s331 + $0x58] sm:$0xff]
        %v401 = vld [vmem:[%s331 + $0x60] sm:$0xff]
        %v402 = vld [vmem:[%s331 + $0x68] sm:$0xff]
        %v403 = vld [vmem:[%s331 + $0x70] sm:$0xff]
        %v404 = vld [vmem:[%s331 + $0x78] sm:$0xff]
        %v405 = vld [vmem:[%s331 + $0x80] sm:$0xff]
        %v406 = vld [vmem:[%s331 + $0x88] sm:$0xff]
        %v407 = vld [vmem:[%s331 + $0x90] sm:$0xff]
        %v408 = vld [vmem:[%s331 + $0x98] sm:$0xff]
        %v409 = vld [vmem:[%s331 + $0xa0] sm:$0xff]
        %v410 = vld [vmem:[%s331 + $0xa8] sm:$0xff]
        %v411 = vld [vmem:[%s331 + $0xb0] sm:$0xff]
        %v412 = vld [vmem:[%s331 + $0xb8] sm:$0xff]
        %v413 = vld [vmem:[%s331 + $0xc0] sm:$0xff]
        %v414 = vld [vmem:[%s331 + $0xc8] sm:$0xff]
        %v415 = vld [vmem:[%s331 + $0xd0] sm:$0xff]
        %v416 = vld [vmem:[%s331 + $0xd8] sm:$0xff]
        %v417 = vld [vmem:[%s331 + $0xe0] sm:$0xff]
        %v418 = vld [vmem:[%s331 + $0xe8] sm:$0xff]
        %v419 = vld [vmem:[%s331 + $0xf0] sm:$0xff]
        %v420 = vld [vmem:[%s331 + $0xf8] sm:$0xff]
        %v421 = vld [vmem:[%s331 + $0x100] sm:$0xff]
        %v422 = vld [vmem:[%s331 + $0x108] sm:$0xff]
        %v423 = vld [vmem:[%s331 + $0x110] sm:$0xff]
        %v424 = vld [vmem:[%s331 + $0x118] sm:$0xff]
        %v425 = vld [vmem:[%s331 + $0x120] sm:$0xff]
        %v426 = vld [vmem:[%s331 + $0x128] sm:$0xff]
        %v427 = vld [vmem:[%s331 + $0x130] sm:$0xff]
        %v428 = vld [vmem:[%s331 + $0x138] sm:$0xff]
        %v429 = vld [vmem:[%s331 + $0x140] sm:$0xff]
        %v430 = vld [vmem:[%s331 + $0x148] sm:$0xff]
        %v431 = vld [vmem:[%s331 + $0x150] sm:$0xff]
        %v432 = vld [vmem:[%s331 + $0x158] sm:$0xff]
        %v433 = vld [vmem:[%s331 + $0x160] sm:$0xff]
        %v434 = vld [vmem:[%s331 + $0x168] sm:$0xff]
        %v435 = vld [vmem:[%s331 + $0x170] sm:$0xff]
        %v436 = vld [vmem:[%s331 + $0x178] sm:$0xff]
        %v437 = vld [vmem:[%s331 + $0x180] sm:$0xff]
        %v438 = vld [vmem:[%s331 + $0x188] sm:$0xff]
        %v439 = vld [vmem:[%s331 + $0x190] sm:$0xff]
        %v440 = vld [vmem:[%s331 + $0x198] sm:$0xff]
        %v441 = vld [vmem:[%s331 + $0x1a0] sm:$0xff]
        %v442 = vld [vmem:[%s331 + $0x1a8] sm:$0xff]
        %v443 = vld [vmem:[%s331 + $0x1b0] sm:$0xff]
        %v444 = vld [vmem:[%s331 + $0x1b8] sm:$0xff]
        %v445 = vld [vmem:[%s331 + $0x1c0] sm:$0xff]
        %v446 = vld [vmem:[%s331 + $0x1c8] sm:$0xff]
        %v447 = vld [vmem:[%s331 + $0x1d0] sm:$0xff]
        %v448 = vld [vmem:[%s331 + $0x1d8] sm:$0xff]
        %v449 = vld [vmem:[%s331 + $0x1e0] sm:$0xff]
        %v450 = vld [vmem:[%s331 + $0x1e8] sm:$0xff]
        %v451 = vld [vmem:[%s331 + $0x1f0] sm:$0xff]
        %v452 = vld [vmem:[%s331 + $0x1f8] sm:$0xff]
        %v453 = vld [vmem:[%s323 + $0x10] sm:$0x11]
        %v454 = vld [vmem:[%s323 + $0x18] sm:$0x11]
        %s455 = scalar_lea.vmem %s331, 512 [#allocation4]
        %v456 = vld [vmem:[%s455] sm:$0xff]
        %v457 = vld [vmem:[%s455 + $0x8] sm:$0xff]
        %v458 = vld [vmem:[%s455 + $0x10] sm:$0xff]
        %v459 = vld [vmem:[%s455 + $0x18] sm:$0xff]
        %v460 = vld [vmem:[%s455 + $0x20] sm:$0xff]
        %v461 = vld [vmem:[%s455 + $0x28] sm:$0xff]
        %v462 = vld [vmem:[%s455 + $0x30] sm:$0xff]
        %v463 = vld [vmem:[%s455 + $0x38] sm:$0xff]
        %v464 = vld [vmem:[%s455 + $0x40] sm:$0xff]
        %v465 = vld [vmem:[%s455 + $0x48] sm:$0xff]
        %v466 = vld [vmem:[%s455 + $0x50] sm:$0xff]
        %v467 = vld [vmem:[%s455 + $0x58] sm:$0xff]
        %v468 = vld [vmem:[%s455 + $0x60] sm:$0xff]
        %v469 = vld [vmem:[%s455 + $0x68] sm:$0xff]
        %v470 = vld [vmem:[%s455 + $0x70] sm:$0xff]
        %v471 = vld [vmem:[%s455 + $0x78] sm:$0xff]
        %v472 = vld [vmem:[%s455 + $0x80] sm:$0xff]
        %v473 = vld [vmem:[%s455 + $0x88] sm:$0xff]
        %v474 = vld [vmem:[%s455 + $0x90] sm:$0xff]
        %v475 = vld [vmem:[%s455 + $0x98] sm:$0xff]
        %v476 = vld [vmem:[%s455 + $0xa0] sm:$0xff]
        %v477 = vld [vmem:[%s455 + $0xa8] sm:$0xff]
        %v478 = vld [vmem:[%s455 + $0xb0] sm:$0xff]
        %v479 = vld [vmem:[%s455 + $0xb8] sm:$0xff]
        %v480 = vld [vmem:[%s455 + $0xc0] sm:$0xff]
        %v481 = vld [vmem:[%s455 + $0xc8] sm:$0xff]
        %v482 = vld [vmem:[%s455 + $0xd0] sm:$0xff]
        %v483 = vld [vmem:[%s455 + $0xd8] sm:$0xff]
        %v484 = vld [vmem:[%s455 + $0xe0] sm:$0xff]
        %v485 = vld [vmem:[%s455 + $0xe8] sm:$0xff]
        %v486 = vld [vmem:[%s455 + $0xf0] sm:$0xff]
        %v487 = vld [vmem:[%s455 + $0xf8] sm:$0xff]
        %v488 = vld [vmem:[%s455 + $0x100] sm:$0xff]
        %v489 = vld [vmem:[%s455 + $0x108] sm:$0xff]
        %v490 = vld [vmem:[%s455 + $0x110] sm:$0xff]
        %v491 = vld [vmem:[%s455 + $0x118] sm:$0xff]
        %v492 = vld [vmem:[%s455 + $0x120] sm:$0xff]
        %v493 = vld [vmem:[%s455 + $0x128] sm:$0xff]
        %v494 = vld [vmem:[%s455 + $0x130] sm:$0xff]
        %v495 = vld [vmem:[%s455 + $0x138] sm:$0xff]
        %v496 = vld [vmem:[%s455 + $0x140] sm:$0xff]
        %v497 = vld [vmem:[%s455 + $0x148] sm:$0xff]
        %v498 = vld [vmem:[%s455 + $0x150] sm:$0xff]
        %v499 = vld [vmem:[%s455 + $0x158] sm:$0xff]
        %v500 = vld [vmem:[%s455 + $0x160] sm:$0xff]
        %v501 = vld [vmem:[%s455 + $0x168] sm:$0xff]
        %v502 = vld [vmem:[%s455 + $0x170] sm:$0xff]
        %v503 = vld [vmem:[%s455 + $0x178] sm:$0xff]
        %v504 = vld [vmem:[%s455 + $0x180] sm:$0xff]
        %v505 = vld [vmem:[%s455 + $0x188] sm:$0xff]
        %v506 = vld [vmem:[%s455 + $0x190] sm:$0xff]
        %v507 = vld [vmem:[%s455 + $0x198] sm:$0xff]
        %v508 = vld [vmem:[%s455 + $0x1a0] sm:$0xff]
        %v509 = vld [vmem:[%s455 + $0x1a8] sm:$0xff]
        %v510 = vld [vmem:[%s455 + $0x1b0] sm:$0xff]
        %v511 = vld [vmem:[%s455 + $0x1b8] sm:$0xff]
        %v512 = vld [vmem:[%s455 + $0x1c0] sm:$0xff]
        %v513 = vld [vmem:[%s455 + $0x1c8] sm:$0xff]
        %v514 = vld [vmem:[%s455 + $0x1d0] sm:$0xff]
        %v515 = vld [vmem:[%s455 + $0x1d8] sm:$0xff]
        %v516 = vld [vmem:[%s455 + $0x1e0] sm:$0xff]
        %v517 = vld [vmem:[%s455 + $0x1e8] sm:$0xff]
        %v518 = vld [vmem:[%s455 + $0x1f0] sm:$0xff]
        %v519 = vld [vmem:[%s455 + $0x1f8] sm:$0xff]
        %v524 = vunpack.c.l.b16 %v387
        %v525 = vunpack.c.h.b16 %v387
        %v526 = vunpack.c.l.b16 %v388
        %v527 = vunpack.c.h.b16 %v388
        %v528 = vunpack.c.l.b16 %v453
        %v529 = vunpack.c.h.b16 %v453
        %v530 = vunpack.c.l.b16 %v454
        %v531 = vunpack.c.h.b16 %v454
        %v532 = vpack.c.b16 %v528, %v524
        %v533 = vpack.c.b16 %v529, %v525
        %v534 = vpack.c.b16 %v530, %v526
        %v535 = vpack.c.b16 %v531, %v527
        %v537 = vshrl.u32 %v532, 16
        %v539 = vshll.u32 %v532, 16
        %v541 = vrot.slane %v539, 1
        %v542 = vor.u32 %v537, %v541
        %v544 = vshrl.u32 %v533, 16
        %v546 = vshll.u32 %v533, 16
        %v548 = vrot.slane %v546, 1
        %v549 = vor.u32 %v544, %v548
        %v551 = vshrl.u32 %v534, 16
        %v553 = vshll.u32 %v534, 16
        %v555 = vrot.slane %v553, 1
        %v556 = vor.u32 %v551, %v555
        %v558 = vshrl.u32 %v535, 16
        %v560 = vshll.u32 %v535, 16
        %v562 = vrot.slane %v560, 1
        %v563 = vor.u32 %v558, %v562
        %v632 = vunpack.c.l.b16 %v456
        %v633 = vunpack.c.h.b16 %v456
        %v634 = vunpack.c.l.b16 %v457
        %v635 = vunpack.c.h.b16 %v457
        %v636 = vunpack.c.l.b16 %v458
        %v637 = vunpack.c.h.b16 %v458
        %v638 = vunpack.c.l.b16 %v459
        %v639 = vunpack.c.h.b16 %v459
        %v640 = vunpack.c.l.b16 %v460
        %v641 = vunpack.c.h.b16 %v460
        %v642 = vunpack.c.l.b16 %v461
        %v643 = vunpack.c.h.b16 %v461
        %v644 = vunpack.c.l.b16 %v462
        %v645 = vunpack.c.h.b16 %v462
        %v646 = vunpack.c.l.b16 %v463
        %v647 = vunpack.c.h.b16 %v463
        %v648 = vunpack.c.l.b16 %v464
        %v649 = vunpack.c.h.b16 %v464
        %v650 = vunpack.c.l.b16 %v465
        %v651 = vunpack.c.h.b16 %v465
        %v652 = vunpack.c.l.b16 %v466
        %v653 = vunpack.c.h.b16 %v466
        %v654 = vunpack.c.l.b16 %v467
        %v655 = vunpack.c.h.b16 %v467
        %v656 = vunpack.c.l.b16 %v468
        %v657 = vunpack.c.h.b16 %v468
        %v658 = vunpack.c.l.b16 %v469
        %v659 = vunpack.c.h.b16 %v469
        %v660 = vunpack.c.l.b16 %v470
        %v661 = vunpack.c.h.b16 %v470
        %v662 = vunpack.c.l.b16 %v471
        %v663 = vunpack.c.h.b16 %v471
        %v664 = vunpack.c.l.b16 %v472
        %v665 = vunpack.c.h.b16 %v472
        %v666 = vunpack.c.l.b16 %v473
        %v667 = vunpack.c.h.b16 %v473
        %v668 = vunpack.c.l.b16 %v474
        %v669 = vunpack.c.h.b16 %v474
        %v670 = vunpack.c.l.b16 %v475
        %v671 = vunpack.c.h.b16 %v475
        %v672 = vunpack.c.l.b16 %v476
        %v673 = vunpack.c.h.b16 %v476
        %v674 = vunpack.c.l.b16 %v477
        %v675 = vunpack.c.h.b16 %v477
        %v676 = vunpack.c.l.b16 %v478
        %v677 = vunpack.c.h.b16 %v478
        %v678 = vunpack.c.l.b16 %v479
        %v679 = vunpack.c.h.b16 %v479
        %v680 = vunpack.c.l.b16 %v480
        %v681 = vunpack.c.h.b16 %v480
        %v682 = vunpack.c.l.b16 %v481
        %v683 = vunpack.c.h.b16 %v481
        %v684 = vunpack.c.l.b16 %v482
        %v685 = vunpack.c.h.b16 %v482
        %v686 = vunpack.c.l.b16 %v483
        %v687 = vunpack.c.h.b16 %v483
        %v688 = vunpack.c.l.b16 %v484
        %v689 = vunpack.c.h.b16 %v484
        %v690 = vunpack.c.l.b16 %v485
        %v691 = vunpack.c.h.b16 %v485
        %v692 = vunpack.c.l.b16 %v486
        %v693 = vunpack.c.h.b16 %v486
        %v694 = vunpack.c.l.b16 %v487
        %v695 = vunpack.c.h.b16 %v487
        %v696 = vunpack.c.l.b16 %v488
        %v697 = vunpack.c.h.b16 %v488
        %v698 = vunpack.c.l.b16 %v489
        %v699 = vunpack.c.h.b16 %v489
        %v700 = vunpack.c.l.b16 %v490
        %v701 = vunpack.c.h.b16 %v490
        %v702 = vunpack.c.l.b16 %v491
        %v703 = vunpack.c.h.b16 %v491
        %v704 = vunpack.c.l.b16 %v492
        %v705 = vunpack.c.h.b16 %v492
        %v706 = vunpack.c.l.b16 %v493
        %v707 = vunpack.c.h.b16 %v493
        %v708 = vunpack.c.l.b16 %v494
        %v709 = vunpack.c.h.b16 %v494
        %v710 = vunpack.c.l.b16 %v495
        %v711 = vunpack.c.h.b16 %v495
        %v712 = vunpack.c.l.b16 %v496
        %v713 = vunpack.c.h.b16 %v496
        %v714 = vunpack.c.l.b16 %v497
        %v715 = vunpack.c.h.b16 %v497
        %v716 = vunpack.c.l.b16 %v498
        %v717 = vunpack.c.h.b16 %v498
        %v718 = vunpack.c.l.b16 %v499
        %v719 = vunpack.c.h.b16 %v499
        %v720 = vunpack.c.l.b16 %v500
        %v721 = vunpack.c.h.b16 %v500
        %v722 = vunpack.c.l.b16 %v501
        %v723 = vunpack.c.h.b16 %v501
        %v724 = vunpack.c.l.b16 %v502
        %v725 = vunpack.c.h.b16 %v502
        %v726 = vunpack.c.l.b16 %v503
        %v727 = vunpack.c.h.b16 %v503
        %v728 = vunpack.c.l.b16 %v504
        %v729 = vunpack.c.h.b16 %v504
        %v730 = vunpack.c.l.b16 %v505
        %v731 = vunpack.c.h.b16 %v505
        %v732 = vunpack.c.l.b16 %v506
        %v733 = vunpack.c.h.b16 %v506
        %v734 = vunpack.c.l.b16 %v507
        %v735 = vunpack.c.h.b16 %v507
        %v736 = vunpack.c.l.b16 %v508
        %v737 = vunpack.c.h.b16 %v508
        %v738 = vunpack.c.l.b16 %v509
        %v739 = vunpack.c.h.b16 %v509
        %v740 = vunpack.c.l.b16 %v510
        %v741 = vunpack.c.h.b16 %v510
        %v742 = vunpack.c.l.b16 %v511
        %v743 = vunpack.c.h.b16 %v511
        %v744 = vunpack.c.l.b16 %v512
        %v745 = vunpack.c.h.b16 %v512
        %v746 = vunpack.c.l.b16 %v513
        %v747 = vunpack.c.h.b16 %v513
        %v748 = vunpack.c.l.b16 %v514
        %v749 = vunpack.c.h.b16 %v514
        %v750 = vunpack.c.l.b16 %v515
        %v751 = vunpack.c.h.b16 %v515
        %v752 = vunpack.c.l.b16 %v516
        %v753 = vunpack.c.h.b16 %v516
        %v754 = vunpack.c.l.b16 %v517
        %v755 = vunpack.c.h.b16 %v517
        %v756 = vunpack.c.l.b16 %v518
        %v757 = vunpack.c.h.b16 %v518
        %v758 = vunpack.c.l.b16 %v519
        %v759 = vunpack.c.h.b16 %v519
        %v760 = vpack.c.b16 %v634, %v632
        %v761 = vpack.c.b16 %v635, %v633
        %v762 = vpack.c.b16 %v638, %v636
        %v763 = vpack.c.b16 %v639, %v637
        %v764 = vpack.c.b16 %v642, %v640
        %v765 = vpack.c.b16 %v643, %v641
        %v766 = vpack.c.b16 %v646, %v644
        %v767 = vpack.c.b16 %v647, %v645
        %v768 = vpack.c.b16 %v650, %v648
        %v769 = vpack.c.b16 %v651, %v649
        %v770 = vpack.c.b16 %v654, %v652
        %v771 = vpack.c.b16 %v655, %v653
        %v772 = vpack.c.b16 %v658, %v656
        %v773 = vpack.c.b16 %v659, %v657
        %v774 = vpack.c.b16 %v662, %v660
        %v775 = vpack.c.b16 %v663, %v661
        %v776 = vpack.c.b16 %v666, %v664
        %v777 = vpack.c.b16 %v667, %v665
        %v778 = vpack.c.b16 %v670, %v668
        %v779 = vpack.c.b16 %v671, %v669
        %v780 = vpack.c.b16 %v674, %v672
        %v781 = vpack.c.b16 %v675, %v673
        %v782 = vpack.c.b16 %v678, %v676
        %v783 = vpack.c.b16 %v679, %v677
        %v784 = vpack.c.b16 %v682, %v680
        %v785 = vpack.c.b16 %v683, %v681
        %v786 = vpack.c.b16 %v686, %v684
        %v787 = vpack.c.b16 %v687, %v685
        %v788 = vpack.c.b16 %v690, %v688
        %v789 = vpack.c.b16 %v691, %v689
        %v790 = vpack.c.b16 %v694, %v692
        %v791 = vpack.c.b16 %v695, %v693
        %v792 = vpack.c.b16 %v698, %v696
        %v793 = vpack.c.b16 %v699, %v697
        %v794 = vpack.c.b16 %v702, %v700
        %v795 = vpack.c.b16 %v703, %v701
        %v796 = vpack.c.b16 %v706, %v704
        %v797 = vpack.c.b16 %v707, %v705
        %v798 = vpack.c.b16 %v710, %v708
        %v799 = vpack.c.b16 %v711, %v709
        %v800 = vpack.c.b16 %v714, %v712
        %v801 = vpack.c.b16 %v715, %v713
        %v802 = vpack.c.b16 %v718, %v716
        %v803 = vpack.c.b16 %v719, %v717
        %v804 = vpack.c.b16 %v722, %v720
        %v805 = vpack.c.b16 %v723, %v721
        %v806 = vpack.c.b16 %v726, %v724
        %v807 = vpack.c.b16 %v727, %v725
        %v808 = vpack.c.b16 %v730, %v728
        %v809 = vpack.c.b16 %v731, %v729
        %v810 = vpack.c.b16 %v734, %v732
        %v811 = vpack.c.b16 %v735, %v733
        %v812 = vpack.c.b16 %v738, %v736
        %v813 = vpack.c.b16 %v739, %v737
        %v814 = vpack.c.b16 %v742, %v740
        %v815 = vpack.c.b16 %v743, %v741
        %v816 = vpack.c.b16 %v746, %v744
        %v817 = vpack.c.b16 %v747, %v745
        %v818 = vpack.c.b16 %v750, %v748
        %v819 = vpack.c.b16 %v751, %v749
        %v820 = vpack.c.b16 %v754, %v752
        %v821 = vpack.c.b16 %v755, %v753
        %v822 = vpack.c.b16 %v758, %v756
        %v823 = vpack.c.b16 %v759, %v757
        %888 = vmatprep.subr.bf16.mxu0 %v761
        %889 = vmatpush1.bf16.msra.mxu0 %v760
        %890 = vmatprep.subr.bf16.mxu0 %v763
        %891 = vmatpush1.bf16.msra.mxu0 %v762
        %892 = vmatprep.subr.bf16.mxu0 %v765
        %893 = vmatpush1.bf16.msra.mxu0 %v764
        %894 = vmatprep.subr.bf16.mxu0 %v767
        %895 = vmatpush1.bf16.msra.mxu0 %v766
        %896 = vmatprep.subr.bf16.mxu0 %v769
        %897 = vmatpush1.bf16.msra.mxu0 %v768
        %898 = vmatprep.subr.bf16.mxu0 %v771
        %899 = vmatpush1.bf16.msra.mxu0 %v770
        %900 = vmatprep.subr.bf16.mxu0 %v773
        %901 = vmatpush1.bf16.msra.mxu0 %v772
        %902 = vmatprep.subr.bf16.mxu0 %v775
        %903 = vmatpush1.bf16.msra.mxu0 %v774
        %904 = vmatprep.subr.bf16.mxu0 %v777
        %905 = vmatpush1.bf16.msra.mxu0 %v776
        %906 = vmatprep.subr.bf16.mxu0 %v779
        %907 = vmatpush1.bf16.msra.mxu0 %v778
        %908 = vmatprep.subr.bf16.mxu0 %v781
        %909 = vmatpush1.bf16.msra.mxu0 %v780
        %910 = vmatprep.subr.bf16.mxu0 %v783
        %911 = vmatpush1.bf16.msra.mxu0 %v782
        %912 = vmatprep.subr.bf16.mxu0 %v785
        %913 = vmatpush1.bf16.msra.mxu0 %v784
        %914 = vmatprep.subr.bf16.mxu0 %v787
        %915 = vmatpush1.bf16.msra.mxu0 %v786
        %916 = vmatprep.subr.bf16.mxu0 %v789
        %917 = vmatpush1.bf16.msra.mxu0 %v788
        %918 = vmatprep.subr.bf16.mxu0 %v791
        %919 = vmatpush1.bf16.msra.mxu0 %v790
        %920 = vmatprep.mubr.bf16.mxu0 %v549
        %921 = vmatmul.mubr.bf16.gmra.mrb[0].mxu0 %v542
        %v922 = vpop.f32.mrb[0].mxu0
        %v923 = vadd.f32 0.0, %v922
        %v924 = vpop.f32.mrb[0].mxu0
        %v925 = vadd.f32 0.0, %v924
        %v926 = vpop.f32.mrb[0].mxu0
        %v927 = vpop.f32.mrb[0].mxu0
        %928 = vdwg.mxu0
        %929 = vmatprep.subr.bf16.mxu0 %v793
        %930 = vmatpush1.bf16.msra.mxu0 %v792
        %931 = vmatprep.subr.bf16.mxu0 %v795
        %932 = vmatpush1.bf16.msra.mxu0 %v794
        %933 = vmatprep.subr.bf16.mxu0 %v797
        %934 = vmatpush1.bf16.msra.mxu0 %v796
        %935 = vmatprep.subr.bf16.mxu0 %v799
        %936 = vmatpush1.bf16.msra.mxu0 %v798
        %937 = vmatprep.subr.bf16.mxu0 %v801
        %938 = vmatpush1.bf16.msra.mxu0 %v800
        %939 = vmatprep.subr.bf16.mxu0 %v803
        %940 = vmatpush1.bf16.msra.mxu0 %v802
        %941 = vmatprep.subr.bf16.mxu0 %v805
        %942 = vmatpush1.bf16.msra.mxu0 %v804
        %943 = vmatprep.subr.bf16.mxu0 %v807
        %944 = vmatpush1.bf16.msra.mxu0 %v806
        %945 = vmatprep.subr.bf16.mxu0 %v809
        %946 = vmatpush1.bf16.msra.mxu0 %v808
        %947 = vmatprep.subr.bf16.mxu0 %v811
        %948 = vmatpush1.bf16.msra.mxu0 %v810
        %949 = vmatprep.subr.bf16.mxu0 %v813
        %950 = vmatpush1.bf16.msra.mxu0 %v812
        %951 = vmatprep.subr.bf16.mxu0 %v815
        %952 = vmatpush1.bf16.msra.mxu0 %v814
        %953 = vmatprep.subr.bf16.mxu0 %v817
        %954 = vmatpush1.bf16.msra.mxu0 %v816
        %955 = vmatprep.subr.bf16.mxu0 %v819
        %956 = vmatpush1.bf16.msra.mxu0 %v818
        %957 = vmatprep.subr.bf16.mxu0 %v821
        %958 = vmatpush1.bf16.msra.mxu0 %v820
        %959 = vmatprep.subr.bf16.mxu0 %v823
        %960 = vmatpush1.bf16.msra.mxu0 %v822
        %961 = vmatprep.mubr.bf16.mxu0 %v563
        %962 = vmatmul.mubr.bf16.gmra.mrb[0].mxu0 %v556
        %v963 = vpop.f32.mrb[0].mxu0
        %v964 = vadd.f32 %v923, %v963
        %v965 = vpop.f32.mrb[0].mxu0
        %v966 = vadd.f32 %v925, %v965
        %v967 = vpop.f32.mrb[0].mxu0
        %v968 = vpop.f32.mrb[0].mxu0
        %969 = vdwg.mxu0
        %v970 = vpack.c.b16 %v524, %v524
        %v971 = vpack.c.b16 %v525, %v525
        %v972 = vpack.c.b16 %v526, %v526
        %v973 = vpack.c.b16 %v527, %v527
        %v1042 = vunpack.c.l.b16 %v389
        %v1043 = vunpack.c.h.b16 %v389
        %v1044 = vunpack.c.l.b16 %v390
        %v1045 = vunpack.c.h.b16 %v390
        %v1046 = vunpack.c.l.b16 %v391
        %v1047 = vunpack.c.h.b16 %v391
        %v1048 = vunpack.c.l.b16 %v392
        %v1049 = vunpack.c.h.b16 %v392
        %v1050 = vunpack.c.l.b16 %v393
        %v1051 = vunpack.c.h.b16 %v393
        %v1052 = vunpack.c.l.b16 %v394
        %v1053 = vunpack.c.h.b16 %v394
        %v1054 = vunpack.c.l.b16 %v395
        %v1055 = vunpack.c.h.b16 %v395
        %v1056 = vunpack.c.l.b16 %v396
        %v1057 = vunpack.c.h.b16 %v396
        %v1058 = vunpack.c.l.b16 %v397
        %v1059 = vunpack.c.h.b16 %v397
        %v1060 = vunpack.c.l.b16 %v398
        %v1061 = vunpack.c.h.b16 %v398
        %v1062 = vunpack.c.l.b16 %v399
        %v1063 = vunpack.c.h.b16 %v399
        %v1064 = vunpack.c.l.b16 %v400
        %v1065 = vunpack.c.h.b16 %v400
        %v1066 = vunpack.c.l.b16 %v401
        %v1067 = vunpack.c.h.b16 %v401
        %v1068 = vunpack.c.l.b16 %v402
        %v1069 = vunpack.c.h.b16 %v402
        %v1070 = vunpack.c.l.b16 %v403
        %v1071 = vunpack.c.h.b16 %v403
        %v1072 = vunpack.c.l.b16 %v404
        %v1073 = vunpack.c.h.b16 %v404
        %v1074 = vunpack.c.l.b16 %v405
        %v1075 = vunpack.c.h.b16 %v405
        %v1076 = vunpack.c.l.b16 %v406
        %v1077 = vunpack.c.h.b16 %v406
        %v1078 = vunpack.c.l.b16 %v407
        %v1079 = vunpack.c.h.b16 %v407
        %v1080 = vunpack.c.l.b16 %v408
        %v1081 = vunpack.c.h.b16 %v408
        %v1082 = vunpack.c.l.b16 %v409
        %v1083 = vunpack.c.h.b16 %v409
        %v1084 = vunpack.c.l.b16 %v410
        %v1085 = vunpack.c.h.b16 %v410
        %v1086 = vunpack.c.l.b16 %v411
        %v1087 = vunpack.c.h.b16 %v411
        %v1088 = vunpack.c.l.b16 %v412
        %v1089 = vunpack.c.h.b16 %v412
        %v1090 = vunpack.c.l.b16 %v413
        %v1091 = vunpack.c.h.b16 %v413
        %v1092 = vunpack.c.l.b16 %v414
        %v1093 = vunpack.c.h.b16 %v414
        %v1094 = vunpack.c.l.b16 %v415
        %v1095 = vunpack.c.h.b16 %v415
        %v1096 = vunpack.c.l.b16 %v416
        %v1097 = vunpack.c.h.b16 %v416
        %v1098 = vunpack.c.l.b16 %v417
        %v1099 = vunpack.c.h.b16 %v417
        %v1100 = vunpack.c.l.b16 %v418
        %v1101 = vunpack.c.h.b16 %v418
        %v1102 = vunpack.c.l.b16 %v419
        %v1103 = vunpack.c.h.b16 %v419
        %v1104 = vunpack.c.l.b16 %v420
        %v1105 = vunpack.c.h.b16 %v420
        %v1106 = vunpack.c.l.b16 %v421
        %v1107 = vunpack.c.h.b16 %v421
        %v1108 = vunpack.c.l.b16 %v422
        %v1109 = vunpack.c.h.b16 %v422
        %v1110 = vunpack.c.l.b16 %v423
        %v1111 = vunpack.c.h.b16 %v423
        %v1112 = vunpack.c.l.b16 %v424
        %v1113 = vunpack.c.h.b16 %v424
        %v1114 = vunpack.c.l.b16 %v425
        %v1115 = vunpack.c.h.b16 %v425
        %v1116 = vunpack.c.l.b16 %v426
        %v1117 = vunpack.c.h.b16 %v426
        %v1118 = vunpack.c.l.b16 %v427
        %v1119 = vunpack.c.h.b16 %v427
        %v1120 = vunpack.c.l.b16 %v428
        %v1121 = vunpack.c.h.b16 %v428
        %v1122 = vunpack.c.l.b16 %v429
        %v1123 = vunpack.c.h.b16 %v429
        %v1124 = vunpack.c.l.b16 %v430
        %v1125 = vunpack.c.h.b16 %v430
        %v1126 = vunpack.c.l.b16 %v431
        %v1127 = vunpack.c.h.b16 %v431
        %v1128 = vunpack.c.l.b16 %v432
        %v1129 = vunpack.c.h.b16 %v432
        %v1130 = vunpack.c.l.b16 %v433
        %v1131 = vunpack.c.h.b16 %v433
        %v1132 = vunpack.c.l.b16 %v434
        %v1133 = vunpack.c.h.b16 %v434
        %v1134 = vunpack.c.l.b16 %v435
        %v1135 = vunpack.c.h.b16 %v435
        %v1136 = vunpack.c.l.b16 %v436
        %v1137 = vunpack.c.h.b16 %v436
        %v1138 = vunpack.c.l.b16 %v437
        %v1139 = vunpack.c.h.b16 %v437
        %v1140 = vunpack.c.l.b16 %v438
        %v1141 = vunpack.c.h.b16 %v438
        %v1142 = vunpack.c.l.b16 %v439
        %v1143 = vunpack.c.h.b16 %v439
        %v1144 = vunpack.c.l.b16 %v440
        %v1145 = vunpack.c.h.b16 %v440
        %v1146 = vunpack.c.l.b16 %v441
        %v1147 = vunpack.c.h.b16 %v441
        %v1148 = vunpack.c.l.b16 %v442
        %v1149 = vunpack.c.h.b16 %v442
        %v1150 = vunpack.c.l.b16 %v443
        %v1151 = vunpack.c.h.b16 %v443
        %v1152 = vunpack.c.l.b16 %v444
        %v1153 = vunpack.c.h.b16 %v444
        %v1154 = vunpack.c.l.b16 %v445
        %v1155 = vunpack.c.h.b16 %v445
        %v1156 = vunpack.c.l.b16 %v446
        %v1157 = vunpack.c.h.b16 %v446
        %v1158 = vunpack.c.l.b16 %v447
        %v1159 = vunpack.c.h.b16 %v447
        %v1160 = vunpack.c.l.b16 %v448
        %v1161 = vunpack.c.h.b16 %v448
        %v1162 = vunpack.c.l.b16 %v449
        %v1163 = vunpack.c.h.b16 %v449
        %v1164 = vunpack.c.l.b16 %v450
        %v1165 = vunpack.c.h.b16 %v450
        %v1166 = vunpack.c.l.b16 %v451
        %v1167 = vunpack.c.h.b16 %v451
        %v1168 = vunpack.c.l.b16 %v452
        %v1169 = vunpack.c.h.b16 %v452
        %v1170 = vpack.c.b16 %v1044, %v1042
        %v1171 = vpack.c.b16 %v1045, %v1043
        %v1172 = vpack.c.b16 %v1048, %v1046
        %v1173 = vpack.c.b16 %v1049, %v1047
        %v1174 = vpack.c.b16 %v1052, %v1050
        %v1175 = vpack.c.b16 %v1053, %v1051
        %v1176 = vpack.c.b16 %v1056, %v1054
        %v1177 = vpack.c.b16 %v1057, %v1055
        %v1178 = vpack.c.b16 %v1060, %v1058
        %v1179 = vpack.c.b16 %v1061, %v1059
        %v1180 = vpack.c.b16 %v1064, %v1062
        %v1181 = vpack.c.b16 %v1065, %v1063
        %v1182 = vpack.c.b16 %v1068, %v1066
        %v1183 = vpack.c.b16 %v1069, %v1067
        %v1184 = vpack.c.b16 %v1072, %v1070
        %v1185 = vpack.c.b16 %v1073, %v1071
        %v1186 = vpack.c.b16 %v1076, %v1074
        %v1187 = vpack.c.b16 %v1077, %v1075
        %v1188 = vpack.c.b16 %v1080, %v1078
        %v1189 = vpack.c.b16 %v1081, %v1079
        %v1190 = vpack.c.b16 %v1084, %v1082
        %v1191 = vpack.c.b16 %v1085, %v1083
        %v1192 = vpack.c.b16 %v1088, %v1086
        %v1193 = vpack.c.b16 %v1089, %v1087
        %v1194 = vpack.c.b16 %v1092, %v1090
        %v1195 = vpack.c.b16 %v1093, %v1091
        %v1196 = vpack.c.b16 %v1096, %v1094
        %v1197 = vpack.c.b16 %v1097, %v1095
        %v1198 = vpack.c.b16 %v1100, %v1098
        %v1199 = vpack.c.b16 %v1101, %v1099
        %v1200 = vpack.c.b16 %v1104, %v1102
        %v1201 = vpack.c.b16 %v1105, %v1103
        %v1202 = vpack.c.b16 %v1108, %v1106
        %v1203 = vpack.c.b16 %v1109, %v1107
        %v1204 = vpack.c.b16 %v1112, %v1110
        %v1205 = vpack.c.b16 %v1113, %v1111
        %v1206 = vpack.c.b16 %v1116, %v1114
        %v1207 = vpack.c.b16 %v1117, %v1115
        %v1208 = vpack.c.b16 %v1120, %v1118
        %v1209 = vpack.c.b16 %v1121, %v1119
        %v1210 = vpack.c.b16 %v1124, %v1122
        %v1211 = vpack.c.b16 %v1125, %v1123
        %v1212 = vpack.c.b16 %v1128, %v1126
        %v1213 = vpack.c.b16 %v1129, %v1127
        %v1214 = vpack.c.b16 %v1132, %v1130
        %v1215 = vpack.c.b16 %v1133, %v1131
        %v1216 = vpack.c.b16 %v1136, %v1134
        %v1217 = vpack.c.b16 %v1137, %v1135
        %v1218 = vpack.c.b16 %v1140, %v1138
        %v1219 = vpack.c.b16 %v1141, %v1139
        %v1220 = vpack.c.b16 %v1144, %v1142
        %v1221 = vpack.c.b16 %v1145, %v1143
        %v1222 = vpack.c.b16 %v1148, %v1146
        %v1223 = vpack.c.b16 %v1149, %v1147
        %v1224 = vpack.c.b16 %v1152, %v1150
        %v1225 = vpack.c.b16 %v1153, %v1151
        %v1226 = vpack.c.b16 %v1156, %v1154
        %v1227 = vpack.c.b16 %v1157, %v1155
        %v1228 = vpack.c.b16 %v1160, %v1158
        %v1229 = vpack.c.b16 %v1161, %v1159
        %v1230 = vpack.c.b16 %v1164, %v1162
        %v1231 = vpack.c.b16 %v1165, %v1163
        %v1232 = vpack.c.b16 %v1168, %v1166
        %v1233 = vpack.c.b16 %v1169, %v1167
        %1298 = vmatprep.subr.bf16.mxu0 %v1171
        %1299 = vmatpush1.bf16.msra.mxu0 %v1170
        %1300 = vmatprep.subr.bf16.mxu0 %v1173
        %1301 = vmatpush1.bf16.msra.mxu0 %v1172
        %1302 = vmatprep.subr.bf16.mxu0 %v1175
        %1303 = vmatpush1.bf16.msra.mxu0 %v1174
        %1304 = vmatprep.subr.bf16.mxu0 %v1177
        %1305 = vmatpush1.bf16.msra.mxu0 %v1176
        %1306 = vmatprep.subr.bf16.mxu0 %v1179
        %1307 = vmatpush1.bf16.msra.mxu0 %v1178
        %1308 = vmatprep.subr.bf16.mxu0 %v1181
        %1309 = vmatpush1.bf16.msra.mxu0 %v1180
        %1310 = vmatprep.subr.bf16.mxu0 %v1183
        %1311 = vmatpush1.bf16.msra.mxu0 %v1182
        %1312 = vmatprep.subr.bf16.mxu0 %v1185
        %1313 = vmatpush1.bf16.msra.mxu0 %v1184
        %1314 = vmatprep.subr.bf16.mxu0 %v1187
        %1315 = vmatpush1.bf16.msra.mxu0 %v1186
        %1316 = vmatprep.subr.bf16.mxu0 %v1189
        %1317 = vmatpush1.bf16.msra.mxu0 %v1188
        %1318 = vmatprep.subr.bf16.mxu0 %v1191
        %1319 = vmatpush1.bf16.msra.mxu0 %v1190
        %1320 = vmatprep.subr.bf16.mxu0 %v1193
        %1321 = vmatpush1.bf16.msra.mxu0 %v1192
        %1322 = vmatprep.subr.bf16.mxu0 %v1195
        %1323 = vmatpush1.bf16.msra.mxu0 %v1194
        %1324 = vmatprep.subr.bf16.mxu0 %v1197
        %1325 = vmatpush1.bf16.msra.mxu0 %v1196
        %1326 = vmatprep.subr.bf16.mxu0 %v1199
        %1327 = vmatpush1.bf16.msra.mxu0 %v1198
        %1328 = vmatprep.subr.bf16.mxu0 %v1201
        %1329 = vmatpush1.bf16.msra.mxu0 %v1200
        %1330 = vmatprep.mubr.bf16.mxu0 %v971
        %1331 = vmatmul.mubr.bf16.gmra.mrb[0].mxu0 %v970
        %v1332 = vpop.f32.mrb[0].mxu0
        %v1333 = vadd.f32 %v964, %v1332
        %v1334 = vpop.f32.mrb[0].mxu0
        %v1335 = vadd.f32 %v966, %v1334
        %v1336 = vpop.f32.mrb[0].mxu0
        %v1337 = vpop.f32.mrb[0].mxu0
        %1338 = vdwg.mxu0
        %1339 = vmatprep.subr.bf16.mxu0 %v1203
        %1340 = vmatpush1.bf16.msra.mxu0 %v1202
        %1341 = vmatprep.subr.bf16.mxu0 %v1205
        %1342 = vmatpush1.bf16.msra.mxu0 %v1204
        %1343 = vmatprep.subr.bf16.mxu0 %v1207
        %1344 = vmatpush1.bf16.msra.mxu0 %v1206
        %1345 = vmatprep.subr.bf16.mxu0 %v1209
        %1346 = vmatpush1.bf16.msra.mxu0 %v1208
        %1347 = vmatprep.subr.bf16.mxu0 %v1211
        %1348 = vmatpush1.bf16.msra.mxu0 %v1210
        %1349 = vmatprep.subr.bf16.mxu0 %v1213
        %1350 = vmatpush1.bf16.msra.mxu0 %v1212
        %1351 = vmatprep.subr.bf16.mxu0 %v1215
        %1352 = vmatpush1.bf16.msra.mxu0 %v1214
        %1353 = vmatprep.subr.bf16.mxu0 %v1217
        %1354 = vmatpush1.bf16.msra.mxu0 %v1216
        %1355 = vmatprep.subr.bf16.mxu0 %v1219
        %1356 = vmatpush1.bf16.msra.mxu0 %v1218
        %1357 = vmatprep.subr.bf16.mxu0 %v1221
        %1358 = vmatpush1.bf16.msra.mxu0 %v1220
        %1359 = vmatprep.subr.bf16.mxu0 %v1223
        %1360 = vmatpush1.bf16.msra.mxu0 %v1222
        %1361 = vmatprep.subr.bf16.mxu0 %v1225
        %1362 = vmatpush1.bf16.msra.mxu0 %v1224
        %1363 = vmatprep.subr.bf16.mxu0 %v1227
        %1364 = vmatpush1.bf16.msra.mxu0 %v1226
        %1365 = vmatprep.subr.bf16.mxu0 %v1229
        %1366 = vmatpush1.bf16.msra.mxu0 %v1228
        %1367 = vmatprep.subr.bf16.mxu0 %v1231
        %1368 = vmatpush1.bf16.msra.mxu0 %v1230
        %1369 = vmatprep.subr.bf16.mxu0 %v1233
        %1370 = vmatpush1.bf16.msra.mxu0 %v1232
        %1371 = vmatprep.mubr.bf16.mxu0 %v973
        %1372 = vmatmul.mubr.bf16.gmra.mrb[0].mxu0 %v972
        %v1373 = vpop.f32.mrb[0].mxu0
        %v1374 = vadd.f32 %v1333, %v1373
        %v1375 = vpop.f32.mrb[0].mxu0
        %v1376 = vadd.f32 %v1335, %v1375
        %v1377 = vpop.f32.mrb[0].mxu0
        %v1378 = vpop.f32.mrb[0].mxu0
        %1379 = vdwg.mxu0
        %v1380 = vld [vmem:[%s323] sm:$0xee]
        %v1381 = vld [vmem:[%s323 + $0x8] sm:$0xee]
        %s1382 = scalar_lea.vmem %s331, 1024 [#allocation4]
        %v1383 = vld [vmem:[%s1382] sm:$0xff]
        %v1384 = vld [vmem:[%s1382 + $0x8] sm:$0xff]
        %v1385 = vld [vmem:[%s1382 + $0x10] sm:$0xff]
        %v1386 = vld [vmem:[%s1382 + $0x18] sm:$0xff]
        %v1387 = vld [vmem:[%s1382 + $0x20] sm:$0xff]
        %v1388 = vld [vmem:[%s1382 + $0x28] sm:$0xff]
        %v1389 = vld [vmem:[%s1382 + $0x30] sm:$0xff]
        %v1390 = vld [vmem:[%s1382 + $0x38] sm:$0xff]
        %v1391 = vld [vmem:[%s1382 + $0x40] sm:$0xff]
        %v1392 = vld [vmem:[%s1382 + $0x48] sm:$0xff]
        %v1393 = vld [vmem:[%s1382 + $0x50] sm:$0xff]
        %v1394 = vld [vmem:[%s1382 + $0x58] sm:$0xff]
        %v1395 = vld [vmem:[%s1382 + $0x60] sm:$0xff]
        %v1396 = vld [vmem:[%s1382 + $0x68] sm:$0xff]
        %v1397 = vld [vmem:[%s1382 + $0x70] sm:$0xff]
        %v1398 = vld [vmem:[%s1382 + $0x78] sm:$0xff]
        %v1399 = vld [vmem:[%s1382 + $0x80] sm:$0xff]
        %v1400 = vld [vmem:[%s1382 + $0x88] sm:$0xff]
        %v1401 = vld [vmem:[%s1382 + $0x90] sm:$0xff]
        %v1402 = vld [vmem:[%s1382 + $0x98] sm:$0xff]
        %v1403 = vld [vmem:[%s1382 + $0xa0] sm:$0xff]
        %v1404 = vld [vmem:[%s1382 + $0xa8] sm:$0xff]
        %v1405 = vld [vmem:[%s1382 + $0xb0] sm:$0xff]
        %v1406 = vld [vmem:[%s1382 + $0xb8] sm:$0xff]
        %v1407 = vld [vmem:[%s1382 + $0xc0] sm:$0xff]
        %v1408 = vld [vmem:[%s1382 + $0xc8] sm:$0xff]
        %v1409 = vld [vmem:[%s1382 + $0xd0] sm:$0xff]
        %v1410 = vld [vmem:[%s1382 + $0xd8] sm:$0xff]
        %v1411 = vld [vmem:[%s1382 + $0xe0] sm:$0xff]
        %v1412 = vld [vmem:[%s1382 + $0xe8] sm:$0xff]
        %v1413 = vld [vmem:[%s1382 + $0xf0] sm:$0xff]
        %v1414 = vld [vmem:[%s1382 + $0xf8] sm:$0xff]
        %v1415 = vld [vmem:[%s1382 + $0x100] sm:$0xff]
        %v1416 = vld [vmem:[%s1382 + $0x108] sm:$0xff]
        %v1417 = vld [vmem:[%s1382 + $0x110] sm:$0xff]
        %v1418 = vld [vmem:[%s1382 + $0x118] sm:$0xff]
        %v1419 = vld [vmem:[%s1382 + $0x120] sm:$0xff]
        %v1420 = vld [vmem:[%s1382 + $0x128] sm:$0xff]
        %v1421 = vld [vmem:[%s1382 + $0x130] sm:$0xff]
        %v1422 = vld [vmem:[%s1382 + $0x138] sm:$0xff]
        %v1423 = vld [vmem:[%s1382 + $0x140] sm:$0xff]
        %v1424 = vld [vmem:[%s1382 + $0x148] sm:$0xff]
        %v1425 = vld [vmem:[%s1382 + $0x150] sm:$0xff]
        %v1426 = vld [vmem:[%s1382 + $0x158] sm:$0xff]
        %v1427 = vld [vmem:[%s1382 + $0x160] sm:$0xff]
        %v1428 = vld [vmem:[%s1382 + $0x168] sm:$0xff]
        %v1429 = vld [vmem:[%s1382 + $0x170] sm:$0xff]
        %v1430 = vld [vmem:[%s1382 + $0x178] sm:$0xff]
        %v1431 = vld [vmem:[%s1382 + $0x180] sm:$0xff]
        %v1432 = vld [vmem:[%s1382 + $0x188] sm:$0xff]
        %v1433 = vld [vmem:[%s1382 + $0x190] sm:$0xff]
        %v1434 = vld [vmem:[%s1382 + $0x198] sm:$0xff]
        %v1435 = vld [vmem:[%s1382 + $0x1a0] sm:$0xff]
        %v1436 = vld [vmem:[%s1382 + $0x1a8] sm:$0xff]
        %v1437 = vld [vmem:[%s1382 + $0x1b0] sm:$0xff]
        %v1438 = vld [vmem:[%s1382 + $0x1b8] sm:$0xff]
        %v1439 = vld [vmem:[%s1382 + $0x1c0] sm:$0xff]
        %v1440 = vld [vmem:[%s1382 + $0x1c8] sm:$0xff]
        %v1441 = vld [vmem:[%s1382 + $0x1d0] sm:$0xff]
        %v1442 = vld [vmem:[%s1382 + $0x1d8] sm:$0xff]
        %v1443 = vld [vmem:[%s1382 + $0x1e0] sm:$0xff]
        %v1444 = vld [vmem:[%s1382 + $0x1e8] sm:$0xff]
        %v1445 = vld [vmem:[%s1382 + $0x1f0] sm:$0xff]
        %v1446 = vld [vmem:[%s1382 + $0x1f8] sm:$0xff]
        %v1449 = vunpack.c.l.b16 %v1380
        %v1450 = vunpack.c.h.b16 %v1380
        %v1451 = vunpack.c.l.b16 %v1381
        %v1452 = vunpack.c.h.b16 %v1381
        %v1453 = vpack.c.b16 %v528, %v1449
        %v1454 = vpack.c.b16 %v529, %v1450
        %v1455 = vpack.c.b16 %v530, %v1451
        %v1456 = vpack.c.b16 %v531, %v1452
        %v1457 = vrot.slane %v1453, 1
        %v1458 = vrot.slane %v1454, 1
        %v1459 = vrot.slane %v1455, 1
        %v1460 = vrot.slane %v1456, 1
        %v1529 = vunpack.c.l.b16 %v1383
        %v1530 = vunpack.c.h.b16 %v1383
        %v1531 = vunpack.c.l.b16 %v1384
        %v1532 = vunpack.c.h.b16 %v1384
        %v1533 = vunpack.c.l.b16 %v1385
        %v1534 = vunpack.c.h.b16 %v1385
        %v1535 = vunpack.c.l.b16 %v1386
        %v1536 = vunpack.c.h.b16 %v1386
        %v1537 = vunpack.c.l.b16 %v1387
        %v1538 = vunpack.c.h.b16 %v1387
        %v1539 = vunpack.c.l.b16 %v1388
        %v1540 = vunpack.c.h.b16 %v1388
        %v1541 = vunpack.c.l.b16 %v1389
        %v1542 = vunpack.c.h.b16 %v1389
        %v1543 = vunpack.c.l.b16 %v1390
        %v1544 = vunpack.c.h.b16 %v1390
        %v1545 = vunpack.c.l.b16 %v1391
        %v1546 = vunpack.c.h.b16 %v1391
        %v1547 = vunpack.c.l.b16 %v1392
        %v1548 = vunpack.c.h.b16 %v1392
        %v1549 = vunpack.c.l.b16 %v1393
        %v1550 = vunpack.c.h.b16 %v1393
        %v1551 = vunpack.c.l.b16 %v1394
        %v1552 = vunpack.c.h.b16 %v1394
        %v1553 = vunpack.c.l.b16 %v1395
        %v1554 = vunpack.c.h.b16 %v1395
        %v1555 = vunpack.c.l.b16 %v1396
        %v1556 = vunpack.c.h.b16 %v1396
        %v1557 = vunpack.c.l.b16 %v1397
        %v1558 = vunpack.c.h.b16 %v1397
        %v1559 = vunpack.c.l.b16 %v1398
        %v1560 = vunpack.c.h.b16 %v1398
        %v1561 = vunpack.c.l.b16 %v1399
        %v1562 = vunpack.c.h.b16 %v1399
        %v1563 = vunpack.c.l.b16 %v1400
        %v1564 = vunpack.c.h.b16 %v1400
        %v1565 = vunpack.c.l.b16 %v1401
        %v1566 = vunpack.c.h.b16 %v1401
        %v1567 = vunpack.c.l.b16 %v1402
        %v1568 = vunpack.c.h.b16 %v1402
        %v1569 = vunpack.c.l.b16 %v1403
        %v1570 = vunpack.c.h.b16 %v1403
        %v1571 = vunpack.c.l.b16 %v1404
        %v1572 = vunpack.c.h.b16 %v1404
        %v1573 = vunpack.c.l.b16 %v1405
        %v1574 = vunpack.c.h.b16 %v1405
        %v1575 = vunpack.c.l.b16 %v1406
        %v1576 = vunpack.c.h.b16 %v1406
        %v1577 = vunpack.c.l.b16 %v1407
        %v1578 = vunpack.c.h.b16 %v1407
        %v1579 = vunpack.c.l.b16 %v1408
        %v1580 = vunpack.c.h.b16 %v1408
        %v1581 = vunpack.c.l.b16 %v1409
        %v1582 = vunpack.c.h.b16 %v1409
        %v1583 = vunpack.c.l.b16 %v1410
        %v1584 = vunpack.c.h.b16 %v1410
        %v1585 = vunpack.c.l.b16 %v1411
        %v1586 = vunpack.c.h.b16 %v1411
        %v1587 = vunpack.c.l.b16 %v1412
        %v1588 = vunpack.c.h.b16 %v1412
        %v1589 = vunpack.c.l.b16 %v1413
        %v1590 = vunpack.c.h.b16 %v1413
        %v1591 = vunpack.c.l.b16 %v1414
        %v1592 = vunpack.c.h.b16 %v1414
        %v1593 = vunpack.c.l.b16 %v1415
        %v1594 = vunpack.c.h.b16 %v1415
        %v1595 = vunpack.c.l.b16 %v1416
        %v1596 = vunpack.c.h.b16 %v1416
        %v1597 = vunpack.c.l.b16 %v1417
        %v1598 = vunpack.c.h.b16 %v1417
        %v1599 = vunpack.c.l.b16 %v1418
        %v1600 = vunpack.c.h.b16 %v1418
        %v1601 = vunpack.c.l.b16 %v1419
        %v1602 = vunpack.c.h.b16 %v1419
        %v1603 = vunpack.c.l.b16 %v1420
        %v1604 = vunpack.c.h.b16 %v1420
        %v1605 = vunpack.c.l.b16 %v1421
        %v1606 = vunpack.c.h.b16 %v1421
        %v1607 = vunpack.c.l.b16 %v1422
        %v1608 = vunpack.c.h.b16 %v1422
        %v1609 = vunpack.c.l.b16 %v1423
        %v1610 = vunpack.c.h.b16 %v1423
        %v1611 = vunpack.c.l.b16 %v1424
        %v1612 = vunpack.c.h.b16 %v1424
        %v1613 = vunpack.c.l.b16 %v1425
        %v1614 = vunpack.c.h.b16 %v1425
        %v1615 = vunpack.c.l.b16 %v1426
        %v1616 = vunpack.c.h.b16 %v1426
        %v1617 = vunpack.c.l.b16 %v1427
        %v1618 = vunpack.c.h.b16 %v1427
        %v1619 = vunpack.c.l.b16 %v1428
        %v1620 = vunpack.c.h.b16 %v1428
        %v1621 = vunpack.c.l.b16 %v1429
        %v1622 = vunpack.c.h.b16 %v1429
        %v1623 = vunpack.c.l.b16 %v1430
        %v1624 = vunpack.c.h.b16 %v1430
        %v1625 = vunpack.c.l.b16 %v1431
        %v1626 = vunpack.c.h.b16 %v1431
        %v1627 = vunpack.c.l.b16 %v1432
        %v1628 = vunpack.c.h.b16 %v1432
        %v1629 = vunpack.c.l.b16 %v1433
        %v1630 = vunpack.c.h.b16 %v1433
        %v1631 = vunpack.c.l.b16 %v1434
        %v1632 = vunpack.c.h.b16 %v1434
        %v1633 = vunpack.c.l.b16 %v1435
        %v1634 = vunpack.c.h.b16 %v1435
        %v1635 = vunpack.c.l.b16 %v1436
        %v1636 = vunpack.c.h.b16 %v1436
        %v1637 = vunpack.c.l.b16 %v1437
        %v1638 = vunpack.c.h.b16 %v1437
        %v1639 = vunpack.c.l.b16 %v1438
        %v1640 = vunpack.c.h.b16 %v1438
        %v1641 = vunpack.c.l.b16 %v1439
        %v1642 = vunpack.c.h.b16 %v1439
        %v1643 = vunpack.c.l.b16 %v1440
        %v1644 = vunpack.c.h.b16 %v1440
        %v1645 = vunpack.c.l.b16 %v1441
        %v1646 = vunpack.c.h.b16 %v1441
        %v1647 = vunpack.c.l.b16 %v1442
        %v1648 = vunpack.c.h.b16 %v1442
        %v1649 = vunpack.c.l.b16 %v1443
        %v1650 = vunpack.c.h.b16 %v1443
        %v1651 = vunpack.c.l.b16 %v1444
        %v1652 = vunpack.c.h.b16 %v1444
        %v1653 = vunpack.c.l.b16 %v1445
        %v1654 = vunpack.c.h.b16 %v1445
        %v1655 = vunpack.c.l.b16 %v1446
        %v1656 = vunpack.c.h.b16 %v1446
        %v1657 = vpack.c.b16 %v1531, %v1529
        %v1658 = vpack.c.b16 %v1532, %v1530
        %v1659 = vpack.c.b16 %v1535, %v1533
        %v1660 = vpack.c.b16 %v1536, %v1534
        %v1661 = vpack.c.b16 %v1539, %v1537
        %v1662 = vpack.c.b16 %v1540, %v1538
        %v1663 = vpack.c.b16 %v1543, %v1541
        %v1664 = vpack.c.b16 %v1544, %v1542
        %v1665 = vpack.c.b16 %v1547, %v1545
        %v1666 = vpack.c.b16 %v1548, %v1546
        %v1667 = vpack.c.b16 %v1551, %v1549
        %v1668 = vpack.c.b16 %v1552, %v1550
        %v1669 = vpack.c.b16 %v1555, %v1553
        %v1670 = vpack.c.b16 %v1556, %v1554
        %v1671 = vpack.c.b16 %v1559, %v1557
        %v1672 = vpack.c.b16 %v1560, %v1558
        %v1673 = vpack.c.b16 %v1563, %v1561
        %v1674 = vpack.c.b16 %v1564, %v1562
        %v1675 = vpack.c.b16 %v1567, %v1565
        %v1676 = vpack.c.b16 %v1568, %v1566
        %v1677 = vpack.c.b16 %v1571, %v1569
        %v1678 = vpack.c.b16 %v1572, %v1570
        %v1679 = vpack.c.b16 %v1575, %v1573
        %v1680 = vpack.c.b16 %v1576, %v1574
        %v1681 = vpack.c.b16 %v1579, %v1577
        %v1682 = vpack.c.b16 %v1580, %v1578
        %v1683 = vpack.c.b16 %v1583, %v1581
        %v1684 = vpack.c.b16 %v1584, %v1582
        %v1685 = vpack.c.b16 %v1587, %v1585
        %v1686 = vpack.c.b16 %v1588, %v1586
        %v1687 = vpack.c.b16 %v1591, %v1589
        %v1688 = vpack.c.b16 %v1592, %v1590
        %v1689 = vpack.c.b16 %v1595, %v1593
        %v1690 = vpack.c.b16 %v1596, %v1594
        %v1691 = vpack.c.b16 %v1599, %v1597
        %v1692 = vpack.c.b16 %v1600, %v1598
        %v1693 = vpack.c.b16 %v1603, %v1601
        %v1694 = vpack.c.b16 %v1604, %v1602
        %v1695 = vpack.c.b16 %v1607, %v1605
        %v1696 = vpack.c.b16 %v1608, %v1606
        %v1697 = vpack.c.b16 %v1611, %v1609
        %v1698 = vpack.c.b16 %v1612, %v1610
        %v1699 = vpack.c.b16 %v1615, %v1613
        %v1700 = vpack.c.b16 %v1616, %v1614
        %v1701 = vpack.c.b16 %v1619, %v1617
        %v1702 = vpack.c.b16 %v1620, %v1618
        %v1703 = vpack.c.b16 %v1623, %v1621
        %v1704 = vpack.c.b16 %v1624, %v1622
        %v1705 = vpack.c.b16 %v1627, %v1625
        %v1706 = vpack.c.b16 %v1628, %v1626
        %v1707 = vpack.c.b16 %v1631, %v1629
        %v1708 = vpack.c.b16 %v1632, %v1630
        %v1709 = vpack.c.b16 %v1635, %v1633
        %v1710 = vpack.c.b16 %v1636, %v1634
        %v1711 = vpack.c.b16 %v1639, %v1637
        %v1712 = vpack.c.b16 %v1640, %v1638
        %v1713 = vpack.c.b16 %v1643, %v1641
        %v1714 = vpack.c.b16 %v1644, %v1642
        %v1715 = vpack.c.b16 %v1647, %v1645
        %v1716 = vpack.c.b16 %v1648, %v1646
        %v1717 = vpack.c.b16 %v1651, %v1649
        %v1718 = vpack.c.b16 %v1652, %v1650
        %v1719 = vpack.c.b16 %v1655, %v1653
        %v1720 = vpack.c.b16 %v1656, %v1654
        %1785 = vmatprep.subr.bf16.mxu0 %v1658
        %1786 = vmatpush1.bf16.msra.mxu0 %v1657
        %1787 = vmatprep.subr.bf16.mxu0 %v1660
        %1788 = vmatpush1.bf16.msra.mxu0 %v1659
        %1789 = vmatprep.subr.bf16.mxu0 %v1662
        %1790 = vmatpush1.bf16.msra.mxu0 %v1661
        %1791 = vmatprep.subr.bf16.mxu0 %v1664
        %1792 = vmatpush1.bf16.msra.mxu0 %v1663
        %1793 = vmatprep.subr.bf16.mxu0 %v1666
        %1794 = vmatpush1.bf16.msra.mxu0 %v1665
        %1795 = vmatprep.subr.bf16.mxu0 %v1668
        %1796 = vmatpush1.bf16.msra.mxu0 %v1667
        %1797 = vmatprep.subr.bf16.mxu0 %v1670
        %1798 = vmatpush1.bf16.msra.mxu0 %v1669
        %1799 = vmatprep.subr.bf16.mxu0 %v1672
        %1800 = vmatpush1.bf16.msra.mxu0 %v1671
        %1801 = vmatprep.subr.bf16.mxu0 %v1674
        %1802 = vmatpush1.bf16.msra.mxu0 %v1673
        %1803 = vmatprep.subr.bf16.mxu0 %v1676
        %1804 = vmatpush1.bf16.msra.mxu0 %v1675
        %1805 = vmatprep.subr.bf16.mxu0 %v1678
        %1806 = vmatpush1.bf16.msra.mxu0 %v1677
        %1807 = vmatprep.subr.bf16.mxu0 %v1680
        %1808 = vmatpush1.bf16.msra.mxu0 %v1679
        %1809 = vmatprep.subr.bf16.mxu0 %v1682
        %1810 = vmatpush1.bf16.msra.mxu0 %v1681
        %1811 = vmatprep.subr.bf16.mxu0 %v1684
        %1812 = vmatpush1.bf16.msra.mxu0 %v1683
        %1813 = vmatprep.subr.bf16.mxu0 %v1686
        %1814 = vmatpush1.bf16.msra.mxu0 %v1685
        %1815 = vmatprep.subr.bf16.mxu0 %v1688
        %1816 = vmatpush1.bf16.msra.mxu0 %v1687
        %1817 = vmatprep.mubr.bf16.mxu0 %v1458
        %1818 = vmatmul.mubr.bf16.gmra.mrb[0].mxu0 %v1457
        %v1819 = vpop.f32.mrb[0].mxu0
        %v1820 = vadd.f32 0.0, %v1819
        %v1821 = vpop.f32.mrb[0].mxu0
        %v1822 = vadd.f32 0.0, %v1821
        %v1823 = vpop.f32.mrb[0].mxu0
        %v1824 = vpop.f32.mrb[0].mxu0
        %1825 = vdwg.mxu0
        %1826 = vmatprep.subr.bf16.mxu0 %v1690
        %1827 = vmatpush1.bf16.msra.mxu0 %v1689
        %1828 = vmatprep.subr.bf16.mxu0 %v1692
        %1829 = vmatpush1.bf16.msra.mxu0 %v1691
        %1830 = vmatprep.subr.bf16.mxu0 %v1694
        %1831 = vmatpush1.bf16.msra.mxu0 %v1693
        %1832 = vmatprep.subr.bf16.mxu0 %v1696
        %1833 = vmatpush1.bf16.msra.mxu0 %v1695
        %1834 = vmatprep.subr.bf16.mxu0 %v1698
        %1835 = vmatpush1.bf16.msra.mxu0 %v1697
        %1836 = vmatprep.subr.bf16.mxu0 %v1700
        %1837 = vmatpush1.bf16.msra.mxu0 %v1699
        %1838 = vmatprep.subr.bf16.mxu0 %v1702
        %1839 = vmatpush1.bf16.msra.mxu0 %v1701
        %1840 = vmatprep.subr.bf16.mxu0 %v1704
        %1841 = vmatpush1.bf16.msra.mxu0 %v1703
        %1842 = vmatprep.subr.bf16.mxu0 %v1706
        %1843 = vmatpush1.bf16.msra.mxu0 %v1705
        %1844 = vmatprep.subr.bf16.mxu0 %v1708
        %1845 = vmatpush1.bf16.msra.mxu0 %v1707
        %1846 = vmatprep.subr.bf16.mxu0 %v1710
        %1847 = vmatpush1.bf16.msra.mxu0 %v1709
        %1848 = vmatprep.subr.bf16.mxu0 %v1712
        %1849 = vmatpush1.bf16.msra.mxu0 %v1711
        %1850 = vmatprep.subr.bf16.mxu0 %v1714
        %1851 = vmatpush1.bf16.msra.mxu0 %v1713
        %1852 = vmatprep.subr.bf16.mxu0 %v1716
        %1853 = vmatpush1.bf16.msra.mxu0 %v1715
        %1854 = vmatprep.subr.bf16.mxu0 %v1718
        %1855 = vmatpush1.bf16.msra.mxu0 %v1717
        %1856 = vmatprep.subr.bf16.mxu0 %v1720
        %1857 = vmatpush1.bf16.msra.mxu0 %v1719
        %1858 = vmatprep.mubr.bf16.mxu0 %v1460
        %1859 = vmatmul.mubr.bf16.gmra.mrb[0].mxu0 %v1459
        %v1860 = vpop.f32.mrb[0].mxu0
        %v1861 = vadd.f32 %v1820, %v1860
        %v1862 = vpop.f32.mrb[0].mxu0
        %v1863 = vadd.f32 %v1822, %v1862
        %v1864 = vpop.f32.mrb[0].mxu0
        %v1865 = vpop.f32.mrb[0].mxu0
        %1866 = vdwg.mxu0
        %v1867 = vadd.f32 %v1374, %v1861
        %v1868 = vadd.f32 %v1376, %v1863
        %v1869 = vld [vmem:[%s323] sm:$0xcc]
        %v1870 = vld [vmem:[%s323 + $0x8] sm:$0xcc]
        %v1871 = vld [vmem:[%s323 + $0x10] sm:$0x33]
        %v1872 = vld [vmem:[%s323 + $0x18] sm:$0x33]
        %s1873 = scalar_lea.vmem %s331, 1536 [#allocation4]
        %v1874 = vld [vmem:[%s1873] sm:$0xff]
        %v1875 = vld [vmem:[%s1873 + $0x8] sm:$0xff]
        %v1876 = vld [vmem:[%s1873 + $0x10] sm:$0xff]
        %v1877 = vld [vmem:[%s1873 + $0x18] sm:$0xff]
        %v1878 = vld [vmem:[%s1873 + $0x20] sm:$0xff]
        %v1879 = vld [vmem:[%s1873 + $0x28] sm:$0xff]
        %v1880 = vld [vmem:[%s1873 + $0x30] sm:$0xff]
        %v1881 = vld [vmem:[%s1873 + $0x38] sm:$0xff]
        %v1882 = vld [vmem:[%s1873 + $0x40] sm:$0xff]
        %v1883 = vld [vmem:[%s1873 + $0x48] sm:$0xff]
        %v1884 = vld [vmem:[%s1873 + $0x50] sm:$0xff]
        %v1885 = vld [vmem:[%s1873 + $0x58] sm:$0xff]
        %v1886 = vld [vmem:[%s1873 + $0x60] sm:$0xff]
        %v1887 = vld [vmem:[%s1873 + $0x68] sm:$0xff]
        %v1888 = vld [vmem:[%s1873 + $0x70] sm:$0xff]
        %v1889 = vld [vmem:[%s1873 + $0x78] sm:$0xff]
        %v1890 = vld [vmem:[%s1873 + $0x80] sm:$0xff]
        %v1891 = vld [vmem:[%s1873 + $0x88] sm:$0xff]
        %v1892 = vld [vmem:[%s1873 + $0x90] sm:$0xff]
        %v1893 = vld [vmem:[%s1873 + $0x98] sm:$0xff]
        %v1894 = vld [vmem:[%s1873 + $0xa0] sm:$0xff]
        %v1895 = vld [vmem:[%s1873 + $0xa8] sm:$0xff]
        %v1896 = vld [vmem:[%s1873 + $0xb0] sm:$0xff]
        %v1897 = vld [vmem:[%s1873 + $0xb8] sm:$0xff]
        %v1898 = vld [vmem:[%s1873 + $0xc0] sm:$0xff]
        %v1899 = vld [vmem:[%s1873 + $0xc8] sm:$0xff]
        %v1900 = vld [vmem:[%s1873 + $0xd0] sm:$0xff]
        %v1901 = vld [vmem:[%s1873 + $0xd8] sm:$0xff]
        %v1902 = vld [vmem:[%s1873 + $0xe0] sm:$0xff]
        %v1903 = vld [vmem:[%s1873 + $0xe8] sm:$0xff]
        %v1904 = vld [vmem:[%s1873 + $0xf0] sm:$0xff]
        %v1905 = vld [vmem:[%s1873 + $0xf8] sm:$0xff]
        %v1906 = vld [vmem:[%s1873 + $0x100] sm:$0xff]
        %v1907 = vld [vmem:[%s1873 + $0x108] sm:$0xff]
        %v1908 = vld [vmem:[%s1873 + $0x110] sm:$0xff]
        %v1909 = vld [vmem:[%s1873 + $0x118] sm:$0xff]
        %v1910 = vld [vmem:[%s1873 + $0x120] sm:$0xff]
        %v1911 = vld [vmem:[%s1873 + $0x128] sm:$0xff]
        %v1912 = vld [vmem:[%s1873 + $0x130] sm:$0xff]
        %v1913 = vld [vmem:[%s1873 + $0x138] sm:$0xff]
        %v1914 = vld [vmem:[%s1873 + $0x140] sm:$0xff]
        %v1915 = vld [vmem:[%s1873 + $0x148] sm:$0xff]
        %v1916 = vld [vmem:[%s1873 + $0x150] sm:$0xff]
        %v1917 = vld [vmem:[%s1873 + $0x158] sm:$0xff]
        %v1918 = vld [vmem:[%s1873 + $0x160] sm:$0xff]
        %v1919 = vld [vmem:[%s1873 + $0x168] sm:$0xff]
        %v1920 = vld [vmem:[%s1873 + $0x170] sm:$0xff]
        %v1921 = vld [vmem:[%s1873 + $0x178] sm:$0xff]
        %v1922 = vld [vmem:[%s1873 + $0x180] sm:$0xff]
        %v1923 = vld [vmem:[%s1873 + $0x188] sm:$0xff]
        %v1924 = vld [vmem:[%s1873 + $0x190] sm:$0xff]
        %v1925 = vld [vmem:[%s1873 + $0x198] sm:$0xff]
        %v1926 = vld [vmem:[%s1873 + $0x1a0] sm:$0xff]
        %v1927 = vld [vmem:[%s1873 + $0x1a8] sm:$0xff]
        %v1928 = vld [vmem:[%s1873 + $0x1b0] sm:$0xff]
        %v1929 = vld [vmem:[%s1873 + $0x1b8] sm:$0xff]
        %v1930 = vld [vmem:[%s1873 + $0x1c0] sm:$0xff]
        %v1931 = vld [vmem:[%s1873 + $0x1c8] sm:$0xff]
        %v1932 = vld [vmem:[%s1873 + $0x1d0] sm:$0xff]
        %v1933 = vld [vmem:[%s1873 + $0x1d8] sm:$0xff]
        %v1934 = vld [vmem:[%s1873 + $0x1e0] sm:$0xff]
        %v1935 = vld [vmem:[%s1873 + $0x1e8] sm:$0xff]
        %v1936 = vld [vmem:[%s1873 + $0x1f0] sm:$0xff]
        %v1937 = vld [vmem:[%s1873 + $0x1f8] sm:$0xff]
        %v1942 = vunpack.c.l.b16 %v1869
        %v1943 = vunpack.c.h.b16 %v1869
        %v1944 = vunpack.c.l.b16 %v1870
        %v1945 = vunpack.c.h.b16 %v1870
        %v1946 = vunpack.c.l.b16 %v1871
        %v1947 = vunpack.c.h.b16 %v1871
        %v1948 = vunpack.c.l.b16 %v1872
        %v1949 = vunpack.c.h.b16 %v1872
        %v1950 = vpack.c.b16 %v1946, %v1942
        %v1951 = vpack.c.b16 %v1947, %v1943
        %v1952 = vpack.c.b16 %v1948, %v1944
        %v1953 = vpack.c.b16 %v1949, %v1945
        %v1954 = vrot.slane %v1950, 2
        %v1955 = vrot.slane %v1951, 2
        %v1956 = vrot.slane %v1952, 2
        %v1957 = vrot.slane %v1953, 2
        %v2026 = vunpack.c.l.b16 %v1874
        %v2027 = vunpack.c.h.b16 %v1874
        %v2028 = vunpack.c.l.b16 %v1875
        %v2029 = vunpack.c.h.b16 %v1875
        %v2030 = vunpack.c.l.b16 %v1876
        %v2031 = vunpack.c.h.b16 %v1876
        %v2032 = vunpack.c.l.b16 %v1877
        %v2033 = vunpack.c.h.b16 %v1877
        %v2034 = vunpack.c.l.b16 %v1878
        %v2035 = vunpack.c.h.b16 %v1878
        %v2036 = vunpack.c.l.b16 %v1879
        %v2037 = vunpack.c.h.b16 %v1879
        %v2038 = vunpack.c.l.b16 %v1880
        %v2039 = vunpack.c.h.b16 %v1880
        %v2040 = vunpack.c.l.b16 %v1881
        %v2041 = vunpack.c.h.b16 %v1881
        %v2042 = vunpack.c.l.b16 %v1882
        %v2043 = vunpack.c.h.b16 %v1882
        %v2044 = vunpack.c.l.b16 %v1883
        %v2045 = vunpack.c.h.b16 %v1883
        %v2046 = vunpack.c.l.b16 %v1884
        %v2047 = vunpack.c.h.b16 %v1884
        %v2048 = vunpack.c.l.b16 %v1885
        %v2049 = vunpack.c.h.b16 %v1885
        %v2050 = vunpack.c.l.b16 %v1886
        %v2051 = vunpack.c.h.b16 %v1886
        %v2052 = vunpack.c.l.b16 %v1887
        %v2053 = vunpack.c.h.b16 %v1887
        %v2054 = vunpack.c.l.b16 %v1888
        %v2055 = vunpack.c.h.b16 %v1888
        %v2056 = vunpack.c.l.b16 %v1889
        %v2057 = vunpack.c.h.b16 %v1889
        %v2058 = vunpack.c.l.b16 %v1890
        %v2059 = vunpack.c.h.b16 %v1890
        %v2060 = vunpack.c.l.b16 %v1891
        %v2061 = vunpack.c.h.b16 %v1891
        %v2062 = vunpack.c.l.b16 %v1892
        %v2063 = vunpack.c.h.b16 %v1892
        %v2064 = vunpack.c.l.b16 %v1893
        %v2065 = vunpack.c.h.b16 %v1893
        %v2066 = vunpack.c.l.b16 %v1894
        %v2067 = vunpack.c.h.b16 %v1894
        %v2068 = vunpack.c.l.b16 %v1895
        %v2069 = vunpack.c.h.b16 %v1895
        %v2070 = vunpack.c.l.b16 %v1896
        %v2071 = vunpack.c.h.b16 %v1896
        %v2072 = vunpack.c.l.b16 %v1897
        %v2073 = vunpack.c.h.b16 %v1897
        %v2074 = vunpack.c.l.b16 %v1898
        %v2075 = vunpack.c.h.b16 %v1898
        %v2076 = vunpack.c.l.b16 %v1899
        %v2077 = vunpack.c.h.b16 %v1899
        %v2078 = vunpack.c.l.b16 %v1900
        %v2079 = vunpack.c.h.b16 %v1900
        %v2080 = vunpack.c.l.b16 %v1901
        %v2081 = vunpack.c.h.b16 %v1901
        %v2082 = vunpack.c.l.b16 %v1902
        %v2083 = vunpack.c.h.b16 %v1902
        %v2084 = vunpack.c.l.b16 %v1903
        %v2085 = vunpack.c.h.b16 %v1903
        %v2086 = vunpack.c.l.b16 %v1904
        %v2087 = vunpack.c.h.b16 %v1904
        %v2088 = vunpack.c.l.b16 %v1905
        %v2089 = vunpack.c.h.b16 %v1905
        %v2090 = vunpack.c.l.b16 %v1906
        %v2091 = vunpack.c.h.b16 %v1906
        %v2092 = vunpack.c.l.b16 %v1907
        %v2093 = vunpack.c.h.b16 %v1907
        %v2094 = vunpack.c.l.b16 %v1908
        %v2095 = vunpack.c.h.b16 %v1908
        %v2096 = vunpack.c.l.b16 %v1909
        %v2097 = vunpack.c.h.b16 %v1909
        %v2098 = vunpack.c.l.b16 %v1910
        %v2099 = vunpack.c.h.b16 %v1910
        %v2100 = vunpack.c.l.b16 %v1911
        %v2101 = vunpack.c.h.b16 %v1911
        %v2102 = vunpack.c.l.b16 %v1912
        %v2103 = vunpack.c.h.b16 %v1912
        %v2104 = vunpack.c.l.b16 %v1913
        %v2105 = vunpack.c.h.b16 %v1913
        %v2106 = vunpack.c.l.b16 %v1914
        %v2107 = vunpack.c.h.b16 %v1914
        %v2108 = vunpack.c.l.b16 %v1915
        %v2109 = vunpack.c.h.b16 %v1915
        %v2110 = vunpack.c.l.b16 %v1916
        %v2111 = vunpack.c.h.b16 %v1916
        %v2112 = vunpack.c.l.b16 %v1917
        %v2113 = vunpack.c.h.b16 %v1917
        %v2114 = vunpack.c.l.b16 %v1918
        %v2115 = vunpack.c.h.b16 %v1918
        %v2116 = vunpack.c.l.b16 %v1919
        %v2117 = vunpack.c.h.b16 %v1919
        %v2118 = vunpack.c.l.b16 %v1920
        %v2119 = vunpack.c.h.b16 %v1920
        %v2120 = vunpack.c.l.b16 %v1921
        %v2121 = vunpack.c.h.b16 %v1921
        %v2122 = vunpack.c.l.b16 %v1922
        %v2123 = vunpack.c.h.b16 %v1922
        %v2124 = vunpack.c.l.b16 %v1923
        %v2125 = vunpack.c.h.b16 %v1923
        %v2126 = vunpack.c.l.b16 %v1924
        %v2127 = vunpack.c.h.b16 %v1924
        %v2128 = vunpack.c.l.b16 %v1925
        %v2129 = vunpack.c.h.b16 %v1925
        %v2130 = vunpack.c.l.b16 %v1926
        %v2131 = vunpack.c.h.b16 %v1926
        %v2132 = vunpack.c.l.b16 %v1927
        %v2133 = vunpack.c.h.b16 %v1927
        %v2134 = vunpack.c.l.b16 %v1928
        %v2135 = vunpack.c.h.b16 %v1928
        %v2136 = vunpack.c.l.b16 %v1929
        %v2137 = vunpack.c.h.b16 %v1929
        %v2138 = vunpack.c.l.b16 %v1930
        %v2139 = vunpack.c.h.b16 %v1930
        %v2140 = vunpack.c.l.b16 %v1931
        %v2141 = vunpack.c.h.b16 %v1931
        %v2142 = vunpack.c.l.b16 %v1932
        %v2143 = vunpack.c.h.b16 %v1932
        %v2144 = vunpack.c.l.b16 %v1933
        %v2145 = vunpack.c.h.b16 %v1933
        %v2146 = vunpack.c.l.b16 %v1934
        %v2147 = vunpack.c.h.b16 %v1934
        %v2148 = vunpack.c.l.b16 %v1935
        %v2149 = vunpack.c.h.b16 %v1935
        %v2150 = vunpack.c.l.b16 %v1936
        %v2151 = vunpack.c.h.b16 %v1936
        %v2152 = vunpack.c.l.b16 %v1937
        %v2153 = vunpack.c.h.b16 %v1937
        %v2154 = vpack.c.b16 %v2028, %v2026
        %v2155 = vpack.c.b16 %v2029, %v2027
        %v2156 = vpack.c.b16 %v2032, %v2030
        %v2157 = vpack.c.b16 %v2033, %v2031
        %v2158 = vpack.c.b16 %v2036, %v2034
        %v2159 = vpack.c.b16 %v2037, %v2035
        %v2160 = vpack.c.b16 %v2040, %v2038
        %v2161 = vpack.c.b16 %v2041, %v2039
        %v2162 = vpack.c.b16 %v2044, %v2042
        %v2163 = vpack.c.b16 %v2045, %v2043
        %v2164 = vpack.c.b16 %v2048, %v2046
        %v2165 = vpack.c.b16 %v2049, %v2047
        %v2166 = vpack.c.b16 %v2052, %v2050
        %v2167 = vpack.c.b16 %v2053, %v2051
        %v2168 = vpack.c.b16 %v2056, %v2054
        %v2169 = vpack.c.b16 %v2057, %v2055
        %v2170 = vpack.c.b16 %v2060, %v2058
        %v2171 = vpack.c.b16 %v2061, %v2059
        %v2172 = vpack.c.b16 %v2064, %v2062
        %v2173 = vpack.c.b16 %v2065, %v2063
        %v2174 = vpack.c.b16 %v2068, %v2066
        %v2175 = vpack.c.b16 %v2069, %v2067
        %v2176 = vpack.c.b16 %v2072, %v2070
        %v2177 = vpack.c.b16 %v2073, %v2071
        %v2178 = vpack.c.b16 %v2076, %v2074
        %v2179 = vpack.c.b16 %v2077, %v2075
        %v2180 = vpack.c.b16 %v2080, %v2078
        %v2181 = vpack.c.b16 %v2081, %v2079
        %v2182 = vpack.c.b16 %v2084, %v2082
        %v2183 = vpack.c.b16 %v2085, %v2083
        %v2184 = vpack.c.b16 %v2088, %v2086
        %v2185 = vpack.c.b16 %v2089, %v2087
        %v2186 = vpack.c.b16 %v2092, %v2090
        %v2187 = vpack.c.b16 %v2093, %v2091
        %v2188 = vpack.c.b16 %v2096, %v2094
        %v2189 = vpack.c.b16 %v2097, %v2095
        %v2190 = vpack.c.b16 %v2100, %v2098
        %v2191 = vpack.c.b16 %v2101, %v2099
        %v2192 = vpack.c.b16 %v2104, %v2102
        %v2193 = vpack.c.b16 %v2105, %v2103
        %v2194 = vpack.c.b16 %v2108, %v2106
        %v2195 = vpack.c.b16 %v2109, %v2107
        %v2196 = vpack.c.b16 %v2112, %v2110
        %v2197 = vpack.c.b16 %v2113, %v2111
        %v2198 = vpack.c.b16 %v2116, %v2114
        %v2199 = vpack.c.b16 %v2117, %v2115
        %v2200 = vpack.c.b16 %v2120, %v2118
        %v2201 = vpack.c.b16 %v2121, %v2119
        %v2202 = vpack.c.b16 %v2124, %v2122
        %v2203 = vpack.c.b16 %v2125, %v2123
        %v2204 = vpack.c.b16 %v2128, %v2126
        %v2205 = vpack.c.b16 %v2129, %v2127
        %v2206 = vpack.c.b16 %v2132, %v2130
        %v2207 = vpack.c.b16 %v2133, %v2131
        %v2208 = vpack.c.b16 %v2136, %v2134
        %v2209 = vpack.c.b16 %v2137, %v2135
        %v2210 = vpack.c.b16 %v2140, %v2138
        %v2211 = vpack.c.b16 %v2141, %v2139
        %v2212 = vpack.c.b16 %v2144, %v2142
        %v2213 = vpack.c.b16 %v2145, %v2143
        %v2214 = vpack.c.b16 %v2148, %v2146
        %v2215 = vpack.c.b16 %v2149, %v2147
        %v2216 = vpack.c.b16 %v2152, %v2150
        %v2217 = vpack.c.b16 %v2153, %v2151
        %2282 = vmatprep.subr.bf16.mxu0 %v2155
        %2283 = vmatpush1.bf16.msra.mxu0 %v2154
        %2284 = vmatprep.subr.bf16.mxu0 %v2157
        %2285 = vmatpush1.bf16.msra.mxu0 %v2156
        %2286 = vmatprep.subr.bf16.mxu0 %v2159
        %2287 = vmatpush1.bf16.msra.mxu0 %v2158
        %2288 = vmatprep.subr.bf16.mxu0 %v2161
        %2289 = vmatpush1.bf16.msra.mxu0 %v2160
        %2290 = vmatprep.subr.bf16.mxu0 %v2163
        %2291 = vmatpush1.bf16.msra.mxu0 %v2162
        %2292 = vmatprep.subr.bf16.mxu0 %v2165
        %2293 = vmatpush1.bf16.msra.mxu0 %v2164
        %2294 = vmatprep.subr.bf16.mxu0 %v2167
        %2295 = vmatpush1.bf16.msra.mxu0 %v2166
        %2296 = vmatprep.subr.bf16.mxu0 %v2169
        %2297 = vmatpush1.bf16.msra.mxu0 %v2168
        %2298 = vmatprep.subr.bf16.mxu0 %v2171
        %2299 = vmatpush1.bf16.msra.mxu0 %v2170
        %2300 = vmatprep.subr.bf16.mxu0 %v2173
        %2301 = vmatpush1.bf16.msra.mxu0 %v2172
        %2302 = vmatprep.subr.bf16.mxu0 %v2175
        %2303 = vmatpush1.bf16.msra.mxu0 %v2174
        %2304 = vmatprep.subr.bf16.mxu0 %v2177
        %2305 = vmatpush1.bf16.msra.mxu0 %v2176
        %2306 = vmatprep.subr.bf16.mxu0 %v2179
        %2307 = vmatpush1.bf16.msra.mxu0 %v2178
        %2308 = vmatprep.subr.bf16.mxu0 %v2181
        %2309 = vmatpush1.bf16.msra.mxu0 %v2180
        %2310 = vmatprep.subr.bf16.mxu0 %v2183
        %2311 = vmatpush1.bf16.msra.mxu0 %v2182
        %2312 = vmatprep.subr.bf16.mxu0 %v2185
        %2313 = vmatpush1.bf16.msra.mxu0 %v2184
        %2314 = vmatprep.mubr.bf16.mxu0 %v1955
        %2315 = vmatmul.mubr.bf16.gmra.mrb[0].mxu0 %v1954
        %v2316 = vpop.f32.mrb[0].mxu0
        %v2317 = vadd.f32 0.0, %v2316
        %v2318 = vpop.f32.mrb[0].mxu0
        %v2319 = vadd.f32 0.0, %v2318
        %v2320 = vpop.f32.mrb[0].mxu0
        %v2321 = vpop.f32.mrb[0].mxu0
        %2322 = vdwg.mxu0
        %2323 = vmatprep.subr.bf16.mxu0 %v2187
        %2324 = vmatpush1.bf16.msra.mxu0 %v2186
        %2325 = vmatprep.subr.bf16.mxu0 %v2189
        %2326 = vmatpush1.bf16.msra.mxu0 %v2188
        %2327 = vmatprep.subr.bf16.mxu0 %v2191
        %2328 = vmatpush1.bf16.msra.mxu0 %v2190
        %2329 = vmatprep.subr.bf16.mxu0 %v2193
        %2330 = vmatpush1.bf16.msra.mxu0 %v2192
        %2331 = vmatprep.subr.bf16.mxu0 %v2195
        %2332 = vmatpush1.bf16.msra.mxu0 %v2194
        %2333 = vmatprep.subr.bf16.mxu0 %v2197
        %2334 = vmatpush1.bf16.msra.mxu0 %v2196
        %2335 = vmatprep.subr.bf16.mxu0 %v2199
        %2336 = vmatpush1.bf16.msra.mxu0 %v2198
        %2337 = vmatprep.subr.bf16.mxu0 %v2201
        %2338 = vmatpush1.bf16.msra.mxu0 %v2200
        %2339 = vmatprep.subr.bf16.mxu0 %v2203
        %2340 = vmatpush1.bf16.msra.mxu0 %v2202
        %2341 = vmatprep.subr.bf16.mxu0 %v2205
        %2342 = vmatpush1.bf16.msra.mxu0 %v2204
        %2343 = vmatprep.subr.bf16.mxu0 %v2207
        %2344 = vmatpush1.bf16.msra.mxu0 %v2206
        %2345 = vmatprep.subr.bf16.mxu0 %v2209
        %2346 = vmatpush1.bf16.msra.mxu0 %v2208
        %2347 = vmatprep.subr.bf16.mxu0 %v2211
        %2348 = vmatpush1.bf16.msra.mxu0 %v2210
        %2349 = vmatprep.subr.bf16.mxu0 %v2213
        %2350 = vmatpush1.bf16.msra.mxu0 %v2212
        %2351 = vmatprep.subr.bf16.mxu0 %v2215
        %2352 = vmatpush1.bf16.msra.mxu0 %v2214
        %2353 = vmatprep.subr.bf16.mxu0 %v2217
        %2354 = vmatpush1.bf16.msra.mxu0 %v2216
        %2355 = vmatprep.mubr.bf16.mxu0 %v1957
        %2356 = vmatmul.mubr.bf16.gmra.mrb[0].mxu0 %v1956
        %v2357 = vpop.f32.mrb[0].mxu0
        %v2358 = vadd.f32 %v2317, %v2357
        %v2359 = vpop.f32.mrb[0].mxu0
        %v2360 = vadd.f32 %v2319, %v2359
        %v2361 = vpop.f32.mrb[0].mxu0
        %v2362 = vpop.f32.mrb[0].mxu0
        %2363 = vdwg.mxu0
        %v2364 = vadd.f32 %v1867, %v2358
        %v2365 = vadd.f32 %v1868, %v2360
        %v2366 = vld [vmem:[%s323 + $0x10] sm:$0x77]
        %v2367 = vld [vmem:[%s323 + $0x18] sm:$0x77]
        %s2368 = scalar_lea.vmem %s331, 2048 [#allocation4]
        %v2369 = vld [vmem:[%s2368] sm:$0xff]
        %v2370 = vld [vmem:[%s2368 + $0x8] sm:$0xff]
        %v2371 = vld [vmem:[%s2368 + $0x10] sm:$0xff]
        %v2372 = vld [vmem:[%s2368 + $0x18] sm:$0xff]
        %v2373 = vld [vmem:[%s2368 + $0x20] sm:$0xff]
        %v2374 = vld [vmem:[%s2368 + $0x28] sm:$0xff]
        %v2375 = vld [vmem:[%s2368 + $0x30] sm:$0xff]
        %v2376 = vld [vmem:[%s2368 + $0x38] sm:$0xff]
        %v2377 = vld [vmem:[%s2368 + $0x40] sm:$0xff]
        %v2378 = vld [vmem:[%s2368 + $0x48] sm:$0xff]
        %v2379 = vld [vmem:[%s2368 + $0x50] sm:$0xff]
        %v2380 = vld [vmem:[%s2368 + $0x58] sm:$0xff]
        %v2381 = vld [vmem:[%s2368 + $0x60] sm:$0xff]
        %v2382 = vld [vmem:[%s2368 + $0x68] sm:$0xff]
        %v2383 = vld [vmem:[%s2368 + $0x70] sm:$0xff]
        %v2384 = vld [vmem:[%s2368 + $0x78] sm:$0xff]
        %v2385 = vld [vmem:[%s2368 + $0x80] sm:$0xff]
        %v2386 = vld [vmem:[%s2368 + $0x88] sm:$0xff]
        %v2387 = vld [vmem:[%s2368 + $0x90] sm:$0xff]
        %v2388 = vld [vmem:[%s2368 + $0x98] sm:$0xff]
        %v2389 = vld [vmem:[%s2368 + $0xa0] sm:$0xff]
        %v2390 = vld [vmem:[%s2368 + $0xa8] sm:$0xff]
        %v2391 = vld [vmem:[%s2368 + $0xb0] sm:$0xff]
        %v2392 = vld [vmem:[%s2368 + $0xb8] sm:$0xff]
        %v2393 = vld [vmem:[%s2368 + $0xc0] sm:$0xff]
        %v2394 = vld [vmem:[%s2368 + $0xc8] sm:$0xff]
        %v2395 = vld [vmem:[%s2368 + $0xd0] sm:$0xff]
        %v2396 = vld [vmem:[%s2368 + $0xd8] sm:$0xff]
        %v2397 = vld [vmem:[%s2368 + $0xe0] sm:$0xff]
        %v2398 = vld [vmem:[%s2368 + $0xe8] sm:$0xff]
        %v2399 = vld [vmem:[%s2368 + $0xf0] sm:$0xff]
        %v2400 = vld [vmem:[%s2368 + $0xf8] sm:$0xff]
        %v2401 = vld [vmem:[%s2368 + $0x100] sm:$0xff]
        %v2402 = vld [vmem:[%s2368 + $0x108] sm:$0xff]
        %v2403 = vld [vmem:[%s2368 + $0x110] sm:$0xff]
        %v2404 = vld [vmem:[%s2368 + $0x118] sm:$0xff]
        %v2405 = vld [vmem:[%s2368 + $0x120] sm:$0xff]
        %v2406 = vld [vmem:[%s2368 + $0x128] sm:$0xff]
        %v2407 = vld [vmem:[%s2368 + $0x130] sm:$0xff]
        %v2408 = vld [vmem:[%s2368 + $0x138] sm:$0xff]
        %v2409 = vld [vmem:[%s2368 + $0x140] sm:$0xff]
        %v2410 = vld [vmem:[%s2368 + $0x148] sm:$0xff]
        %v2411 = vld [vmem:[%s2368 + $0x150] sm:$0xff]
        %v2412 = vld [vmem:[%s2368 + $0x158] sm:$0xff]
        %v2413 = vld [vmem:[%s2368 + $0x160] sm:$0xff]
        %v2414 = vld [vmem:[%s2368 + $0x168] sm:$0xff]
        %v2415 = vld [vmem:[%s2368 + $0x170] sm:$0xff]
        %v2416 = vld [vmem:[%s2368 + $0x178] sm:$0xff]
        %v2417 = vld [vmem:[%s2368 + $0x180] sm:$0xff]
        %v2418 = vld [vmem:[%s2368 + $0x188] sm:$0xff]
        %v2419 = vld [vmem:[%s2368 + $0x190] sm:$0xff]
        %v2420 = vld [vmem:[%s2368 + $0x198] sm:$0xff]
        %v2421 = vld [vmem:[%s2368 + $0x1a0] sm:$0xff]
        %v2422 = vld [vmem:[%s2368 + $0x1a8] sm:$0xff]
        %v2423 = vld [vmem:[%s2368 + $0x1b0] sm:$0xff]
        %v2424 = vld [vmem:[%s2368 + $0x1b8] sm:$0xff]
        %v2425 = vld [vmem:[%s2368 + $0x1c0] sm:$0xff]
        %v2426 = vld [vmem:[%s2368 + $0x1c8] sm:$0xff]
        %v2427 = vld [vmem:[%s2368 + $0x1d0] sm:$0xff]
        %v2428 = vld [vmem:[%s2368 + $0x1d8] sm:$0xff]
        %v2429 = vld [vmem:[%s2368 + $0x1e0] sm:$0xff]
        %v2430 = vld [vmem:[%s2368 + $0x1e8] sm:$0xff]
        %v2431 = vld [vmem:[%s2368 + $0x1f0] sm:$0xff]
        %v2432 = vld [vmem:[%s2368 + $0x1f8] sm:$0xff]
        %v2435 = vunpack.c.l.b16 %v2366
        %v2436 = vunpack.c.h.b16 %v2366
        %v2437 = vunpack.c.l.b16 %v2367
        %v2438 = vunpack.c.h.b16 %v2367
        %v2439 = vpack.c.b16 %v2435, %v1942
        %v2440 = vpack.c.b16 %v2436, %v1943
        %v2441 = vpack.c.b16 %v2437, %v1944
        %v2442 = vpack.c.b16 %v2438, %v1945
        %v2444 = vshrl.u32 %v2439, 16
        %v2446 = vrot.slane %v2444, 2
        %v2447 = vshll.u32 %v2439, 16
        %v2449 = vrot.slane %v2447, 3
        %v2450 = vor.u32 %v2446, %v2449
        %v2452 = vshrl.u32 %v2440, 16
        %v2454 = vrot.slane %v2452, 2
        %v2455 = vshll.u32 %v2440, 16
        %v2457 = vrot.slane %v2455, 3
        %v2458 = vor.u32 %v2454, %v2457
        %v2460 = vshrl.u32 %v2441, 16
        %v2462 = vrot.slane %v2460, 2
        %v2463 = vshll.u32 %v2441, 16
        %v2465 = vrot.slane %v2463, 3
        %v2466 = vor.u32 %v2462, %v2465
        %v2468 = vshrl.u32 %v2442, 16
        %v2470 = vrot.slane %v2468, 2
        %v2471 = vshll.u32 %v2442, 16
        %v2473 = vrot.slane %v2471, 3
        %v2474 = vor.u32 %v2470, %v2473
        %v2543 = vunpack.c.l.b16 %v2369
        %v2544 = vunpack.c.h.b16 %v2369
        %v2545 = vunpack.c.l.b16 %v2370
        %v2546 = vunpack.c.h.b16 %v2370
        %v2547 = vunpack.c.l.b16 %v2371
        %v2548 = vunpack.c.h.b16 %v2371
        %v2549 = vunpack.c.l.b16 %v2372
        %v2550 = vunpack.c.h.b16 %v2372
        %v2551 = vunpack.c.l.b16 %v2373
        %v2552 = vunpack.c.h.b16 %v2373
        %v2553 = vunpack.c.l.b16 %v2374
        %v2554 = vunpack.c.h.b16 %v2374
        %v2555 = vunpack.c.l.b16 %v2375
        %v2556 = vunpack.c.h.b16 %v2375
        %v2557 = vunpack.c.l.b16 %v2376
        %v2558 = vunpack.c.h.b16 %v2376
        %v2559 = vunpack.c.l.b16 %v2377
        %v2560 = vunpack.c.h.b16 %v2377
        %v2561 = vunpack.c.l.b16 %v2378
        %v2562 = vunpack.c.h.b16 %v2378
        %v2563 = vunpack.c.l.b16 %v2379
        %v2564 = vunpack.c.h.b16 %v2379
        %v2565 = vunpack.c.l.b16 %v2380
        %v2566 = vunpack.c.h.b16 %v2380
        %v2567 = vunpack.c.l.b16 %v2381
        %v2568 = vunpack.c.h.b16 %v2381
        %v2569 = vunpack.c.l.b16 %v2382
        %v2570 = vunpack.c.h.b16 %v2382
        %v2571 = vunpack.c.l.b16 %v2383
        %v2572 = vunpack.c.h.b16 %v2383
        %v2573 = vunpack.c.l.b16 %v2384
        %v2574 = vunpack.c.h.b16 %v2384
        %v2575 = vunpack.c.l.b16 %v2385
        %v2576 = vunpack.c.h.b16 %v2385
        %v2577 = vunpack.c.l.b16 %v2386
        %v2578 = vunpack.c.h.b16 %v2386
        %v2579 = vunpack.c.l.b16 %v2387
        %v2580 = vunpack.c.h.b16 %v2387
        %v2581 = vunpack.c.l.b16 %v2388
        %v2582 = vunpack.c.h.b16 %v2388
        %v2583 = vunpack.c.l.b16 %v2389
        %v2584 = vunpack.c.h.b16 %v2389
        %v2585 = vunpack.c.l.b16 %v2390
        %v2586 = vunpack.c.h.b16 %v2390
        %v2587 = vunpack.c.l.b16 %v2391
        %v2588 = vunpack.c.h.b16 %v2391
        %v2589 = vunpack.c.l.b16 %v2392
        %v2590 = vunpack.c.h.b16 %v2392
        %v2591 = vunpack.c.l.b16 %v2393
        %v2592 = vunpack.c.h.b16 %v2393
        %v2593 = vunpack.c.l.b16 %v2394
        %v2594 = vunpack.c.h.b16 %v2394
        %v2595 = vunpack.c.l.b16 %v2395
        %v2596 = vunpack.c.h.b16 %v2395
        %v2597 = vunpack.c.l.b16 %v2396
        %v2598 = vunpack.c.h.b16 %v2396
        %v2599 = vunpack.c.l.b16 %v2397
        %v2600 = vunpack.c.h.b16 %v2397
        %v2601 = vunpack.c.l.b16 %v2398
        %v2602 = vunpack.c.h.b16 %v2398
        %v2603 = vunpack.c.l.b16 %v2399
        %v2604 = vunpack.c.h.b16 %v2399
        %v2605 = vunpack.c.l.b16 %v2400
        %v2606 = vunpack.c.h.b16 %v2400
        %v2607 = vunpack.c.l.b16 %v2401
        %v2608 = vunpack.c.h.b16 %v2401
        %v2609 = vunpack.c.l.b16 %v2402
        %v2610 = vunpack.c.h.b16 %v2402
        %v2611 = vunpack.c.l.b16 %v2403
        %v2612 = vunpack.c.h.b16 %v2403
        %v2613 = vunpack.c.l.b16 %v2404
        %v2614 = vunpack.c.h.b16 %v2404
        %v2615 = vunpack.c.l.b16 %v2405
        %v2616 = vunpack.c.h.b16 %v2405
        %v2617 = vunpack.c.l.b16 %v2406
        %v2618 = vunpack.c.h.b16 %v2406
        %v2619 = vunpack.c.l.b16 %v2407
        %v2620 = vunpack.c.h.b16 %v2407
        %v2621 = vunpack.c.l.b16 %v2408
        %v2622 = vunpack.c.h.b16 %v2408
        %v2623 = vunpack.c.l.b16 %v2409
        %v2624 = vunpack.c.h.b16 %v2409
        %v2625 = vunpack.c.l.b16 %v2410
        %v2626 = vunpack.c.h.b16 %v2410
        %v2627 = vunpack.c.l.b16 %v2411
        %v2628 = vunpack.c.h.b16 %v2411
        %v2629 = vunpack.c.l.b16 %v2412
        %v2630 = vunpack.c.h.b16 %v2412
        %v2631 = vunpack.c.l.b16 %v2413
        %v2632 = vunpack.c.h.b16 %v2413
        %v2633 = vunpack.c.l.b16 %v2414
        %v2634 = vunpack.c.h.b16 %v2414
        %v2635 = vunpack.c.l.b16 %v2415
        %v2636 = vunpack.c.h.b16 %v2415
        %v2637 = vunpack.c.l.b16 %v2416
        %v2638 = vunpack.c.h.b16 %v2416
        %v2639 = vunpack.c.l.b16 %v2417
        %v2640 = vunpack.c.h.b16 %v2417
        %v2641 = vunpack.c.l.b16 %v2418
        %v2642 = vunpack.c.h.b16 %v2418
        %v2643 = vunpack.c.l.b16 %v2419
        %v2644 = vunpack.c.h.b16 %v2419
        %v2645 = vunpack.c.l.b16 %v2420
        %v2646 = vunpack.c.h.b16 %v2420
        %v2647 = vunpack.c.l.b16 %v2421
        %v2648 = vunpack.c.h.b16 %v2421
        %v2649 = vunpack.c.l.b16 %v2422
        %v2650 = vunpack.c.h.b16 %v2422
        %v2651 = vunpack.c.l.b16 %v2423
        %v2652 = vunpack.c.h.b16 %v2423
        %v2653 = vunpack.c.l.b16 %v2424
        %v2654 = vunpack.c.h.b16 %v2424
        %v2655 = vunpack.c.l.b16 %v2425
        %v2656 = vunpack.c.h.b16 %v2425
        %v2657 = vunpack.c.l.b16 %v2426
        %v2658 = vunpack.c.h.b16 %v2426
        %v2659 = vunpack.c.l.b16 %v2427
        %v2660 = vunpack.c.h.b16 %v2427
        %v2661 = vunpack.c.l.b16 %v2428
        %v2662 = vunpack.c.h.b16 %v2428
        %v2663 = vunpack.c.l.b16 %v2429
        %v2664 = vunpack.c.h.b16 %v2429
        %v2665 = vunpack.c.l.b16 %v2430
        %v2666 = vunpack.c.h.b16 %v2430
        %v2667 = vunpack.c.l.b16 %v2431
        %v2668 = vunpack.c.h.b16 %v2431
        %v2669 = vunpack.c.l.b16 %v2432
        %v2670 = vunpack.c.h.b16 %v2432
        %v2671 = vpack.c.b16 %v2545, %v2543
        %v2672 = vpack.c.b16 %v2546, %v2544
        %v2673 = vpack.c.b16 %v2549, %v2547
        %v2674 = vpack.c.b16 %v2550, %v2548
        %v2675 = vpack.c.b16 %v2553, %v2551
        %v2676 = vpack.c.b16 %v2554, %v2552
        %v2677 = vpack.c.b16 %v2557, %v2555
        %v2678 = vpack.c.b16 %v2558, %v2556
        %v2679 = vpack.c.b16 %v2561, %v2559
        %v2680 = vpack.c.b16 %v2562, %v2560
        %v2681 = vpack.c.b16 %v2565, %v2563
        %v2682 = vpack.c.b16 %v2566, %v2564
        %v2683 = vpack.c.b16 %v2569, %v2567
        %v2684 = vpack.c.b16 %v2570, %v2568
        %v2685 = vpack.c.b16 %v2573, %v2571
        %v2686 = vpack.c.b16 %v2574, %v2572
        %v2687 = vpack.c.b16 %v2577, %v2575
        %v2688 = vpack.c.b16 %v2578, %v2576
        %v2689 = vpack.c.b16 %v2581, %v2579
        %v2690 = vpack.c.b16 %v2582, %v2580
        %v2691 = vpack.c.b16 %v2585, %v2583
        %v2692 = vpack.c.b16 %v2586, %v2584
        %v2693 = vpack.c.b16 %v2589, %v2587
        %v2694 = vpack.c.b16 %v2590, %v2588
        %v2695 = vpack.c.b16 %v2593, %v2591
        %v2696 = vpack.c.b16 %v2594, %v2592
        %v2697 = vpack.c.b16 %v2597, %v2595
        %v2698 = vpack.c.b16 %v2598, %v2596
        %v2699 = vpack.c.b16 %v2601, %v2599
        %v2700 = vpack.c.b16 %v2602, %v2600
        %v2701 = vpack.c.b16 %v2605, %v2603
        %v2702 = vpack.c.b16 %v2606, %v2604
        %v2703 = vpack.c.b16 %v2609, %v2607
        %v2704 = vpack.c.b16 %v2610, %v2608
        %v2705 = vpack.c.b16 %v2613, %v2611
        %v2706 = vpack.c.b16 %v2614, %v2612
        %v2707 = vpack.c.b16 %v2617, %v2615
        %v2708 = vpack.c.b16 %v2618, %v2616
        %v2709 = vpack.c.b16 %v2621, %v2619
        %v2710 = vpack.c.b16 %v2622, %v2620
        %v2711 = vpack.c.b16 %v2625, %v2623
        %v2712 = vpack.c.b16 %v2626, %v2624
        %v2713 = vpack.c.b16 %v2629, %v2627
        %v2714 = vpack.c.b16 %v2630, %v2628
        %v2715 = vpack.c.b16 %v2633, %v2631
        %v2716 = vpack.c.b16 %v2634, %v2632
        %v2717 = vpack.c.b16 %v2637, %v2635
        %v2718 = vpack.c.b16 %v2638, %v2636
        %v2719 = vpack.c.b16 %v2641, %v2639
        %v2720 = vpack.c.b16 %v2642, %v2640
        %v2721 = vpack.c.b16 %v2645, %v2643
        %v2722 = vpack.c.b16 %v2646, %v2644
        %v2723 = vpack.c.b16 %v2649, %v2647
        %v2724 = vpack.c.b16 %v2650, %v2648
        %v2725 = vpack.c.b16 %v2653, %v2651
        %v2726 = vpack.c.b16 %v2654, %v2652
        %v2727 = vpack.c.b16 %v2657, %v2655
        %v2728 = vpack.c.b16 %v2658, %v2656
        %v2729 = vpack.c.b16 %v2661, %v2659
        %v2730 = vpack.c.b16 %v2662, %v2660
        %v2731 = vpack.c.b16 %v2665, %v2663
        %v2732 = vpack.c.b16 %v2666, %v2664
        %v2733 = vpack.c.b16 %v2669, %v2667
        %v2734 = vpack.c.b16 %v2670, %v2668
        %2799 = vmatprep.subr.bf16.mxu0 %v2672
        %2800 = vmatpush1.bf16.msra.mxu0 %v2671
        %2801 = vmatprep.subr.bf16.mxu0 %v2674
        %2802 = vmatpush1.bf16.msra.mxu0 %v2673
        %2803 = vmatprep.subr.bf16.mxu0 %v2676
        %2804 = vmatpush1.bf16.msra.mxu0 %v2675
        %2805 = vmatprep.subr.bf16.mxu0 %v2678
        %2806 = vmatpush1.bf16.msra.mxu0 %v2677
        %2807 = vmatprep.subr.bf16.mxu0 %v2680
        %2808 = vmatpush1.bf16.msra.mxu0 %v2679
        %2809 = vmatprep.subr.bf16.mxu0 %v2682
        %2810 = vmatpush1.bf16.msra.mxu0 %v2681
        %2811 = vmatprep.subr.bf16.mxu0 %v2684
        %2812 = vmatpush1.bf16.msra.mxu0 %v2683
        %2813 = vmatprep.subr.bf16.mxu0 %v2686
        %2814 = vmatpush1.bf16.msra.mxu0 %v2685
        %2815 = vmatprep.subr.bf16.mxu0 %v2688
        %2816 = vmatpush1.bf16.msra.mxu0 %v2687
        %2817 = vmatprep.subr.bf16.mxu0 %v2690
        %2818 = vmatpush1.bf16.msra.mxu0 %v2689
        %2819 = vmatprep.subr.bf16.mxu0 %v2692
        %2820 = vmatpush1.bf16.msra.mxu0 %v2691
        %2821 = vmatprep.subr.bf16.mxu0 %v2694
        %2822 = vmatpush1.bf16.msra.mxu0 %v2693
        %2823 = vmatprep.subr.bf16.mxu0 %v2696
        %2824 = vmatpush1.bf16.msra.mxu0 %v2695
        %2825 = vmatprep.subr.bf16.mxu0 %v2698
        %2826 = vmatpush1.bf16.msra.mxu0 %v2697
        %2827 = vmatprep.subr.bf16.mxu0 %v2700
        %2828 = vmatpush1.bf16.msra.mxu0 %v2699
        %2829 = vmatprep.subr.bf16.mxu0 %v2702
        %2830 = vmatpush1.bf16.msra.mxu0 %v2701
        %2831 = vmatprep.mubr.bf16.mxu0 %v2458
        %2832 = vmatmul.mubr.bf16.gmra.mrb[0].mxu0 %v2450
        %v2833 = vpop.f32.mrb[0].mxu0
        %v2834 = vadd.f32 0.0, %v2833
        %v2835 = vpop.f32.mrb[0].mxu0
        %v2836 = vadd.f32 0.0, %v2835
        %v2837 = vpop.f32.mrb[0].mxu0
        %v2838 = vpop.f32.mrb[0].mxu0
        %2839 = vdwg.mxu0
        %2840 = vmatprep.subr.bf16.mxu0 %v2704
        %2841 = vmatpush1.bf16.msra.mxu0 %v2703
        %2842 = vmatprep.subr.bf16.mxu0 %v2706
        %2843 = vmatpush1.bf16.msra.mxu0 %v2705
        %2844 = vmatprep.subr.bf16.mxu0 %v2708
        %2845 = vmatpush1.bf16.msra.mxu0 %v2707
        %2846 = vmatprep.subr.bf16.mxu0 %v2710
        %2847 = vmatpush1.bf16.msra.mxu0 %v2709
        %2848 = vmatprep.subr.bf16.mxu0 %v2712
        %2849 = vmatpush1.bf16.msra.mxu0 %v2711
        %2850 = vmatprep.subr.bf16.mxu0 %v2714
        %2851 = vmatpush1.bf16.msra.mxu0 %v2713
        %2852 = vmatprep.subr.bf16.mxu0 %v2716
        %2853 = vmatpush1.bf16.msra.mxu0 %v2715
        %2854 = vmatprep.subr.bf16.mxu0 %v2718
        %2855 = vmatpush1.bf16.msra.mxu0 %v2717
        %2856 = vmatprep.subr.bf16.mxu0 %v2720
        %2857 = vmatpush1.bf16.msra.mxu0 %v2719
        %2858 = vmatprep.subr.bf16.mxu0 %v2722
        %2859 = vmatpush1.bf16.msra.mxu0 %v2721
        %2860 = vmatprep.subr.bf16.mxu0 %v2724
        %2861 = vmatpush1.bf16.msra.mxu0 %v2723
        %2862 = vmatprep.subr.bf16.mxu0 %v2726
        %2863 = vmatpush1.bf16.msra.mxu0 %v2725
        %2864 = vmatprep.subr.bf16.mxu0 %v2728
        %2865 = vmatpush1.bf16.msra.mxu0 %v2727
        %2866 = vmatprep.subr.bf16.mxu0 %v2730
        %2867 = vmatpush1.bf16.msra.mxu0 %v2729
        %2868 = vmatprep.subr.bf16.mxu0 %v2732
        %2869 = vmatpush1.bf16.msra.mxu0 %v2731
        %2870 = vmatprep.subr.bf16.mxu0 %v2734
        %2871 = vmatpush1.bf16.msra.mxu0 %v2733
        %2872 = vmatprep.mubr.bf16.mxu0 %v2474
        %2873 = vmatmul.mubr.bf16.gmra.mrb[0].mxu0 %v2466
        %v2874 = vpop.f32.mrb[0].mxu0
        %v2875 = vadd.f32 %v2834, %v2874
        %v2876 = vpop.f32.mrb[0].mxu0
        %v2877 = vadd.f32 %v2836, %v2876
        %v2878 = vpop.f32.mrb[0].mxu0
        %v2879 = vpop.f32.mrb[0].mxu0
        %2880 = vdwg.mxu0
        %v2881 = vadd.f32 %v2364, %v2875
        %v2882 = vadd.f32 %v2365, %v2877
        %v2883 = vld [vmem:[%s323] sm:$0x88]
        %v2884 = vld [vmem:[%s323 + $0x8] sm:$0x88]
        %s2885 = scalar_lea.vmem %s331, 2560 [#allocation4]
        %v2886 = vld [vmem:[%s2885] sm:$0xff]
        %v2887 = vld [vmem:[%s2885 + $0x8] sm:$0xff]
        %v2888 = vld [vmem:[%s2885 + $0x10] sm:$0xff]
        %v2889 = vld [vmem:[%s2885 + $0x18] sm:$0xff]
        %v2890 = vld [vmem:[%s2885 + $0x20] sm:$0xff]
        %v2891 = vld [vmem:[%s2885 + $0x28] sm:$0xff]
        %v2892 = vld [vmem:[%s2885 + $0x30] sm:$0xff]
        %v2893 = vld [vmem:[%s2885 + $0x38] sm:$0xff]
        %v2894 = vld [vmem:[%s2885 + $0x40] sm:$0xff]
        %v2895 = vld [vmem:[%s2885 + $0x48] sm:$0xff]
        %v2896 = vld [vmem:[%s2885 + $0x50] sm:$0xff]
        %v2897 = vld [vmem:[%s2885 + $0x58] sm:$0xff]
        %v2898 = vld [vmem:[%s2885 + $0x60] sm:$0xff]
        %v2899 = vld [vmem:[%s2885 + $0x68] sm:$0xff]
        %v2900 = vld [vmem:[%s2885 + $0x70] sm:$0xff]
        %v2901 = vld [vmem:[%s2885 + $0x78] sm:$0xff]
        %v2902 = vld [vmem:[%s2885 + $0x80] sm:$0xff]
        %v2903 = vld [vmem:[%s2885 + $0x88] sm:$0xff]
        %v2904 = vld [vmem:[%s2885 + $0x90] sm:$0xff]
        %v2905 = vld [vmem:[%s2885 + $0x98] sm:$0xff]
        %v2906 = vld [vmem:[%s2885 + $0xa0] sm:$0xff]
        %v2907 = vld [vmem:[%s2885 + $0xa8] sm:$0xff]
        %v2908 = vld [vmem:[%s2885 + $0xb0] sm:$0xff]
        %v2909 = vld [vmem:[%s2885 + $0xb8] sm:$0xff]
        %v2910 = vld [vmem:[%s2885 + $0xc0] sm:$0xff]
        %v2911 = vld [vmem:[%s2885 + $0xc8] sm:$0xff]
        %v2912 = vld [vmem:[%s2885 + $0xd0] sm:$0xff]
        %v2913 = vld [vmem:[%s2885 + $0xd8] sm:$0xff]
        %v2914 = vld [vmem:[%s2885 + $0xe0] sm:$0xff]
        %v2915 = vld [vmem:[%s2885 + $0xe8] sm:$0xff]
        %v2916 = vld [vmem:[%s2885 + $0xf0] sm:$0xff]
        %v2917 = vld [vmem:[%s2885 + $0xf8] sm:$0xff]
        %v2918 = vld [vmem:[%s2885 + $0x100] sm:$0xff]
        %v2919 = vld [vmem:[%s2885 + $0x108] sm:$0xff]
        %v2920 = vld [vmem:[%s2885 + $0x110] sm:$0xff]
        %v2921 = vld [vmem:[%s2885 + $0x118] sm:$0xff]
        %v2922 = vld [vmem:[%s2885 + $0x120] sm:$0xff]
        %v2923 = vld [vmem:[%s2885 + $0x128] sm:$0xff]
        %v2924 = vld [vmem:[%s2885 + $0x130] sm:$0xff]
        %v2925 = vld [vmem:[%s2885 + $0x138] sm:$0xff]
        %v2926 = vld [vmem:[%s2885 + $0x140] sm:$0xff]
        %v2927 = vld [vmem:[%s2885 + $0x148] sm:$0xff]
        %v2928 = vld [vmem:[%s2885 + $0x150] sm:$0xff]
        %v2929 = vld [vmem:[%s2885 + $0x158] sm:$0xff]
        %v2930 = vld [vmem:[%s2885 + $0x160] sm:$0xff]
        %v2931 = vld [vmem:[%s2885 + $0x168] sm:$0xff]
        %v2932 = vld [vmem:[%s2885 + $0x170] sm:$0xff]
        %v2933 = vld [vmem:[%s2885 + $0x178] sm:$0xff]
        %v2934 = vld [vmem:[%s2885 + $0x180] sm:$0xff]
        %v2935 = vld [vmem:[%s2885 + $0x188] sm:$0xff]
        %v2936 = vld [vmem:[%s2885 + $0x190] sm:$0xff]
        %v2937 = vld [vmem:[%s2885 + $0x198] sm:$0xff]
        %v2938 = vld [vmem:[%s2885 + $0x1a0] sm:$0xff]
        %v2939 = vld [vmem:[%s2885 + $0x1a8] sm:$0xff]
        %v2940 = vld [vmem:[%s2885 + $0x1b0] sm:$0xff]
        %v2941 = vld [vmem:[%s2885 + $0x1b8] sm:$0xff]
        %v2942 = vld [vmem:[%s2885 + $0x1c0] sm:$0xff]
        %v2943 = vld [vmem:[%s2885 + $0x1c8] sm:$0xff]
        %v2944 = vld [vmem:[%s2885 + $0x1d0] sm:$0xff]
        %v2945 = vld [vmem:[%s2885 + $0x1d8] sm:$0xff]
        %v2946 = vld [vmem:[%s2885 + $0x1e0] sm:$0xff]
        %v2947 = vld [vmem:[%s2885 + $0x1e8] sm:$0xff]
        %v2948 = vld [vmem:[%s2885 + $0x1f0] sm:$0xff]
        %v2949 = vld [vmem:[%s2885 + $0x1f8] sm:$0xff]
        %v2952 = vunpack.c.l.b16 %v2883
        %v2953 = vunpack.c.h.b16 %v2883
        %v2954 = vunpack.c.l.b16 %v2884
        %v2955 = vunpack.c.h.b16 %v2884
        %v2956 = vpack.c.b16 %v2435, %v2952
        %v2957 = vpack.c.b16 %v2436, %v2953
        %v2958 = vpack.c.b16 %v2437, %v2954
        %v2959 = vpack.c.b16 %v2438, %v2955
        %v2960 = vrot.slane %v2956, 3
        %v2961 = vrot.slane %v2957, 3
        %v2962 = vrot.slane %v2958, 3
        %v2963 = vrot.slane %v2959, 3
        %v3032 = vunpack.c.l.b16 %v2886
        %v3033 = vunpack.c.h.b16 %v2886
        %v3034 = vunpack.c.l.b16 %v2887
        %v3035 = vunpack.c.h.b16 %v2887
        %v3036 = vunpack.c.l.b16 %v2888
        %v3037 = vunpack.c.h.b16 %v2888
        %v3038 = vunpack.c.l.b16 %v2889
        %v3039 = vunpack.c.h.b16 %v2889
        %v3040 = vunpack.c.l.b16 %v2890
        %v3041 = vunpack.c.h.b16 %v2890
        %v3042 = vunpack.c.l.b16 %v2891
        %v3043 = vunpack.c.h.b16 %v2891
        %v3044 = vunpack.c.l.b16 %v2892
        %v3045 = vunpack.c.h.b16 %v2892
        %v3046 = vunpack.c.l.b16 %v2893
        %v3047 = vunpack.c.h.b16 %v2893
        %v3048 = vunpack.c.l.b16 %v2894
        %v3049 = vunpack.c.h.b16 %v2894
        %v3050 = vunpack.c.l.b16 %v2895
        %v3051 = vunpack.c.h.b16 %v2895
        %v3052 = vunpack.c.l.b16 %v2896
        %v3053 = vunpack.c.h.b16 %v2896
        %v3054 = vunpack.c.l.b16 %v2897
        %v3055 = vunpack.c.h.b16 %v2897
        %v3056 = vunpack.c.l.b16 %v2898
        %v3057 = vunpack.c.h.b16 %v2898
        %v3058 = vunpack.c.l.b16 %v2899
        %v3059 = vunpack.c.h.b16 %v2899
        %v3060 = vunpack.c.l.b16 %v2900
        %v3061 = vunpack.c.h.b16 %v2900
        %v3062 = vunpack.c.l.b16 %v2901
        %v3063 = vunpack.c.h.b16 %v2901
        %v3064 = vunpack.c.l.b16 %v2902
        %v3065 = vunpack.c.h.b16 %v2902
        %v3066 = vunpack.c.l.b16 %v2903
        %v3067 = vunpack.c.h.b16 %v2903
        %v3068 = vunpack.c.l.b16 %v2904
        %v3069 = vunpack.c.h.b16 %v2904
        %v3070 = vunpack.c.l.b16 %v2905
        %v3071 = vunpack.c.h.b16 %v2905
        %v3072 = vunpack.c.l.b16 %v2906
        %v3073 = vunpack.c.h.b16 %v2906
        %v3074 = vunpack.c.l.b16 %v2907
        %v3075 = vunpack.c.h.b16 %v2907
        %v3076 = vunpack.c.l.b16 %v2908
        %v3077 = vunpack.c.h.b16 %v2908
        %v3078 = vunpack.c.l.b16 %v2909
        %v3079 = vunpack.c.h.b16 %v2909
        %v3080 = vunpack.c.l.b16 %v2910
        %v3081 = vunpack.c.h.b16 %v2910
        %v3082 = vunpack.c.l.b16 %v2911
        %v3083 = vunpack.c.h.b16 %v2911
        %v3084 = vunpack.c.l.b16 %v2912
        %v3085 = vunpack.c.h.b16 %v2912
        %v3086 = vunpack.c.l.b16 %v2913
        %v3087 = vunpack.c.h.b16 %v2913
        %v3088 = vunpack.c.l.b16 %v2914
        %v3089 = vunpack.c.h.b16 %v2914
        %v3090 = vunpack.c.l.b16 %v2915
        %v3091 = vunpack.c.h.b16 %v2915
        %v3092 = vunpack.c.l.b16 %v2916
        %v3093 = vunpack.c.h.b16 %v2916
        %v3094 = vunpack.c.l.b16 %v2917
        %v3095 = vunpack.c.h.b16 %v2917
        %v3096 = vunpack.c.l.b16 %v2918
        %v3097 = vunpack.c.h.b16 %v2918
        %v3098 = vunpack.c.l.b16 %v2919
        %v3099 = vunpack.c.h.b16 %v2919
        %v3100 = vunpack.c.l.b16 %v2920
        %v3101 = vunpack.c.h.b16 %v2920
        %v3102 = vunpack.c.l.b16 %v2921
        %v3103 = vunpack.c.h.b16 %v2921
        %v3104 = vunpack.c.l.b16 %v2922
        %v3105 = vunpack.c.h.b16 %v2922
        %v3106 = vunpack.c.l.b16 %v2923
        %v3107 = vunpack.c.h.b16 %v2923
        %v3108 = vunpack.c.l.b16 %v2924
        %v3109 = vunpack.c.h.b16 %v2924
        %v3110 = vunpack.c.l.b16 %v2925
        %v3111 = vunpack.c.h.b16 %v2925
        %v3112 = vunpack.c.l.b16 %v2926
        %v3113 = vunpack.c.h.b16 %v2926
        %v3114 = vunpack.c.l.b16 %v2927
        %v3115 = vunpack.c.h.b16 %v2927
        %v3116 = vunpack.c.l.b16 %v2928
        %v3117 = vunpack.c.h.b16 %v2928
        %v3118 = vunpack.c.l.b16 %v2929
        %v3119 = vunpack.c.h.b16 %v2929
        %v3120 = vunpack.c.l.b16 %v2930
        %v3121 = vunpack.c.h.b16 %v2930
        %v3122 = vunpack.c.l.b16 %v2931
        %v3123 = vunpack.c.h.b16 %v2931
        %v3124 = vunpack.c.l.b16 %v2932
        %v3125 = vunpack.c.h.b16 %v2932
        %v3126 = vunpack.c.l.b16 %v2933
        %v3127 = vunpack.c.h.b16 %v2933
        %v3128 = vunpack.c.l.b16 %v2934
        %v3129 = vunpack.c.h.b16 %v2934
        %v3130 = vunpack.c.l.b16 %v2935
        %v3131 = vunpack.c.h.b16 %v2935
        %v3132 = vunpack.c.l.b16 %v2936
        %v3133 = vunpack.c.h.b16 %v2936
        %v3134 = vunpack.c.l.b16 %v2937
        %v3135 = vunpack.c.h.b16 %v2937
        %v3136 = vunpack.c.l.b16 %v2938
        %v3137 = vunpack.c.h.b16 %v2938
        %v3138 = vunpack.c.l.b16 %v2939
        %v3139 = vunpack.c.h.b16 %v2939
        %v3140 = vunpack.c.l.b16 %v2940
        %v3141 = vunpack.c.h.b16 %v2940
        %v3142 = vunpack.c.l.b16 %v2941
        %v3143 = vunpack.c.h.b16 %v2941
        %v3144 = vunpack.c.l.b16 %v2942
        %v3145 = vunpack.c.h.b16 %v2942
        %v3146 = vunpack.c.l.b16 %v2943
        %v3147 = vunpack.c.h.b16 %v2943
        %v3148 = vunpack.c.l.b16 %v2944
        %v3149 = vunpack.c.h.b16 %v2944
        %v3150 = vunpack.c.l.b16 %v2945
        %v3151 = vunpack.c.h.b16 %v2945
        %v3152 = vunpack.c.l.b16 %v2946
        %v3153 = vunpack.c.h.b16 %v2946
        %v3154 = vunpack.c.l.b16 %v2947
        %v3155 = vunpack.c.h.b16 %v2947
        %v3156 = vunpack.c.l.b16 %v2948
        %v3157 = vunpack.c.h.b16 %v2948
        %v3158 = vunpack.c.l.b16 %v2949
        %v3159 = vunpack.c.h.b16 %v2949
        %v3160 = vpack.c.b16 %v3034, %v3032
        %v3161 = vpack.c.b16 %v3035, %v3033
        %v3162 = vpack.c.b16 %v3038, %v3036
        %v3163 = vpack.c.b16 %v3039, %v3037
        %v3164 = vpack.c.b16 %v3042, %v3040
        %v3165 = vpack.c.b16 %v3043, %v3041
        %v3166 = vpack.c.b16 %v3046, %v3044
        %v3167 = vpack.c.b16 %v3047, %v3045
        %v3168 = vpack.c.b16 %v3050, %v3048
        %v3169 = vpack.c.b16 %v3051, %v3049
        %v3170 = vpack.c.b16 %v3054, %v3052
        %v3171 = vpack.c.b16 %v3055, %v3053
        %v3172 = vpack.c.b16 %v3058, %v3056
        %v3173 = vpack.c.b16 %v3059, %v3057
        %v3174 = vpack.c.b16 %v3062, %v3060
        %v3175 = vpack.c.b16 %v3063, %v3061
        %v3176 = vpack.c.b16 %v3066, %v3064
        %v3177 = vpack.c.b16 %v3067, %v3065
        %v3178 = vpack.c.b16 %v3070, %v3068
        %v3179 = vpack.c.b16 %v3071, %v3069
        %v3180 = vpack.c.b16 %v3074, %v3072
        %v3181 = vpack.c.b16 %v3075, %v3073
        %v3182 = vpack.c.b16 %v3078, %v3076
        %v3183 = vpack.c.b16 %v3079, %v3077
        %v3184 = vpack.c.b16 %v3082, %v3080
        %v3185 = vpack.c.b16 %v3083, %v3081
        %v3186 = vpack.c.b16 %v3086, %v3084
        %v3187 = vpack.c.b16 %v3087, %v3085
        %v3188 = vpack.c.b16 %v3090, %v3088
        %v3189 = vpack.c.b16 %v3091, %v3089
        %v3190 = vpack.c.b16 %v3094, %v3092
        %v3191 = vpack.c.b16 %v3095, %v3093
        %v3192 = vpack.c.b16 %v3098, %v3096
        %v3193 = vpack.c.b16 %v3099, %v3097
        %v3194 = vpack.c.b16 %v3102, %v3100
        %v3195 = vpack.c.b16 %v3103, %v3101
        %v3196 = vpack.c.b16 %v3106, %v3104
        %v3197 = vpack.c.b16 %v3107, %v3105
        %v3198 = vpack.c.b16 %v3110, %v3108
        %v3199 = vpack.c.b16 %v3111, %v3109
        %v3200 = vpack.c.b16 %v3114, %v3112
        %v3201 = vpack.c.b16 %v3115, %v3113
        %v3202 = vpack.c.b16 %v3118, %v3116
        %v3203 = vpack.c.b16 %v3119, %v3117
        %v3204 = vpack.c.b16 %v3122, %v3120
        %v3205 = vpack.c.b16 %v3123, %v3121
        %v3206 = vpack.c.b16 %v3126, %v3124
        %v3207 = vpack.c.b16 %v3127, %v3125
        %v3208 = vpack.c.b16 %v3130, %v3128
        %v3209 = vpack.c.b16 %v3131, %v3129
        %v3210 = vpack.c.b16 %v3134, %v3132
        %v3211 = vpack.c.b16 %v3135, %v3133
        %v3212 = vpack.c.b16 %v3138, %v3136
        %v3213 = vpack.c.b16 %v3139, %v3137
        %v3214 = vpack.c.b16 %v3142, %v3140
        %v3215 = vpack.c.b16 %v3143, %v3141
        %v3216 = vpack.c.b16 %v3146, %v3144
        %v3217 = vpack.c.b16 %v3147, %v3145
        %v3218 = vpack.c.b16 %v3150, %v3148
        %v3219 = vpack.c.b16 %v3151, %v3149
        %v3220 = vpack.c.b16 %v3154, %v3152
        %v3221 = vpack.c.b16 %v3155, %v3153
        %v3222 = vpack.c.b16 %v3158, %v3156
        %v3223 = vpack.c.b16 %v3159, %v3157
        %3288 = vmatprep.subr.bf16.mxu0 %v3161
        %3289 = vmatpush1.bf16.msra.mxu0 %v3160
        %3290 = vmatprep.subr.bf16.mxu0 %v3163
        %3291 = vmatpush1.bf16.msra.mxu0 %v3162
        %3292 = vmatprep.subr.bf16.mxu0 %v3165
        %3293 = vmatpush1.bf16.msra.mxu0 %v3164
        %3294 = vmatprep.subr.bf16.mxu0 %v3167
        %3295 = vmatpush1.bf16.msra.mxu0 %v3166
        %3296 = vmatprep.subr.bf16.mxu0 %v3169
        %3297 = vmatpush1.bf16.msra.mxu0 %v3168
        %3298 = vmatprep.subr.bf16.mxu0 %v3171
        %3299 = vmatpush1.bf16.msra.mxu0 %v3170
        %3300 = vmatprep.subr.bf16.mxu0 %v3173
        %3301 = vmatpush1.bf16.msra.mxu0 %v3172
        %3302 = vmatprep.subr.bf16.mxu0 %v3175
        %3303 = vmatpush1.bf16.msra.mxu0 %v3174
        %3304 = vmatprep.subr.bf16.mxu0 %v3177
        %3305 = vmatpush1.bf16.msra.mxu0 %v3176
        %3306 = vmatprep.subr.bf16.mxu0 %v3179
        %3307 = vmatpush1.bf16.msra.mxu0 %v3178
        %3308 = vmatprep.subr.bf16.mxu0 %v3181
        %3309 = vmatpush1.bf16.msra.mxu0 %v3180
        %3310 = vmatprep.subr.bf16.mxu0 %v3183
        %3311 = vmatpush1.bf16.msra.mxu0 %v3182
        %3312 = vmatprep.subr.bf16.mxu0 %v3185
        %3313 = vmatpush1.bf16.msra.mxu0 %v3184
        %3314 = vmatprep.subr.bf16.mxu0 %v3187
        %3315 = vmatpush1.bf16.msra.mxu0 %v3186
        %3316 = vmatprep.subr.bf16.mxu0 %v3189
        %3317 = vmatpush1.bf16.msra.mxu0 %v3188
        %3318 = vmatprep.subr.bf16.mxu0 %v3191
        %3319 = vmatpush1.bf16.msra.mxu0 %v3190
        %3320 = vmatprep.mubr.bf16.mxu0 %v2961
        %3321 = vmatmul.mubr.bf16.gmra.mrb[0].mxu0 %v2960
        %v3322 = vpop.f32.mrb[0].mxu0
        %v3323 = vadd.f32 0.0, %v3322
        %v3324 = vpop.f32.mrb[0].mxu0
        %v3325 = vadd.f32 0.0, %v3324
        %v3326 = vpop.f32.mrb[0].mxu0
        %v3327 = vpop.f32.mrb[0].mxu0
        %3328 = vdwg.mxu0
        %3329 = vmatprep.subr.bf16.mxu0 %v3193
        %3330 = vmatpush1.bf16.msra.mxu0 %v3192
        %3331 = vmatprep.subr.bf16.mxu0 %v3195
        %3332 = vmatpush1.bf16.msra.mxu0 %v3194
        %3333 = vmatprep.subr.bf16.mxu0 %v3197
        %3334 = vmatpush1.bf16.msra.mxu0 %v3196
        %3335 = vmatprep.subr.bf16.mxu0 %v3199
        %3336 = vmatpush1.bf16.msra.mxu0 %v3198
        %3337 = vmatprep.subr.bf16.mxu0 %v3201
        %3338 = vmatpush1.bf16.msra.mxu0 %v3200
        %3339 = vmatprep.subr.bf16.mxu0 %v3203
        %3340 = vmatpush1.bf16.msra.mxu0 %v3202
        %3341 = vmatprep.subr.bf16.mxu0 %v3205
        %3342 = vmatpush1.bf16.msra.mxu0 %v3204
        %3343 = vmatprep.subr.bf16.mxu0 %v3207
        %3344 = vmatpush1.bf16.msra.mxu0 %v3206
        %3345 = vmatprep.subr.bf16.mxu0 %v3209
        %3346 = vmatpush1.bf16.msra.mxu0 %v3208
        %3347 = vmatprep.subr.bf16.mxu0 %v3211
        %3348 = vmatpush1.bf16.msra.mxu0 %v3210
        %3349 = vmatprep.subr.bf16.mxu0 %v3213
        %3350 = vmatpush1.bf16.msra.mxu0 %v3212
        %3351 = vmatprep.subr.bf16.mxu0 %v3215
        %3352 = vmatpush1.bf16.msra.mxu0 %v3214
        %3353 = vmatprep.subr.bf16.mxu0 %v3217
        %3354 = vmatpush1.bf16.msra.mxu0 %v3216
        %3355 = vmatprep.subr.bf16.mxu0 %v3219
        %3356 = vmatpush1.bf16.msra.mxu0 %v3218
        %3357 = vmatprep.subr.bf16.mxu0 %v3221
        %3358 = vmatpush1.bf16.msra.mxu0 %v3220
        %3359 = vmatprep.subr.bf16.mxu0 %v3223
        %3360 = vmatpush1.bf16.msra.mxu0 %v3222
        %3361 = vmatprep.mubr.bf16.mxu0 %v2963
        %3362 = vmatmul.mubr.bf16.gmra.mrb[0].mxu0 %v2962
        %v3363 = vpop.f32.mrb[0].mxu0
        %v3364 = vadd.f32 %v3323, %v3363
        %v3365 = vpop.f32.mrb[0].mxu0
        %v3366 = vadd.f32 %v3325, %v3365
        %v3367 = vpop.f32.mrb[0].mxu0
        %v3368 = vpop.f32.mrb[0].mxu0
        %3369 = vdwg.mxu0
        %v3370 = vadd.f32 %v2881, %v3364
        %v3371 = vadd.f32 %v2882, %v3366
        %v3372 = vld [vmem:[%s323 + $0x10] sm:$0xff]
        %v3373 = vld [vmem:[%s323 + $0x18] sm:$0xff]
        %s3374 = scalar_lea.vmem %s331, 3072 [#allocation4]
        %v3375 = vld [vmem:[%s3374] sm:$0xff]
        %v3376 = vld [vmem:[%s3374 + $0x8] sm:$0xff]
        %v3377 = vld [vmem:[%s3374 + $0x10] sm:$0xff]
        %v3378 = vld [vmem:[%s3374 + $0x18] sm:$0xff]
        %v3379 = vld [vmem:[%s3374 + $0x20] sm:$0xff]
        %v3380 = vld [vmem:[%s3374 + $0x28] sm:$0xff]
        %v3381 = vld [vmem:[%s3374 + $0x30] sm:$0xff]
        %v3382 = vld [vmem:[%s3374 + $0x38] sm:$0xff]
        %v3383 = vld [vmem:[%s3374 + $0x40] sm:$0xff]
        %v3384 = vld [vmem:[%s3374 + $0x48] sm:$0xff]
        %v3385 = vld [vmem:[%s3374 + $0x50] sm:$0xff]
        %v3386 = vld [vmem:[%s3374 + $0x58] sm:$0xff]
        %v3387 = vld [vmem:[%s3374 + $0x60] sm:$0xff]
        %v3388 = vld [vmem:[%s3374 + $0x68] sm:$0xff]
        %v3389 = vld [vmem:[%s3374 + $0x70] sm:$0xff]
        %v3390 = vld [vmem:[%s3374 + $0x78] sm:$0xff]
        %v3391 = vld [vmem:[%s3374 + $0x80] sm:$0xff]
        %v3392 = vld [vmem:[%s3374 + $0x88] sm:$0xff]
        %v3393 = vld [vmem:[%s3374 + $0x90] sm:$0xff]
        %v3394 = vld [vmem:[%s3374 + $0x98] sm:$0xff]
        %v3395 = vld [vmem:[%s3374 + $0xa0] sm:$0xff]
        %v3396 = vld [vmem:[%s3374 + $0xa8] sm:$0xff]
        %v3397 = vld [vmem:[%s3374 + $0xb0] sm:$0xff]
        %v3398 = vld [vmem:[%s3374 + $0xb8] sm:$0xff]
        %v3399 = vld [vmem:[%s3374 + $0xc0] sm:$0xff]
        %v3400 = vld [vmem:[%s3374 + $0xc8] sm:$0xff]
        %v3401 = vld [vmem:[%s3374 + $0xd0] sm:$0xff]
        %v3402 = vld [vmem:[%s3374 + $0xd8] sm:$0xff]
        %v3403 = vld [vmem:[%s3374 + $0xe0] sm:$0xff]
        %v3404 = vld [vmem:[%s3374 + $0xe8] sm:$0xff]
        %v3405 = vld [vmem:[%s3374 + $0xf0] sm:$0xff]
        %v3406 = vld [vmem:[%s3374 + $0xf8] sm:$0xff]
        %v3407 = vld [vmem:[%s3374 + $0x100] sm:$0xff]
        %v3408 = vld [vmem:[%s3374 + $0x108] sm:$0xff]
        %v3409 = vld [vmem:[%s3374 + $0x110] sm:$0xff]
        %v3410 = vld [vmem:[%s3374 + $0x118] sm:$0xff]
        %v3411 = vld [vmem:[%s3374 + $0x120] sm:$0xff]
        %v3412 = vld [vmem:[%s3374 + $0x128] sm:$0xff]
        %v3413 = vld [vmem:[%s3374 + $0x130] sm:$0xff]
        %v3414 = vld [vmem:[%s3374 + $0x138] sm:$0xff]
        %v3415 = vld [vmem:[%s3374 + $0x140] sm:$0xff]
        %v3416 = vld [vmem:[%s3374 + $0x148] sm:$0xff]
        %v3417 = vld [vmem:[%s3374 + $0x150] sm:$0xff]
        %v3418 = vld [vmem:[%s3374 + $0x158] sm:$0xff]
        %v3419 = vld [vmem:[%s3374 + $0x160] sm:$0xff]
        %v3420 = vld [vmem:[%s3374 + $0x168] sm:$0xff]
        %v3421 = vld [vmem:[%s3374 + $0x170] sm:$0xff]
        %v3422 = vld [vmem:[%s3374 + $0x178] sm:$0xff]
        %v3423 = vld [vmem:[%s3374 + $0x180] sm:$0xff]
        %v3424 = vld [vmem:[%s3374 + $0x188] sm:$0xff]
        %v3425 = vld [vmem:[%s3374 + $0x190] sm:$0xff]
        %v3426 = vld [vmem:[%s3374 + $0x198] sm:$0xff]
        %v3427 = vld [vmem:[%s3374 + $0x1a0] sm:$0xff]
        %v3428 = vld [vmem:[%s3374 + $0x1a8] sm:$0xff]
        %v3429 = vld [vmem:[%s3374 + $0x1b0] sm:$0xff]
        %v3430 = vld [vmem:[%s3374 + $0x1b8] sm:$0xff]
        %v3431 = vld [vmem:[%s3374 + $0x1c0] sm:$0xff]
        %v3432 = vld [vmem:[%s3374 + $0x1c8] sm:$0xff]
        %v3433 = vld [vmem:[%s3374 + $0x1d0] sm:$0xff]
        %v3434 = vld [vmem:[%s3374 + $0x1d8] sm:$0xff]
        %v3435 = vld [vmem:[%s3374 + $0x1e0] sm:$0xff]
        %v3436 = vld [vmem:[%s3374 + $0x1e8] sm:$0xff]
        %v3437 = vld [vmem:[%s3374 + $0x1f0] sm:$0xff]
        %v3438 = vld [vmem:[%s3374 + $0x1f8] sm:$0xff]
        %v3441 = vunpack.c.l.b16 %v3372
        %v3442 = vunpack.c.h.b16 %v3372
        %v3443 = vunpack.c.l.b16 %v3373
        %v3444 = vunpack.c.h.b16 %v3373
        %v3445 = vpack.c.b16 %v3441, %v3441
        %v3446 = vpack.c.b16 %v3442, %v3442
        %v3447 = vpack.c.b16 %v3443, %v3443
        %v3448 = vpack.c.b16 %v3444, %v3444
        %v3517 = vunpack.c.l.b16 %v3375
        %v3518 = vunpack.c.h.b16 %v3375
        %v3519 = vunpack.c.l.b16 %v3376
        %v3520 = vunpack.c.h.b16 %v3376
        %v3521 = vunpack.c.l.b16 %v3377
        %v3522 = vunpack.c.h.b16 %v3377
        %v3523 = vunpack.c.l.b16 %v3378
        %v3524 = vunpack.c.h.b16 %v3378
        %v3525 = vunpack.c.l.b16 %v3379
        %v3526 = vunpack.c.h.b16 %v3379
        %v3527 = vunpack.c.l.b16 %v3380
        %v3528 = vunpack.c.h.b16 %v3380
        %v3529 = vunpack.c.l.b16 %v3381
        %v3530 = vunpack.c.h.b16 %v3381
        %v3531 = vunpack.c.l.b16 %v3382
        %v3532 = vunpack.c.h.b16 %v3382
        %v3533 = vunpack.c.l.b16 %v3383
        %v3534 = vunpack.c.h.b16 %v3383
        %v3535 = vunpack.c.l.b16 %v3384
        %v3536 = vunpack.c.h.b16 %v3384
        %v3537 = vunpack.c.l.b16 %v3385
        %v3538 = vunpack.c.h.b16 %v3385
        %v3539 = vunpack.c.l.b16 %v3386
        %v3540 = vunpack.c.h.b16 %v3386
        %v3541 = vunpack.c.l.b16 %v3387
        %v3542 = vunpack.c.h.b16 %v3387
        %v3543 = vunpack.c.l.b16 %v3388
        %v3544 = vunpack.c.h.b16 %v3388
        %v3545 = vunpack.c.l.b16 %v3389
        %v3546 = vunpack.c.h.b16 %v3389
        %v3547 = vunpack.c.l.b16 %v3390
        %v3548 = vunpack.c.h.b16 %v3390
        %v3549 = vunpack.c.l.b16 %v3391
        %v3550 = vunpack.c.h.b16 %v3391
        %v3551 = vunpack.c.l.b16 %v3392
        %v3552 = vunpack.c.h.b16 %v3392
        %v3553 = vunpack.c.l.b16 %v3393
        %v3554 = vunpack.c.h.b16 %v3393
        %v3555 = vunpack.c.l.b16 %v3394
        %v3556 = vunpack.c.h.b16 %v3394
        %v3557 = vunpack.c.l.b16 %v3395
        %v3558 = vunpack.c.h.b16 %v3395
        %v3559 = vunpack.c.l.b16 %v3396
        %v3560 = vunpack.c.h.b16 %v3396
        %v3561 = vunpack.c.l.b16 %v3397
        %v3562 = vunpack.c.h.b16 %v3397
        %v3563 = vunpack.c.l.b16 %v3398
        %v3564 = vunpack.c.h.b16 %v3398
        %v3565 = vunpack.c.l.b16 %v3399
        %v3566 = vunpack.c.h.b16 %v3399
        %v3567 = vunpack.c.l.b16 %v3400
        %v3568 = vunpack.c.h.b16 %v3400
        %v3569 = vunpack.c.l.b16 %v3401
        %v3570 = vunpack.c.h.b16 %v3401
        %v3571 = vunpack.c.l.b16 %v3402
        %v3572 = vunpack.c.h.b16 %v3402
        %v3573 = vunpack.c.l.b16 %v3403
        %v3574 = vunpack.c.h.b16 %v3403
        %v3575 = vunpack.c.l.b16 %v3404
        %v3576 = vunpack.c.h.b16 %v3404
        %v3577 = vunpack.c.l.b16 %v3405
        %v3578 = vunpack.c.h.b16 %v3405
        %v3579 = vunpack.c.l.b16 %v3406
        %v3580 = vunpack.c.h.b16 %v3406
        %v3581 = vunpack.c.l.b16 %v3407
        %v3582 = vunpack.c.h.b16 %v3407
        %v3583 = vunpack.c.l.b16 %v3408
        %v3584 = vunpack.c.h.b16 %v3408
        %v3585 = vunpack.c.l.b16 %v3409
        %v3586 = vunpack.c.h.b16 %v3409
        %v3587 = vunpack.c.l.b16 %v3410
        %v3588 = vunpack.c.h.b16 %v3410
        %v3589 = vunpack.c.l.b16 %v3411
        %v3590 = vunpack.c.h.b16 %v3411
        %v3591 = vunpack.c.l.b16 %v3412
        %v3592 = vunpack.c.h.b16 %v3412
        %v3593 = vunpack.c.l.b16 %v3413
        %v3594 = vunpack.c.h.b16 %v3413
        %v3595 = vunpack.c.l.b16 %v3414
        %v3596 = vunpack.c.h.b16 %v3414
        %v3597 = vunpack.c.l.b16 %v3415
        %v3598 = vunpack.c.h.b16 %v3415
        %v3599 = vunpack.c.l.b16 %v3416
        %v3600 = vunpack.c.h.b16 %v3416
        %v3601 = vunpack.c.l.b16 %v3417
        %v3602 = vunpack.c.h.b16 %v3417
        %v3603 = vunpack.c.l.b16 %v3418
        %v3604 = vunpack.c.h.b16 %v3418
        %v3605 = vunpack.c.l.b16 %v3419
        %v3606 = vunpack.c.h.b16 %v3419
        %v3607 = vunpack.c.l.b16 %v3420
        %v3608 = vunpack.c.h.b16 %v3420
        %v3609 = vunpack.c.l.b16 %v3421
        %v3610 = vunpack.c.h.b16 %v3421
        %v3611 = vunpack.c.l.b16 %v3422
        %v3612 = vunpack.c.h.b16 %v3422
        %v3613 = vunpack.c.l.b16 %v3423
        %v3614 = vunpack.c.h.b16 %v3423
        %v3615 = vunpack.c.l.b16 %v3424
        %v3616 = vunpack.c.h.b16 %v3424
        %v3617 = vunpack.c.l.b16 %v3425
        %v3618 = vunpack.c.h.b16 %v3425
        %v3619 = vunpack.c.l.b16 %v3426
        %v3620 = vunpack.c.h.b16 %v3426
        %v3621 = vunpack.c.l.b16 %v3427
        %v3622 = vunpack.c.h.b16 %v3427
        %v3623 = vunpack.c.l.b16 %v3428
        %v3624 = vunpack.c.h.b16 %v3428
        %v3625 = vunpack.c.l.b16 %v3429
        %v3626 = vunpack.c.h.b16 %v3429
        %v3627 = vunpack.c.l.b16 %v3430
        %v3628 = vunpack.c.h.b16 %v3430
        %v3629 = vunpack.c.l.b16 %v3431
        %v3630 = vunpack.c.h.b16 %v3431
        %v3631 = vunpack.c.l.b16 %v3432
        %v3632 = vunpack.c.h.b16 %v3432
        %v3633 = vunpack.c.l.b16 %v3433
        %v3634 = vunpack.c.h.b16 %v3433
        %v3635 = vunpack.c.l.b16 %v3434
        %v3636 = vunpack.c.h.b16 %v3434
        %v3637 = vunpack.c.l.b16 %v3435
        %v3638 = vunpack.c.h.b16 %v3435
        %v3639 = vunpack.c.l.b16 %v3436
        %v3640 = vunpack.c.h.b16 %v3436
        %v3641 = vunpack.c.l.b16 %v3437
        %v3642 = vunpack.c.h.b16 %v3437
        %v3643 = vunpack.c.l.b16 %v3438
        %v3644 = vunpack.c.h.b16 %v3438
        %v3645 = vpack.c.b16 %v3519, %v3517
        %v3646 = vpack.c.b16 %v3520, %v3518
        %v3647 = vpack.c.b16 %v3523, %v3521
        %v3648 = vpack.c.b16 %v3524, %v3522
        %v3649 = vpack.c.b16 %v3527, %v3525
        %v3650 = vpack.c.b16 %v3528, %v3526
        %v3651 = vpack.c.b16 %v3531, %v3529
        %v3652 = vpack.c.b16 %v3532, %v3530
        %v3653 = vpack.c.b16 %v3535, %v3533
        %v3654 = vpack.c.b16 %v3536, %v3534
        %v3655 = vpack.c.b16 %v3539, %v3537
        %v3656 = vpack.c.b16 %v3540, %v3538
        %v3657 = vpack.c.b16 %v3543, %v3541
        %v3658 = vpack.c.b16 %v3544, %v3542
        %v3659 = vpack.c.b16 %v3547, %v3545
        %v3660 = vpack.c.b16 %v3548, %v3546
        %v3661 = vpack.c.b16 %v3551, %v3549
        %v3662 = vpack.c.b16 %v3552, %v3550
        %v3663 = vpack.c.b16 %v3555, %v3553
        %v3664 = vpack.c.b16 %v3556, %v3554
        %v3665 = vpack.c.b16 %v3559, %v3557
        %v3666 = vpack.c.b16 %v3560, %v3558
        %v3667 = vpack.c.b16 %v3563, %v3561
        %v3668 = vpack.c.b16 %v3564, %v3562
        %v3669 = vpack.c.b16 %v3567, %v3565
        %v3670 = vpack.c.b16 %v3568, %v3566
        %v3671 = vpack.c.b16 %v3571, %v3569
        %v3672 = vpack.c.b16 %v3572, %v3570
        %v3673 = vpack.c.b16 %v3575, %v3573
        %v3674 = vpack.c.b16 %v3576, %v3574
        %v3675 = vpack.c.b16 %v3579, %v3577
        %v3676 = vpack.c.b16 %v3580, %v3578
        %v3677 = vpack.c.b16 %v3583, %v3581
        %v3678 = vpack.c.b16 %v3584, %v3582
        %v3679 = vpack.c.b16 %v3587, %v3585
        %v3680 = vpack.c.b16 %v3588, %v3586
        %v3681 = vpack.c.b16 %v3591, %v3589
        %v3682 = vpack.c.b16 %v3592, %v3590
        %v3683 = vpack.c.b16 %v3595, %v3593
        %v3684 = vpack.c.b16 %v3596, %v3594
        %v3685 = vpack.c.b16 %v3599, %v3597
        %v3686 = vpack.c.b16 %v3600, %v3598
        %v3687 = vpack.c.b16 %v3603, %v3601
        %v3688 = vpack.c.b16 %v3604, %v3602
        %v3689 = vpack.c.b16 %v3607, %v3605
        %v3690 = vpack.c.b16 %v3608, %v3606
        %v3691 = vpack.c.b16 %v3611, %v3609
        %v3692 = vpack.c.b16 %v3612, %v3610
        %v3693 = vpack.c.b16 %v3615, %v3613
        %v3694 = vpack.c.b16 %v3616, %v3614
        %v3695 = vpack.c.b16 %v3619, %v3617
        %v3696 = vpack.c.b16 %v3620, %v3618
        %v3697 = vpack.c.b16 %v3623, %v3621
        %v3698 = vpack.c.b16 %v3624, %v3622
        %v3699 = vpack.c.b16 %v3627, %v3625
        %v3700 = vpack.c.b16 %v3628, %v3626
        %v3701 = vpack.c.b16 %v3631, %v3629
        %v3702 = vpack.c.b16 %v3632, %v3630
        %v3703 = vpack.c.b16 %v3635, %v3633
        %v3704 = vpack.c.b16 %v3636, %v3634
        %v3705 = vpack.c.b16 %v3639, %v3637
        %v3706 = vpack.c.b16 %v3640, %v3638
        %v3707 = vpack.c.b16 %v3643, %v3641
        %v3708 = vpack.c.b16 %v3644, %v3642
        %3773 = vmatprep.subr.bf16.mxu0 %v3646
        %3774 = vmatpush1.bf16.msra.mxu0 %v3645
        %3775 = vmatprep.subr.bf16.mxu0 %v3648
        %3776 = vmatpush1.bf16.msra.mxu0 %v3647
        %3777 = vmatprep.subr.bf16.mxu0 %v3650
        %3778 = vmatpush1.bf16.msra.mxu0 %v3649
        %3779 = vmatprep.subr.bf16.mxu0 %v3652
        %3780 = vmatpush1.bf16.msra.mxu0 %v3651
        %3781 = vmatprep.subr.bf16.mxu0 %v3654
        %3782 = vmatpush1.bf16.msra.mxu0 %v3653
        %3783 = vmatprep.subr.bf16.mxu0 %v3656
        %3784 = vmatpush1.bf16.msra.mxu0 %v3655
        %3785 = vmatprep.subr.bf16.mxu0 %v3658
        %3786 = vmatpush1.bf16.msra.mxu0 %v3657
        %3787 = vmatprep.subr.bf16.mxu0 %v3660
        %3788 = vmatpush1.bf16.msra.mxu0 %v3659
        %3789 = vmatprep.subr.bf16.mxu0 %v3662
        %3790 = vmatpush1.bf16.msra.mxu0 %v3661
        %3791 = vmatprep.subr.bf16.mxu0 %v3664
        %3792 = vmatpush1.bf16.msra.mxu0 %v3663
        %3793 = vmatprep.subr.bf16.mxu0 %v3666
        %3794 = vmatpush1.bf16.msra.mxu0 %v3665
        %3795 = vmatprep.subr.bf16.mxu0 %v3668
        %3796 = vmatpush1.bf16.msra.mxu0 %v3667
        %3797 = vmatprep.subr.bf16.mxu0 %v3670
        %3798 = vmatpush1.bf16.msra.mxu0 %v3669
        %3799 = vmatprep.subr.bf16.mxu0 %v3672
        %3800 = vmatpush1.bf16.msra.mxu0 %v3671
        %3801 = vmatprep.subr.bf16.mxu0 %v3674
        %3802 = vmatpush1.bf16.msra.mxu0 %v3673
        %3803 = vmatprep.subr.bf16.mxu0 %v3676
        %3804 = vmatpush1.bf16.msra.mxu0 %v3675
        %3805 = vmatprep.mubr.bf16.mxu0 %v3446
        %3806 = vmatmul.mubr.bf16.gmra.mrb[0].mxu0 %v3445
        %v3807 = vpop.f32.mrb[0].mxu0
        %v3808 = vadd.f32 0.0, %v3807
        %v3809 = vpop.f32.mrb[0].mxu0
        %v3810 = vadd.f32 0.0, %v3809
        %v3811 = vpop.f32.mrb[0].mxu0
        %v3812 = vpop.f32.mrb[0].mxu0
        %3813 = vdwg.mxu0
        %3814 = vmatprep.subr.bf16.mxu0 %v3678
        %3815 = vmatpush1.bf16.msra.mxu0 %v3677
        %3816 = vmatprep.subr.bf16.mxu0 %v3680
        %3817 = vmatpush1.bf16.msra.mxu0 %v3679
        %3818 = vmatprep.subr.bf16.mxu0 %v3682
        %3819 = vmatpush1.bf16.msra.mxu0 %v3681
        %3820 = vmatprep.subr.bf16.mxu0 %v3684
        %3821 = vmatpush1.bf16.msra.mxu0 %v3683
        %3822 = vmatprep.subr.bf16.mxu0 %v3686
        %3823 = vmatpush1.bf16.msra.mxu0 %v3685
        %3824 = vmatprep.subr.bf16.mxu0 %v3688
        %3825 = vmatpush1.bf16.msra.mxu0 %v3687
        %3826 = vmatprep.subr.bf16.mxu0 %v3690
        %3827 = vmatpush1.bf16.msra.mxu0 %v3689
        %3828 = vmatprep.subr.bf16.mxu0 %v3692
        %3829 = vmatpush1.bf16.msra.mxu0 %v3691
        %3830 = vmatprep.subr.bf16.mxu0 %v3694
        %3831 = vmatpush1.bf16.msra.mxu0 %v3693
        %3832 = vmatprep.subr.bf16.mxu0 %v3696
        %3833 = vmatpush1.bf16.msra.mxu0 %v3695
        %3834 = vmatprep.subr.bf16.mxu0 %v3698
        %3835 = vmatpush1.bf16.msra.mxu0 %v3697
        %3836 = vmatprep.subr.bf16.mxu0 %v3700
        %3837 = vmatpush1.bf16.msra.mxu0 %v3699
        %3838 = vmatprep.subr.bf16.mxu0 %v3702
        %3839 = vmatpush1.bf16.msra.mxu0 %v3701
        %3840 = vmatprep.subr.bf16.mxu0 %v3704
        %3841 = vmatpush1.bf16.msra.mxu0 %v3703
        %3842 = vmatprep.subr.bf16.mxu0 %v3706
        %3843 = vmatpush1.bf16.msra.mxu0 %v3705
        %3844 = vmatprep.subr.bf16.mxu0 %v3708
        %3845 = vmatpush1.bf16.msra.mxu0 %v3707
        %3846 = vmatprep.mubr.bf16.mxu0 %v3448
        %3847 = vmatmul.mubr.bf16.gmra.mrb[0].mxu0 %v3447
        %v3848 = vpop.f32.mrb[0].mxu0
        %v3849 = vadd.f32 %v3808, %v3848
        %v3850 = vpop.f32.mrb[0].mxu0
        %v3851 = vadd.f32 %v3810, %v3850
        %v3852 = vpop.f32.mrb[0].mxu0
        %v3853 = vpop.f32.mrb[0].mxu0
        %3854 = vdwg.mxu0
        %v3855 = vadd.f32 %v3370, %v3849
        %v3856 = vadd.f32 %v3371, %v3851
        %v3857 = vld [vmem:[%s323 + $0x10] sm:$0xff]
        %v3858 = vld [vmem:[%s323 + $0x18] sm:$0xff]
        %v3859 = vld [vmem:[%s323 + $0x20] sm:$0x11]
        %v3860 = vld [vmem:[%s323 + $0x28] sm:$0x11]
        %s3861 = scalar_lea.vmem %s331, 3584 [#allocation4]
        %v3862 = vld [vmem:[%s3861] sm:$0xff]
        %v3863 = vld [vmem:[%s3861 + $0x8] sm:$0xff]
        %v3864 = vld [vmem:[%s3861 + $0x10] sm:$0xff]
        %v3865 = vld [vmem:[%s3861 + $0x18] sm:$0xff]
        %v3866 = vld [vmem:[%s3861 + $0x20] sm:$0xff]
        %v3867 = vld [vmem:[%s3861 + $0x28] sm:$0xff]
        %v3868 = vld [vmem:[%s3861 + $0x30] sm:$0xff]
        %v3869 = vld [vmem:[%s3861 + $0x38] sm:$0xff]
        %v3870 = vld [vmem:[%s3861 + $0x40] sm:$0xff]
        %v3871 = vld [vmem:[%s3861 + $0x48] sm:$0xff]
        %v3872 = vld [vmem:[%s3861 + $0x50] sm:$0xff]
        %v3873 = vld [vmem:[%s3861 + $0x58] sm:$0xff]
        %v3874 = vld [vmem:[%s3861 + $0x60] sm:$0xff]
        %v3875 = vld [vmem:[%s3861 + $0x68] sm:$0xff]
        %v3876 = vld [vmem:[%s3861 + $0x70] sm:$0xff]
        %v3877 = vld [vmem:[%s3861 + $0x78] sm:$0xff]
        %v3878 = vld [vmem:[%s3861 + $0x80] sm:$0xff]
        %v3879 = vld [vmem:[%s3861 + $0x88] sm:$0xff]
        %v3880 = vld [vmem:[%s3861 + $0x90] sm:$0xff]
        %v3881 = vld [vmem:[%s3861 + $0x98] sm:$0xff]
        %v3882 = vld [vmem:[%s3861 + $0xa0] sm:$0xff]
        %v3883 = vld [vmem:[%s3861 + $0xa8] sm:$0xff]
        %v3884 = vld [vmem:[%s3861 + $0xb0] sm:$0xff]
        %v3885 = vld [vmem:[%s3861 + $0xb8] sm:$0xff]
        %v3886 = vld [vmem:[%s3861 + $0xc0] sm:$0xff]
        %v3887 = vld [vmem:[%s3861 + $0xc8] sm:$0xff]
        %v3888 = vld [vmem:[%s3861 + $0xd0] sm:$0xff]
        %v3889 = vld [vmem:[%s3861 + $0xd8] sm:$0xff]
        %v3890 = vld [vmem:[%s3861 + $0xe0] sm:$0xff]
        %v3891 = vld [vmem:[%s3861 + $0xe8] sm:$0xff]
        %v3892 = vld [vmem:[%s3861 + $0xf0] sm:$0xff]
        %v3893 = vld [vmem:[%s3861 + $0xf8] sm:$0xff]
        %v3894 = vld [vmem:[%s3861 + $0x100] sm:$0xff]
        %v3895 = vld [vmem:[%s3861 + $0x108] sm:$0xff]
        %v3896 = vld [vmem:[%s3861 + $0x110] sm:$0xff]
        %v3897 = vld [vmem:[%s3861 + $0x118] sm:$0xff]
        %v3898 = vld [vmem:[%s3861 + $0x120] sm:$0xff]
        %v3899 = vld [vmem:[%s3861 + $0x128] sm:$0xff]
        %v3900 = vld [vmem:[%s3861 + $0x130] sm:$0xff]
        %v3901 = vld [vmem:[%s3861 + $0x138] sm:$0xff]
        %v3902 = vld [vmem:[%s3861 + $0x140] sm:$0xff]
        %v3903 = vld [vmem:[%s3861 + $0x148] sm:$0xff]
        %v3904 = vld [vmem:[%s3861 + $0x150] sm:$0xff]
        %v3905 = vld [vmem:[%s3861 + $0x158] sm:$0xff]
        %v3906 = vld [vmem:[%s3861 + $0x160] sm:$0xff]
        %v3907 = vld [vmem:[%s3861 + $0x168] sm:$0xff]
        %v3908 = vld [vmem:[%s3861 + $0x170] sm:$0xff]
        %v3909 = vld [vmem:[%s3861 + $0x178] sm:$0xff]
        %v3910 = vld [vmem:[%s3861 + $0x180] sm:$0xff]
        %v3911 = vld [vmem:[%s3861 + $0x188] sm:$0xff]
        %v3912 = vld [vmem:[%s3861 + $0x190] sm:$0xff]
        %v3913 = vld [vmem:[%s3861 + $0x198] sm:$0xff]
        %v3914 = vld [vmem:[%s3861 + $0x1a0] sm:$0xff]
        %v3915 = vld [vmem:[%s3861 + $0x1a8] sm:$0xff]
        %v3916 = vld [vmem:[%s3861 + $0x1b0] sm:$0xff]
        %v3917 = vld [vmem:[%s3861 + $0x1b8] sm:$0xff]
        %v3918 = vld [vmem:[%s3861 + $0x1c0] sm:$0xff]
        %v3919 = vld [vmem:[%s3861 + $0x1c8] sm:$0xff]
        %v3920 = vld [vmem:[%s3861 + $0x1d0] sm:$0xff]
        %v3921 = vld [vmem:[%s3861 + $0x1d8] sm:$0xff]
        %v3922 = vld [vmem:[%s3861 + $0x1e0] sm:$0xff]
        %v3923 = vld [vmem:[%s3861 + $0x1e8] sm:$0xff]
        %v3924 = vld [vmem:[%s3861 + $0x1f0] sm:$0xff]
        %v3925 = vld [vmem:[%s3861 + $0x1f8] sm:$0xff]
        %v3930 = vunpack.c.l.b16 %v3857
        %v3931 = vunpack.c.h.b16 %v3857
        %v3932 = vunpack.c.l.b16 %v3858
        %v3933 = vunpack.c.h.b16 %v3858
        %v3934 = vunpack.c.l.b16 %v3859
        %v3935 = vunpack.c.h.b16 %v3859
        %v3936 = vunpack.c.l.b16 %v3860
        %v3937 = vunpack.c.h.b16 %v3860
        %v3938 = vpack.c.b16 %v3934, %v3930
        %v3939 = vpack.c.b16 %v3935, %v3931
        %v3940 = vpack.c.b16 %v3936, %v3932
        %v3941 = vpack.c.b16 %v3937, %v3933
        %v3943 = vshrl.u32 %v3938, 16
        %v3945 = vshll.u32 %v3938, 16
        %v3947 = vrot.slane %v3945, 1
        %v3948 = vor.u32 %v3943, %v3947
        %v3950 = vshrl.u32 %v3939, 16
        %v3952 = vshll.u32 %v3939, 16
        %v3954 = vrot.slane %v3952, 1
        %v3955 = vor.u32 %v3950, %v3954
        %v3957 = vshrl.u32 %v3940, 16
        %v3959 = vshll.u32 %v3940, 16
        %v3961 = vrot.slane %v3959, 1
        %v3962 = vor.u32 %v3957, %v3961
        %v3964 = vshrl.u32 %v3941, 16
        %v3966 = vshll.u32 %v3941, 16
        %v3968 = vrot.slane %v3966, 1
        %v3969 = vor.u32 %v3964, %v3968
        %v4038 = vunpack.c.l.b16 %v3862
        %v4039 = vunpack.c.h.b16 %v3862
        %v4040 = vunpack.c.l.b16 %v3863
        %v4041 = vunpack.c.h.b16 %v3863
        %v4042 = vunpack.c.l.b16 %v3864
        %v4043 = vunpack.c.h.b16 %v3864
        %v4044 = vunpack.c.l.b16 %v3865
        %v4045 = vunpack.c.h.b16 %v3865
        %v4046 = vunpack.c.l.b16 %v3866
        %v4047 = vunpack.c.h.b16 %v3866
        %v4048 = vunpack.c.l.b16 %v3867
        %v4049 = vunpack.c.h.b16 %v3867
        %v4050 = vunpack.c.l.b16 %v3868
        %v4051 = vunpack.c.h.b16 %v3868
        %v4052 = vunpack.c.l.b16 %v3869
        %v4053 = vunpack.c.h.b16 %v3869
        %v4054 = vunpack.c.l.b16 %v3870
        %v4055 = vunpack.c.h.b16 %v3870
        %v4056 = vunpack.c.l.b16 %v3871
        %v4057 = vunpack.c.h.b16 %v3871
        %v4058 = vunpack.c.l.b16 %v3872
        %v4059 = vunpack.c.h.b16 %v3872
        %v4060 = vunpack.c.l.b16 %v3873
        %v4061 = vunpack.c.h.b16 %v3873
        %v4062 = vunpack.c.l.b16 %v3874
        %v4063 = vunpack.c.h.b16 %v3874
        %v4064 = vunpack.c.l.b16 %v3875
        %v4065 = vunpack.c.h.b16 %v3875
        %v4066 = vunpack.c.l.b16 %v3876
        %v4067 = vunpack.c.h.b16 %v3876
        %v4068 = vunpack.c.l.b16 %v3877
        %v4069 = vunpack.c.h.b16 %v3877
        %v4070 = vunpack.c.l.b16 %v3878
        %v4071 = vunpack.c.h.b16 %v3878
        %v4072 = vunpack.c.l.b16 %v3879
        %v4073 = vunpack.c.h.b16 %v3879
        %v4074 = vunpack.c.l.b16 %v3880
        %v4075 = vunpack.c.h.b16 %v3880
        %v4076 = vunpack.c.l.b16 %v3881
        %v4077 = vunpack.c.h.b16 %v3881
        %v4078 = vunpack.c.l.b16 %v3882
        %v4079 = vunpack.c.h.b16 %v3882
        %v4080 = vunpack.c.l.b16 %v3883
        %v4081 = vunpack.c.h.b16 %v3883
        %v4082 = vunpack.c.l.b16 %v3884
        %v4083 = vunpack.c.h.b16 %v3884
        %v4084 = vunpack.c.l.b16 %v3885
        %v4085 = vunpack.c.h.b16 %v3885
        %v4086 = vunpack.c.l.b16 %v3886
        %v4087 = vunpack.c.h.b16 %v3886
        %v4088 = vunpack.c.l.b16 %v3887
        %v4089 = vunpack.c.h.b16 %v3887
        %v4090 = vunpack.c.l.b16 %v3888
        %v4091 = vunpack.c.h.b16 %v3888
        %v4092 = vunpack.c.l.b16 %v3889
        %v4093 = vunpack.c.h.b16 %v3889
        %v4094 = vunpack.c.l.b16 %v3890
        %v4095 = vunpack.c.h.b16 %v3890
        %v4096 = vunpack.c.l.b16 %v3891
        %v4097 = vunpack.c.h.b16 %v3891
        %v4098 = vunpack.c.l.b16 %v3892
        %v4099 = vunpack.c.h.b16 %v3892
        %v4100 = vunpack.c.l.b16 %v3893
        %v4101 = vunpack.c.h.b16 %v3893
        %v4102 = vunpack.c.l.b16 %v3894
        %v4103 = vunpack.c.h.b16 %v3894
        %v4104 = vunpack.c.l.b16 %v3895
        %v4105 = vunpack.c.h.b16 %v3895
        %v4106 = vunpack.c.l.b16 %v3896
        %v4107 = vunpack.c.h.b16 %v3896
        %v4108 = vunpack.c.l.b16 %v3897
        %v4109 = vunpack.c.h.b16 %v3897
        %v4110 = vunpack.c.l.b16 %v3898
        %v4111 = vunpack.c.h.b16 %v3898
        %v4112 = vunpack.c.l.b16 %v3899
        %v4113 = vunpack.c.h.b16 %v3899
        %v4114 = vunpack.c.l.b16 %v3900
        %v4115 = vunpack.c.h.b16 %v3900
        %v4116 = vunpack.c.l.b16 %v3901
        %v4117 = vunpack.c.h.b16 %v3901
        %v4118 = vunpack.c.l.b16 %v3902
        %v4119 = vunpack.c.h.b16 %v3902
        %v4120 = vunpack.c.l.b16 %v3903
        %v4121 = vunpack.c.h.b16 %v3903
        %v4122 = vunpack.c.l.b16 %v3904
        %v4123 = vunpack.c.h.b16 %v3904
        %v4124 = vunpack.c.l.b16 %v3905
        %v4125 = vunpack.c.h.b16 %v3905
        %v4126 = vunpack.c.l.b16 %v3906
        %v4127 = vunpack.c.h.b16 %v3906
        %v4128 = vunpack.c.l.b16 %v3907
        %v4129 = vunpack.c.h.b16 %v3907
        %v4130 = vunpack.c.l.b16 %v3908
        %v4131 = vunpack.c.h.b16 %v3908
        %v4132 = vunpack.c.l.b16 %v3909
        %v4133 = vunpack.c.h.b16 %v3909
        %v4134 = vunpack.c.l.b16 %v3910
        %v4135 = vunpack.c.h.b16 %v3910
        %v4136 = vunpack.c.l.b16 %v3911
        %v4137 = vunpack.c.h.b16 %v3911
        %v4138 = vunpack.c.l.b16 %v3912
        %v4139 = vunpack.c.h.b16 %v3912
        %v4140 = vunpack.c.l.b16 %v3913
        %v4141 = vunpack.c.h.b16 %v3913
        %v4142 = vunpack.c.l.b16 %v3914
        %v4143 = vunpack.c.h.b16 %v3914
        %v4144 = vunpack.c.l.b16 %v3915
        %v4145 = vunpack.c.h.b16 %v3915
        %v4146 = vunpack.c.l.b16 %v3916
        %v4147 = vunpack.c.h.b16 %v3916
        %v4148 = vunpack.c.l.b16 %v3917
        %v4149 = vunpack.c.h.b16 %v3917
        %v4150 = vunpack.c.l.b16 %v3918
        %v4151 = vunpack.c.h.b16 %v3918
        %v4152 = vunpack.c.l.b16 %v3919
        %v4153 = vunpack.c.h.b16 %v3919
        %v4154 = vunpack.c.l.b16 %v3920
        %v4155 = vunpack.c.h.b16 %v3920
        %v4156 = vunpack.c.l.b16 %v3921
        %v4157 = vunpack.c.h.b16 %v3921
        %v4158 = vunpack.c.l.b16 %v3922
        %v4159 = vunpack.c.h.b16 %v3922
        %v4160 = vunpack.c.l.b16 %v3923
        %v4161 = vunpack.c.h.b16 %v3923
        %v4162 = vunpack.c.l.b16 %v3924
        %v4163 = vunpack.c.h.b16 %v3924
        %v4164 = vunpack.c.l.b16 %v3925
        %v4165 = vunpack.c.h.b16 %v3925
        %v4166 = vpack.c.b16 %v4040, %v4038
        %v4167 = vpack.c.b16 %v4041, %v4039
        %v4168 = vpack.c.b16 %v4044, %v4042
        %v4169 = vpack.c.b16 %v4045, %v4043
        %v4170 = vpack.c.b16 %v4048, %v4046
        %v4171 = vpack.c.b16 %v4049, %v4047
        %v4172 = vpack.c.b16 %v4052, %v4050
        %v4173 = vpack.c.b16 %v4053, %v4051
        %v4174 = vpack.c.b16 %v4056, %v4054
        %v4175 = vpack.c.b16 %v4057, %v4055
        %v4176 = vpack.c.b16 %v4060, %v4058
        %v4177 = vpack.c.b16 %v4061, %v4059
        %v4178 = vpack.c.b16 %v4064, %v4062
        %v4179 = vpack.c.b16 %v4065, %v4063
        %v4180 = vpack.c.b16 %v4068, %v4066
        %v4181 = vpack.c.b16 %v4069, %v4067
        %v4182 = vpack.c.b16 %v4072, %v4070
        %v4183 = vpack.c.b16 %v4073, %v4071
        %v4184 = vpack.c.b16 %v4076, %v4074
        %v4185 = vpack.c.b16 %v4077, %v4075
        %v4186 = vpack.c.b16 %v4080, %v4078
        %v4187 = vpack.c.b16 %v4081, %v4079
        %v4188 = vpack.c.b16 %v4084, %v4082
        %v4189 = vpack.c.b16 %v4085, %v4083
        %v4190 = vpack.c.b16 %v4088, %v4086
        %v4191 = vpack.c.b16 %v4089, %v4087
        %v4192 = vpack.c.b16 %v4092, %v4090
        %v4193 = vpack.c.b16 %v4093, %v4091
        %v4194 = vpack.c.b16 %v4096, %v4094
        %v4195 = vpack.c.b16 %v4097, %v4095
        %v4196 = vpack.c.b16 %v4100, %v4098
        %v4197 = vpack.c.b16 %v4101, %v4099
        %v4198 = vpack.c.b16 %v4104, %v4102
        %v4199 = vpack.c.b16 %v4105, %v4103
        %v4200 = vpack.c.b16 %v4108, %v4106
        %v4201 = vpack.c.b16 %v4109, %v4107
        %v4202 = vpack.c.b16 %v4112, %v4110
        %v4203 = vpack.c.b16 %v4113, %v4111
        %v4204 = vpack.c.b16 %v4116, %v4114
        %v4205 = vpack.c.b16 %v4117, %v4115
        %v4206 = vpack.c.b16 %v4120, %v4118
        %v4207 = vpack.c.b16 %v4121, %v4119
        %v4208 = vpack.c.b16 %v4124, %v4122
        %v4209 = vpack.c.b16 %v4125, %v4123
        %v4210 = vpack.c.b16 %v4128, %v4126
        %v4211 = vpack.c.b16 %v4129, %v4127
        %v4212 = vpack.c.b16 %v4132, %v4130
        %v4213 = vpack.c.b16 %v4133, %v4131
        %v4214 = vpack.c.b16 %v4136, %v4134
        %v4215 = vpack.c.b16 %v4137, %v4135
        %v4216 = vpack.c.b16 %v4140, %v4138
        %v4217 = vpack.c.b16 %v4141, %v4139
        %v4218 = vpack.c.b16 %v4144, %v4142
        %v4219 = vpack.c.b16 %v4145, %v4143
        %v4220 = vpack.c.b16 %v4148, %v4146
        %v4221 = vpack.c.b16 %v4149, %v4147
        %v4222 = vpack.c.b16 %v4152, %v4150
        %v4223 = vpack.c.b16 %v4153, %v4151
        %v4224 = vpack.c.b16 %v4156, %v4154
        %v4225 = vpack.c.b16 %v4157, %v4155
        %v4226 = vpack.c.b16 %v4160, %v4158
        %v4227 = vpack.c.b16 %v4161, %v4159
        %v4228 = vpack.c.b16 %v4164, %v4162
        %v4229 = vpack.c.b16 %v4165, %v4163
        %4294 = vmatprep.subr.bf16.mxu0 %v4167
        %4295 = vmatpush1.bf16.msra.mxu0 %v4166
        %4296 = vmatprep.subr.bf16.mxu0 %v4169
        %4297 = vmatpush1.bf16.msra.mxu0 %v4168
        %4298 = vmatprep.subr.bf16.mxu0 %v4171
        %4299 = vmatpush1.bf16.msra.mxu0 %v4170
        %4300 = vmatprep.subr.bf16.mxu0 %v4173
        %4301 = vmatpush1.bf16.msra.mxu0 %v4172
        %4302 = vmatprep.subr.bf16.mxu0 %v4175
        %4303 = vmatpush1.bf16.msra.mxu0 %v4174
        %4304 = vmatprep.subr.bf16.mxu0 %v4177
        %4305 = vmatpush1.bf16.msra.mxu0 %v4176
        %4306 = vmatprep.subr.bf16.mxu0 %v4179
        %4307 = vmatpush1.bf16.msra.mxu0 %v4178
        %4308 = vmatprep.subr.bf16.mxu0 %v4181
        %4309 = vmatpush1.bf16.msra.mxu0 %v4180
        %4310 = vmatprep.subr.bf16.mxu0 %v4183
        %4311 = vmatpush1.bf16.msra.mxu0 %v4182
        %4312 = vmatprep.subr.bf16.mxu0 %v4185
        %4313 = vmatpush1.bf16.msra.mxu0 %v4184
        %4314 = vmatprep.subr.bf16.mxu0 %v4187
        %4315 = vmatpush1.bf16.msra.mxu0 %v4186
        %4316 = vmatprep.subr.bf16.mxu0 %v4189
        %4317 = vmatpush1.bf16.msra.mxu0 %v4188
        %4318 = vmatprep.subr.bf16.mxu0 %v4191
        %4319 = vmatpush1.bf16.msra.mxu0 %v4190
        %4320 = vmatprep.subr.bf16.mxu0 %v4193
        %4321 = vmatpush1.bf16.msra.mxu0 %v4192
        %4322 = vmatprep.subr.bf16.mxu0 %v4195
        %4323 = vmatpush1.bf16.msra.mxu0 %v4194
        %4324 = vmatprep.subr.bf16.mxu0 %v4197
        %4325 = vmatpush1.bf16.msra.mxu0 %v4196
        %4326 = vmatprep.mubr.bf16.mxu0 %v3955
        %4327 = vmatmul.mubr.bf16.gmra.mrb[0].mxu0 %v3948
        %v4328 = vpop.f32.mrb[0].mxu0
        %v4329 = vadd.f32 0.0, %v4328
        %v4330 = vpop.f32.mrb[0].mxu0
        %v4331 = vadd.f32 0.0, %v4330
        %v4332 = vpop.f32.mrb[0].mxu0
        %v4333 = vpop.f32.mrb[0].mxu0
        %4334 = vdwg.mxu0
        %4335 = vmatprep.subr.bf16.mxu0 %v4199
        %4336 = vmatpush1.bf16.msra.mxu0 %v4198
        %4337 = vmatprep.subr.bf16.mxu0 %v4201
        %4338 = vmatpush1.bf16.msra.mxu0 %v4200
        %4339 = vmatprep.subr.bf16.mxu0 %v4203
        %4340 = vmatpush1.bf16.msra.mxu0 %v4202
        %4341 = vmatprep.subr.bf16.mxu0 %v4205
        %4342 = vmatpush1.bf16.msra.mxu0 %v4204
        %4343 = vmatprep.subr.bf16.mxu0 %v4207
        %4344 = vmatpush1.bf16.msra.mxu0 %v4206
        %4345 = vmatprep.subr.bf16.mxu0 %v4209
        %4346 = vmatpush1.bf16.msra.mxu0 %v4208
        %4347 = vmatprep.subr.bf16.mxu0 %v4211
        %4348 = vmatpush1.bf16.msra.mxu0 %v4210
        %4349 = vmatprep.subr.bf16.mxu0 %v4213
        %4350 = vmatpush1.bf16.msra.mxu0 %v4212
        %4351 = vmatprep.subr.bf16.mxu0 %v4215
        %4352 = vmatpush1.bf16.msra.mxu0 %v4214
        %4353 = vmatprep.subr.bf16.mxu0 %v4217
        %4354 = vmatpush1.bf16.msra.mxu0 %v4216
        %4355 = vmatprep.subr.bf16.mxu0 %v4219
        %4356 = vmatpush1.bf16.msra.mxu0 %v4218
        %4357 = vmatprep.subr.bf16.mxu0 %v4221
        %4358 = vmatpush1.bf16.msra.mxu0 %v4220
        %4359 = vmatprep.subr.bf16.mxu0 %v4223
        %4360 = vmatpush1.bf16.msra.mxu0 %v4222
        %4361 = vmatprep.subr.bf16.mxu0 %v4225
        %4362 = vmatpush1.bf16.msra.mxu0 %v4224
        %4363 = vmatprep.subr.bf16.mxu0 %v4227
        %4364 = vmatpush1.bf16.msra.mxu0 %v4226
        %4365 = vmatprep.subr.bf16.mxu0 %v4229
        %4366 = vmatpush1.bf16.msra.mxu0 %v4228
        %4367 = vmatprep.mubr.bf16.mxu0 %v3969
        %4368 = vmatmul.mubr.bf16.gmra.mrb[0].mxu0 %v3962
        %v4369 = vpop.f32.mrb[0].mxu0
        %v4370 = vadd.f32 %v4329, %v4369
        %v4371 = vpop.f32.mrb[0].mxu0
        %v4372 = vadd.f32 %v4331, %v4371
        %v4373 = vpop.f32.mrb[0].mxu0
        %v4374 = vpop.f32.mrb[0].mxu0
        %4375 = vdwg.mxu0
        %v4376 = vadd.f32 %v3855, %v4370
        %v4377 = vadd.f32 %v3856, %v4372
        %v4378 = vld [vmem:[%s323 + $0x10] sm:$0xee]
        %v4379 = vld [vmem:[%s323 + $0x18] sm:$0xee]
        %s4380 = scalar_lea.vmem %s331, 4096 [#allocation4]
        %v4381 = vld [vmem:[%s4380] sm:$0xff]
        %v4382 = vld [vmem:[%s4380 + $0x8] sm:$0xff]
        %v4383 = vld [vmem:[%s4380 + $0x10] sm:$0xff]
        %v4384 = vld [vmem:[%s4380 + $0x18] sm:$0xff]
        %v4385 = vld [vmem:[%s4380 + $0x20] sm:$0xff]
        %v4386 = vld [vmem:[%s4380 + $0x28] sm:$0xff]
        %v4387 = vld [vmem:[%s4380 + $0x30] sm:$0xff]
        %v4388 = vld [vmem:[%s4380 + $0x38] sm:$0xff]
        %v4389 = vld [vmem:[%s4380 + $0x40] sm:$0xff]
        %v4390 = vld [vmem:[%s4380 + $0x48] sm:$0xff]
        %v4391 = vld [vmem:[%s4380 + $0x50] sm:$0xff]
        %v4392 = vld [vmem:[%s4380 + $0x58] sm:$0xff]
        %v4393 = vld [vmem:[%s4380 + $0x60] sm:$0xff]
        %v4394 = vld [vmem:[%s4380 + $0x68] sm:$0xff]
        %v4395 = vld [vmem:[%s4380 + $0x70] sm:$0xff]
        %v4396 = vld [vmem:[%s4380 + $0x78] sm:$0xff]
        %v4397 = vld [vmem:[%s4380 + $0x80] sm:$0xff]
        %v4398 = vld [vmem:[%s4380 + $0x88] sm:$0xff]
        %v4399 = vld [vmem:[%s4380 + $0x90] sm:$0xff]
        %v4400 = vld [vmem:[%s4380 + $0x98] sm:$0xff]
        %v4401 = vld [vmem:[%s4380 + $0xa0] sm:$0xff]
        %v4402 = vld [vmem:[%s4380 + $0xa8] sm:$0xff]
        %v4403 = vld [vmem:[%s4380 + $0xb0] sm:$0xff]
        %v4404 = vld [vmem:[%s4380 + $0xb8] sm:$0xff]
        %v4405 = vld [vmem:[%s4380 + $0xc0] sm:$0xff]
        %v4406 = vld [vmem:[%s4380 + $0xc8] sm:$0xff]
        %v4407 = vld [vmem:[%s4380 + $0xd0] sm:$0xff]
        %v4408 = vld [vmem:[%s4380 + $0xd8] sm:$0xff]
        %v4409 = vld [vmem:[%s4380 + $0xe0] sm:$0xff]
        %v4410 = vld [vmem:[%s4380 + $0xe8] sm:$0xff]
        %v4411 = vld [vmem:[%s4380 + $0xf0] sm:$0xff]
        %v4412 = vld [vmem:[%s4380 + $0xf8] sm:$0xff]
        %v4413 = vld [vmem:[%s4380 + $0x100] sm:$0xff]
        %v4414 = vld [vmem:[%s4380 + $0x108] sm:$0xff]
        %v4415 = vld [vmem:[%s4380 + $0x110] sm:$0xff]
        %v4416 = vld [vmem:[%s4380 + $0x118] sm:$0xff]
        %v4417 = vld [vmem:[%s4380 + $0x120] sm:$0xff]
        %v4418 = vld [vmem:[%s4380 + $0x128] sm:$0xff]
        %v4419 = vld [vmem:[%s4380 + $0x130] sm:$0xff]
        %v4420 = vld [vmem:[%s4380 + $0x138] sm:$0xff]
        %v4421 = vld [vmem:[%s4380 + $0x140] sm:$0xff]
        %v4422 = vld [vmem:[%s4380 + $0x148] sm:$0xff]
        %v4423 = vld [vmem:[%s4380 + $0x150] sm:$0xff]
        %v4424 = vld [vmem:[%s4380 + $0x158] sm:$0xff]
        %v4425 = vld [vmem:[%s4380 + $0x160] sm:$0xff]
        %v4426 = vld [vmem:[%s4380 + $0x168] sm:$0xff]
        %v4427 = vld [vmem:[%s4380 + $0x170] sm:$0xff]
        %v4428 = vld [vmem:[%s4380 + $0x178] sm:$0xff]
        %v4429 = vld [vmem:[%s4380 + $0x180] sm:$0xff]
        %v4430 = vld [vmem:[%s4380 + $0x188] sm:$0xff]
        %v4431 = vld [vmem:[%s4380 + $0x190] sm:$0xff]
        %v4432 = vld [vmem:[%s4380 + $0x198] sm:$0xff]
        %v4433 = vld [vmem:[%s4380 + $0x1a0] sm:$0xff]
        %v4434 = vld [vmem:[%s4380 + $0x1a8] sm:$0xff]
        %v4435 = vld [vmem:[%s4380 + $0x1b0] sm:$0xff]
        %v4436 = vld [vmem:[%s4380 + $0x1b8] sm:$0xff]
        %v4437 = vld [vmem:[%s4380 + $0x1c0] sm:$0xff]
        %v4438 = vld [vmem:[%s4380 + $0x1c8] sm:$0xff]
        %v4439 = vld [vmem:[%s4380 + $0x1d0] sm:$0xff]
        %v4440 = vld [vmem:[%s4380 + $0x1d8] sm:$0xff]
        %v4441 = vld [vmem:[%s4380 + $0x1e0] sm:$0xff]
        %v4442 = vld [vmem:[%s4380 + $0x1e8] sm:$0xff]
        %v4443 = vld [vmem:[%s4380 + $0x1f0] sm:$0xff]
        %v4444 = vld [vmem:[%s4380 + $0x1f8] sm:$0xff]
        %v4447 = vunpack.c.l.b16 %v4378
        %v4448 = vunpack.c.h.b16 %v4378
        %v4449 = vunpack.c.l.b16 %v4379
        %v4450 = vunpack.c.h.b16 %v4379
        %v4451 = vpack.c.b16 %v3934, %v4447
        %v4452 = vpack.c.b16 %v3935, %v4448
        %v4453 = vpack.c.b16 %v3936, %v4449
        %v4454 = vpack.c.b16 %v3937, %v4450
        %v4455 = vrot.slane %v4451, 1
        %v4456 = vrot.slane %v4452, 1
        %v4457 = vrot.slane %v4453, 1
        %v4458 = vrot.slane %v4454, 1
        %v4527 = vunpack.c.l.b16 %v4381
        %v4528 = vunpack.c.h.b16 %v4381
        %v4529 = vunpack.c.l.b16 %v4382
        %v4530 = vunpack.c.h.b16 %v4382
        %v4531 = vunpack.c.l.b16 %v4383
        %v4532 = vunpack.c.h.b16 %v4383
        %v4533 = vunpack.c.l.b16 %v4384
        %v4534 = vunpack.c.h.b16 %v4384
        %v4535 = vunpack.c.l.b16 %v4385
        %v4536 = vunpack.c.h.b16 %v4385
        %v4537 = vunpack.c.l.b16 %v4386
        %v4538 = vunpack.c.h.b16 %v4386
        %v4539 = vunpack.c.l.b16 %v4387
        %v4540 = vunpack.c.h.b16 %v4387
        %v4541 = vunpack.c.l.b16 %v4388
        %v4542 = vunpack.c.h.b16 %v4388
        %v4543 = vunpack.c.l.b16 %v4389
        %v4544 = vunpack.c.h.b16 %v4389
        %v4545 = vunpack.c.l.b16 %v4390
        %v4546 = vunpack.c.h.b16 %v4390
        %v4547 = vunpack.c.l.b16 %v4391
        %v4548 = vunpack.c.h.b16 %v4391
        %v4549 = vunpack.c.l.b16 %v4392
        %v4550 = vunpack.c.h.b16 %v4392
        %v4551 = vunpack.c.l.b16 %v4393
        %v4552 = vunpack.c.h.b16 %v4393
        %v4553 = vunpack.c.l.b16 %v4394
        %v4554 = vunpack.c.h.b16 %v4394
        %v4555 = vunpack.c.l.b16 %v4395
        %v4556 = vunpack.c.h.b16 %v4395
        %v4557 = vunpack.c.l.b16 %v4396
        %v4558 = vunpack.c.h.b16 %v4396
        %v4559 = vunpack.c.l.b16 %v4397
        %v4560 = vunpack.c.h.b16 %v4397
        %v4561 = vunpack.c.l.b16 %v4398
        %v4562 = vunpack.c.h.b16 %v4398
        %v4563 = vunpack.c.l.b16 %v4399
        %v4564 = vunpack.c.h.b16 %v4399
        %v4565 = vunpack.c.l.b16 %v4400
        %v4566 = vunpack.c.h.b16 %v4400
        %v4567 = vunpack.c.l.b16 %v4401
        %v4568 = vunpack.c.h.b16 %v4401
        %v4569 = vunpack.c.l.b16 %v4402
        %v4570 = vunpack.c.h.b16 %v4402
        %v4571 = vunpack.c.l.b16 %v4403
        %v4572 = vunpack.c.h.b16 %v4403
        %v4573 = vunpack.c.l.b16 %v4404
        %v4574 = vunpack.c.h.b16 %v4404
        %v4575 = vunpack.c.l.b16 %v4405
        %v4576 = vunpack.c.h.b16 %v4405
        %v4577 = vunpack.c.l.b16 %v4406
        %v4578 = vunpack.c.h.b16 %v4406
        %v4579 = vunpack.c.l.b16 %v4407
        %v4580 = vunpack.c.h.b16 %v4407
        %v4581 = vunpack.c.l.b16 %v4408
        %v4582 = vunpack.c.h.b16 %v4408
        %v4583 = vunpack.c.l.b16 %v4409
        %v4584 = vunpack.c.h.b16 %v4409
        %v4585 = vunpack.c.l.b16 %v4410
        %v4586 = vunpack.c.h.b16 %v4410
        %v4587 = vunpack.c.l.b16 %v4411
        %v4588 = vunpack.c.h.b16 %v4411
        %v4589 = vunpack.c.l.b16 %v4412
        %v4590 = vunpack.c.h.b16 %v4412
        %v4591 = vunpack.c.l.b16 %v4413
        %v4592 = vunpack.c.h.b16 %v4413
        %v4593 = vunpack.c.l.b16 %v4414
        %v4594 = vunpack.c.h.b16 %v4414
        %v4595 = vunpack.c.l.b16 %v4415
        %v4596 = vunpack.c.h.b16 %v4415
        %v4597 = vunpack.c.l.b16 %v4416
        %v4598 = vunpack.c.h.b16 %v4416
        %v4599 = vunpack.c.l.b16 %v4417
        %v4600 = vunpack.c.h.b16 %v4417
        %v4601 = vunpack.c.l.b16 %v4418
        %v4602 = vunpack.c.h.b16 %v4418
        %v4603 = vunpack.c.l.b16 %v4419
        %v4604 = vunpack.c.h.b16 %v4419
        %v4605 = vunpack.c.l.b16 %v4420
        %v4606 = vunpack.c.h.b16 %v4420
        %v4607 = vunpack.c.l.b16 %v4421
        %v4608 = vunpack.c.h.b16 %v4421
        %v4609 = vunpack.c.l.b16 %v4422
        %v4610 = vunpack.c.h.b16 %v4422
        %v4611 = vunpack.c.l.b16 %v4423
        %v4612 = vunpack.c.h.b16 %v4423
        %v4613 = vunpack.c.l.b16 %v4424
        %v4614 = vunpack.c.h.b16 %v4424
        %v4615 = vunpack.c.l.b16 %v4425
        %v4616 = vunpack.c.h.b16 %v4425
        %v4617 = vunpack.c.l.b16 %v4426
        %v4618 = vunpack.c.h.b16 %v4426
        %v4619 = vunpack.c.l.b16 %v4427
        %v4620 = vunpack.c.h.b16 %v4427
        %v4621 = vunpack.c.l.b16 %v4428
        %v4622 = vunpack.c.h.b16 %v4428
        %v4623 = vunpack.c.l.b16 %v4429
        %v4624 = vunpack.c.h.b16 %v4429
        %v4625 = vunpack.c.l.b16 %v4430
        %v4626 = vunpack.c.h.b16 %v4430
        %v4627 = vunpack.c.l.b16 %v4431
        %v4628 = vunpack.c.h.b16 %v4431
        %v4629 = vunpack.c.l.b16 %v4432
        %v4630 = vunpack.c.h.b16 %v4432
        %v4631 = vunpack.c.l.b16 %v4433
        %v4632 = vunpack.c.h.b16 %v4433
        %v4633 = vunpack.c.l.b16 %v4434
        %v4634 = vunpack.c.h.b16 %v4434
        %v4635 = vunpack.c.l.b16 %v4435
        %v4636 = vunpack.c.h.b16 %v4435
        %v4637 = vunpack.c.l.b16 %v4436
        %v4638 = vunpack.c.h.b16 %v4436
        %v4639 = vunpack.c.l.b16 %v4437
        %v4640 = vunpack.c.h.b16 %v4437
        %v4641 = vunpack.c.l.b16 %v4438
        %v4642 = vunpack.c.h.b16 %v4438
        %v4643 = vunpack.c.l.b16 %v4439
        %v4644 = vunpack.c.h.b16 %v4439
        %v4645 = vunpack.c.l.b16 %v4440
        %v4646 = vunpack.c.h.b16 %v4440
        %v4647 = vunpack.c.l.b16 %v4441
        %v4648 = vunpack.c.h.b16 %v4441
        %v4649 = vunpack.c.l.b16 %v4442
        %v4650 = vunpack.c.h.b16 %v4442
        %v4651 = vunpack.c.l.b16 %v4443
        %v4652 = vunpack.c.h.b16 %v4443
        %v4653 = vunpack.c.l.b16 %v4444
        %v4654 = vunpack.c.h.b16 %v4444
        %v4655 = vpack.c.b16 %v4529, %v4527
        %v4656 = vpack.c.b16 %v4530, %v4528
        %v4657 = vpack.c.b16 %v4533, %v4531
        %v4658 = vpack.c.b16 %v4534, %v4532
        %v4659 = vpack.c.b16 %v4537, %v4535
        %v4660 = vpack.c.b16 %v4538, %v4536
        %v4661 = vpack.c.b16 %v4541, %v4539
        %v4662 = vpack.c.b16 %v4542, %v4540
        %v4663 = vpack.c.b16 %v4545, %v4543
        %v4664 = vpack.c.b16 %v4546, %v4544
        %v4665 = vpack.c.b16 %v4549, %v4547
        %v4666 = vpack.c.b16 %v4550, %v4548
        %v4667 = vpack.c.b16 %v4553, %v4551
        %v4668 = vpack.c.b16 %v4554, %v4552
        %v4669 = vpack.c.b16 %v4557, %v4555
        %v4670 = vpack.c.b16 %v4558, %v4556
        %v4671 = vpack.c.b16 %v4561, %v4559
        %v4672 = vpack.c.b16 %v4562, %v4560
        %v4673 = vpack.c.b16 %v4565, %v4563
        %v4674 = vpack.c.b16 %v4566, %v4564
        %v4675 = vpack.c.b16 %v4569, %v4567
        %v4676 = vpack.c.b16 %v4570, %v4568
        %v4677 = vpack.c.b16 %v4573, %v4571
        %v4678 = vpack.c.b16 %v4574, %v4572
        %v4679 = vpack.c.b16 %v4577, %v4575
        %v4680 = vpack.c.b16 %v4578, %v4576
        %v4681 = vpack.c.b16 %v4581, %v4579
        %v4682 = vpack.c.b16 %v4582, %v4580
        %v4683 = vpack.c.b16 %v4585, %v4583
        %v4684 = vpack.c.b16 %v4586, %v4584
        %v4685 = vpack.c.b16 %v4589, %v4587
        %v4686 = vpack.c.b16 %v4590, %v4588
        %v4687 = vpack.c.b16 %v4593, %v4591
        %v4688 = vpack.c.b16 %v4594, %v4592
        %v4689 = vpack.c.b16 %v4597, %v4595
        %v4690 = vpack.c.b16 %v4598, %v4596
        %v4691 = vpack.c.b16 %v4601, %v4599
        %v4692 = vpack.c.b16 %v4602, %v4600
        %v4693 = vpack.c.b16 %v4605, %v4603
        %v4694 = vpack.c.b16 %v4606, %v4604
        %v4695 = vpack.c.b16 %v4609, %v4607
        %v4696 = vpack.c.b16 %v4610, %v4608
        %v4697 = vpack.c.b16 %v4613, %v4611
        %v4698 = vpack.c.b16 %v4614, %v4612
        %v4699 = vpack.c.b16 %v4617, %v4615
        %v4700 = vpack.c.b16 %v4618, %v4616
        %v4701 = vpack.c.b16 %v4621, %v4619
        %v4702 = vpack.c.b16 %v4622, %v4620
        %v4703 = vpack.c.b16 %v4625, %v4623
        %v4704 = vpack.c.b16 %v4626, %v4624
        %v4705 = vpack.c.b16 %v4629, %v4627
        %v4706 = vpack.c.b16 %v4630, %v4628
        %v4707 = vpack.c.b16 %v4633, %v4631
        %v4708 = vpack.c.b16 %v4634, %v4632
        %v4709 = vpack.c.b16 %v4637, %v4635
        %v4710 = vpack.c.b16 %v4638, %v4636
        %v4711 = vpack.c.b16 %v4641, %v4639
        %v4712 = vpack.c.b16 %v4642, %v4640
        %v4713 = vpack.c.b16 %v4645, %v4643
        %v4714 = vpack.c.b16 %v4646, %v4644
        %v4715 = vpack.c.b16 %v4649, %v4647
        %v4716 = vpack.c.b16 %v4650, %v4648
        %v4717 = vpack.c.b16 %v4653, %v4651
        %v4718 = vpack.c.b16 %v4654, %v4652
        %4783 = vmatprep.subr.bf16.mxu0 %v4656
        %4784 = vmatpush1.bf16.msra.mxu0 %v4655
        %4785 = vmatprep.subr.bf16.mxu0 %v4658
        %4786 = vmatpush1.bf16.msra.mxu0 %v4657
        %4787 = vmatprep.subr.bf16.mxu0 %v4660
        %4788 = vmatpush1.bf16.msra.mxu0 %v4659
        %4789 = vmatprep.subr.bf16.mxu0 %v4662
        %4790 = vmatpush1.bf16.msra.mxu0 %v4661
        %4791 = vmatprep.subr.bf16.mxu0 %v4664
        %4792 = vmatpush1.bf16.msra.mxu0 %v4663
        %4793 = vmatprep.subr.bf16.mxu0 %v4666
        %4794 = vmatpush1.bf16.msra.mxu0 %v4665
        %4795 = vmatprep.subr.bf16.mxu0 %v4668
        %4796 = vmatpush1.bf16.msra.mxu0 %v4667
        %4797 = vmatprep.subr.bf16.mxu0 %v4670
        %4798 = vmatpush1.bf16.msra.mxu0 %v4669
        %4799 = vmatprep.subr.bf16.mxu0 %v4672
        %4800 = vmatpush1.bf16.msra.mxu0 %v4671
        %4801 = vmatprep.subr.bf16.mxu0 %v4674
        %4802 = vmatpush1.bf16.msra.mxu0 %v4673
        %4803 = vmatprep.subr.bf16.mxu0 %v4676
        %4804 = vmatpush1.bf16.msra.mxu0 %v4675
        %4805 = vmatprep.subr.bf16.mxu0 %v4678
        %4806 = vmatpush1.bf16.msra.mxu0 %v4677
        %4807 = vmatprep.subr.bf16.mxu0 %v4680
        %4808 = vmatpush1.bf16.msra.mxu0 %v4679
        %4809 = vmatprep.subr.bf16.mxu0 %v4682
        %4810 = vmatpush1.bf16.msra.mxu0 %v4681
        %4811 = vmatprep.subr.bf16.mxu0 %v4684
        %4812 = vmatpush1.bf16.msra.mxu0 %v4683
        %4813 = vmatprep.subr.bf16.mxu0 %v4686
        %4814 = vmatpush1.bf16.msra.mxu0 %v4685
        %4815 = vmatprep.mubr.bf16.mxu0 %v4456
        %4816 = vmatmul.mubr.bf16.gmra.mrb[0].mxu0 %v4455
        %v4817 = vpop.f32.mrb[0].mxu0
        %v4818 = vadd.f32 0.0, %v4817
        %v4819 = vpop.f32.mrb[0].mxu0
        %v4820 = vadd.f32 0.0, %v4819
        %v4821 = vpop.f32.mrb[0].mxu0
        %v4822 = vpop.f32.mrb[0].mxu0
        %4823 = vdwg.mxu0
        %4824 = vmatprep.subr.bf16.mxu0 %v4688
        %4825 = vmatpush1.bf16.msra.mxu0 %v4687
        %4826 = vmatprep.subr.bf16.mxu0 %v4690
        %4827 = vmatpush1.bf16.msra.mxu0 %v4689
        %4828 = vmatprep.subr.bf16.mxu0 %v4692
        %4829 = vmatpush1.bf16.msra.mxu0 %v4691
        %4830 = vmatprep.subr.bf16.mxu0 %v4694
        %4831 = vmatpush1.bf16.msra.mxu0 %v4693
        %4832 = vmatprep.subr.bf16.mxu0 %v4696
        %4833 = vmatpush1.bf16.msra.mxu0 %v4695
        %4834 = vmatprep.subr.bf16.mxu0 %v4698
        %4835 = vmatpush1.bf16.msra.mxu0 %v4697
        %4836 = vmatprep.subr.bf16.mxu0 %v4700
        %4837 = vmatpush1.bf16.msra.mxu0 %v4699
        %4838 = vmatprep.subr.bf16.mxu0 %v4702
        %4839 = vmatpush1.bf16.msra.mxu0 %v4701
        %4840 = vmatprep.subr.bf16.mxu0 %v4704
        %4841 = vmatpush1.bf16.msra.mxu0 %v4703
        %4842 = vmatprep.subr.bf16.mxu0 %v4706
        %4843 = vmatpush1.bf16.msra.mxu0 %v4705
        %4844 = vmatprep.subr.bf16.mxu0 %v4708
        %4845 = vmatpush1.bf16.msra.mxu0 %v4707
        %4846 = vmatprep.subr.bf16.mxu0 %v4710
        %4847 = vmatpush1.bf16.msra.mxu0 %v4709
        %4848 = vmatprep.subr.bf16.mxu0 %v4712
        %4849 = vmatpush1.bf16.msra.mxu0 %v4711
        %4850 = vmatprep.subr.bf16.mxu0 %v4714
        %4851 = vmatpush1.bf16.msra.mxu0 %v4713
        %4852 = vmatprep.subr.bf16.mxu0 %v4716
        %4853 = vmatpush1.bf16.msra.mxu0 %v4715
        %4854 = vmatprep.subr.bf16.mxu0 %v4718
        %4855 = vmatpush1.bf16.msra.mxu0 %v4717
        %4856 = vmatprep.mubr.bf16.mxu0 %v4458
        %4857 = vmatmul.mubr.bf16.gmra.mrb[0].mxu0 %v4457
        %v4858 = vpop.f32.mrb[0].mxu0
        %v4859 = vadd.f32 %v4818, %v4858
        %v4860 = vpop.f32.mrb[0].mxu0
        %v4861 = vadd.f32 %v4820, %v4860
        %v4862 = vpop.f32.mrb[0].mxu0
        %v4863 = vpop.f32.mrb[0].mxu0
        %4864 = vdwg.mxu0
        %v4865 = vadd.f32 %v4376, %v4859
        %v4866 = vadd.f32 %v4377, %v4861
        %v4867 = vld [vmem:[#allocation2] sm:$0xff]
        %v4868 = vld [vmem:[#allocation2 + $0x8] sm:$0xff]
        %v4869 = vadd.f32 %v4867, %v4865
        %v4870 = vadd.f32 %v4868, %v4866
        %4871 = vst [vmem:[#allocation2] sm:$0xff] %v4869
        %4872 = vst [vmem:[#allocation2 + $0x8] sm:$0xff] %v4870
        %s4873 = scalar_lea.vmem %s323, 48 [#allocation3]
        %v4874 = vld [vmem:[%s4873] sm:$0xff]
        %v4875 = vld [vmem:[%s4873 + $0x8] sm:$0xff]
        %v4876 = vld [vmem:[%s331] sm:$0xff]
        %v4877 = vld [vmem:[%s331 + $0x8] sm:$0xff]
        %v4878 = vld [vmem:[%s331 + $0x10] sm:$0xff]
        %v4879 = vld [vmem:[%s331 + $0x18] sm:$0xff]
        %v4880 = vld [vmem:[%s331 + $0x20] sm:$0xff]
        %v4881 = vld [vmem:[%s331 + $0x28] sm:$0xff]
        %v4882 = vld [vmem:[%s331 + $0x30] sm:$0xff]
        %v4883 = vld [vmem:[%s331 + $0x38] sm:$0xff]
        %v4884 = vld [vmem:[%s331 + $0x40] sm:$0xff]
        %v4885 = vld [vmem:[%s331 + $0x48] sm:$0xff]
        %v4886 = vld [vmem:[%s331 + $0x50] sm:$0xff]
        %v4887 = vld [vmem:[%s331 + $0x58] sm:$0xff]
        %v4888 = vld [vmem:[%s331 + $0x60] sm:$0xff]
        %v4889 = vld [vmem:[%s331 + $0x68] sm:$0xff]
        %v4890 = vld [vmem:[%s331 + $0x70] sm:$0xff]
        %v4891 = vld [vmem:[%s331 + $0x78] sm:$0xff]
        %v4892 = vld [vmem:[%s331 + $0x80] sm:$0xff]
        %v4893 = vld [vmem:[%s331 + $0x88] sm:$0xff]
        %v4894 = vld [vmem:[%s331 + $0x90] sm:$0xff]
        %v4895 = vld [vmem:[%s331 + $0x98] sm:$0xff]
        %v4896 = vld [vmem:[%s331 + $0xa0] sm:$0xff]
        %v4897 = vld [vmem:[%s331 + $0xa8] sm:$0xff]
        %v4898 = vld [vmem:[%s331 + $0xb0] sm:$0xff]
        %v4899 = vld [vmem:[%s331 + $0xb8] sm:$0xff]
        %v4900 = vld [vmem:[%s331 + $0xc0] sm:$0xff]
        %v4901 = vld [vmem:[%s331 + $0xc8] sm:$0xff]
        %v4902 = vld [vmem:[%s331 + $0xd0] sm:$0xff]
        %v4903 = vld [vmem:[%s331 + $0xd8] sm:$0xff]
        %v4904 = vld [vmem:[%s331 + $0xe0] sm:$0xff]
        %v4905 = vld [vmem:[%s331 + $0xe8] sm:$0xff]
        %v4906 = vld [vmem:[%s331 + $0xf0] sm:$0xff]
        %v4907 = vld [vmem:[%s331 + $0xf8] sm:$0xff]
        %v4908 = vld [vmem:[%s331 + $0x100] sm:$0xff]
        %v4909 = vld [vmem:[%s331 + $0x108] sm:$0xff]
        %v4910 = vld [vmem:[%s331 + $0x110] sm:$0xff]
        %v4911 = vld [vmem:[%s331 + $0x118] sm:$0xff]
        %v4912 = vld [vmem:[%s331 + $0x120] sm:$0xff]
        %v4913 = vld [vmem:[%s331 + $0x128] sm:$0xff]
        %v4914 = vld [vmem:[%s331 + $0x130] sm:$0xff]
        %v4915 = vld [vmem:[%s331 + $0x138] sm:$0xff]
        %v4916 = vld [vmem:[%s331 + $0x140] sm:$0xff]
        %v4917 = vld [vmem:[%s331 + $0x148] sm:$0xff]
        %v4918 = vld [vmem:[%s331 + $0x150] sm:$0xff]
        %v4919 = vld [vmem:[%s331 + $0x158] sm:$0xff]
        %v4920 = vld [vmem:[%s331 + $0x160] sm:$0xff]
        %v4921 = vld [vmem:[%s331 + $0x168] sm:$0xff]
        %v4922 = vld [vmem:[%s331 + $0x170] sm:$0xff]
        %v4923 = vld [vmem:[%s331 + $0x178] sm:$0xff]
        %v4924 = vld [vmem:[%s331 + $0x180] sm:$0xff]
        %v4925 = vld [vmem:[%s331 + $0x188] sm:$0xff]
        %v4926 = vld [vmem:[%s331 + $0x190] sm:$0xff]
        %v4927 = vld [vmem:[%s331 + $0x198] sm:$0xff]
        %v4928 = vld [vmem:[%s331 + $0x1a0] sm:$0xff]
        %v4929 = vld [vmem:[%s331 + $0x1a8] sm:$0xff]
        %v4930 = vld [vmem:[%s331 + $0x1b0] sm:$0xff]
        %v4931 = vld [vmem:[%s331 + $0x1b8] sm:$0xff]
        %v4932 = vld [vmem:[%s331 + $0x1c0] sm:$0xff]
        %v4933 = vld [vmem:[%s331 + $0x1c8] sm:$0xff]
        %v4934 = vld [vmem:[%s331 + $0x1d0] sm:$0xff]
        %v4935 = vld [vmem:[%s331 + $0x1d8] sm:$0xff]
        %v4936 = vld [vmem:[%s331 + $0x1e0] sm:$0xff]
        %v4937 = vld [vmem:[%s331 + $0x1e8] sm:$0xff]
        %v4938 = vld [vmem:[%s331 + $0x1f0] sm:$0xff]
        %v4939 = vld [vmem:[%s331 + $0x1f8] sm:$0xff]
        %v4940 = vld [vmem:[%s4873 + $0x10] sm:$0x11]
        %v4941 = vld [vmem:[%s4873 + $0x18] sm:$0x11]
        %v4942 = vld [vmem:[%s455] sm:$0xff]
        %v4943 = vld [vmem:[%s455 + $0x8] sm:$0xff]
        %v4944 = vld [vmem:[%s455 + $0x10] sm:$0xff]
        %v4945 = vld [vmem:[%s455 + $0x18] sm:$0xff]
        %v4946 = vld [vmem:[%s455 + $0x20] sm:$0xff]
        %v4947 = vld [vmem:[%s455 + $0x28] sm:$0xff]
        %v4948 = vld [vmem:[%s455 + $0x30] sm:$0xff]
        %v4949 = vld [vmem:[%s455 + $0x38] sm:$0xff]
        %v4950 = vld [vmem:[%s455 + $0x40] sm:$0xff]
        %v4951 = vld [vmem:[%s455 + $0x48] sm:$0xff]
        %v4952 = vld [vmem:[%s455 + $0x50] sm:$0xff]
        %v4953 = vld [vmem:[%s455 + $0x58] sm:$0xff]
        %v4954 = vld [vmem:[%s455 + $0x60] sm:$0xff]
        %v4955 = vld [vmem:[%s455 + $0x68] sm:$0xff]
        %v4956 = vld [vmem:[%s455 + $0x70] sm:$0xff]
        %v4957 = vld [vmem:[%s455 + $0x78] sm:$0xff]
        %v4958 = vld [vmem:[%s455 + $0x80] sm:$0xff]
        %v4959 = vld [vmem:[%s455 + $0x88] sm:$0xff]
        %v4960 = vld [vmem:[%s455 + $0x90] sm:$0xff]
        %v4961 = vld [vmem:[%s455 + $0x98] sm:$0xff]
        %v4962 = vld [vmem:[%s455 + $0xa0] sm:$0xff]
        %v4963 = vld [vmem:[%s455 + $0xa8] sm:$0xff]
        %v4964 = vld [vmem:[%s455 + $0xb0] sm:$0xff]
        %v4965 = vld [vmem:[%s455 + $0xb8] sm:$0xff]
        %v4966 = vld [vmem:[%s455 + $0xc0] sm:$0xff]
        %v4967 = vld [vmem:[%s455 + $0xc8] sm:$0xff]
        %v4968 = vld [vmem:[%s455 + $0xd0] sm:$0xff]
        %v4969 = vld [vmem:[%s455 + $0xd8] sm:$0xff]
        %v4970 = vld [vmem:[%s455 + $0xe0] sm:$0xff]
        %v4971 = vld [vmem:[%s455 + $0xe8] sm:$0xff]
        %v4972 = vld [vmem:[%s455 + $0xf0] sm:$0xff]
        %v4973 = vld [vmem:[%s455 + $0xf8] sm:$0xff]
        %v4974 = vld [vmem:[%s455 + $0x100] sm:$0xff]
        %v4975 = vld [vmem:[%s455 + $0x108] sm:$0xff]
        %v4976 = vld [vmem:[%s455 + $0x110] sm:$0xff]
        %v4977 = vld [vmem:[%s455 + $0x118] sm:$0xff]
        %v4978 = vld [vmem:[%s455 + $0x120] sm:$0xff]
        %v4979 = vld [vmem:[%s455 + $0x128] sm:$0xff]
        %v4980 = vld [vmem:[%s455 + $0x130] sm:$0xff]
        %v4981 = vld [vmem:[%s455 + $0x138] sm:$0xff]
        %v4982 = vld [vmem:[%s455 + $0x140] sm:$0xff]
        %v4983 = vld [vmem:[%s455 + $0x148] sm:$0xff]
        %v4984 = vld [vmem:[%s455 + $0x150] sm:$0xff]
        %v4985 = vld [vmem:[%s455 + $0x158] sm:$0xff]
        %v4986 = vld [vmem:[%s455 + $0x160] sm:$0xff]
        %v4987 = vld [vmem:[%s455 + $0x168] sm:$0xff]
        %v4988 = vld [vmem:[%s455 + $0x170] sm:$0xff]
        %v4989 = vld [vmem:[%s455 + $0x178] sm:$0xff]
        %v4990 = vld [vmem:[%s455 + $0x180] sm:$0xff]
        %v4991 = vld [vmem:[%s455 + $0x188] sm:$0xff]
        %v4992 = vld [vmem:[%s455 + $0x190] sm:$0xff]
        %v4993 = vld [vmem:[%s455 + $0x198] sm:$0xff]
        %v4994 = vld [vmem:[%s455 + $0x1a0] sm:$0xff]
        %v4995 = vld [vmem:[%s455 + $0x1a8] sm:$0xff]
        %v4996 = vld [vmem:[%s455 + $0x1b0] sm:$0xff]
        %v4997 = vld [vmem:[%s455 + $0x1b8] sm:$0xff]
        %v4998 = vld [vmem:[%s455 + $0x1c0] sm:$0xff]
        %v4999 = vld [vmem:[%s455 + $0x1c8] sm:$0xff]
        %v5000 = vld [vmem:[%s455 + $0x1d0] sm:$0xff]
        %v5001 = vld [vmem:[%s455 + $0x1d8] sm:$0xff]
        %v5002 = vld [vmem:[%s455 + $0x1e0] sm:$0xff]
        %v5003 = vld [vmem:[%s455 + $0x1e8] sm:$0xff]
        %v5004 = vld [vmem:[%s455 + $0x1f0] sm:$0xff]
        %v5005 = vld [vmem:[%s455 + $0x1f8] sm:$0xff]
        %v5010 = vunpack.c.l.b16 %v4874
        %v5011 = vunpack.c.h.b16 %v4874
        %v5012 = vunpack.c.l.b16 %v4875
        %v5013 = vunpack.c.h.b16 %v4875
        %v5014 = vunpack.c.l.b16 %v4940
        %v5015 = vunpack.c.h.b16 %v4940
        %v5016 = vunpack.c.l.b16 %v4941
        %v5017 = vunpack.c.h.b16 %v4941
        %v5018 = vpack.c.b16 %v5014, %v5010
        %v5019 = vpack.c.b16 %v5015, %v5011
        %v5020 = vpack.c.b16 %v5016, %v5012
        %v5021 = vpack.c.b16 %v5017, %v5013
        %v5023 = vshrl.u32 %v5018, 16
        %v5025 = vshll.u32 %v5018, 16
        %v5027 = vrot.slane %v5025, 1
        %v5028 = vor.u32 %v5023, %v5027
        %v5030 = vshrl.u32 %v5019, 16
        %v5032 = vshll.u32 %v5019, 16
        %v5034 = vrot.slane %v5032, 1
        %v5035 = vor.u32 %v5030, %v5034
        %v5037 = vshrl.u32 %v5020, 16
        %v5039 = vshll.u32 %v5020, 16
        %v5041 = vrot.slane %v5039, 1
        %v5042 = vor.u32 %v5037, %v5041
        %v5044 = vshrl.u32 %v5021, 16
        %v5046 = vshll.u32 %v5021, 16
        %v5048 = vrot.slane %v5046, 1
        %v5049 = vor.u32 %v5044, %v5048
        %v5118 = vunpack.c.l.b16 %v4942
        %v5119 = vunpack.c.h.b16 %v4942
        %v5120 = vunpack.c.l.b16 %v4943
        %v5121 = vunpack.c.h.b16 %v4943
        %v5122 = vunpack.c.l.b16 %v4944
        %v5123 = vunpack.c.h.b16 %v4944
        %v5124 = vunpack.c.l.b16 %v4945
        %v5125 = vunpack.c.h.b16 %v4945
        %v5126 = vunpack.c.l.b16 %v4946
        %v5127 = vunpack.c.h.b16 %v4946
        %v5128 = vunpack.c.l.b16 %v4947
        %v5129 = vunpack.c.h.b16 %v4947
        %v5130 = vunpack.c.l.b16 %v4948
        %v5131 = vunpack.c.h.b16 %v4948
        %v5132 = vunpack.c.l.b16 %v4949
        %v5133 = vunpack.c.h.b16 %v4949
        %v5134 = vunpack.c.l.b16 %v4950
        %v5135 = vunpack.c.h.b16 %v4950
        %v5136 = vunpack.c.l.b16 %v4951
        %v5137 = vunpack.c.h.b16 %v4951
        %v5138 = vunpack.c.l.b16 %v4952
        %v5139 = vunpack.c.h.b16 %v4952
        %v5140 = vunpack.c.l.b16 %v4953
        %v5141 = vunpack.c.h.b16 %v4953
        %v5142 = vunpack.c.l.b16 %v4954
        %v5143 = vunpack.c.h.b16 %v4954
        %v5144 = vunpack.c.l.b16 %v4955
        %v5145 = vunpack.c.h.b16 %v4955
        %v5146 = vunpack.c.l.b16 %v4956
        %v5147 = vunpack.c.h.b16 %v4956
        %v5148 = vunpack.c.l.b16 %v4957
        %v5149 = vunpack.c.h.b16 %v4957
        %v5150 = vunpack.c.l.b16 %v4958
        %v5151 = vunpack.c.h.b16 %v4958
        %v5152 = vunpack.c.l.b16 %v4959
        %v5153 = vunpack.c.h.b16 %v4959
        %v5154 = vunpack.c.l.b16 %v4960
        %v5155 = vunpack.c.h.b16 %v4960
        %v5156 = vunpack.c.l.b16 %v4961
        %v5157 = vunpack.c.h.b16 %v4961
        %v5158 = vunpack.c.l.b16 %v4962
        %v5159 = vunpack.c.h.b16 %v4962
        %v5160 = vunpack.c.l.b16 %v4963
        %v5161 = vunpack.c.h.b16 %v4963
        %v5162 = vunpack.c.l.b16 %v4964
        %v5163 = vunpack.c.h.b16 %v4964
        %v5164 = vunpack.c.l.b16 %v4965
        %v5165 = vunpack.c.h.b16 %v4965
        %v5166 = vunpack.c.l.b16 %v4966
        %v5167 = vunpack.c.h.b16 %v4966
        %v5168 = vunpack.c.l.b16 %v4967
        %v5169 = vunpack.c.h.b16 %v4967
        %v5170 = vunpack.c.l.b16 %v4968
        %v5171 = vunpack.c.h.b16 %v4968
        %v5172 = vunpack.c.l.b16 %v4969
        %v5173 = vunpack.c.h.b16 %v4969
        %v5174 = vunpack.c.l.b16 %v4970
        %v5175 = vunpack.c.h.b16 %v4970
        %v5176 = vunpack.c.l.b16 %v4971
        %v5177 = vunpack.c.h.b16 %v4971
        %v5178 = vunpack.c.l.b16 %v4972
        %v5179 = vunpack.c.h.b16 %v4972
        %v5180 = vunpack.c.l.b16 %v4973
        %v5181 = vunpack.c.h.b16 %v4973
        %v5182 = vunpack.c.l.b16 %v4974
        %v5183 = vunpack.c.h.b16 %v4974
        %v5184 = vunpack.c.l.b16 %v4975
        %v5185 = vunpack.c.h.b16 %v4975
        %v5186 = vunpack.c.l.b16 %v4976
        %v5187 = vunpack.c.h.b16 %v4976
        %v5188 = vunpack.c.l.b16 %v4977
        %v5189 = vunpack.c.h.b16 %v4977
        %v5190 = vunpack.c.l.b16 %v4978
        %v5191 = vunpack.c.h.b16 %v4978
        %v5192 = vunpack.c.l.b16 %v4979
        %v5193 = vunpack.c.h.b16 %v4979
        %v5194 = vunpack.c.l.b16 %v4980
        %v5195 = vunpack.c.h.b16 %v4980
        %v5196 = vunpack.c.l.b16 %v4981
        %v5197 = vunpack.c.h.b16 %v4981
        %v5198 = vunpack.c.l.b16 %v4982
        %v5199 = vunpack.c.h.b16 %v4982
        %v5200 = vunpack.c.l.b16 %v4983
        %v5201 = vunpack.c.h.b16 %v4983
        %v5202 = vunpack.c.l.b16 %v4984
        %v5203 = vunpack.c.h.b16 %v4984
        %v5204 = vunpack.c.l.b16 %v4985
        %v5205 = vunpack.c.h.b16 %v4985
        %v5206 = vunpack.c.l.b16 %v4986
        %v5207 = vunpack.c.h.b16 %v4986
        %v5208 = vunpack.c.l.b16 %v4987
        %v5209 = vunpack.c.h.b16 %v4987
        %v5210 = vunpack.c.l.b16 %v4988
        %v5211 = vunpack.c.h.b16 %v4988
        %v5212 = vunpack.c.l.b16 %v4989
        %v5213 = vunpack.c.h.b16 %v4989
        %v5214 = vunpack.c.l.b16 %v4990
        %v5215 = vunpack.c.h.b16 %v4990
        %v5216 = vunpack.c.l.b16 %v4991
        %v5217 = vunpack.c.h.b16 %v4991
        %v5218 = vunpack.c.l.b16 %v4992
        %v5219 = vunpack.c.h.b16 %v4992
        %v5220 = vunpack.c.l.b16 %v4993
        %v5221 = vunpack.c.h.b16 %v4993
        %v5222 = vunpack.c.l.b16 %v4994
        %v5223 = vunpack.c.h.b16 %v4994
        %v5224 = vunpack.c.l.b16 %v4995
        %v5225 = vunpack.c.h.b16 %v4995
        %v5226 = vunpack.c.l.b16 %v4996
        %v5227 = vunpack.c.h.b16 %v4996
        %v5228 = vunpack.c.l.b16 %v4997
        %v5229 = vunpack.c.h.b16 %v4997
        %v5230 = vunpack.c.l.b16 %v4998
        %v5231 = vunpack.c.h.b16 %v4998
        %v5232 = vunpack.c.l.b16 %v4999
        %v5233 = vunpack.c.h.b16 %v4999
        %v5234 = vunpack.c.l.b16 %v5000
        %v5235 = vunpack.c.h.b16 %v5000
        %v5236 = vunpack.c.l.b16 %v5001
        %v5237 = vunpack.c.h.b16 %v5001
        %v5238 = vunpack.c.l.b16 %v5002
        %v5239 = vunpack.c.h.b16 %v5002
        %v5240 = vunpack.c.l.b16 %v5003
        %v5241 = vunpack.c.h.b16 %v5003
        %v5242 = vunpack.c.l.b16 %v5004
        %v5243 = vunpack.c.h.b16 %v5004
        %v5244 = vunpack.c.l.b16 %v5005
        %v5245 = vunpack.c.h.b16 %v5005
        %v5246 = vpack.c.b16 %v5120, %v5118
        %v5247 = vpack.c.b16 %v5121, %v5119
        %v5248 = vpack.c.b16 %v5124, %v5122
        %v5249 = vpack.c.b16 %v5125, %v5123
        %v5250 = vpack.c.b16 %v5128, %v5126
        %v5251 = vpack.c.b16 %v5129, %v5127
        %v5252 = vpack.c.b16 %v5132, %v5130
        %v5253 = vpack.c.b16 %v5133, %v5131
        %v5254 = vpack.c.b16 %v5136, %v5134
        %v5255 = vpack.c.b16 %v5137, %v5135
        %v5256 = vpack.c.b16 %v5140, %v5138
        %v5257 = vpack.c.b16 %v5141, %v5139
        %v5258 = vpack.c.b16 %v5144, %v5142
        %v5259 = vpack.c.b16 %v5145, %v5143
        %v5260 = vpack.c.b16 %v5148, %v5146
        %v5261 = vpack.c.b16 %v5149, %v5147
        %v5262 = vpack.c.b16 %v5152, %v5150
        %v5263 = vpack.c.b16 %v5153, %v5151
        %v5264 = vpack.c.b16 %v5156, %v5154
        %v5265 = vpack.c.b16 %v5157, %v5155
        %v5266 = vpack.c.b16 %v5160, %v5158
        %v5267 = vpack.c.b16 %v5161, %v5159
        %v5268 = vpack.c.b16 %v5164, %v5162
        %v5269 = vpack.c.b16 %v5165, %v5163
        %v5270 = vpack.c.b16 %v5168, %v5166
        %v5271 = vpack.c.b16 %v5169, %v5167
        %v5272 = vpack.c.b16 %v5172, %v5170
        %v5273 = vpack.c.b16 %v5173, %v5171
        %v5274 = vpack.c.b16 %v5176, %v5174
        %v5275 = vpack.c.b16 %v5177, %v5175
        %v5276 = vpack.c.b16 %v5180, %v5178
        %v5277 = vpack.c.b16 %v5181, %v5179
        %v5278 = vpack.c.b16 %v5184, %v5182
        %v5279 = vpack.c.b16 %v5185, %v5183
        %v5280 = vpack.c.b16 %v5188, %v5186
        %v5281 = vpack.c.b16 %v5189, %v5187
        %v5282 = vpack.c.b16 %v5192, %v5190
        %v5283 = vpack.c.b16 %v5193, %v5191
        %v5284 = vpack.c.b16 %v5196, %v5194
        %v5285 = vpack.c.b16 %v5197, %v5195
        %v5286 = vpack.c.b16 %v5200, %v5198
        %v5287 = vpack.c.b16 %v5201, %v5199
        %v5288 = vpack.c.b16 %v5204, %v5202
        %v5289 = vpack.c.b16 %v5205, %v5203
        %v5290 = vpack.c.b16 %v5208, %v5206
        %v5291 = vpack.c.b16 %v5209, %v5207
        %v5292 = vpack.c.b16 %v5212, %v5210
        %v5293 = vpack.c.b16 %v5213, %v5211
        %v5294 = vpack.c.b16 %v5216, %v5214
        %v5295 = vpack.c.b16 %v5217, %v5215
        %v5296 = vpack.c.b16 %v5220, %v5218
        %v5297 = vpack.c.b16 %v5221, %v5219
        %v5298 = vpack.c.b16 %v5224, %v5222
        %v5299 = vpack.c.b16 %v5225, %v5223
        %v5300 = vpack.c.b16 %v5228, %v5226
        %v5301 = vpack.c.b16 %v5229, %v5227
        %v5302 = vpack.c.b16 %v5232, %v5230
        %v5303 = vpack.c.b16 %v5233, %v5231
        %v5304 = vpack.c.b16 %v5236, %v5234
        %v5305 = vpack.c.b16 %v5237, %v5235
        %v5306 = vpack.c.b16 %v5240, %v5238
        %v5307 = vpack.c.b16 %v5241, %v5239
        %v5308 = vpack.c.b16 %v5244, %v5242
        %v5309 = vpack.c.b16 %v5245, %v5243
        %5374 = vmatprep.subr.bf16.mxu0 %v5247
        %5375 = vmatpush1.bf16.msra.mxu0 %v5246
        %5376 = vmatprep.subr.bf16.mxu0 %v5249
        %5377 = vmatpush1.bf16.msra.mxu0 %v5248
        %5378 = vmatprep.subr.bf16.mxu0 %v5251
        %5379 = vmatpush1.bf16.msra.mxu0 %v5250
        %5380 = vmatprep.subr.bf16.mxu0 %v5253
        %5381 = vmatpush1.bf16.msra.mxu0 %v5252
        %5382 = vmatprep.subr.bf16.mxu0 %v5255
        %5383 = vmatpush1.bf16.msra.mxu0 %v5254
        %5384 = vmatprep.subr.bf16.mxu0 %v5257
        %5385 = vmatpush1.bf16.msra.mxu0 %v5256
        %5386 = vmatprep.subr.bf16.mxu0 %v5259
        %5387 = vmatpush1.bf16.msra.mxu0 %v5258
        %5388 = vmatprep.subr.bf16.mxu0 %v5261
        %5389 = vmatpush1.bf16.msra.mxu0 %v5260
        %5390 = vmatprep.subr.bf16.mxu0 %v5263
        %5391 = vmatpush1.bf16.msra.mxu0 %v5262
        %5392 = vmatprep.subr.bf16.mxu0 %v5265
        %5393 = vmatpush1.bf16.msra.mxu0 %v5264
        %5394 = vmatprep.subr.bf16.mxu0 %v5267
        %5395 = vmatpush1.bf16.msra.mxu0 %v5266
        %5396 = vmatprep.subr.bf16.mxu0 %v5269
        %5397 = vmatpush1.bf16.msra.mxu0 %v5268
        %5398 = vmatprep.subr.bf16.mxu0 %v5271
        %5399 = vmatpush1.bf16.msra.mxu0 %v5270
        %5400 = vmatprep.subr.bf16.mxu0 %v5273
        %5401 = vmatpush1.bf16.msra.mxu0 %v5272
        %5402 = vmatprep.subr.bf16.mxu0 %v5275
        %5403 = vmatpush1.bf16.msra.mxu0 %v5274
        %5404 = vmatprep.subr.bf16.mxu0 %v5277
        %5405 = vmatpush1.bf16.msra.mxu0 %v5276
        %5406 = vmatprep.mubr.bf16.mxu0 %v5035
        %5407 = vmatmul.mubr.bf16.gmra.mrb[0].mxu0 %v5028
        %v5408 = vpop.f32.mrb[0].mxu0
        %v5409 = vadd.f32 0.0, %v5408
        %v5410 = vpop.f32.mrb[0].mxu0
        %v5411 = vadd.f32 0.0, %v5410
        %v5412 = vpop.f32.mrb[0].mxu0
        %v5413 = vpop.f32.mrb[0].mxu0
        %5414 = vdwg.mxu0
        %5415 = vmatprep.subr.bf16.mxu0 %v5279
        %5416 = vmatpush1.bf16.msra.mxu0 %v5278
        %5417 = vmatprep.subr.bf16.mxu0 %v5281
        %5418 = vmatpush1.bf16.msra.mxu0 %v5280
        %5419 = vmatprep.subr.bf16.mxu0 %v5283
        %5420 = vmatpush1.bf16.msra.mxu0 %v5282
        %5421 = vmatprep.subr.bf16.mxu0 %v5285
        %5422 = vmatpush1.bf16.msra.mxu0 %v5284
        %5423 = vmatprep.subr.bf16.mxu0 %v5287
        %5424 = vmatpush1.bf16.msra.mxu0 %v5286
        %5425 = vmatprep.subr.bf16.mxu0 %v5289
        %5426 = vmatpush1.bf16.msra.mxu0 %v5288
        %5427 = vmatprep.subr.bf16.mxu0 %v5291
        %5428 = vmatpush1.bf16.msra.mxu0 %v5290
        %5429 = vmatprep.subr.bf16.mxu0 %v5293
        %5430 = vmatpush1.bf16.msra.mxu0 %v5292
        %5431 = vmatprep.subr.bf16.mxu0 %v5295
        %5432 = vmatpush1.bf16.msra.mxu0 %v5294
        %5433 = vmatprep.subr.bf16.mxu0 %v5297
        %5434 = vmatpush1.bf16.msra.mxu0 %v5296
        %5435 = vmatprep.subr.bf16.mxu0 %v5299
        %5436 = vmatpush1.bf16.msra.mxu0 %v5298
        %5437 = vmatprep.subr.bf16.mxu0 %v5301
        %5438 = vmatpush1.bf16.msra.mxu0 %v5300
        %5439 = vmatprep.subr.bf16.mxu0 %v5303
        %5440 = vmatpush1.bf16.msra.mxu0 %v5302
        %5441 = vmatprep.subr.bf16.mxu0 %v5305
        %5442 = vmatpush1.bf16.msra.mxu0 %v5304
        %5443 = vmatprep.subr.bf16.mxu0 %v5307
        %5444 = vmatpush1.bf16.msra.mxu0 %v5306
        %5445 = vmatprep.subr.bf16.mxu0 %v5309
        %5446 = vmatpush1.bf16.msra.mxu0 %v5308
        %5447 = vmatprep.mubr.bf16.mxu0 %v5049
        %5448 = vmatmul.mubr.bf16.gmra.mrb[0].mxu0 %v5042
        %v5449 = vpop.f32.mrb[0].mxu0
        %v5450 = vadd.f32 %v5409, %v5449
        %v5451 = vpop.f32.mrb[0].mxu0
        %v5452 = vadd.f32 %v5411, %v5451
        %v5453 = vpop.f32.mrb[0].mxu0
        %v5454 = vpop.f32.mrb[0].mxu0
        %5455 = vdwg.mxu0
        %v5456 = vpack.c.b16 %v5010, %v5010
        %v5457 = vpack.c.b16 %v5011, %v5011
        %v5458 = vpack.c.b16 %v5012, %v5012
        %v5459 = vpack.c.b16 %v5013, %v5013
        %v5528 = vunpack.c.l.b16 %v4876
        %v5529 = vunpack.c.h.b16 %v4876
        %v5530 = vunpack.c.l.b16 %v4877
        %v5531 = vunpack.c.h.b16 %v4877
        %v5532 = vunpack.c.l.b16 %v4878
        %v5533 = vunpack.c.h.b16 %v4878
        %v5534 = vunpack.c.l.b16 %v4879
        %v5535 = vunpack.c.h.b16 %v4879
        %v5536 = vunpack.c.l.b16 %v4880
        %v5537 = vunpack.c.h.b16 %v4880
        %v5538 = vunpack.c.l.b16 %v4881
        %v5539 = vunpack.c.h.b16 %v4881
        %v5540 = vunpack.c.l.b16 %v4882
        %v5541 = vunpack.c.h.b16 %v4882
        %v5542 = vunpack.c.l.b16 %v4883
        %v5543 = vunpack.c.h.b16 %v4883
        %v5544 = vunpack.c.l.b16 %v4884
        %v5545 = vunpack.c.h.b16 %v4884
        %v5546 = vunpack.c.l.b16 %v4885
        %v5547 = vunpack.c.h.b16 %v4885
        %v5548 = vunpack.c.l.b16 %v4886
        %v5549 = vunpack.c.h.b16 %v4886
        %v5550 = vunpack.c.l.b16 %v4887
        %v5551 = vunpack.c.h.b16 %v4887
        %v5552 = vunpack.c.l.b16 %v4888
        %v5553 = vunpack.c.h.b16 %v4888
        %v5554 = vunpack.c.l.b16 %v4889
        %v5555 = vunpack.c.h.b16 %v4889
        %v5556 = vunpack.c.l.b16 %v4890
        %v5557 = vunpack.c.h.b16 %v4890
        %v5558 = vunpack.c.l.b16 %v4891
        %v5559 = vunpack.c.h.b16 %v4891
        %v5560 = vunpack.c.l.b16 %v4892
        %v5561 = vunpack.c.h.b16 %v4892
        %v5562 = vunpack.c.l.b16 %v4893
        %v5563 = vunpack.c.h.b16 %v4893
        %v5564 = vunpack.c.l.b16 %v4894
        %v5565 = vunpack.c.h.b16 %v4894
        %v5566 = vunpack.c.l.b16 %v4895
        %v5567 = vunpack.c.h.b16 %v4895
        %v5568 = vunpack.c.l.b16 %v4896
        %v5569 = vunpack.c.h.b16 %v4896
        %v5570 = vunpack.c.l.b16 %v4897
        %v5571 = vunpack.c.h.b16 %v4897
        %v5572 = vunpack.c.l.b16 %v4898
        %v5573 = vunpack.c.h.b16 %v4898
        %v5574 = vunpack.c.l.b16 %v4899
        %v5575 = vunpack.c.h.b16 %v4899
        %v5576 = vunpack.c.l.b16 %v4900
        %v5577 = vunpack.c.h.b16 %v4900
        %v5578 = vunpack.c.l.b16 %v4901
        %v5579 = vunpack.c.h.b16 %v4901
        %v5580 = vunpack.c.l.b16 %v4902
        %v5581 = vunpack.c.h.b16 %v4902
        %v5582 = vunpack.c.l.b16 %v4903
        %v5583 = vunpack.c.h.b16 %v4903
        %v5584 = vunpack.c.l.b16 %v4904
        %v5585 = vunpack.c.h.b16 %v4904
        %v5586 = vunpack.c.l.b16 %v4905
        %v5587 = vunpack.c.h.b16 %v4905
        %v5588 = vunpack.c.l.b16 %v4906
        %v5589 = vunpack.c.h.b16 %v4906
        %v5590 = vunpack.c.l.b16 %v4907
        %v5591 = vunpack.c.h.b16 %v4907
        %v5592 = vunpack.c.l.b16 %v4908
        %v5593 = vunpack.c.h.b16 %v4908
        %v5594 = vunpack.c.l.b16 %v4909
        %v5595 = vunpack.c.h.b16 %v4909
        %v5596 = vunpack.c.l.b16 %v4910
        %v5597 = vunpack.c.h.b16 %v4910
        %v5598 = vunpack.c.l.b16 %v4911
        %v5599 = vunpack.c.h.b16 %v4911
        %v5600 = vunpack.c.l.b16 %v4912
        %v5601 = vunpack.c.h.b16 %v4912
        %v5602 = vunpack.c.l.b16 %v4913
        %v5603 = vunpack.c.h.b16 %v4913
        %v5604 = vunpack.c.l.b16 %v4914
        %v5605 = vunpack.c.h.b16 %v4914
        %v5606 = vunpack.c.l.b16 %v4915
        %v5607 = vunpack.c.h.b16 %v4915
        %v5608 = vunpack.c.l.b16 %v4916
        %v5609 = vunpack.c.h.b16 %v4916
        %v5610 = vunpack.c.l.b16 %v4917
        %v5611 = vunpack.c.h.b16 %v4917
        %v5612 = vunpack.c.l.b16 %v4918
        %v5613 = vunpack.c.h.b16 %v4918
        %v5614 = vunpack.c.l.b16 %v4919
        %v5615 = vunpack.c.h.b16 %v4919
        %v5616 = vunpack.c.l.b16 %v4920
        %v5617 = vunpack.c.h.b16 %v4920
        %v5618 = vunpack.c.l.b16 %v4921
        %v5619 = vunpack.c.h.b16 %v4921
        %v5620 = vunpack.c.l.b16 %v4922
        %v5621 = vunpack.c.h.b16 %v4922
        %v5622 = vunpack.c.l.b16 %v4923
        %v5623 = vunpack.c.h.b16 %v4923
        %v5624 = vunpack.c.l.b16 %v4924
        %v5625 = vunpack.c.h.b16 %v4924
        %v5626 = vunpack.c.l.b16 %v4925
        %v5627 = vunpack.c.h.b16 %v4925
        %v5628 = vunpack.c.l.b16 %v4926
        %v5629 = vunpack.c.h.b16 %v4926
        %v5630 = vunpack.c.l.b16 %v4927
        %v5631 = vunpack.c.h.b16 %v4927
        %v5632 = vunpack.c.l.b16 %v4928
        %v5633 = vunpack.c.h.b16 %v4928
        %v5634 = vunpack.c.l.b16 %v4929
        %v5635 = vunpack.c.h.b16 %v4929
        %v5636 = vunpack.c.l.b16 %v4930
        %v5637 = vunpack.c.h.b16 %v4930
        %v5638 = vunpack.c.l.b16 %v4931
        %v5639 = vunpack.c.h.b16 %v4931
        %v5640 = vunpack.c.l.b16 %v4932
        %v5641 = vunpack.c.h.b16 %v4932
        %v5642 = vunpack.c.l.b16 %v4933
        %v5643 = vunpack.c.h.b16 %v4933
        %v5644 = vunpack.c.l.b16 %v4934
        %v5645 = vunpack.c.h.b16 %v4934
        %v5646 = vunpack.c.l.b16 %v4935
        %v5647 = vunpack.c.h.b16 %v4935
        %v5648 = vunpack.c.l.b16 %v4936
        %v5649 = vunpack.c.h.b16 %v4936
        %v5650 = vunpack.c.l.b16 %v4937
        %v5651 = vunpack.c.h.b16 %v4937
        %v5652 = vunpack.c.l.b16 %v4938
        %v5653 = vunpack.c.h.b16 %v4938
        %v5654 = vunpack.c.l.b16 %v4939
        %v5655 = vunpack.c.h.b16 %v4939
        %v5656 = vpack.c.b16 %v5530, %v5528
        %v5657 = vpack.c.b16 %v5531, %v5529
        %v5658 = vpack.c.b16 %v5534, %v5532
        %v5659 = vpack.c.b16 %v5535, %v5533
        %v5660 = vpack.c.b16 %v5538, %v5536
        %v5661 = vpack.c.b16 %v5539, %v5537
        %v5662 = vpack.c.b16 %v5542, %v5540
        %v5663 = vpack.c.b16 %v5543, %v5541
        %v5664 = vpack.c.b16 %v5546, %v5544
        %v5665 = vpack.c.b16 %v5547, %v5545
        %v5666 = vpack.c.b16 %v5550, %v5548
        %v5667 = vpack.c.b16 %v5551, %v5549
        %v5668 = vpack.c.b16 %v5554, %v5552
        %v5669 = vpack.c.b16 %v5555, %v5553
        %v5670 = vpack.c.b16 %v5558, %v5556
        %v5671 = vpack.c.b16 %v5559, %v5557
        %v5672 = vpack.c.b16 %v5562, %v5560
        %v5673 = vpack.c.b16 %v5563, %v5561
        %v5674 = vpack.c.b16 %v5566, %v5564
        %v5675 = vpack.c.b16 %v5567, %v5565
        %v5676 = vpack.c.b16 %v5570, %v5568
        %v5677 = vpack.c.b16 %v5571, %v5569
        %v5678 = vpack.c.b16 %v5574, %v5572
        %v5679 = vpack.c.b16 %v5575, %v5573
        %v5680 = vpack.c.b16 %v5578, %v5576
        %v5681 = vpack.c.b16 %v5579, %v5577
        %v5682 = vpack.c.b16 %v5582, %v5580
        %v5683 = vpack.c.b16 %v5583, %v5581
        %v5684 = vpack.c.b16 %v5586, %v5584
        %v5685 = vpack.c.b16 %v5587, %v5585
        %v5686 = vpack.c.b16 %v5590, %v5588
        %v5687 = vpack.c.b16 %v5591, %v5589
        %v5688 = vpack.c.b16 %v5594, %v5592
        %v5689 = vpack.c.b16 %v5595, %v5593
        %v5690 = vpack.c.b16 %v5598, %v5596
        %v5691 = vpack.c.b16 %v5599, %v5597
        %v5692 = vpack.c.b16 %v5602, %v5600
        %v5693 = vpack.c.b16 %v5603, %v5601
        %v5694 = vpack.c.b16 %v5606, %v5604
        %v5695 = vpack.c.b16 %v5607, %v5605
        %v5696 = vpack.c.b16 %v5610, %v5608
        %v5697 = vpack.c.b16 %v5611, %v5609
        %v5698 = vpack.c.b16 %v5614, %v5612
        %v5699 = vpack.c.b16 %v5615, %v5613
        %v5700 = vpack.c.b16 %v5618, %v5616
        %v5701 = vpack.c.b16 %v5619, %v5617
        %v5702 = vpack.c.b16 %v5622, %v5620
        %v5703 = vpack.c.b16 %v5623, %v5621
        %v5704 = vpack.c.b16 %v5626, %v5624
        %v5705 = vpack.c.b16 %v5627, %v5625
        %v5706 = vpack.c.b16 %v5630, %v5628
        %v5707 = vpack.c.b16 %v5631, %v5629
        %v5708 = vpack.c.b16 %v5634, %v5632
        %v5709 = vpack.c.b16 %v5635, %v5633
        %v5710 = vpack.c.b16 %v5638, %v5636
        %v5711 = vpack.c.b16 %v5639, %v5637
        %v5712 = vpack.c.b16 %v5642, %v5640
        %v5713 = vpack.c.b16 %v5643, %v5641
        %v5714 = vpack.c.b16 %v5646, %v5644
        %v5715 = vpack.c.b16 %v5647, %v5645
        %v5716 = vpack.c.b16 %v5650, %v5648
        %v5717 = vpack.c.b16 %v5651, %v5649
        %v5718 = vpack.c.b16 %v5654, %v5652
        %v5719 = vpack.c.b16 %v5655, %v5653
        %5784 = vmatprep.subr.bf16.mxu0 %v5657
        %5785 = vmatpush1.bf16.msra.mxu0 %v5656
        %5786 = vmatprep.subr.bf16.mxu0 %v5659
        %5787 = vmatpush1.bf16.msra.mxu0 %v5658
        %5788 = vmatprep.subr.bf16.mxu0 %v5661
        %5789 = vmatpush1.bf16.msra.mxu0 %v5660
        %5790 = vmatprep.subr.bf16.mxu0 %v5663
        %5791 = vmatpush1.bf16.msra.mxu0 %v5662
        %5792 = vmatprep.subr.bf16.mxu0 %v5665
        %5793 = vmatpush1.bf16.msra.mxu0 %v5664
        %5794 = vmatprep.subr.bf16.mxu0 %v5667
        %5795 = vmatpush1.bf16.msra.mxu0 %v5666
        %5796 = vmatprep.subr.bf16.mxu0 %v5669
        %5797 = vmatpush1.bf16.msra.mxu0 %v5668
        %5798 = vmatprep.subr.bf16.mxu0 %v5671
        %5799 = vmatpush1.bf16.msra.mxu0 %v5670
        %5800 = vmatprep.subr.bf16.mxu0 %v5673
        %5801 = vmatpush1.bf16.msra.mxu0 %v5672
        %5802 = vmatprep.subr.bf16.mxu0 %v5675
        %5803 = vmatpush1.bf16.msra.mxu0 %v5674
        %5804 = vmatprep.subr.bf16.mxu0 %v5677
        %5805 = vmatpush1.bf16.msra.mxu0 %v5676
        %5806 = vmatprep.subr.bf16.mxu0 %v5679
        %5807 = vmatpush1.bf16.msra.mxu0 %v5678
        %5808 = vmatprep.subr.bf16.mxu0 %v5681
        %5809 = vmatpush1.bf16.msra.mxu0 %v5680
        %5810 = vmatprep.subr.bf16.mxu0 %v5683
        %5811 = vmatpush1.bf16.msra.mxu0 %v5682
        %5812 = vmatprep.subr.bf16.mxu0 %v5685
        %5813 = vmatpush1.bf16.msra.mxu0 %v5684
        %5814 = vmatprep.subr.bf16.mxu0 %v5687
        %5815 = vmatpush1.bf16.msra.mxu0 %v5686
        %5816 = vmatprep.mubr.bf16.mxu0 %v5457
        %5817 = vmatmul.mubr.bf16.gmra.mrb[0].mxu0 %v5456
        %v5818 = vpop.f32.mrb[0].mxu0
        %v5819 = vadd.f32 %v5450, %v5818
        %v5820 = vpop.f32.mrb[0].mxu0
        %v5821 = vadd.f32 %v5452, %v5820
        %v5822 = vpop.f32.mrb[0].mxu0
        %v5823 = vpop.f32.mrb[0].mxu0
        %5824 = vdwg.mxu0
        %5825 = vmatprep.subr.bf16.mxu0 %v5689
        %5826 = vmatpush1.bf16.msra.mxu0 %v5688
        %5827 = vmatprep.subr.bf16.mxu0 %v5691
        %5828 = vmatpush1.bf16.msra.mxu0 %v5690
        %5829 = vmatprep.subr.bf16.mxu0 %v5693
        %5830 = vmatpush1.bf16.msra.mxu0 %v5692
        %5831 = vmatprep.subr.bf16.mxu0 %v5695
        %5832 = vmatpush1.bf16.msra.mxu0 %v5694
        %5833 = vmatprep.subr.bf16.mxu0 %v5697
        %5834 = vmatpush1.bf16.msra.mxu0 %v5696
        %5835 = vmatprep.subr.bf16.mxu0 %v5699
        %5836 = vmatpush1.bf16.msra.mxu0 %v5698
        %5837 = vmatprep.subr.bf16.mxu0 %v5701
        %5838 = vmatpush1.bf16.msra.mxu0 %v5700
        %5839 = vmatprep.subr.bf16.mxu0 %v5703
        %5840 = vmatpush1.bf16.msra.mxu0 %v5702
        %5841 = vmatprep.subr.bf16.mxu0 %v5705
        %5842 = vmatpush1.bf16.msra.mxu0 %v5704
        %5843 = vmatprep.subr.bf16.mxu0 %v5707
        %5844 = vmatpush1.bf16.msra.mxu0 %v5706
        %5845 = vmatprep.subr.bf16.mxu0 %v5709
        %5846 = vmatpush1.bf16.msra.mxu0 %v5708
        %5847 = vmatprep.subr.bf16.mxu0 %v5711
        %5848 = vmatpush1.bf16.msra.mxu0 %v5710
        %5849 = vmatprep.subr.bf16.mxu0 %v5713
        %5850 = vmatpush1.bf16.msra.mxu0 %v5712
        %5851 = vmatprep.subr.bf16.mxu0 %v5715
        %5852 = vmatpush1.bf16.msra.mxu0 %v5714
        %5853 = vmatprep.subr.bf16.mxu0 %v5717
        %5854 = vmatpush1.bf16.msra.mxu0 %v5716
        %5855 = vmatprep.subr.bf16.mxu0 %v5719
        %5856 = vmatpush1.bf16.msra.mxu0 %v5718
        %5857 = vmatprep.mubr.bf16.mxu0 %v5459
        %5858 = vmatmul.mubr.bf16.gmra.mrb[0].mxu0 %v5458
        %v5859 = vpop.f32.mrb[0].mxu0
        %v5860 = vadd.f32 %v5819, %v5859
        %v5861 = vpop.f32.mrb[0].mxu0
        %v5862 = vadd.f32 %v5821, %v5861
        %v5863 = vpop.f32.mrb[0].mxu0
        %v5864 = vpop.f32.mrb[0].mxu0
        %5865 = vdwg.mxu0
        %v5866 = vld [vmem:[%s4873] sm:$0xee]
        %v5867 = vld [vmem:[%s4873 + $0x8] sm:$0xee]
        %v5868 = vld [vmem:[%s1382] sm:$0xff]
        %v5869 = vld [vmem:[%s1382 + $0x8] sm:$0xff]
        %v5870 = vld [vmem:[%s1382 + $0x10] sm:$0xff]
        %v5871 = vld [vmem:[%s1382 + $0x18] sm:$0xff]
        %v5872 = vld [vmem:[%s1382 + $0x20] sm:$0xff]
        %v5873 = vld [vmem:[%s1382 + $0x28] sm:$0xff]
        %v5874 = vld [vmem:[%s1382 + $0x30] sm:$0xff]
        %v5875 = vld [vmem:[%s1382 + $0x38] sm:$0xff]
        %v5876 = vld [vmem:[%s1382 + $0x40] sm:$0xff]
        %v5877 = vld [vmem:[%s1382 + $0x48] sm:$0xff]
        %v5878 = vld [vmem:[%s1382 + $0x50] sm:$0xff]
        %v5879 = vld [vmem:[%s1382 + $0x58] sm:$0xff]
        %v5880 = vld [vmem:[%s1382 + $0x60] sm:$0xff]
        %v5881 = vld [vmem:[%s1382 + $0x68] sm:$0xff]
        %v5882 = vld [vmem:[%s1382 + $0x70] sm:$0xff]
        %v5883 = vld [vmem:[%s1382 + $0x78] sm:$0xff]
        %v5884 = vld [vmem:[%s1382 + $0x80] sm:$0xff]
        %v5885 = vld [vmem:[%s1382 + $0x88] sm:$0xff]
        %v5886 = vld [vmem:[%s1382 + $0x90] sm:$0xff]
        %v5887 = vld [vmem:[%s1382 + $0x98] sm:$0xff]
        %v5888 = vld [vmem:[%s1382 + $0xa0] sm:$0xff]
        %v5889 = vld [vmem:[%s1382 + $0xa8] sm:$0xff]
        %v5890 = vld [vmem:[%s1382 + $0xb0] sm:$0xff]
        %v5891 = vld [vmem:[%s1382 + $0xb8] sm:$0xff]
        %v5892 = vld [vmem:[%s1382 + $0xc0] sm:$0xff]
        %v5893 = vld [vmem:[%s1382 + $0xc8] sm:$0xff]
        %v5894 = vld [vmem:[%s1382 + $0xd0] sm:$0xff]
        %v5895 = vld [vmem:[%s1382 + $0xd8] sm:$0xff]
        %v5896 = vld [vmem:[%s1382 + $0xe0] sm:$0xff]
        %v5897 = vld [vmem:[%s1382 + $0xe8] sm:$0xff]
        %v5898 = vld [vmem:[%s1382 + $0xf0] sm:$0xff]
        %v5899 = vld [vmem:[%s1382 + $0xf8] sm:$0xff]
        %v5900 = vld [vmem:[%s1382 + $0x100] sm:$0xff]
        %v5901 = vld [vmem:[%s1382 + $0x108] sm:$0xff]
        %v5902 = vld [vmem:[%s1382 + $0x110] sm:$0xff]
        %v5903 = vld [vmem:[%s1382 + $0x118] sm:$0xff]
        %v5904 = vld [vmem:[%s1382 + $0x120] sm:$0xff]
        %v5905 = vld [vmem:[%s1382 + $0x128] sm:$0xff]
        %v5906 = vld [vmem:[%s1382 + $0x130] sm:$0xff]
        %v5907 = vld [vmem:[%s1382 + $0x138] sm:$0xff]
        %v5908 = vld [vmem:[%s1382 + $0x140] sm:$0xff]
        %v5909 = vld [vmem:[%s1382 + $0x148] sm:$0xff]
        %v5910 = vld [vmem:[%s1382 + $0x150] sm:$0xff]
        %v5911 = vld [vmem:[%s1382 + $0x158] sm:$0xff]
        %v5912 = vld [vmem:[%s1382 + $0x160] sm:$0xff]
        %v5913 = vld [vmem:[%s1382 + $0x168] sm:$0xff]
        %v5914 = vld [vmem:[%s1382 + $0x170] sm:$0xff]
        %v5915 = vld [vmem:[%s1382 + $0x178] sm:$0xff]
        %v5916 = vld [vmem:[%s1382 + $0x180] sm:$0xff]
        %v5917 = vld [vmem:[%s1382 + $0x188] sm:$0xff]
        %v5918 = vld [vmem:[%s1382 + $0x190] sm:$0xff]
        %v5919 = vld [vmem:[%s1382 + $0x198] sm:$0xff]
        %v5920 = vld [vmem:[%s1382 + $0x1a0] sm:$0xff]
        %v5921 = vld [vmem:[%s1382 + $0x1a8] sm:$0xff]
        %v5922 = vld [vmem:[%s1382 + $0x1b0] sm:$0xff]
        %v5923 = vld [vmem:[%s1382 + $0x1b8] sm:$0xff]
        %v5924 = vld [vmem:[%s1382 + $0x1c0] sm:$0xff]
        %v5925 = vld [vmem:[%s1382 + $0x1c8] sm:$0xff]
        %v5926 = vld [vmem:[%s1382 + $0x1d0] sm:$0xff]
        %v5927 = vld [vmem:[%s1382 + $0x1d8] sm:$0xff]
        %v5928 = vld [vmem:[%s1382 + $0x1e0] sm:$0xff]
        %v5929 = vld [vmem:[%s1382 + $0x1e8] sm:$0xff]
        %v5930 = vld [vmem:[%s1382 + $0x1f0] sm:$0xff]
        %v5931 = vld [vmem:[%s1382 + $0x1f8] sm:$0xff]
        %v5934 = vunpack.c.l.b16 %v5866
        %v5935 = vunpack.c.h.b16 %v5866
        %v5936 = vunpack.c.l.b16 %v5867
        %v5937 = vunpack.c.h.b16 %v5867
        %v5938 = vpack.c.b16 %v5014, %v5934
        %v5939 = vpack.c.b16 %v5015, %v5935
        %v5940 = vpack.c.b16 %v5016, %v5936
        %v5941 = vpack.c.b16 %v5017, %v5937
        %v5942 = vrot.slane %v5938, 1
        %v5943 = vrot.slane %v5939, 1
        %v5944 = vrot.slane %v5940, 1
        %v5945 = vrot.slane %v5941, 1
        %v6014 = vunpack.c.l.b16 %v5868
        %v6015 = vunpack.c.h.b16 %v5868
        %v6016 = vunpack.c.l.b16 %v5869
        %v6017 = vunpack.c.h.b16 %v5869
        %v6018 = vunpack.c.l.b16 %v5870
        %v6019 = vunpack.c.h.b16 %v5870
        %v6020 = vunpack.c.l.b16 %v5871
        %v6021 = vunpack.c.h.b16 %v5871
        %v6022 = vunpack.c.l.b16 %v5872
        %v6023 = vunpack.c.h.b16 %v5872
        %v6024 = vunpack.c.l.b16 %v5873
        %v6025 = vunpack.c.h.b16 %v5873
        %v6026 = vunpack.c.l.b16 %v5874
        %v6027 = vunpack.c.h.b16 %v5874
        %v6028 = vunpack.c.l.b16 %v5875
        %v6029 = vunpack.c.h.b16 %v5875
        %v6030 = vunpack.c.l.b16 %v5876
        %v6031 = vunpack.c.h.b16 %v5876
        %v6032 = vunpack.c.l.b16 %v5877
        %v6033 = vunpack.c.h.b16 %v5877
        %v6034 = vunpack.c.l.b16 %v5878
        %v6035 = vunpack.c.h.b16 %v5878
        %v6036 = vunpack.c.l.b16 %v5879
        %v6037 = vunpack.c.h.b16 %v5879
        %v6038 = vunpack.c.l.b16 %v5880
        %v6039 = vunpack.c.h.b16 %v5880
        %v6040 = vunpack.c.l.b16 %v5881
        %v6041 = vunpack.c.h.b16 %v5881
        %v6042 = vunpack.c.l.b16 %v5882
        %v6043 = vunpack.c.h.b16 %v5882
        %v6044 = vunpack.c.l.b16 %v5883
        %v6045 = vunpack.c.h.b16 %v5883
        %v6046 = vunpack.c.l.b16 %v5884
        %v6047 = vunpack.c.h.b16 %v5884
        %v6048 = vunpack.c.l.b16 %v5885
        %v6049 = vunpack.c.h.b16 %v5885
        %v6050 = vunpack.c.l.b16 %v5886
        %v6051 = vunpack.c.h.b16 %v5886
        %v6052 = vunpack.c.l.b16 %v5887
        %v6053 = vunpack.c.h.b16 %v5887
        %v6054 = vunpack.c.l.b16 %v5888
        %v6055 = vunpack.c.h.b16 %v5888
        %v6056 = vunpack.c.l.b16 %v5889
        %v6057 = vunpack.c.h.b16 %v5889
        %v6058 = vunpack.c.l.b16 %v5890
        %v6059 = vunpack.c.h.b16 %v5890
        %v6060 = vunpack.c.l.b16 %v5891
        %v6061 = vunpack.c.h.b16 %v5891
        %v6062 = vunpack.c.l.b16 %v5892
        %v6063 = vunpack.c.h.b16 %v5892
        %v6064 = vunpack.c.l.b16 %v5893
        %v6065 = vunpack.c.h.b16 %v5893
        %v6066 = vunpack.c.l.b16 %v5894
        %v6067 = vunpack.c.h.b16 %v5894
        %v6068 = vunpack.c.l.b16 %v5895
        %v6069 = vunpack.c.h.b16 %v5895
        %v6070 = vunpack.c.l.b16 %v5896
        %v6071 = vunpack.c.h.b16 %v5896
        %v6072 = vunpack.c.l.b16 %v5897
        %v6073 = vunpack.c.h.b16 %v5897
        %v6074 = vunpack.c.l.b16 %v5898
        %v6075 = vunpack.c.h.b16 %v5898
        %v6076 = vunpack.c.l.b16 %v5899
        %v6077 = vunpack.c.h.b16 %v5899
        %v6078 = vunpack.c.l.b16 %v5900
        %v6079 = vunpack.c.h.b16 %v5900
        %v6080 = vunpack.c.l.b16 %v5901
        %v6081 = vunpack.c.h.b16 %v5901
        %v6082 = vunpack.c.l.b16 %v5902
        %v6083 = vunpack.c.h.b16 %v5902
        %v6084 = vunpack.c.l.b16 %v5903
        %v6085 = vunpack.c.h.b16 %v5903
        %v6086 = vunpack.c.l.b16 %v5904
        %v6087 = vunpack.c.h.b16 %v5904
        %v6088 = vunpack.c.l.b16 %v5905
        %v6089 = vunpack.c.h.b16 %v5905
        %v6090 = vunpack.c.l.b16 %v5906
        %v6091 = vunpack.c.h.b16 %v5906
        %v6092 = vunpack.c.l.b16 %v5907
        %v6093 = vunpack.c.h.b16 %v5907
        %v6094 = vunpack.c.l.b16 %v5908
        %v6095 = vunpack.c.h.b16 %v5908
        %v6096 = vunpack.c.l.b16 %v5909
        %v6097 = vunpack.c.h.b16 %v5909
        %v6098 = vunpack.c.l.b16 %v5910
        %v6099 = vunpack.c.h.b16 %v5910
        %v6100 = vunpack.c.l.b16 %v5911
        %v6101 = vunpack.c.h.b16 %v5911
        %v6102 = vunpack.c.l.b16 %v5912
        %v6103 = vunpack.c.h.b16 %v5912
        %v6104 = vunpack.c.l.b16 %v5913
        %v6105 = vunpack.c.h.b16 %v5913
        %v6106 = vunpack.c.l.b16 %v5914
        %v6107 = vunpack.c.h.b16 %v5914
        %v6108 = vunpack.c.l.b16 %v5915
        %v6109 = vunpack.c.h.b16 %v5915
        %v6110 = vunpack.c.l.b16 %v5916
        %v6111 = vunpack.c.h.b16 %v5916
        %v6112 = vunpack.c.l.b16 %v5917
        %v6113 = vunpack.c.h.b16 %v5917
        %v6114 = vunpack.c.l.b16 %v5918
        %v6115 = vunpack.c.h.b16 %v5918
        %v6116 = vunpack.c.l.b16 %v5919
        %v6117 = vunpack.c.h.b16 %v5919
        %v6118 = vunpack.c.l.b16 %v5920
        %v6119 = vunpack.c.h.b16 %v5920
        %v6120 = vunpack.c.l.b16 %v5921
        %v6121 = vunpack.c.h.b16 %v5921
        %v6122 = vunpack.c.l.b16 %v5922
        %v6123 = vunpack.c.h.b16 %v5922
        %v6124 = vunpack.c.l.b16 %v5923
        %v6125 = vunpack.c.h.b16 %v5923
        %v6126 = vunpack.c.l.b16 %v5924
        %v6127 = vunpack.c.h.b16 %v5924
        %v6128 = vunpack.c.l.b16 %v5925
        %v6129 = vunpack.c.h.b16 %v5925
        %v6130 = vunpack.c.l.b16 %v5926
        %v6131 = vunpack.c.h.b16 %v5926
        %v6132 = vunpack.c.l.b16 %v5927
        %v6133 = vunpack.c.h.b16 %v5927
        %v6134 = vunpack.c.l.b16 %v5928
        %v6135 = vunpack.c.h.b16 %v5928
        %v6136 = vunpack.c.l.b16 %v5929
        %v6137 = vunpack.c.h.b16 %v5929
        %v6138 = vunpack.c.l.b16 %v5930
        %v6139 = vunpack.c.h.b16 %v5930
        %v6140 = vunpack.c.l.b16 %v5931
        %v6141 = vunpack.c.h.b16 %v5931
        %v6142 = vpack.c.b16 %v6016, %v6014
        %v6143 = vpack.c.b16 %v6017, %v6015
        %v6144 = vpack.c.b16 %v6020, %v6018
        %v6145 = vpack.c.b16 %v6021, %v6019
        %v6146 = vpack.c.b16 %v6024, %v6022
        %v6147 = vpack.c.b16 %v6025, %v6023
        %v6148 = vpack.c.b16 %v6028, %v6026
        %v6149 = vpack.c.b16 %v6029, %v6027
        %v6150 = vpack.c.b16 %v6032, %v6030
        %v6151 = vpack.c.b16 %v6033, %v6031
        %v6152 = vpack.c.b16 %v6036, %v6034
        %v6153 = vpack.c.b16 %v6037, %v6035
        %v6154 = vpack.c.b16 %v6040, %v6038
        %v6155 = vpack.c.b16 %v6041, %v6039
        %v6156 = vpack.c.b16 %v6044, %v6042
        %v6157 = vpack.c.b16 %v6045, %v6043
        %v6158 = vpack.c.b16 %v6048, %v6046
        %v6159 = vpack.c.b16 %v6049, %v6047
        %v6160 = vpack.c.b16 %v6052, %v6050
        %v6161 = vpack.c.b16 %v6053, %v6051
        %v6162 = vpack.c.b16 %v6056, %v6054
        %v6163 = vpack.c.b16 %v6057, %v6055
        %v6164 = vpack.c.b16 %v6060, %v6058
        %v6165 = vpack.c.b16 %v6061, %v6059
        %v6166 = vpack.c.b16 %v6064, %v6062
        %v6167 = vpack.c.b16 %v6065, %v6063
        %v6168 = vpack.c.b16 %v6068, %v6066
        %v6169 = vpack.c.b16 %v6069, %v6067
        %v6170 = vpack.c.b16 %v6072, %v6070
        %v6171 = vpack.c.b16 %v6073, %v6071
        %v6172 = vpack.c.b16 %v6076, %v6074
        %v6173 = vpack.c.b16 %v6077, %v6075
        %v6174 = vpack.c.b16 %v6080, %v6078
        %v6175 = vpack.c.b16 %v6081, %v6079
        %v6176 = vpack.c.b16 %v6084, %v6082
        %v6177 = vpack.c.b16 %v6085, %v6083
        %v6178 = vpack.c.b16 %v6088, %v6086
        %v6179 = vpack.c.b16 %v6089, %v6087
        %v6180 = vpack.c.b16 %v6092, %v6090
        %v6181 = vpack.c.b16 %v6093, %v6091
        %v6182 = vpack.c.b16 %v6096, %v6094
        %v6183 = vpack.c.b16 %v6097, %v6095
        %v6184 = vpack.c.b16 %v6100, %v6098
        %v6185 = vpack.c.b16 %v6101, %v6099
        %v6186 = vpack.c.b16 %v6104, %v6102
        %v6187 = vpack.c.b16 %v6105, %v6103
        %v6188 = vpack.c.b16 %v6108, %v6106
        %v6189 = vpack.c.b16 %v6109, %v6107
        %v6190 = vpack.c.b16 %v6112, %v6110
        %v6191 = vpack.c.b16 %v6113, %v6111
        %v6192 = vpack.c.b16 %v6116, %v6114
        %v6193 = vpack.c.b16 %v6117, %v6115
        %v6194 = vpack.c.b16 %v6120, %v6118
        %v6195 = vpack.c.b16 %v6121, %v6119
        %v6196 = vpack.c.b16 %v6124, %v6122
        %v6197 = vpack.c.b16 %v6125, %v6123
        %v6198 = vpack.c.b16 %v6128, %v6126
        %v6199 = vpack.c.b16 %v6129, %v6127
        %v6200 = vpack.c.b16 %v6132, %v6130
        %v6201 = vpack.c.b16 %v6133, %v6131
        %v6202 = vpack.c.b16 %v6136, %v6134
        %v6203 = vpack.c.b16 %v6137, %v6135
        %v6204 = vpack.c.b16 %v6140, %v6138
        %v6205 = vpack.c.b16 %v6141, %v6139
        %6270 = vmatprep.subr.bf16.mxu0 %v6143
        %6271 = vmatpush1.bf16.msra.mxu0 %v6142
        %6272 = vmatprep.subr.bf16.mxu0 %v6145
        %6273 = vmatpush1.bf16.msra.mxu0 %v6144
        %6274 = vmatprep.subr.bf16.mxu0 %v6147
        %6275 = vmatpush1.bf16.msra.mxu0 %v6146
        %6276 = vmatprep.subr.bf16.mxu0 %v6149
        %6277 = vmatpush1.bf16.msra.mxu0 %v6148
        %6278 = vmatprep.subr.bf16.mxu0 %v6151
        %6279 = vmatpush1.bf16.msra.mxu0 %v6150
        %6280 = vmatprep.subr.bf16.mxu0 %v6153
        %6281 = vmatpush1.bf16.msra.mxu0 %v6152
        %6282 = vmatprep.subr.bf16.mxu0 %v6155
        %6283 = vmatpush1.bf16.msra.mxu0 %v6154
        %6284 = vmatprep.subr.bf16.mxu0 %v6157
        %6285 = vmatpush1.bf16.msra.mxu0 %v6156
        %6286 = vmatprep.subr.bf16.mxu0 %v6159
        %6287 = vmatpush1.bf16.msra.mxu0 %v6158
        %6288 = vmatprep.subr.bf16.mxu0 %v6161
        %6289 = vmatpush1.bf16.msra.mxu0 %v6160
        %6290 = vmatprep.subr.bf16.mxu0 %v6163
        %6291 = vmatpush1.bf16.msra.mxu0 %v6162
        %6292 = vmatprep.subr.bf16.mxu0 %v6165
        %6293 = vmatpush1.bf16.msra.mxu0 %v6164
        %6294 = vmatprep.subr.bf16.mxu0 %v6167
        %6295 = vmatpush1.bf16.msra.mxu0 %v6166
        %6296 = vmatprep.subr.bf16.mxu0 %v6169
        %6297 = vmatpush1.bf16.msra.mxu0 %v6168
        %6298 = vmatprep.subr.bf16.mxu0 %v6171
        %6299 = vmatpush1.bf16.msra.mxu0 %v6170
        %6300 = vmatprep.subr.bf16.mxu0 %v6173
        %6301 = vmatpush1.bf16.msra.mxu0 %v6172
        %6302 = vmatprep.mubr.bf16.mxu0 %v5943
        %6303 = vmatmul.mubr.bf16.gmra.mrb[0].mxu0 %v5942
        %v6304 = vpop.f32.mrb[0].mxu0
        %v6305 = vadd.f32 0.0, %v6304
        %v6306 = vpop.f32.mrb[0].mxu0
        %v6307 = vadd.f32 0.0, %v6306
        %v6308 = vpop.f32.mrb[0].mxu0
        %v6309 = vpop.f32.mrb[0].mxu0
        %6310 = vdwg.mxu0
        %6311 = vmatprep.subr.bf16.mxu0 %v6175
        %6312 = vmatpush1.bf16.msra.mxu0 %v6174
        %6313 = vmatprep.subr.bf16.mxu0 %v6177
        %6314 = vmatpush1.bf16.msra.mxu0 %v6176
        %6315 = vmatprep.subr.bf16.mxu0 %v6179
        %6316 = vmatpush1.bf16.msra.mxu0 %v6178
        %6317 = vmatprep.subr.bf16.mxu0 %v6181
        %6318 = vmatpush1.bf16.msra.mxu0 %v6180
        %6319 = vmatprep.subr.bf16.mxu0 %v6183
        %6320 = vmatpush1.bf16.msra.mxu0 %v6182
        %6321 = vmatprep.subr.bf16.mxu0 %v6185
        %6322 = vmatpush1.bf16.msra.mxu0 %v6184
        %6323 = vmatprep.subr.bf16.mxu0 %v6187
        %6324 = vmatpush1.bf16.msra.mxu0 %v6186
        %6325 = vmatprep.subr.bf16.mxu0 %v6189
        %6326 = vmatpush1.bf16.msra.mxu0 %v6188
        %6327 = vmatprep.subr.bf16.mxu0 %v6191
        %6328 = vmatpush1.bf16.msra.mxu0 %v6190
        %6329 = vmatprep.subr.bf16.mxu0 %v6193
        %6330 = vmatpush1.bf16.msra.mxu0 %v6192
        %6331 = vmatprep.subr.bf16.mxu0 %v6195
        %6332 = vmatpush1.bf16.msra.mxu0 %v6194
        %6333 = vmatprep.subr.bf16.mxu0 %v6197
        %6334 = vmatpush1.bf16.msra.mxu0 %v6196
        %6335 = vmatprep.subr.bf16.mxu0 %v6199
        %6336 = vmatpush1.bf16.msra.mxu0 %v6198
        %6337 = vmatprep.subr.bf16.mxu0 %v6201
        %6338 = vmatpush1.bf16.msra.mxu0 %v6200
        %6339 = vmatprep.subr.bf16.mxu0 %v6203
        %6340 = vmatpush1.bf16.msra.mxu0 %v6202
        %6341 = vmatprep.subr.bf16.mxu0 %v6205
        %6342 = vmatpush1.bf16.msra.mxu0 %v6204
        %6343 = vmatprep.mubr.bf16.mxu0 %v5945
        %6344 = vmatmul.mubr.bf16.gmra.mrb[0].mxu0 %v5944
        %v6345 = vpop.f32.mrb[0].mxu0
        %v6346 = vadd.f32 %v6305, %v6345
        %v6347 = vpop.f32.mrb[0].mxu0
        %v6348 = vadd.f32 %v6307, %v6347
        %v6349 = vpop.f32.mrb[0].mxu0
        %v6350 = vpop.f32.mrb[0].mxu0
        %6351 = vdwg.mxu0
        %v6352 = vadd.f32 %v5860, %v6346
        %v6353 = vadd.f32 %v5862, %v6348
        %v6354 = vld [vmem:[%s4873] sm:$0xcc]
        %v6355 = vld [vmem:[%s4873 + $0x8] sm:$0xcc]
        %v6356 = vld [vmem:[%s4873 + $0x10] sm:$0x33]
        %v6357 = vld [vmem:[%s4873 + $0x18] sm:$0x33]
        %v6358 = vld [vmem:[%s1873] sm:$0xff]
        %v6359 = vld [vmem:[%s1873 + $0x8] sm:$0xff]
        %v6360 = vld [vmem:[%s1873 + $0x10] sm:$0xff]
        %v6361 = vld [vmem:[%s1873 + $0x18] sm:$0xff]
        %v6362 = vld [vmem:[%s1873 + $0x20] sm:$0xff]
        %v6363 = vld [vmem:[%s1873 + $0x28] sm:$0xff]
        %v6364 = vld [vmem:[%s1873 + $0x30] sm:$0xff]
        %v6365 = vld [vmem:[%s1873 + $0x38] sm:$0xff]
        %v6366 = vld [vmem:[%s1873 + $0x40] sm:$0xff]
        %v6367 = vld [vmem:[%s1873 + $0x48] sm:$0xff]
        %v6368 = vld [vmem:[%s1873 + $0x50] sm:$0xff]
        %v6369 = vld [vmem:[%s1873 + $0x58] sm:$0xff]
        %v6370 = vld [vmem:[%s1873 + $0x60] sm:$0xff]
        %v6371 = vld [vmem:[%s1873 + $0x68] sm:$0xff]
        %v6372 = vld [vmem:[%s1873 + $0x70] sm:$0xff]
        %v6373 = vld [vmem:[%s1873 + $0x78] sm:$0xff]
        %v6374 = vld [vmem:[%s1873 + $0x80] sm:$0xff]
        %v6375 = vld [vmem:[%s1873 + $0x88] sm:$0xff]
        %v6376 = vld [vmem:[%s1873 + $0x90] sm:$0xff]
        %v6377 = vld [vmem:[%s1873 + $0x98] sm:$0xff]
        %v6378 = vld [vmem:[%s1873 + $0xa0] sm:$0xff]
        %v6379 = vld [vmem:[%s1873 + $0xa8] sm:$0xff]
        %v6380 = vld [vmem:[%s1873 + $0xb0] sm:$0xff]
        %v6381 = vld [vmem:[%s1873 + $0xb8] sm:$0xff]
        %v6382 = vld [vmem:[%s1873 + $0xc0] sm:$0xff]
        %v6383 = vld [vmem:[%s1873 + $0xc8] sm:$0xff]
        %v6384 = vld [vmem:[%s1873 + $0xd0] sm:$0xff]
        %v6385 = vld [vmem:[%s1873 + $0xd8] sm:$0xff]
        %v6386 = vld [vmem:[%s1873 + $0xe0] sm:$0xff]
        %v6387 = vld [vmem:[%s1873 + $0xe8] sm:$0xff]
        %v6388 = vld [vmem:[%s1873 + $0xf0] sm:$0xff]
        %v6389 = vld [vmem:[%s1873 + $0xf8] sm:$0xff]
        %v6390 = vld [vmem:[%s1873 + $0x100] sm:$0xff]
        %v6391 = vld [vmem:[%s1873 + $0x108] sm:$0xff]
        %v6392 = vld [vmem:[%s1873 + $0x110] sm:$0xff]
        %v6393 = vld [vmem:[%s1873 + $0x118] sm:$0xff]
        %v6394 = vld [vmem:[%s1873 + $0x120] sm:$0xff]
        %v6395 = vld [vmem:[%s1873 + $0x128] sm:$0xff]
        %v6396 = vld [vmem:[%s1873 + $0x130] sm:$0xff]
        %v6397 = vld [vmem:[%s1873 + $0x138] sm:$0xff]
        %v6398 = vld [vmem:[%s1873 + $0x140] sm:$0xff]
        %v6399 = vld [vmem:[%s1873 + $0x148] sm:$0xff]
        %v6400 = vld [vmem:[%s1873 + $0x150] sm:$0xff]
        %v6401 = vld [vmem:[%s1873 + $0x158] sm:$0xff]
        %v6402 = vld [vmem:[%s1873 + $0x160] sm:$0xff]
        %v6403 = vld [vmem:[%s1873 + $0x168] sm:$0xff]
        %v6404 = vld [vmem:[%s1873 + $0x170] sm:$0xff]
        %v6405 = vld [vmem:[%s1873 + $0x178] sm:$0xff]
        %v6406 = vld [vmem:[%s1873 + $0x180] sm:$0xff]
        %v6407 = vld [vmem:[%s1873 + $0x188] sm:$0xff]
        %v6408 = vld [vmem:[%s1873 + $0x190] sm:$0xff]
        %v6409 = vld [vmem:[%s1873 + $0x198] sm:$0xff]
        %v6410 = vld [vmem:[%s1873 + $0x1a0] sm:$0xff]
        %v6411 = vld [vmem:[%s1873 + $0x1a8] sm:$0xff]
        %v6412 = vld [vmem:[%s1873 + $0x1b0] sm:$0xff]
        %v6413 = vld [vmem:[%s1873 + $0x1b8] sm:$0xff]
        %v6414 = vld [vmem:[%s1873 + $0x1c0] sm:$0xff]
        %v6415 = vld [vmem:[%s1873 + $0x1c8] sm:$0xff]
        %v6416 = vld [vmem:[%s1873 + $0x1d0] sm:$0xff]
        %v6417 = vld [vmem:[%s1873 + $0x1d8] sm:$0xff]
        %v6418 = vld [vmem:[%s1873 + $0x1e0] sm:$0xff]
        %v6419 = vld [vmem:[%s1873 + $0x1e8] sm:$0xff]
        %v6420 = vld [vmem:[%s1873 + $0x1f0] sm:$0xff]
        %v6421 = vld [vmem:[%s1873 + $0x1f8] sm:$0xff]
        %v6426 = vunpack.c.l.b16 %v6354
        %v6427 = vunpack.c.h.b16 %v6354
        %v6428 = vunpack.c.l.b16 %v6355
        %v6429 = vunpack.c.h.b16 %v6355
        %v6430 = vunpack.c.l.b16 %v6356
        %v6431 = vunpack.c.h.b16 %v6356
        %v6432 = vunpack.c.l.b16 %v6357
        %v6433 = vunpack.c.h.b16 %v6357
        %v6434 = vpack.c.b16 %v6430, %v6426
        %v6435 = vpack.c.b16 %v6431, %v6427
        %v6436 = vpack.c.b16 %v6432, %v6428
        %v6437 = vpack.c.b16 %v6433, %v6429
        %v6438 = vrot.slane %v6434, 2
        %v6439 = vrot.slane %v6435, 2
        %v6440 = vrot.slane %v6436, 2
        %v6441 = vrot.slane %v6437, 2
        %v6510 = vunpack.c.l.b16 %v6358
        %v6511 = vunpack.c.h.b16 %v6358
        %v6512 = vunpack.c.l.b16 %v6359
        %v6513 = vunpack.c.h.b16 %v6359
        %v6514 = vunpack.c.l.b16 %v6360
        %v6515 = vunpack.c.h.b16 %v6360
        %v6516 = vunpack.c.l.b16 %v6361
        %v6517 = vunpack.c.h.b16 %v6361
        %v6518 = vunpack.c.l.b16 %v6362
        %v6519 = vunpack.c.h.b16 %v6362
        %v6520 = vunpack.c.l.b16 %v6363
        %v6521 = vunpack.c.h.b16 %v6363
        %v6522 = vunpack.c.l.b16 %v6364
        %v6523 = vunpack.c.h.b16 %v6364
        %v6524 = vunpack.c.l.b16 %v6365
        %v6525 = vunpack.c.h.b16 %v6365
        %v6526 = vunpack.c.l.b16 %v6366
        %v6527 = vunpack.c.h.b16 %v6366
        %v6528 = vunpack.c.l.b16 %v6367
        %v6529 = vunpack.c.h.b16 %v6367
        %v6530 = vunpack.c.l.b16 %v6368
        %v6531 = vunpack.c.h.b16 %v6368
        %v6532 = vunpack.c.l.b16 %v6369
        %v6533 = vunpack.c.h.b16 %v6369
        %v6534 = vunpack.c.l.b16 %v6370
        %v6535 = vunpack.c.h.b16 %v6370
        %v6536 = vunpack.c.l.b16 %v6371
        %v6537 = vunpack.c.h.b16 %v6371
        %v6538 = vunpack.c.l.b16 %v6372
        %v6539 = vunpack.c.h.b16 %v6372
        %v6540 = vunpack.c.l.b16 %v6373
        %v6541 = vunpack.c.h.b16 %v6373
        %v6542 = vunpack.c.l.b16 %v6374
        %v6543 = vunpack.c.h.b16 %v6374
        %v6544 = vunpack.c.l.b16 %v6375
        %v6545 = vunpack.c.h.b16 %v6375
        %v6546 = vunpack.c.l.b16 %v6376
        %v6547 = vunpack.c.h.b16 %v6376
        %v6548 = vunpack.c.l.b16 %v6377
        %v6549 = vunpack.c.h.b16 %v6377
        %v6550 = vunpack.c.l.b16 %v6378
        %v6551 = vunpack.c.h.b16 %v6378
        %v6552 = vunpack.c.l.b16 %v6379
        %v6553 = vunpack.c.h.b16 %v6379
        %v6554 = vunpack.c.l.b16 %v6380
        %v6555 = vunpack.c.h.b16 %v6380
        %v6556 = vunpack.c.l.b16 %v6381
        %v6557 = vunpack.c.h.b16 %v6381
        %v6558 = vunpack.c.l.b16 %v6382
        %v6559 = vunpack.c.h.b16 %v6382
        %v6560 = vunpack.c.l.b16 %v6383
        %v6561 = vunpack.c.h.b16 %v6383
        %v6562 = vunpack.c.l.b16 %v6384
        %v6563 = vunpack.c.h.b16 %v6384
        %v6564 = vunpack.c.l.b16 %v6385
        %v6565 = vunpack.c.h.b16 %v6385
        %v6566 = vunpack.c.l.b16 %v6386
        %v6567 = vunpack.c.h.b16 %v6386
        %v6568 = vunpack.c.l.b16 %v6387
        %v6569 = vunpack.c.h.b16 %v6387
        %v6570 = vunpack.c.l.b16 %v6388
        %v6571 = vunpack.c.h.b16 %v6388
        %v6572 = vunpack.c.l.b16 %v6389
        %v6573 = vunpack.c.h.b16 %v6389
        %v6574 = vunpack.c.l.b16 %v6390
        %v6575 = vunpack.c.h.b16 %v6390
        %v6576 = vunpack.c.l.b16 %v6391
        %v6577 = vunpack.c.h.b16 %v6391
        %v6578 = vunpack.c.l.b16 %v6392
        %v6579 = vunpack.c.h.b16 %v6392
        %v6580 = vunpack.c.l.b16 %v6393
        %v6581 = vunpack.c.h.b16 %v6393
        %v6582 = vunpack.c.l.b16 %v6394
        %v6583 = vunpack.c.h.b16 %v6394
        %v6584 = vunpack.c.l.b16 %v6395
        %v6585 = vunpack.c.h.b16 %v6395
        %v6586 = vunpack.c.l.b16 %v6396
        %v6587 = vunpack.c.h.b16 %v6396
        %v6588 = vunpack.c.l.b16 %v6397
        %v6589 = vunpack.c.h.b16 %v6397
        %v6590 = vunpack.c.l.b16 %v6398
        %v6591 = vunpack.c.h.b16 %v6398
        %v6592 = vunpack.c.l.b16 %v6399
        %v6593 = vunpack.c.h.b16 %v6399
        %v6594 = vunpack.c.l.b16 %v6400
        %v6595 = vunpack.c.h.b16 %v6400
        %v6596 = vunpack.c.l.b16 %v6401
        %v6597 = vunpack.c.h.b16 %v6401
        %v6598 = vunpack.c.l.b16 %v6402
        %v6599 = vunpack.c.h.b16 %v6402
        %v6600 = vunpack.c.l.b16 %v6403
        %v6601 = vunpack.c.h.b16 %v6403
        %v6602 = vunpack.c.l.b16 %v6404
        %v6603 = vunpack.c.h.b16 %v6404
        %v6604 = vunpack.c.l.b16 %v6405
        %v6605 = vunpack.c.h.b16 %v6405
        %v6606 = vunpack.c.l.b16 %v6406
        %v6607 = vunpack.c.h.b16 %v6406
        %v6608 = vunpack.c.l.b16 %v6407
        %v6609 = vunpack.c.h.b16 %v6407
        %v6610 = vunpack.c.l.b16 %v6408
        %v6611 = vunpack.c.h.b16 %v6408
        %v6612 = vunpack.c.l.b16 %v6409
        %v6613 = vunpack.c.h.b16 %v6409
        %v6614 = vunpack.c.l.b16 %v6410
        %v6615 = vunpack.c.h.b16 %v6410
        %v6616 = vunpack.c.l.b16 %v6411
        %v6617 = vunpack.c.h.b16 %v6411
        %v6618 = vunpack.c.l.b16 %v6412
        %v6619 = vunpack.c.h.b16 %v6412
        %v6620 = vunpack.c.l.b16 %v6413
        %v6621 = vunpack.c.h.b16 %v6413
        %v6622 = vunpack.c.l.b16 %v6414
        %v6623 = vunpack.c.h.b16 %v6414
        %v6624 = vunpack.c.l.b16 %v6415
        %v6625 = vunpack.c.h.b16 %v6415
        %v6626 = vunpack.c.l.b16 %v6416
        %v6627 = vunpack.c.h.b16 %v6416
        %v6628 = vunpack.c.l.b16 %v6417
        %v6629 = vunpack.c.h.b16 %v6417
        %v6630 = vunpack.c.l.b16 %v6418
        %v6631 = vunpack.c.h.b16 %v6418
        %v6632 = vunpack.c.l.b16 %v6419
        %v6633 = vunpack.c.h.b16 %v6419
        %v6634 = vunpack.c.l.b16 %v6420
        %v6635 = vunpack.c.h.b16 %v6420
        %v6636 = vunpack.c.l.b16 %v6421
        %v6637 = vunpack.c.h.b16 %v6421
        %v6638 = vpack.c.b16 %v6512, %v6510
        %v6639 = vpack.c.b16 %v6513, %v6511
        %v6640 = vpack.c.b16 %v6516, %v6514
        %v6641 = vpack.c.b16 %v6517, %v6515
        %v6642 = vpack.c.b16 %v6520, %v6518
        %v6643 = vpack.c.b16 %v6521, %v6519
        %v6644 = vpack.c.b16 %v6524, %v6522
        %v6645 = vpack.c.b16 %v6525, %v6523
        %v6646 = vpack.c.b16 %v6528, %v6526
        %v6647 = vpack.c.b16 %v6529, %v6527
        %v6648 = vpack.c.b16 %v6532, %v6530
        %v6649 = vpack.c.b16 %v6533, %v6531
        %v6650 = vpack.c.b16 %v6536, %v6534
        %v6651 = vpack.c.b16 %v6537, %v6535
        %v6652 = vpack.c.b16 %v6540, %v6538
        %v6653 = vpack.c.b16 %v6541, %v6539
        %v6654 = vpack.c.b16 %v6544, %v6542
        %v6655 = vpack.c.b16 %v6545, %v6543
        %v6656 = vpack.c.b16 %v6548, %v6546
        %v6657 = vpack.c.b16 %v6549, %v6547
        %v6658 = vpack.c.b16 %v6552, %v6550
        %v6659 = vpack.c.b16 %v6553, %v6551
        %v6660 = vpack.c.b16 %v6556, %v6554
        %v6661 = vpack.c.b16 %v6557, %v6555
        %v6662 = vpack.c.b16 %v6560, %v6558
        %v6663 = vpack.c.b16 %v6561, %v6559
        %v6664 = vpack.c.b16 %v6564, %v6562
        %v6665 = vpack.c.b16 %v6565, %v6563
        %v6666 = vpack.c.b16 %v6568, %v6566
        %v6667 = vpack.c.b16 %v6569, %v6567
        %v6668 = vpack.c.b16 %v6572, %v6570
        %v6669 = vpack.c.b16 %v6573, %v6571
        %v6670 = vpack.c.b16 %v6576, %v6574
        %v6671 = vpack.c.b16 %v6577, %v6575
        %v6672 = vpack.c.b16 %v6580, %v6578
        %v6673 = vpack.c.b16 %v6581, %v6579
        %v6674 = vpack.c.b16 %v6584, %v6582
        %v6675 = vpack.c.b16 %v6585, %v6583
        %v6676 = vpack.c.b16 %v6588, %v6586
        %v6677 = vpack.c.b16 %v6589, %v6587
        %v6678 = vpack.c.b16 %v6592, %v6590
        %v6679 = vpack.c.b16 %v6593, %v6591
        %v6680 = vpack.c.b16 %v6596, %v6594
        %v6681 = vpack.c.b16 %v6597, %v6595
        %v6682 = vpack.c.b16 %v6600, %v6598
        %v6683 = vpack.c.b16 %v6601, %v6599
        %v6684 = vpack.c.b16 %v6604, %v6602
        %v6685 = vpack.c.b16 %v6605, %v6603
        %v6686 = vpack.c.b16 %v6608, %v6606
        %v6687 = vpack.c.b16 %v6609, %v6607
        %v6688 = vpack.c.b16 %v6612, %v6610
        %v6689 = vpack.c.b16 %v6613, %v6611
        %v6690 = vpack.c.b16 %v6616, %v6614
        %v6691 = vpack.c.b16 %v6617, %v6615
        %v6692 = vpack.c.b16 %v6620, %v6618
        %v6693 = vpack.c.b16 %v6621, %v6619
        %v6694 = vpack.c.b16 %v6624, %v6622
        %v6695 = vpack.c.b16 %v6625, %v6623
        %v6696 = vpack.c.b16 %v6628, %v6626
        %v6697 = vpack.c.b16 %v6629, %v6627
        %v6698 = vpack.c.b16 %v6632, %v6630
        %v6699 = vpack.c.b16 %v6633, %v6631
        %v6700 = vpack.c.b16 %v6636, %v6634
        %v6701 = vpack.c.b16 %v6637, %v6635
        %6766 = vmatprep.subr.bf16.mxu0 %v6639
        %6767 = vmatpush1.bf16.msra.mxu0 %v6638
        %6768 = vmatprep.subr.bf16.mxu0 %v6641
        %6769 = vmatpush1.bf16.msra.mxu0 %v6640
        %6770 = vmatprep.subr.bf16.mxu0 %v6643
        %6771 = vmatpush1.bf16.msra.mxu0 %v6642
        %6772 = vmatprep.subr.bf16.mxu0 %v6645
        %6773 = vmatpush1.bf16.msra.mxu0 %v6644
        %6774 = vmatprep.subr.bf16.mxu0 %v6647
        %6775 = vmatpush1.bf16.msra.mxu0 %v6646
        %6776 = vmatprep.subr.bf16.mxu0 %v6649
        %6777 = vmatpush1.bf16.msra.mxu0 %v6648
        %6778 = vmatprep.subr.bf16.mxu0 %v6651
        %6779 = vmatpush1.bf16.msra.mxu0 %v6650
        %6780 = vmatprep.subr.bf16.mxu0 %v6653
        %6781 = vmatpush1.bf16.msra.mxu0 %v6652
        %6782 = vmatprep.subr.bf16.mxu0 %v6655
        %6783 = vmatpush1.bf16.msra.mxu0 %v6654
        %6784 = vmatprep.subr.bf16.mxu0 %v6657
        %6785 = vmatpush1.bf16.msra.mxu0 %v6656
        %6786 = vmatprep.subr.bf16.mxu0 %v6659
        %6787 = vmatpush1.bf16.msra.mxu0 %v6658
        %6788 = vmatprep.subr.bf16.mxu0 %v6661
        %6789 = vmatpush1.bf16.msra.mxu0 %v6660
        %6790 = vmatprep.subr.bf16.mxu0 %v6663
        %6791 = vmatpush1.bf16.msra.mxu0 %v6662
        %6792 = vmatprep.subr.bf16.mxu0 %v6665
        %6793 = vmatpush1.bf16.msra.mxu0 %v6664
        %6794 = vmatprep.subr.bf16.mxu0 %v6667
        %6795 = vmatpush1.bf16.msra.mxu0 %v6666
        %6796 = vmatprep.subr.bf16.mxu0 %v6669
        %6797 = vmatpush1.bf16.msra.mxu0 %v6668
        %6798 = vmatprep.mubr.bf16.mxu0 %v6439
        %6799 = vmatmul.mubr.bf16.gmra.mrb[0].mxu0 %v6438
        %v6800 = vpop.f32.mrb[0].mxu0
        %v6801 = vadd.f32 0.0, %v6800
        %v6802 = vpop.f32.mrb[0].mxu0
        %v6803 = vadd.f32 0.0, %v6802
        %v6804 = vpop.f32.mrb[0].mxu0
        %v6805 = vpop.f32.mrb[0].mxu0
        %6806 = vdwg.mxu0
        %6807 = vmatprep.subr.bf16.mxu0 %v6671
        %6808 = vmatpush1.bf16.msra.mxu0 %v6670
        %6809 = vmatprep.subr.bf16.mxu0 %v6673
        %6810 = vmatpush1.bf16.msra.mxu0 %v6672
        %6811 = vmatprep.subr.bf16.mxu0 %v6675
        %6812 = vmatpush1.bf16.msra.mxu0 %v6674
        %6813 = vmatprep.subr.bf16.mxu0 %v6677
        %6814 = vmatpush1.bf16.msra.mxu0 %v6676
        %6815 = vmatprep.subr.bf16.mxu0 %v6679
        %6816 = vmatpush1.bf16.msra.mxu0 %v6678
        %6817 = vmatprep.subr.bf16.mxu0 %v6681
        %6818 = vmatpush1.bf16.msra.mxu0 %v6680
        %6819 = vmatprep.subr.bf16.mxu0 %v6683
        %6820 = vmatpush1.bf16.msra.mxu0 %v6682
        %6821 = vmatprep.subr.bf16.mxu0 %v6685
        %6822 = vmatpush1.bf16.msra.mxu0 %v6684
        %6823 = vmatprep.subr.bf16.mxu0 %v6687
        %6824 = vmatpush1.bf16.msra.mxu0 %v6686
        %6825 = vmatprep.subr.bf16.mxu0 %v6689
        %6826 = vmatpush1.bf16.msra.mxu0 %v6688
        %6827 = vmatprep.subr.bf16.mxu0 %v6691
        %6828 = vmatpush1.bf16.msra.mxu0 %v6690
        %6829 = vmatprep.subr.bf16.mxu0 %v6693
        %6830 = vmatpush1.bf16.msra.mxu0 %v6692
        %6831 = vmatprep.subr.bf16.mxu0 %v6695
        %6832 = vmatpush1.bf16.msra.mxu0 %v6694
        %6833 = vmatprep.subr.bf16.mxu0 %v6697
        %6834 = vmatpush1.bf16.msra.mxu0 %v6696
        %6835 = vmatprep.subr.bf16.mxu0 %v6699
        %6836 = vmatpush1.bf16.msra.mxu0 %v6698
        %6837 = vmatprep.subr.bf16.mxu0 %v6701
        %6838 = vmatpush1.bf16.msra.mxu0 %v6700
        %6839 = vmatprep.mubr.bf16.mxu0 %v6441
        %6840 = vmatmul.mubr.bf16.gmra.mrb[0].mxu0 %v6440
        %v6841 = vpop.f32.mrb[0].mxu0
        %v6842 = vadd.f32 %v6801, %v6841
        %v6843 = vpop.f32.mrb[0].mxu0
        %v6844 = vadd.f32 %v6803, %v6843
        %v6845 = vpop.f32.mrb[0].mxu0
        %v6846 = vpop.f32.mrb[0].mxu0
        %6847 = vdwg.mxu0
        %v6848 = vadd.f32 %v6352, %v6842
        %v6849 = vadd.f32 %v6353, %v6844
        %v6850 = vld [vmem:[%s4873 + $0x10] sm:$0x77]
        %v6851 = vld [vmem:[%s4873 + $0x18] sm:$0x77]
        %v6852 = vld [vmem:[%s2368] sm:$0xff]
        %v6853 = vld [vmem:[%s2368 + $0x8] sm:$0xff]
        %v6854 = vld [vmem:[%s2368 + $0x10] sm:$0xff]
        %v6855 = vld [vmem:[%s2368 + $0x18] sm:$0xff]
        %v6856 = vld [vmem:[%s2368 + $0x20] sm:$0xff]
        %v6857 = vld [vmem:[%s2368 + $0x28] sm:$0xff]
        %v6858 = vld [vmem:[%s2368 + $0x30] sm:$0xff]
        %v6859 = vld [vmem:[%s2368 + $0x38] sm:$0xff]
        %v6860 = vld [vmem:[%s2368 + $0x40] sm:$0xff]
        %v6861 = vld [vmem:[%s2368 + $0x48] sm:$0xff]
        %v6862 = vld [vmem:[%s2368 + $0x50] sm:$0xff]
        %v6863 = vld [vmem:[%s2368 + $0x58] sm:$0xff]
        %v6864 = vld [vmem:[%s2368 + $0x60] sm:$0xff]
        %v6865 = vld [vmem:[%s2368 + $0x68] sm:$0xff]
        %v6866 = vld [vmem:[%s2368 + $0x70] sm:$0xff]
        %v6867 = vld [vmem:[%s2368 + $0x78] sm:$0xff]
        %v6868 = vld [vmem:[%s2368 + $0x80] sm:$0xff]
        %v6869 = vld [vmem:[%s2368 + $0x88] sm:$0xff]
        %v6870 = vld [vmem:[%s2368 + $0x90] sm:$0xff]
        %v6871 = vld [vmem:[%s2368 + $0x98] sm:$0xff]
        %v6872 = vld [vmem:[%s2368 + $0xa0] sm:$0xff]
        %v6873 = vld [vmem:[%s2368 + $0xa8] sm:$0xff]
        %v6874 = vld [vmem:[%s2368 + $0xb0] sm:$0xff]
        %v6875 = vld [vmem:[%s2368 + $0xb8] sm:$0xff]
        %v6876 = vld [vmem:[%s2368 + $0xc0] sm:$0xff]
        %v6877 = vld [vmem:[%s2368 + $0xc8] sm:$0xff]
        %v6878 = vld [vmem:[%s2368 + $0xd0] sm:$0xff]
        %v6879 = vld [vmem:[%s2368 + $0xd8] sm:$0xff]
        %v6880 = vld [vmem:[%s2368 + $0xe0] sm:$0xff]
        %v6881 = vld [vmem:[%s2368 + $0xe8] sm:$0xff]
        %v6882 = vld [vmem:[%s2368 + $0xf0] sm:$0xff]
        %v6883 = vld [vmem:[%s2368 + $0xf8] sm:$0xff]
        %v6884 = vld [vmem:[%s2368 + $0x100] sm:$0xff]
        %v6885 = vld [vmem:[%s2368 + $0x108] sm:$0xff]
        %v6886 = vld [vmem:[%s2368 + $0x110] sm:$0xff]
        %v6887 = vld [vmem:[%s2368 + $0x118] sm:$0xff]
        %v6888 = vld [vmem:[%s2368 + $0x120] sm:$0xff]
        %v6889 = vld [vmem:[%s2368 + $0x128] sm:$0xff]
        %v6890 = vld [vmem:[%s2368 + $0x130] sm:$0xff]
        %v6891 = vld [vmem:[%s2368 + $0x138] sm:$0xff]
        %v6892 = vld [vmem:[%s2368 + $0x140] sm:$0xff]
        %v6893 = vld [vmem:[%s2368 + $0x148] sm:$0xff]
        %v6894 = vld [vmem:[%s2368 + $0x150] sm:$0xff]
        %v6895 = vld [vmem:[%s2368 + $0x158] sm:$0xff]
        %v6896 = vld [vmem:[%s2368 + $0x160] sm:$0xff]
        %v6897 = vld [vmem:[%s2368 + $0x168] sm:$0xff]
        %v6898 = vld [vmem:[%s2368 + $0x170] sm:$0xff]
        %v6899 = vld [vmem:[%s2368 + $0x178] sm:$0xff]
        %v6900 = vld [vmem:[%s2368 + $0x180] sm:$0xff]
        %v6901 = vld [vmem:[%s2368 + $0x188] sm:$0xff]
        %v6902 = vld [vmem:[%s2368 + $0x190] sm:$0xff]
        %v6903 = vld [vmem:[%s2368 + $0x198] sm:$0xff]
        %v6904 = vld [vmem:[%s2368 + $0x1a0] sm:$0xff]
        %v6905 = vld [vmem:[%s2368 + $0x1a8] sm:$0xff]
        %v6906 = vld [vmem:[%s2368 + $0x1b0] sm:$0xff]
        %v6907 = vld [vmem:[%s2368 + $0x1b8] sm:$0xff]
        %v6908 = vld [vmem:[%s2368 + $0x1c0] sm:$0xff]
        %v6909 = vld [vmem:[%s2368 + $0x1c8] sm:$0xff]
        %v6910 = vld [vmem:[%s2368 + $0x1d0] sm:$0xff]
        %v6911 = vld [vmem:[%s2368 + $0x1d8] sm:$0xff]
        %v6912 = vld [vmem:[%s2368 + $0x1e0] sm:$0xff]
        %v6913 = vld [vmem:[%s2368 + $0x1e8] sm:$0xff]
        %v6914 = vld [vmem:[%s2368 + $0x1f0] sm:$0xff]
        %v6915 = vld [vmem:[%s2368 + $0x1f8] sm:$0xff]
        %v6918 = vunpack.c.l.b16 %v6850
        %v6919 = vunpack.c.h.b16 %v6850
        %v6920 = vunpack.c.l.b16 %v6851
        %v6921 = vunpack.c.h.b16 %v6851
        %v6922 = vpack.c.b16 %v6918, %v6426
        %v6923 = vpack.c.b16 %v6919, %v6427
        %v6924 = vpack.c.b16 %v6920, %v6428
        %v6925 = vpack.c.b16 %v6921, %v6429
        %v6927 = vshrl.u32 %v6922, 16
        %v6929 = vrot.slane %v6927, 2
        %v6930 = vshll.u32 %v6922, 16
        %v6932 = vrot.slane %v6930, 3
        %v6933 = vor.u32 %v6929, %v6932
        %v6935 = vshrl.u32 %v6923, 16
        %v6937 = vrot.slane %v6935, 2
        %v6938 = vshll.u32 %v6923, 16
        %v6940 = vrot.slane %v6938, 3
        %v6941 = vor.u32 %v6937, %v6940
        %v6943 = vshrl.u32 %v6924, 16
        %v6945 = vrot.slane %v6943, 2
        %v6946 = vshll.u32 %v6924, 16
        %v6948 = vrot.slane %v6946, 3
        %v6949 = vor.u32 %v6945, %v6948
        %v6951 = vshrl.u32 %v6925, 16
        %v6953 = vrot.slane %v6951, 2
        %v6954 = vshll.u32 %v6925, 16
        %v6956 = vrot.slane %v6954, 3
        %v6957 = vor.u32 %v6953, %v6956
        %v7026 = vunpack.c.l.b16 %v6852
        %v7027 = vunpack.c.h.b16 %v6852
        %v7028 = vunpack.c.l.b16 %v6853
        %v7029 = vunpack.c.h.b16 %v6853
        %v7030 = vunpack.c.l.b16 %v6854
        %v7031 = vunpack.c.h.b16 %v6854
        %v7032 = vunpack.c.l.b16 %v6855
        %v7033 = vunpack.c.h.b16 %v6855
        %v7034 = vunpack.c.l.b16 %v6856
        %v7035 = vunpack.c.h.b16 %v6856
        %v7036 = vunpack.c.l.b16 %v6857
        %v7037 = vunpack.c.h.b16 %v6857
        %v7038 = vunpack.c.l.b16 %v6858
        %v7039 = vunpack.c.h.b16 %v6858
        %v7040 = vunpack.c.l.b16 %v6859
        %v7041 = vunpack.c.h.b16 %v6859
        %v7042 = vunpack.c.l.b16 %v6860
        %v7043 = vunpack.c.h.b16 %v6860
        %v7044 = vunpack.c.l.b16 %v6861
        %v7045 = vunpack.c.h.b16 %v6861
        %v7046 = vunpack.c.l.b16 %v6862
        %v7047 = vunpack.c.h.b16 %v6862
        %v7048 = vunpack.c.l.b16 %v6863
        %v7049 = vunpack.c.h.b16 %v6863
        %v7050 = vunpack.c.l.b16 %v6864
        %v7051 = vunpack.c.h.b16 %v6864
        %v7052 = vunpack.c.l.b16 %v6865
        %v7053 = vunpack.c.h.b16 %v6865
        %v7054 = vunpack.c.l.b16 %v6866
        %v7055 = vunpack.c.h.b16 %v6866
        %v7056 = vunpack.c.l.b16 %v6867
        %v7057 = vunpack.c.h.b16 %v6867
        %v7058 = vunpack.c.l.b16 %v6868
        %v7059 = vunpack.c.h.b16 %v6868
        %v7060 = vunpack.c.l.b16 %v6869
        %v7061 = vunpack.c.h.b16 %v6869
        %v7062 = vunpack.c.l.b16 %v6870
        %v7063 = vunpack.c.h.b16 %v6870
        %v7064 = vunpack.c.l.b16 %v6871
        %v7065 = vunpack.c.h.b16 %v6871
        %v7066 = vunpack.c.l.b16 %v6872
        %v7067 = vunpack.c.h.b16 %v6872
        %v7068 = vunpack.c.l.b16 %v6873
        %v7069 = vunpack.c.h.b16 %v6873
        %v7070 = vunpack.c.l.b16 %v6874
        %v7071 = vunpack.c.h.b16 %v6874
        %v7072 = vunpack.c.l.b16 %v6875
        %v7073 = vunpack.c.h.b16 %v6875
        %v7074 = vunpack.c.l.b16 %v6876
        %v7075 = vunpack.c.h.b16 %v6876
        %v7076 = vunpack.c.l.b16 %v6877
        %v7077 = vunpack.c.h.b16 %v6877
        %v7078 = vunpack.c.l.b16 %v6878
        %v7079 = vunpack.c.h.b16 %v6878
        %v7080 = vunpack.c.l.b16 %v6879
        %v7081 = vunpack.c.h.b16 %v6879
        %v7082 = vunpack.c.l.b16 %v6880
        %v7083 = vunpack.c.h.b16 %v6880
        %v7084 = vunpack.c.l.b16 %v6881
        %v7085 = vunpack.c.h.b16 %v6881
        %v7086 = vunpack.c.l.b16 %v6882
        %v7087 = vunpack.c.h.b16 %v6882
        %v7088 = vunpack.c.l.b16 %v6883
        %v7089 = vunpack.c.h.b16 %v6883
        %v7090 = vunpack.c.l.b16 %v6884
        %v7091 = vunpack.c.h.b16 %v6884
        %v7092 = vunpack.c.l.b16 %v6885
        %v7093 = vunpack.c.h.b16 %v6885
        %v7094 = vunpack.c.l.b16 %v6886
        %v7095 = vunpack.c.h.b16 %v6886
        %v7096 = vunpack.c.l.b16 %v6887
        %v7097 = vunpack.c.h.b16 %v6887
        %v7098 = vunpack.c.l.b16 %v6888
        %v7099 = vunpack.c.h.b16 %v6888
        %v7100 = vunpack.c.l.b16 %v6889
        %v7101 = vunpack.c.h.b16 %v6889
        %v7102 = vunpack.c.l.b16 %v6890
        %v7103 = vunpack.c.h.b16 %v6890
        %v7104 = vunpack.c.l.b16 %v6891
        %v7105 = vunpack.c.h.b16 %v6891
        %v7106 = vunpack.c.l.b16 %v6892
        %v7107 = vunpack.c.h.b16 %v6892
        %v7108 = vunpack.c.l.b16 %v6893
        %v7109 = vunpack.c.h.b16 %v6893
        %v7110 = vunpack.c.l.b16 %v6894
        %v7111 = vunpack.c.h.b16 %v6894
        %v7112 = vunpack.c.l.b16 %v6895
        %v7113 = vunpack.c.h.b16 %v6895
        %v7114 = vunpack.c.l.b16 %v6896
        %v7115 = vunpack.c.h.b16 %v6896
        %v7116 = vunpack.c.l.b16 %v6897
        %v7117 = vunpack.c.h.b16 %v6897
        %v7118 = vunpack.c.l.b16 %v6898
        %v7119 = vunpack.c.h.b16 %v6898
        %v7120 = vunpack.c.l.b16 %v6899
        %v7121 = vunpack.c.h.b16 %v6899
        %v7122 = vunpack.c.l.b16 %v6900
        %v7123 = vunpack.c.h.b16 %v6900
        %v7124 = vunpack.c.l.b16 %v6901
        %v7125 = vunpack.c.h.b16 %v6901
        %v7126 = vunpack.c.l.b16 %v6902
        %v7127 = vunpack.c.h.b16 %v6902
        %v7128 = vunpack.c.l.b16 %v6903
        %v7129 = vunpack.c.h.b16 %v6903
        %v7130 = vunpack.c.l.b16 %v6904
        %v7131 = vunpack.c.h.b16 %v6904
        %v7132 = vunpack.c.l.b16 %v6905
        %v7133 = vunpack.c.h.b16 %v6905
        %v7134 = vunpack.c.l.b16 %v6906
        %v7135 = vunpack.c.h.b16 %v6906
        %v7136 = vunpack.c.l.b16 %v6907
        %v7137 = vunpack.c.h.b16 %v6907
        %v7138 = vunpack.c.l.b16 %v6908
        %v7139 = vunpack.c.h.b16 %v6908
        %v7140 = vunpack.c.l.b16 %v6909
        %v7141 = vunpack.c.h.b16 %v6909
        %v7142 = vunpack.c.l.b16 %v6910
        %v7143 = vunpack.c.h.b16 %v6910
        %v7144 = vunpack.c.l.b16 %v6911
        %v7145 = vunpack.c.h.b16 %v6911
        %v7146 = vunpack.c.l.b16 %v6912
        %v7147 = vunpack.c.h.b16 %v6912
        %v7148 = vunpack.c.l.b16 %v6913
        %v7149 = vunpack.c.h.b16 %v6913
        %v7150 = vunpack.c.l.b16 %v6914
        %v7151 = vunpack.c.h.b16 %v6914
        %v7152 = vunpack.c.l.b16 %v6915
        %v7153 = vunpack.c.h.b16 %v6915
        %v7154 = vpack.c.b16 %v7028, %v7026
        %v7155 = vpack.c.b16 %v7029, %v7027
        %v7156 = vpack.c.b16 %v7032, %v7030
        %v7157 = vpack.c.b16 %v7033, %v7031
        %v7158 = vpack.c.b16 %v7036, %v7034
        %v7159 = vpack.c.b16 %v7037, %v7035
        %v7160 = vpack.c.b16 %v7040, %v7038
        %v7161 = vpack.c.b16 %v7041, %v7039
        %v7162 = vpack.c.b16 %v7044, %v7042
        %v7163 = vpack.c.b16 %v7045, %v7043
        %v7164 = vpack.c.b16 %v7048, %v7046
        %v7165 = vpack.c.b16 %v7049, %v7047
        %v7166 = vpack.c.b16 %v7052, %v7050
        %v7167 = vpack.c.b16 %v7053, %v7051
        %v7168 = vpack.c.b16 %v7056, %v7054
        %v7169 = vpack.c.b16 %v7057, %v7055
        %v7170 = vpack.c.b16 %v7060, %v7058
        %v7171 = vpack.c.b16 %v7061, %v7059
        %v7172 = vpack.c.b16 %v7064, %v7062
        %v7173 = vpack.c.b16 %v7065, %v7063
        %v7174 = vpack.c.b16 %v7068, %v7066
        %v7175 = vpack.c.b16 %v7069, %v7067
        %v7176 = vpack.c.b16 %v7072, %v7070
        %v7177 = vpack.c.b16 %v7073, %v7071
        %v7178 = vpack.c.b16 %v7076, %v7074
        %v7179 = vpack.c.b16 %v7077, %v7075
        %v7180 = vpack.c.b16 %v7080, %v7078
        %v7181 = vpack.c.b16 %v7081, %v7079
        %v7182 = vpack.c.b16 %v7084, %v7082
        %v7183 = vpack.c.b16 %v7085, %v7083
        %v7184 = vpack.c.b16 %v7088, %v7086
        %v7185 = vpack.c.b16 %v7089, %v7087
        %v7186 = vpack.c.b16 %v7092, %v7090
        %v7187 = vpack.c.b16 %v7093, %v7091
        %v7188 = vpack.c.b16 %v7096, %v7094
        %v7189 = vpack.c.b16 %v7097, %v7095
        %v7190 = vpack.c.b16 %v7100, %v7098
        %v7191 = vpack.c.b16 %v7101, %v7099
        %v7192 = vpack.c.b16 %v7104, %v7102
        %v7193 = vpack.c.b16 %v7105, %v7103
        %v7194 = vpack.c.b16 %v7108, %v7106
        %v7195 = vpack.c.b16 %v7109, %v7107
        %v7196 = vpack.c.b16 %v7112, %v7110
        %v7197 = vpack.c.b16 %v7113, %v7111
        %v7198 = vpack.c.b16 %v7116, %v7114
        %v7199 = vpack.c.b16 %v7117, %v7115
        %v7200 = vpack.c.b16 %v7120, %v7118
        %v7201 = vpack.c.b16 %v7121, %v7119
        %v7202 = vpack.c.b16 %v7124, %v7122
        %v7203 = vpack.c.b16 %v7125, %v7123
        %v7204 = vpack.c.b16 %v7128, %v7126
        %v7205 = vpack.c.b16 %v7129, %v7127
        %v7206 = vpack.c.b16 %v7132, %v7130
        %v7207 = vpack.c.b16 %v7133, %v7131
        %v7208 = vpack.c.b16 %v7136, %v7134
        %v7209 = vpack.c.b16 %v7137, %v7135
        %v7210 = vpack.c.b16 %v7140, %v7138
        %v7211 = vpack.c.b16 %v7141, %v7139
        %v7212 = vpack.c.b16 %v7144, %v7142
        %v7213 = vpack.c.b16 %v7145, %v7143
        %v7214 = vpack.c.b16 %v7148, %v7146
        %v7215 = vpack.c.b16 %v7149, %v7147
        %v7216 = vpack.c.b16 %v7152, %v7150
        %v7217 = vpack.c.b16 %v7153, %v7151
        %7282 = vmatprep.subr.bf16.mxu0 %v7155
        %7283 = vmatpush1.bf16.msra.mxu0 %v7154
        %7284 = vmatprep.subr.bf16.mxu0 %v7157
        %7285 = vmatpush1.bf16.msra.mxu0 %v7156
        %7286 = vmatprep.subr.bf16.mxu0 %v7159
        %7287 = vmatpush1.bf16.msra.mxu0 %v7158
        %7288 = vmatprep.subr.bf16.mxu0 %v7161
        %7289 = vmatpush1.bf16.msra.mxu0 %v7160
        %7290 = vmatprep.subr.bf16.mxu0 %v7163
        %7291 = vmatpush1.bf16.msra.mxu0 %v7162
        %7292 = vmatprep.subr.bf16.mxu0 %v7165
        %7293 = vmatpush1.bf16.msra.mxu0 %v7164
        %7294 = vmatprep.subr.bf16.mxu0 %v7167
        %7295 = vmatpush1.bf16.msra.mxu0 %v7166
        %7296 = vmatprep.subr.bf16.mxu0 %v7169
        %7297 = vmatpush1.bf16.msra.mxu0 %v7168
        %7298 = vmatprep.subr.bf16.mxu0 %v7171
        %7299 = vmatpush1.bf16.msra.mxu0 %v7170
        %7300 = vmatprep.subr.bf16.mxu0 %v7173
        %7301 = vmatpush1.bf16.msra.mxu0 %v7172
        %7302 = vmatprep.subr.bf16.mxu0 %v7175
        %7303 = vmatpush1.bf16.msra.mxu0 %v7174
        %7304 = vmatprep.subr.bf16.mxu0 %v7177
        %7305 = vmatpush1.bf16.msra.mxu0 %v7176
        %7306 = vmatprep.subr.bf16.mxu0 %v7179
        %7307 = vmatpush1.bf16.msra.mxu0 %v7178
        %7308 = vmatprep.subr.bf16.mxu0 %v7181
        %7309 = vmatpush1.bf16.msra.mxu0 %v7180
        %7310 = vmatprep.subr.bf16.mxu0 %v7183
        %7311 = vmatpush1.bf16.msra.mxu0 %v7182
        %7312 = vmatprep.subr.bf16.mxu0 %v7185
        %7313 = vmatpush1.bf16.msra.mxu0 %v7184
        %7314 = vmatprep.mubr.bf16.mxu0 %v6941
        %7315 = vmatmul.mubr.bf16.gmra.mrb[0].mxu0 %v6933
        %v7316 = vpop.f32.mrb[0].mxu0
        %v7317 = vadd.f32 0.0, %v7316
        %v7318 = vpop.f32.mrb[0].mxu0
        %v7319 = vadd.f32 0.0, %v7318
        %v7320 = vpop.f32.mrb[0].mxu0
        %v7321 = vpop.f32.mrb[0].mxu0
        %7322 = vdwg.mxu0
        %7323 = vmatprep.subr.bf16.mxu0 %v7187
        %7324 = vmatpush1.bf16.msra.mxu0 %v7186
        %7325 = vmatprep.subr.bf16.mxu0 %v7189
        %7326 = vmatpush1.bf16.msra.mxu0 %v7188
        %7327 = vmatprep.subr.bf16.mxu0 %v7191
        %7328 = vmatpush1.bf16.msra.mxu0 %v7190
        %7329 = vmatprep.subr.bf16.mxu0 %v7193
        %7330 = vmatpush1.bf16.msra.mxu0 %v7192
        %7331 = vmatprep.subr.bf16.mxu0 %v7195
        %7332 = vmatpush1.bf16.msra.mxu0 %v7194
        %7333 = vmatprep.subr.bf16.mxu0 %v7197
        %7334 = vmatpush1.bf16.msra.mxu0 %v7196
        %7335 = vmatprep.subr.bf16.mxu0 %v7199
        %7336 = vmatpush1.bf16.msra.mxu0 %v7198
        %7337 = vmatprep.subr.bf16.mxu0 %v7201
        %7338 = vmatpush1.bf16.msra.mxu0 %v7200
        %7339 = vmatprep.subr.bf16.mxu0 %v7203
        %7340 = vmatpush1.bf16.msra.mxu0 %v7202
        %7341 = vmatprep.subr.bf16.mxu0 %v7205
        %7342 = vmatpush1.bf16.msra.mxu0 %v7204
        %7343 = vmatprep.subr.bf16.mxu0 %v7207
        %7344 = vmatpush1.bf16.msra.mxu0 %v7206
        %7345 = vmatprep.subr.bf16.mxu0 %v7209
        %7346 = vmatpush1.bf16.msra.mxu0 %v7208
        %7347 = vmatprep.subr.bf16.mxu0 %v7211
        %7348 = vmatpush1.bf16.msra.mxu0 %v7210
        %7349 = vmatprep.subr.bf16.mxu0 %v7213
        %7350 = vmatpush1.bf16.msra.mxu0 %v7212
        %7351 = vmatprep.subr.bf16.mxu0 %v7215
        %7352 = vmatpush1.bf16.msra.mxu0 %v7214
        %7353 = vmatprep.subr.bf16.mxu0 %v7217
        %7354 = vmatpush1.bf16.msra.mxu0 %v7216
        %7355 = vmatprep.mubr.bf16.mxu0 %v6957
        %7356 = vmatmul.mubr.bf16.gmra.mrb[0].mxu0 %v6949
        %v7357 = vpop.f32.mrb[0].mxu0
        %v7358 = vadd.f32 %v7317, %v7357
        %v7359 = vpop.f32.mrb[0].mxu0
        %v7360 = vadd.f32 %v7319, %v7359
        %v7361 = vpop.f32.mrb[0].mxu0
        %v7362 = vpop.f32.mrb[0].mxu0
        %7363 = vdwg.mxu0
        %v7364 = vadd.f32 %v6848, %v7358
        %v7365 = vadd.f32 %v6849, %v7360
        %v7366 = vld [vmem:[%s4873] sm:$0x88]
        %v7367 = vld [vmem:[%s4873 + $0x8] sm:$0x88]
        %v7368 = vld [vmem:[%s2885] sm:$0xff]
        %v7369 = vld [vmem:[%s2885 + $0x8] sm:$0xff]
        %v7370 = vld [vmem:[%s2885 + $0x10] sm:$0xff]
        %v7371 = vld [vmem:[%s2885 + $0x18] sm:$0xff]
        %v7372 = vld [vmem:[%s2885 + $0x20] sm:$0xff]
        %v7373 = vld [vmem:[%s2885 + $0x28] sm:$0xff]
        %v7374 = vld [vmem:[%s2885 + $0x30] sm:$0xff]
        %v7375 = vld [vmem:[%s2885 + $0x38] sm:$0xff]
        %v7376 = vld [vmem:[%s2885 + $0x40] sm:$0xff]
        %v7377 = vld [vmem:[%s2885 + $0x48] sm:$0xff]
        %v7378 = vld [vmem:[%s2885 + $0x50] sm:$0xff]
        %v7379 = vld [vmem:[%s2885 + $0x58] sm:$0xff]
        %v7380 = vld [vmem:[%s2885 + $0x60] sm:$0xff]
        %v7381 = vld [vmem:[%s2885 + $0x68] sm:$0xff]
        %v7382 = vld [vmem:[%s2885 + $0x70] sm:$0xff]
        %v7383 = vld [vmem:[%s2885 + $0x78] sm:$0xff]
        %v7384 = vld [vmem:[%s2885 + $0x80] sm:$0xff]
        %v7385 = vld [vmem:[%s2885 + $0x88] sm:$0xff]
        %v7386 = vld [vmem:[%s2885 + $0x90] sm:$0xff]
        %v7387 = vld [vmem:[%s2885 + $0x98] sm:$0xff]
        %v7388 = vld [vmem:[%s2885 + $0xa0] sm:$0xff]
        %v7389 = vld [vmem:[%s2885 + $0xa8] sm:$0xff]
        %v7390 = vld [vmem:[%s2885 + $0xb0] sm:$0xff]
        %v7391 = vld [vmem:[%s2885 + $0xb8] sm:$0xff]
        %v7392 = vld [vmem:[%s2885 + $0xc0] sm:$0xff]
        %v7393 = vld [vmem:[%s2885 + $0xc8] sm:$0xff]
        %v7394 = vld [vmem:[%s2885 + $0xd0] sm:$0xff]
        %v7395 = vld [vmem:[%s2885 + $0xd8] sm:$0xff]
        %v7396 = vld [vmem:[%s2885 + $0xe0] sm:$0xff]
        %v7397 = vld [vmem:[%s2885 + $0xe8] sm:$0xff]
        %v7398 = vld [vmem:[%s2885 + $0xf0] sm:$0xff]
        %v7399 = vld [vmem:[%s2885 + $0xf8] sm:$0xff]
        %v7400 = vld [vmem:[%s2885 + $0x100] sm:$0xff]
        %v7401 = vld [vmem:[%s2885 + $0x108] sm:$0xff]
        %v7402 = vld [vmem:[%s2885 + $0x110] sm:$0xff]
        %v7403 = vld [vmem:[%s2885 + $0x118] sm:$0xff]
        %v7404 = vld [vmem:[%s2885 + $0x120] sm:$0xff]
        %v7405 = vld [vmem:[%s2885 + $0x128] sm:$0xff]
        %v7406 = vld [vmem:[%s2885 + $0x130] sm:$0xff]
        %v7407 = vld [vmem:[%s2885 + $0x138] sm:$0xff]
        %v7408 = vld [vmem:[%s2885 + $0x140] sm:$0xff]
        %v7409 = vld [vmem:[%s2885 + $0x148] sm:$0xff]
        %v7410 = vld [vmem:[%s2885 + $0x150] sm:$0xff]
        %v7411 = vld [vmem:[%s2885 + $0x158] sm:$0xff]
        %v7412 = vld [vmem:[%s2885 + $0x160] sm:$0xff]
        %v7413 = vld [vmem:[%s2885 + $0x168] sm:$0xff]
        %v7414 = vld [vmem:[%s2885 + $0x170] sm:$0xff]
        %v7415 = vld [vmem:[%s2885 + $0x178] sm:$0xff]
        %v7416 = vld [vmem:[%s2885 + $0x180] sm:$0xff]
        %v7417 = vld [vmem:[%s2885 + $0x188] sm:$0xff]
        %v7418 = vld [vmem:[%s2885 + $0x190] sm:$0xff]
        %v7419 = vld [vmem:[%s2885 + $0x198] sm:$0xff]
        %v7420 = vld [vmem:[%s2885 + $0x1a0] sm:$0xff]
        %v7421 = vld [vmem:[%s2885 + $0x1a8] sm:$0xff]
        %v7422 = vld [vmem:[%s2885 + $0x1b0] sm:$0xff]
        %v7423 = vld [vmem:[%s2885 + $0x1b8] sm:$0xff]
        %v7424 = vld [vmem:[%s2885 + $0x1c0] sm:$0xff]
        %v7425 = vld [vmem:[%s2885 + $0x1c8] sm:$0xff]
        %v7426 = vld [vmem:[%s2885 + $0x1d0] sm:$0xff]
        %v7427 = vld [vmem:[%s2885 + $0x1d8] sm:$0xff]
        %v7428 = vld [vmem:[%s2885 + $0x1e0] sm:$0xff]
        %v7429 = vld [vmem:[%s2885 + $0x1e8] sm:$0xff]
        %v7430 = vld [vmem:[%s2885 + $0x1f0] sm:$0xff]
        %v7431 = vld [vmem:[%s2885 + $0x1f8] sm:$0xff]
        %v7434 = vunpack.c.l.b16 %v7366
        %v7435 = vunpack.c.h.b16 %v7366
        %v7436 = vunpack.c.l.b16 %v7367
        %v7437 = vunpack.c.h.b16 %v7367
        %v7438 = vpack.c.b16 %v6918, %v7434
        %v7439 = vpack.c.b16 %v6919, %v7435
        %v7440 = vpack.c.b16 %v6920, %v7436
        %v7441 = vpack.c.b16 %v6921, %v7437
        %v7442 = vrot.slane %v7438, 3
        %v7443 = vrot.slane %v7439, 3
        %v7444 = vrot.slane %v7440, 3
        %v7445 = vrot.slane %v7441, 3
        %v7514 = vunpack.c.l.b16 %v7368
        %v7515 = vunpack.c.h.b16 %v7368
        %v7516 = vunpack.c.l.b16 %v7369
        %v7517 = vunpack.c.h.b16 %v7369
        %v7518 = vunpack.c.l.b16 %v7370
        %v7519 = vunpack.c.h.b16 %v7370
        %v7520 = vunpack.c.l.b16 %v7371
        %v7521 = vunpack.c.h.b16 %v7371
        %v7522 = vunpack.c.l.b16 %v7372
        %v7523 = vunpack.c.h.b16 %v7372
        %v7524 = vunpack.c.l.b16 %v7373
        %v7525 = vunpack.c.h.b16 %v7373
        %v7526 = vunpack.c.l.b16 %v7374
        %v7527 = vunpack.c.h.b16 %v7374
        %v7528 = vunpack.c.l.b16 %v7375
        %v7529 = vunpack.c.h.b16 %v7375
        %v7530 = vunpack.c.l.b16 %v7376
        %v7531 = vunpack.c.h.b16 %v7376
        %v7532 = vunpack.c.l.b16 %v7377
        %v7533 = vunpack.c.h.b16 %v7377
        %v7534 = vunpack.c.l.b16 %v7378
        %v7535 = vunpack.c.h.b16 %v7378
        %v7536 = vunpack.c.l.b16 %v7379
        %v7537 = vunpack.c.h.b16 %v7379
        %v7538 = vunpack.c.l.b16 %v7380
        %v7539 = vunpack.c.h.b16 %v7380
        %v7540 = vunpack.c.l.b16 %v7381
        %v7541 = vunpack.c.h.b16 %v7381
        %v7542 = vunpack.c.l.b16 %v7382
        %v7543 = vunpack.c.h.b16 %v7382
        %v7544 = vunpack.c.l.b16 %v7383
        %v7545 = vunpack.c.h.b16 %v7383
        %v7546 = vunpack.c.l.b16 %v7384
        %v7547 = vunpack.c.h.b16 %v7384
        %v7548 = vunpack.c.l.b16 %v7385
        %v7549 = vunpack.c.h.b16 %v7385
        %v7550 = vunpack.c.l.b16 %v7386
        %v7551 = vunpack.c.h.b16 %v7386
        %v7552 = vunpack.c.l.b16 %v7387
        %v7553 = vunpack.c.h.b16 %v7387
        %v7554 = vunpack.c.l.b16 %v7388
        %v7555 = vunpack.c.h.b16 %v7388
        %v7556 = vunpack.c.l.b16 %v7389
        %v7557 = vunpack.c.h.b16 %v7389
        %v7558 = vunpack.c.l.b16 %v7390
        %v7559 = vunpack.c.h.b16 %v7390
        %v7560 = vunpack.c.l.b16 %v7391
        %v7561 = vunpack.c.h.b16 %v7391
        %v7562 = vunpack.c.l.b16 %v7392
        %v7563 = vunpack.c.h.b16 %v7392
        %v7564 = vunpack.c.l.b16 %v7393
        %v7565 = vunpack.c.h.b16 %v7393
        %v7566 = vunpack.c.l.b16 %v7394
        %v7567 = vunpack.c.h.b16 %v7394
        %v7568 = vunpack.c.l.b16 %v7395
        %v7569 = vunpack.c.h.b16 %v7395
        %v7570 = vunpack.c.l.b16 %v7396
        %v7571 = vunpack.c.h.b16 %v7396
        %v7572 = vunpack.c.l.b16 %v7397
        %v7573 = vunpack.c.h.b16 %v7397
        %v7574 = vunpack.c.l.b16 %v7398
        %v7575 = vunpack.c.h.b16 %v7398
        %v7576 = vunpack.c.l.b16 %v7399
        %v7577 = vunpack.c.h.b16 %v7399
        %v7578 = vunpack.c.l.b16 %v7400
        %v7579 = vunpack.c.h.b16 %v7400
        %v7580 = vunpack.c.l.b16 %v7401
        %v7581 = vunpack.c.h.b16 %v7401
        %v7582 = vunpack.c.l.b16 %v7402
        %v7583 = vunpack.c.h.b16 %v7402
        %v7584 = vunpack.c.l.b16 %v7403
        %v7585 = vunpack.c.h.b16 %v7403
        %v7586 = vunpack.c.l.b16 %v7404
        %v7587 = vunpack.c.h.b16 %v7404
        %v7588 = vunpack.c.l.b16 %v7405
        %v7589 = vunpack.c.h.b16 %v7405
        %v7590 = vunpack.c.l.b16 %v7406
        %v7591 = vunpack.c.h.b16 %v7406
        %v7592 = vunpack.c.l.b16 %v7407
        %v7593 = vunpack.c.h.b16 %v7407
        %v7594 = vunpack.c.l.b16 %v7408
        %v7595 = vunpack.c.h.b16 %v7408
        %v7596 = vunpack.c.l.b16 %v7409
        %v7597 = vunpack.c.h.b16 %v7409
        %v7598 = vunpack.c.l.b16 %v7410
        %v7599 = vunpack.c.h.b16 %v7410
        %v7600 = vunpack.c.l.b16 %v7411
        %v7601 = vunpack.c.h.b16 %v7411
        %v7602 = vunpack.c.l.b16 %v7412
        %v7603 = vunpack.c.h.b16 %v7412
        %v7604 = vunpack.c.l.b16 %v7413
        %v7605 = vunpack.c.h.b16 %v7413
        %v7606 = vunpack.c.l.b16 %v7414
        %v7607 = vunpack.c.h.b16 %v7414
        %v7608 = vunpack.c.l.b16 %v7415
        %v7609 = vunpack.c.h.b16 %v7415
        %v7610 = vunpack.c.l.b16 %v7416
        %v7611 = vunpack.c.h.b16 %v7416
        %v7612 = vunpack.c.l.b16 %v7417
        %v7613 = vunpack.c.h.b16 %v7417
        %v7614 = vunpack.c.l.b16 %v7418
        %v7615 = vunpack.c.h.b16 %v7418
        %v7616 = vunpack.c.l.b16 %v7419
        %v7617 = vunpack.c.h.b16 %v7419
        %v7618 = vunpack.c.l.b16 %v7420
        %v7619 = vunpack.c.h.b16 %v7420
        %v7620 = vunpack.c.l.b16 %v7421
        %v7621 = vunpack.c.h.b16 %v7421
        %v7622 = vunpack.c.l.b16 %v7422
        %v7623 = vunpack.c.h.b16 %v7422
        %v7624 = vunpack.c.l.b16 %v7423
        %v7625 = vunpack.c.h.b16 %v7423
        %v7626 = vunpack.c.l.b16 %v7424
        %v7627 = vunpack.c.h.b16 %v7424
        %v7628 = vunpack.c.l.b16 %v7425
        %v7629 = vunpack.c.h.b16 %v7425
        %v7630 = vunpack.c.l.b16 %v7426
        %v7631 = vunpack.c.h.b16 %v7426
        %v7632 = vunpack.c.l.b16 %v7427
        %v7633 = vunpack.c.h.b16 %v7427
        %v7634 = vunpack.c.l.b16 %v7428
        %v7635 = vunpack.c.h.b16 %v7428
        %v7636 = vunpack.c.l.b16 %v7429
        %v7637 = vunpack.c.h.b16 %v7429
        %v7638 = vunpack.c.l.b16 %v7430
        %v7639 = vunpack.c.h.b16 %v7430
        %v7640 = vunpack.c.l.b16 %v7431
        %v7641 = vunpack.c.h.b16 %v7431
        %v7642 = vpack.c.b16 %v7516, %v7514
        %v7643 = vpack.c.b16 %v7517, %v7515
        %v7644 = vpack.c.b16 %v7520, %v7518
        %v7645 = vpack.c.b16 %v7521, %v7519
        %v7646 = vpack.c.b16 %v7524, %v7522
        %v7647 = vpack.c.b16 %v7525, %v7523
        %v7648 = vpack.c.b16 %v7528, %v7526
        %v7649 = vpack.c.b16 %v7529, %v7527
        %v7650 = vpack.c.b16 %v7532, %v7530
        %v7651 = vpack.c.b16 %v7533, %v7531
        %v7652 = vpack.c.b16 %v7536, %v7534
        %v7653 = vpack.c.b16 %v7537, %v7535
        %v7654 = vpack.c.b16 %v7540, %v7538
        %v7655 = vpack.c.b16 %v7541, %v7539
        %v7656 = vpack.c.b16 %v7544, %v7542
        %v7657 = vpack.c.b16 %v7545, %v7543
        %v7658 = vpack.c.b16 %v7548, %v7546
        %v7659 = vpack.c.b16 %v7549, %v7547
        %v7660 = vpack.c.b16 %v7552, %v7550
        %v7661 = vpack.c.b16 %v7553, %v7551
        %v7662 = vpack.c.b16 %v7556, %v7554
        %v7663 = vpack.c.b16 %v7557, %v7555
        %v7664 = vpack.c.b16 %v7560, %v7558
        %v7665 = vpack.c.b16 %v7561, %v7559
        %v7666 = vpack.c.b16 %v7564, %v7562
        %v7667 = vpack.c.b16 %v7565, %v7563
        %v7668 = vpack.c.b16 %v7568, %v7566
        %v7669 = vpack.c.b16 %v7569, %v7567
        %v7670 = vpack.c.b16 %v7572, %v7570
        %v7671 = vpack.c.b16 %v7573, %v7571
        %v7672 = vpack.c.b16 %v7576, %v7574
        %v7673 = vpack.c.b16 %v7577, %v7575
        %v7674 = vpack.c.b16 %v7580, %v7578
        %v7675 = vpack.c.b16 %v7581, %v7579
        %v7676 = vpack.c.b16 %v7584, %v7582
        %v7677 = vpack.c.b16 %v7585, %v7583
        %v7678 = vpack.c.b16 %v7588, %v7586
        %v7679 = vpack.c.b16 %v7589, %v7587
        %v7680 = vpack.c.b16 %v7592, %v7590
        %v7681 = vpack.c.b16 %v7593, %v7591
        %v7682 = vpack.c.b16 %v7596, %v7594
        %v7683 = vpack.c.b16 %v7597, %v7595
        %v7684 = vpack.c.b16 %v7600, %v7598
        %v7685 = vpack.c.b16 %v7601, %v7599
        %v7686 = vpack.c.b16 %v7604, %v7602
        %v7687 = vpack.c.b16 %v7605, %v7603
        %v7688 = vpack.c.b16 %v7608, %v7606
        %v7689 = vpack.c.b16 %v7609, %v7607
        %v7690 = vpack.c.b16 %v7612, %v7610
        %v7691 = vpack.c.b16 %v7613, %v7611
        %v7692 = vpack.c.b16 %v7616, %v7614
        %v7693 = vpack.c.b16 %v7617, %v7615
        %v7694 = vpack.c.b16 %v7620, %v7618
        %v7695 = vpack.c.b16 %v7621, %v7619
        %v7696 = vpack.c.b16 %v7624, %v7622
        %v7697 = vpack.c.b16 %v7625, %v7623
        %v7698 = vpack.c.b16 %v7628, %v7626
        %v7699 = vpack.c.b16 %v7629, %v7627
        %v7700 = vpack.c.b16 %v7632, %v7630
        %v7701 = vpack.c.b16 %v7633, %v7631
        %v7702 = vpack.c.b16 %v7636, %v7634
        %v7703 = vpack.c.b16 %v7637, %v7635
        %v7704 = vpack.c.b16 %v7640, %v7638
        %v7705 = vpack.c.b16 %v7641, %v7639
        %7770 = vmatprep.subr.bf16.mxu0 %v7643
        %7771 = vmatpush1.bf16.msra.mxu0 %v7642
        %7772 = vmatprep.subr.bf16.mxu0 %v7645
        %7773 = vmatpush1.bf16.msra.mxu0 %v7644
        %7774 = vmatprep.subr.bf16.mxu0 %v7647
        %7775 = vmatpush1.bf16.msra.mxu0 %v7646
        %7776 = vmatprep.subr.bf16.mxu0 %v7649
        %7777 = vmatpush1.bf16.msra.mxu0 %v7648
        %7778 = vmatprep.subr.bf16.mxu0 %v7651
        %7779 = vmatpush1.bf16.msra.mxu0 %v7650
        %7780 = vmatprep.subr.bf16.mxu0 %v7653
        %7781 = vmatpush1.bf16.msra.mxu0 %v7652
        %7782 = vmatprep.subr.bf16.mxu0 %v7655
        %7783 = vmatpush1.bf16.msra.mxu0 %v7654
        %7784 = vmatprep.subr.bf16.mxu0 %v7657
        %7785 = vmatpush1.bf16.msra.mxu0 %v7656
        %7786 = vmatprep.subr.bf16.mxu0 %v7659
        %7787 = vmatpush1.bf16.msra.mxu0 %v7658
        %7788 = vmatprep.subr.bf16.mxu0 %v7661
        %7789 = vmatpush1.bf16.msra.mxu0 %v7660
        %7790 = vmatprep.subr.bf16.mxu0 %v7663
        %7791 = vmatpush1.bf16.msra.mxu0 %v7662
        %7792 = vmatprep.subr.bf16.mxu0 %v7665
        %7793 = vmatpush1.bf16.msra.mxu0 %v7664
        %7794 = vmatprep.subr.bf16.mxu0 %v7667
        %7795 = vmatpush1.bf16.msra.mxu0 %v7666
        %7796 = vmatprep.subr.bf16.mxu0 %v7669
        %7797 = vmatpush1.bf16.msra.mxu0 %v7668
        %7798 = vmatprep.subr.bf16.mxu0 %v7671
        %7799 = vmatpush1.bf16.msra.mxu0 %v7670
        %7800 = vmatprep.subr.bf16.mxu0 %v7673
        %7801 = vmatpush1.bf16.msra.mxu0 %v7672
        %7802 = vmatprep.mubr.bf16.mxu0 %v7443
        %7803 = vmatmul.mubr.bf16.gmra.mrb[0].mxu0 %v7442
        %v7804 = vpop.f32.mrb[0].mxu0
        %v7805 = vadd.f32 0.0, %v7804
        %v7806 = vpop.f32.mrb[0].mxu0
        %v7807 = vadd.f32 0.0, %v7806
        %v7808 = vpop.f32.mrb[0].mxu0
        %v7809 = vpop.f32.mrb[0].mxu0
        %7810 = vdwg.mxu0
        %7811 = vmatprep.subr.bf16.mxu0 %v7675
        %7812 = vmatpush1.bf16.msra.mxu0 %v7674
        %7813 = vmatprep.subr.bf16.mxu0 %v7677
        %7814 = vmatpush1.bf16.msra.mxu0 %v7676
        %7815 = vmatprep.subr.bf16.mxu0 %v7679
        %7816 = vmatpush1.bf16.msra.mxu0 %v7678
        %7817 = vmatprep.subr.bf16.mxu0 %v7681
        %7818 = vmatpush1.bf16.msra.mxu0 %v7680
        %7819 = vmatprep.subr.bf16.mxu0 %v7683
        %7820 = vmatpush1.bf16.msra.mxu0 %v7682
        %7821 = vmatprep.subr.bf16.mxu0 %v7685
        %7822 = vmatpush1.bf16.msra.mxu0 %v7684
        %7823 = vmatprep.subr.bf16.mxu0 %v7687
        %7824 = vmatpush1.bf16.msra.mxu0 %v7686
        %7825 = vmatprep.subr.bf16.mxu0 %v7689
        %7826 = vmatpush1.bf16.msra.mxu0 %v7688
        %7827 = vmatprep.subr.bf16.mxu0 %v7691
        %7828 = vmatpush1.bf16.msra.mxu0 %v7690
        %7829 = vmatprep.subr.bf16.mxu0 %v7693
        %7830 = vmatpush1.bf16.msra.mxu0 %v7692
        %7831 = vmatprep.subr.bf16.mxu0 %v7695
        %7832 = vmatpush1.bf16.msra.mxu0 %v7694
        %7833 = vmatprep.subr.bf16.mxu0 %v7697
        %7834 = vmatpush1.bf16.msra.mxu0 %v7696
        %7835 = vmatprep.subr.bf16.mxu0 %v7699
        %7836 = vmatpush1.bf16.msra.mxu0 %v7698
        %7837 = vmatprep.subr.bf16.mxu0 %v7701
        %7838 = vmatpush1.bf16.msra.mxu0 %v7700
        %7839 = vmatprep.subr.bf16.mxu0 %v7703
        %7840 = vmatpush1.bf16.msra.mxu0 %v7702
        %7841 = vmatprep.subr.bf16.mxu0 %v7705
        %7842 = vmatpush1.bf16.msra.mxu0 %v7704
        %7843 = vmatprep.mubr.bf16.mxu0 %v7445
        %7844 = vmatmul.mubr.bf16.gmra.mrb[0].mxu0 %v7444
        %v7845 = vpop.f32.mrb[0].mxu0
        %v7846 = vadd.f32 %v7805, %v7845
        %v7847 = vpop.f32.mrb[0].mxu0
        %v7848 = vadd.f32 %v7807, %v7847
        %v7849 = vpop.f32.mrb[0].mxu0
        %v7850 = vpop.f32.mrb[0].mxu0
        %7851 = vdwg.mxu0
        %v7852 = vadd.f32 %v7364, %v7846
        %v7853 = vadd.f32 %v7365, %v7848
        %v7854 = vld [vmem:[%s4873 + $0x10] sm:$0xff]
        %v7855 = vld [vmem:[%s4873 + $0x18] sm:$0xff]
        %v7856 = vld [vmem:[%s3374] sm:$0xff]
        %v7857 = vld [vmem:[%s3374 + $0x8] sm:$0xff]
        %v7858 = vld [vmem:[%s3374 + $0x10] sm:$0xff]
        %v7859 = vld [vmem:[%s3374 + $0x18] sm:$0xff]
        %v7860 = vld [vmem:[%s3374 + $0x20] sm:$0xff]
        %v7861 = vld [vmem:[%s3374 + $0x28] sm:$0xff]
        %v7862 = vld [vmem:[%s3374 + $0x30] sm:$0xff]
        %v7863 = vld [vmem:[%s3374 + $0x38] sm:$0xff]
        %v7864 = vld [vmem:[%s3374 + $0x40] sm:$0xff]
        %v7865 = vld [vmem:[%s3374 + $0x48] sm:$0xff]
        %v7866 = vld [vmem:[%s3374 + $0x50] sm:$0xff]
        %v7867 = vld [vmem:[%s3374 + $0x58] sm:$0xff]
        %v7868 = vld [vmem:[%s3374 + $0x60] sm:$0xff]
        %v7869 = vld [vmem:[%s3374 + $0x68] sm:$0xff]
        %v7870 = vld [vmem:[%s3374 + $0x70] sm:$0xff]
        %v7871 = vld [vmem:[%s3374 + $0x78] sm:$0xff]
        %v7872 = vld [vmem:[%s3374 + $0x80] sm:$0xff]
        %v7873 = vld [vmem:[%s3374 + $0x88] sm:$0xff]
        %v7874 = vld [vmem:[%s3374 + $0x90] sm:$0xff]
        %v7875 = vld [vmem:[%s3374 + $0x98] sm:$0xff]
        %v7876 = vld [vmem:[%s3374 + $0xa0] sm:$0xff]
        %v7877 = vld [vmem:[%s3374 + $0xa8] sm:$0xff]
        %v7878 = vld [vmem:[%s3374 + $0xb0] sm:$0xff]
        %v7879 = vld [vmem:[%s3374 + $0xb8] sm:$0xff]
        %v7880 = vld [vmem:[%s3374 + $0xc0] sm:$0xff]
        %v7881 = vld [vmem:[%s3374 + $0xc8] sm:$0xff]
        %v7882 = vld [vmem:[%s3374 + $0xd0] sm:$0xff]
        %v7883 = vld [vmem:[%s3374 + $0xd8] sm:$0xff]
        %v7884 = vld [vmem:[%s3374 + $0xe0] sm:$0xff]
        %v7885 = vld [vmem:[%s3374 + $0xe8] sm:$0xff]
        %v7886 = vld [vmem:[%s3374 + $0xf0] sm:$0xff]
        %v7887 = vld [vmem:[%s3374 + $0xf8] sm:$0xff]
        %v7888 = vld [vmem:[%s3374 + $0x100] sm:$0xff]
        %v7889 = vld [vmem:[%s3374 + $0x108] sm:$0xff]
        %v7890 = vld [vmem:[%s3374 + $0x110] sm:$0xff]
        %v7891 = vld [vmem:[%s3374 + $0x118] sm:$0xff]
        %v7892 = vld [vmem:[%s3374 + $0x120] sm:$0xff]
        %v7893 = vld [vmem:[%s3374 + $0x128] sm:$0xff]
        %v7894 = vld [vmem:[%s3374 + $0x130] sm:$0xff]
        %v7895 = vld [vmem:[%s3374 + $0x138] sm:$0xff]
        %v7896 = vld [vmem:[%s3374 + $0x140] sm:$0xff]
        %v7897 = vld [vmem:[%s3374 + $0x148] sm:$0xff]
        %v7898 = vld [vmem:[%s3374 + $0x150] sm:$0xff]
        %v7899 = vld [vmem:[%s3374 + $0x158] sm:$0xff]
        %v7900 = vld [vmem:[%s3374 + $0x160] sm:$0xff]
        %v7901 = vld [vmem:[%s3374 + $0x168] sm:$0xff]
        %v7902 = vld [vmem:[%s3374 + $0x170] sm:$0xff]
        %v7903 = vld [vmem:[%s3374 + $0x178] sm:$0xff]
        %v7904 = vld [vmem:[%s3374 + $0x180] sm:$0xff]
        %v7905 = vld [vmem:[%s3374 + $0x188] sm:$0xff]
        %v7906 = vld [vmem:[%s3374 + $0x190] sm:$0xff]
        %v7907 = vld [vmem:[%s3374 + $0x198] sm:$0xff]
        %v7908 = vld [vmem:[%s3374 + $0x1a0] sm:$0xff]
        %v7909 = vld [vmem:[%s3374 + $0x1a8] sm:$0xff]
        %v7910 = vld [vmem:[%s3374 + $0x1b0] sm:$0xff]
        %v7911 = vld [vmem:[%s3374 + $0x1b8] sm:$0xff]
        %v7912 = vld [vmem:[%s3374 + $0x1c0] sm:$0xff]
        %v7913 = vld [vmem:[%s3374 + $0x1c8] sm:$0xff]
        %v7914 = vld [vmem:[%s3374 + $0x1d0] sm:$0xff]
        %v7915 = vld [vmem:[%s3374 + $0x1d8] sm:$0xff]
        %v7916 = vld [vmem:[%s3374 + $0x1e0] sm:$0xff]
        %v7917 = vld [vmem:[%s3374 + $0x1e8] sm:$0xff]
        %v7918 = vld [vmem:[%s3374 + $0x1f0] sm:$0xff]
        %v7919 = vld [vmem:[%s3374 + $0x1f8] sm:$0xff]
        %v7922 = vunpack.c.l.b16 %v7854
        %v7923 = vunpack.c.h.b16 %v7854
        %v7924 = vunpack.c.l.b16 %v7855
        %v7925 = vunpack.c.h.b16 %v7855
        %v7926 = vpack.c.b16 %v7922, %v7922
        %v7927 = vpack.c.b16 %v7923, %v7923
        %v7928 = vpack.c.b16 %v7924, %v7924
        %v7929 = vpack.c.b16 %v7925, %v7925
        %v7998 = vunpack.c.l.b16 %v7856
        %v7999 = vunpack.c.h.b16 %v7856
        %v8000 = vunpack.c.l.b16 %v7857
        %v8001 = vunpack.c.h.b16 %v7857
        %v8002 = vunpack.c.l.b16 %v7858
        %v8003 = vunpack.c.h.b16 %v7858
        %v8004 = vunpack.c.l.b16 %v7859
        %v8005 = vunpack.c.h.b16 %v7859
        %v8006 = vunpack.c.l.b16 %v7860
        %v8007 = vunpack.c.h.b16 %v7860
        %v8008 = vunpack.c.l.b16 %v7861
        %v8009 = vunpack.c.h.b16 %v7861
        %v8010 = vunpack.c.l.b16 %v7862
        %v8011 = vunpack.c.h.b16 %v7862
        %v8012 = vunpack.c.l.b16 %v7863
        %v8013 = vunpack.c.h.b16 %v7863
        %v8014 = vunpack.c.l.b16 %v7864
        %v8015 = vunpack.c.h.b16 %v7864
        %v8016 = vunpack.c.l.b16 %v7865
        %v8017 = vunpack.c.h.b16 %v7865
        %v8018 = vunpack.c.l.b16 %v7866
        %v8019 = vunpack.c.h.b16 %v7866
        %v8020 = vunpack.c.l.b16 %v7867
        %v8021 = vunpack.c.h.b16 %v7867
        %v8022 = vunpack.c.l.b16 %v7868
        %v8023 = vunpack.c.h.b16 %v7868
        %v8024 = vunpack.c.l.b16 %v7869
        %v8025 = vunpack.c.h.b16 %v7869
        %v8026 = vunpack.c.l.b16 %v7870
        %v8027 = vunpack.c.h.b16 %v7870
        %v8028 = vunpack.c.l.b16 %v7871
        %v8029 = vunpack.c.h.b16 %v7871
        %v8030 = vunpack.c.l.b16 %v7872
        %v8031 = vunpack.c.h.b16 %v7872
        %v8032 = vunpack.c.l.b16 %v7873
        %v8033 = vunpack.c.h.b16 %v7873
        %v8034 = vunpack.c.l.b16 %v7874
        %v8035 = vunpack.c.h.b16 %v7874
        %v8036 = vunpack.c.l.b16 %v7875
        %v8037 = vunpack.c.h.b16 %v7875
        %v8038 = vunpack.c.l.b16 %v7876
        %v8039 = vunpack.c.h.b16 %v7876
        %v8040 = vunpack.c.l.b16 %v7877
        %v8041 = vunpack.c.h.b16 %v7877
        %v8042 = vunpack.c.l.b16 %v7878
        %v8043 = vunpack.c.h.b16 %v7878
        %v8044 = vunpack.c.l.b16 %v7879
        %v8045 = vunpack.c.h.b16 %v7879
        %v8046 = vunpack.c.l.b16 %v7880
        %v8047 = vunpack.c.h.b16 %v7880
        %v8048 = vunpack.c.l.b16 %v7881
        %v8049 = vunpack.c.h.b16 %v7881
        %v8050 = vunpack.c.l.b16 %v7882
        %v8051 = vunpack.c.h.b16 %v7882
        %v8052 = vunpack.c.l.b16 %v7883
        %v8053 = vunpack.c.h.b16 %v7883
        %v8054 = vunpack.c.l.b16 %v7884
        %v8055 = vunpack.c.h.b16 %v7884
        %v8056 = vunpack.c.l.b16 %v7885
        %v8057 = vunpack.c.h.b16 %v7885
        %v8058 = vunpack.c.l.b16 %v7886
        %v8059 = vunpack.c.h.b16 %v7886
        %v8060 = vunpack.c.l.b16 %v7887
        %v8061 = vunpack.c.h.b16 %v7887
        %v8062 = vunpack.c.l.b16 %v7888
        %v8063 = vunpack.c.h.b16 %v7888
        %v8064 = vunpack.c.l.b16 %v7889
        %v8065 = vunpack.c.h.b16 %v7889
        %v8066 = vunpack.c.l.b16 %v7890
        %v8067 = vunpack.c.h.b16 %v7890
        %v8068 = vunpack.c.l.b16 %v7891
        %v8069 = vunpack.c.h.b16 %v7891
        %v8070 = vunpack.c.l.b16 %v7892
        %v8071 = vunpack.c.h.b16 %v7892
        %v8072 = vunpack.c.l.b16 %v7893
        %v8073 = vunpack.c.h.b16 %v7893
        %v8074 = vunpack.c.l.b16 %v7894
        %v8075 = vunpack.c.h.b16 %v7894
        %v8076 = vunpack.c.l.b16 %v7895
        %v8077 = vunpack.c.h.b16 %v7895
        %v8078 = vunpack.c.l.b16 %v7896
        %v8079 = vunpack.c.h.b16 %v7896
        %v8080 = vunpack.c.l.b16 %v7897
        %v8081 = vunpack.c.h.b16 %v7897
        %v8082 = vunpack.c.l.b16 %v7898
        %v8083 = vunpack.c.h.b16 %v7898
        %v8084 = vunpack.c.l.b16 %v7899
        %v8085 = vunpack.c.h.b16 %v7899
        %v8086 = vunpack.c.l.b16 %v7900
        %v8087 = vunpack.c.h.b16 %v7900
        %v8088 = vunpack.c.l.b16 %v7901
        %v8089 = vunpack.c.h.b16 %v7901
        %v8090 = vunpack.c.l.b16 %v7902
        %v8091 = vunpack.c.h.b16 %v7902
        %v8092 = vunpack.c.l.b16 %v7903
        %v8093 = vunpack.c.h.b16 %v7903
        %v8094 = vunpack.c.l.b16 %v7904
        %v8095 = vunpack.c.h.b16 %v7904
        %v8096 = vunpack.c.l.b16 %v7905
        %v8097 = vunpack.c.h.b16 %v7905
        %v8098 = vunpack.c.l.b16 %v7906
        %v8099 = vunpack.c.h.b16 %v7906
        %v8100 = vunpack.c.l.b16 %v7907
        %v8101 = vunpack.c.h.b16 %v7907
        %v8102 = vunpack.c.l.b16 %v7908
        %v8103 = vunpack.c.h.b16 %v7908
        %v8104 = vunpack.c.l.b16 %v7909
        %v8105 = vunpack.c.h.b16 %v7909
        %v8106 = vunpack.c.l.b16 %v7910
        %v8107 = vunpack.c.h.b16 %v7910
        %v8108 = vunpack.c.l.b16 %v7911
        %v8109 = vunpack.c.h.b16 %v7911
        %v8110 = vunpack.c.l.b16 %v7912
        %v8111 = vunpack.c.h.b16 %v7912
        %v8112 = vunpack.c.l.b16 %v7913
        %v8113 = vunpack.c.h.b16 %v7913
        %v8114 = vunpack.c.l.b16 %v7914
        %v8115 = vunpack.c.h.b16 %v7914
        %v8116 = vunpack.c.l.b16 %v7915
        %v8117 = vunpack.c.h.b16 %v7915
        %v8118 = vunpack.c.l.b16 %v7916
        %v8119 = vunpack.c.h.b16 %v7916
        %v8120 = vunpack.c.l.b16 %v7917
        %v8121 = vunpack.c.h.b16 %v7917
        %v8122 = vunpack.c.l.b16 %v7918
        %v8123 = vunpack.c.h.b16 %v7918
        %v8124 = vunpack.c.l.b16 %v7919
        %v8125 = vunpack.c.h.b16 %v7919
        %v8126 = vpack.c.b16 %v8000, %v7998
        %v8127 = vpack.c.b16 %v8001, %v7999
        %v8128 = vpack.c.b16 %v8004, %v8002
        %v8129 = vpack.c.b16 %v8005, %v8003
        %v8130 = vpack.c.b16 %v8008, %v8006
        %v8131 = vpack.c.b16 %v8009, %v8007
        %v8132 = vpack.c.b16 %v8012, %v8010
        %v8133 = vpack.c.b16 %v8013, %v8011
        %v8134 = vpack.c.b16 %v8016, %v8014
        %v8135 = vpack.c.b16 %v8017, %v8015
        %v8136 = vpack.c.b16 %v8020, %v8018
        %v8137 = vpack.c.b16 %v8021, %v8019
        %v8138 = vpack.c.b16 %v8024, %v8022
        %v8139 = vpack.c.b16 %v8025, %v8023
        %v8140 = vpack.c.b16 %v8028, %v8026
        %v8141 = vpack.c.b16 %v8029, %v8027
        %v8142 = vpack.c.b16 %v8032, %v8030
        %v8143 = vpack.c.b16 %v8033, %v8031
        %v8144 = vpack.c.b16 %v8036, %v8034
        %v8145 = vpack.c.b16 %v8037, %v8035
        %v8146 = vpack.c.b16 %v8040, %v8038
        %v8147 = vpack.c.b16 %v8041, %v8039
        %v8148 = vpack.c.b16 %v8044, %v8042
        %v8149 = vpack.c.b16 %v8045, %v8043
        %v8150 = vpack.c.b16 %v8048, %v8046
        %v8151 = vpack.c.b16 %v8049, %v8047
        %v8152 = vpack.c.b16 %v8052, %v8050
        %v8153 = vpack.c.b16 %v8053, %v8051
        %v8154 = vpack.c.b16 %v8056, %v8054
        %v8155 = vpack.c.b16 %v8057, %v8055
        %v8156 = vpack.c.b16 %v8060, %v8058
        %v8157 = vpack.c.b16 %v8061, %v8059
        %v8158 = vpack.c.b16 %v8064, %v8062
        %v8159 = vpack.c.b16 %v8065, %v8063
        %v8160 = vpack.c.b16 %v8068, %v8066
        %v8161 = vpack.c.b16 %v8069, %v8067
        %v8162 = vpack.c.b16 %v8072, %v8070
        %v8163 = vpack.c.b16 %v8073, %v8071
        %v8164 = vpack.c.b16 %v8076, %v8074
        %v8165 = vpack.c.b16 %v8077, %v8075
        %v8166 = vpack.c.b16 %v8080, %v8078
        %v8167 = vpack.c.b16 %v8081, %v8079
        %v8168 = vpack.c.b16 %v8084, %v8082
        %v8169 = vpack.c.b16 %v8085, %v8083
        %v8170 = vpack.c.b16 %v8088, %v8086
        %v8171 = vpack.c.b16 %v8089, %v8087
        %v8172 = vpack.c.b16 %v8092, %v8090
        %v8173 = vpack.c.b16 %v8093, %v8091
        %v8174 = vpack.c.b16 %v8096, %v8094
        %v8175 = vpack.c.b16 %v8097, %v8095
        %v8176 = vpack.c.b16 %v8100, %v8098
        %v8177 = vpack.c.b16 %v8101, %v8099
        %v8178 = vpack.c.b16 %v8104, %v8102
        %v8179 = vpack.c.b16 %v8105, %v8103
        %v8180 = vpack.c.b16 %v8108, %v8106
        %v8181 = vpack.c.b16 %v8109, %v8107
        %v8182 = vpack.c.b16 %v8112, %v8110
        %v8183 = vpack.c.b16 %v8113, %v8111
        %v8184 = vpack.c.b16 %v8116, %v8114
        %v8185 = vpack.c.b16 %v8117, %v8115
        %v8186 = vpack.c.b16 %v8120, %v8118
        %v8187 = vpack.c.b16 %v8121, %v8119
        %v8188 = vpack.c.b16 %v8124, %v8122
        %v8189 = vpack.c.b16 %v8125, %v8123
        %8254 = vmatprep.subr.bf16.mxu0 %v8127
        %8255 = vmatpush1.bf16.msra.mxu0 %v8126
        %8256 = vmatprep.subr.bf16.mxu0 %v8129
        %8257 = vmatpush1.bf16.msra.mxu0 %v8128
        %8258 = vmatprep.subr.bf16.mxu0 %v8131
        %8259 = vmatpush1.bf16.msra.mxu0 %v8130
        %8260 = vmatprep.subr.bf16.mxu0 %v8133
        %8261 = vmatpush1.bf16.msra.mxu0 %v8132
        %8262 = vmatprep.subr.bf16.mxu0 %v8135
        %8263 = vmatpush1.bf16.msra.mxu0 %v8134
        %8264 = vmatprep.subr.bf16.mxu0 %v8137
        %8265 = vmatpush1.bf16.msra.mxu0 %v8136
        %8266 = vmatprep.subr.bf16.mxu0 %v8139
        %8267 = vmatpush1.bf16.msra.mxu0 %v8138
        %8268 = vmatprep.subr.bf16.mxu0 %v8141
        %8269 = vmatpush1.bf16.msra.mxu0 %v8140
        %8270 = vmatprep.subr.bf16.mxu0 %v8143
        %8271 = vmatpush1.bf16.msra.mxu0 %v8142
        %8272 = vmatprep.subr.bf16.mxu0 %v8145
        %8273 = vmatpush1.bf16.msra.mxu0 %v8144
        %8274 = vmatprep.subr.bf16.mxu0 %v8147
        %8275 = vmatpush1.bf16.msra.mxu0 %v8146
        %8276 = vmatprep.subr.bf16.mxu0 %v8149
        %8277 = vmatpush1.bf16.msra.mxu0 %v8148
        %8278 = vmatprep.subr.bf16.mxu0 %v8151
        %8279 = vmatpush1.bf16.msra.mxu0 %v8150
        %8280 = vmatprep.subr.bf16.mxu0 %v8153
        %8281 = vmatpush1.bf16.msra.mxu0 %v8152
        %8282 = vmatprep.subr.bf16.mxu0 %v8155
        %8283 = vmatpush1.bf16.msra.mxu0 %v8154
        %8284 = vmatprep.subr.bf16.mxu0 %v8157
        %8285 = vmatpush1.bf16.msra.mxu0 %v8156
        %8286 = vmatprep.mubr.bf16.mxu0 %v7927
        %8287 = vmatmul.mubr.bf16.gmra.mrb[0].mxu0 %v7926
        %v8288 = vpop.f32.mrb[0].mxu0
        %v8289 = vadd.f32 0.0, %v8288
        %v8290 = vpop.f32.mrb[0].mxu0
        %v8291 = vadd.f32 0.0, %v8290
        %v8292 = vpop.f32.mrb[0].mxu0
        %v8293 = vpop.f32.mrb[0].mxu0
        %8294 = vdwg.mxu0
        %8295 = vmatprep.subr.bf16.mxu0 %v8159
        %8296 = vmatpush1.bf16.msra.mxu0 %v8158
        %8297 = vmatprep.subr.bf16.mxu0 %v8161
        %8298 = vmatpush1.bf16.msra.mxu0 %v8160
        %8299 = vmatprep.subr.bf16.mxu0 %v8163
        %8300 = vmatpush1.bf16.msra.mxu0 %v8162
        %8301 = vmatprep.subr.bf16.mxu0 %v8165
        %8302 = vmatpush1.bf16.msra.mxu0 %v8164
        %8303 = vmatprep.subr.bf16.mxu0 %v8167
        %8304 = vmatpush1.bf16.msra.mxu0 %v8166
        %8305 = vmatprep.subr.bf16.mxu0 %v8169
        %8306 = vmatpush1.bf16.msra.mxu0 %v8168
        %8307 = vmatprep.subr.bf16.mxu0 %v8171
        %8308 = vmatpush1.bf16.msra.mxu0 %v8170
        %8309 = vmatprep.subr.bf16.mxu0 %v8173
        %8310 = vmatpush1.bf16.msra.mxu0 %v8172
        %8311 = vmatprep.subr.bf16.mxu0 %v8175
        %8312 = vmatpush1.bf16.msra.mxu0 %v8174
        %8313 = vmatprep.subr.bf16.mxu0 %v8177
        %8314 = vmatpush1.bf16.msra.mxu0 %v8176
        %8315 = vmatprep.subr.bf16.mxu0 %v8179
        %8316 = vmatpush1.bf16.msra.mxu0 %v8178
        %8317 = vmatprep.subr.bf16.mxu0 %v8181
        %8318 = vmatpush1.bf16.msra.mxu0 %v8180
        %8319 = vmatprep.subr.bf16.mxu0 %v8183
        %8320 = vmatpush1.bf16.msra.mxu0 %v8182
        %8321 = vmatprep.subr.bf16.mxu0 %v8185
        %8322 = vmatpush1.bf16.msra.mxu0 %v8184
        %8323 = vmatprep.subr.bf16.mxu0 %v8187
        %8324 = vmatpush1.bf16.msra.mxu0 %v8186
        %8325 = vmatprep.subr.bf16.mxu0 %v8189
        %8326 = vmatpush1.bf16.msra.mxu0 %v8188
        %8327 = vmatprep.mubr.bf16.mxu0 %v7929
        %8328 = vmatmul.mubr.bf16.gmra.mrb[0].mxu0 %v7928
        %v8329 = vpop.f32.mrb[0].mxu0
        %v8330 = vadd.f32 %v8289, %v8329
        %v8331 = vpop.f32.mrb[0].mxu0
        %v8332 = vadd.f32 %v8291, %v8331
        %v8333 = vpop.f32.mrb[0].mxu0
        %v8334 = vpop.f32.mrb[0].mxu0
        %8335 = vdwg.mxu0
        %v8336 = vadd.f32 %v7852, %v8330
        %v8337 = vadd.f32 %v7853, %v8332
        %v8338 = vld [vmem:[%s4873 + $0x10] sm:$0xff]
        %v8339 = vld [vmem:[%s4873 + $0x18] sm:$0xff]
        %v8340 = vld [vmem:[%s4873 + $0x20] sm:$0x11]
        %v8341 = vld [vmem:[%s4873 + $0x28] sm:$0x11]
        %v8342 = vld [vmem:[%s3861] sm:$0xff]
        %v8343 = vld [vmem:[%s3861 + $0x8] sm:$0xff]
        %v8344 = vld [vmem:[%s3861 + $0x10] sm:$0xff]
        %v8345 = vld [vmem:[%s3861 + $0x18] sm:$0xff]
        %v8346 = vld [vmem:[%s3861 + $0x20] sm:$0xff]
        %v8347 = vld [vmem:[%s3861 + $0x28] sm:$0xff]
        %v8348 = vld [vmem:[%s3861 + $0x30] sm:$0xff]
        %v8349 = vld [vmem:[%s3861 + $0x38] sm:$0xff]
        %v8350 = vld [vmem:[%s3861 + $0x40] sm:$0xff]
        %v8351 = vld [vmem:[%s3861 + $0x48] sm:$0xff]
        %v8352 = vld [vmem:[%s3861 + $0x50] sm:$0xff]
        %v8353 = vld [vmem:[%s3861 + $0x58] sm:$0xff]
        %v8354 = vld [vmem:[%s3861 + $0x60] sm:$0xff]
        %v8355 = vld [vmem:[%s3861 + $0x68] sm:$0xff]
        %v8356 = vld [vmem:[%s3861 + $0x70] sm:$0xff]
        %v8357 = vld [vmem:[%s3861 + $0x78] sm:$0xff]
        %v8358 = vld [vmem:[%s3861 + $0x80] sm:$0xff]
        %v8359 = vld [vmem:[%s3861 + $0x88] sm:$0xff]
        %v8360 = vld [vmem:[%s3861 + $0x90] sm:$0xff]
        %v8361 = vld [vmem:[%s3861 + $0x98] sm:$0xff]
        %v8362 = vld [vmem:[%s3861 + $0xa0] sm:$0xff]
        %v8363 = vld [vmem:[%s3861 + $0xa8] sm:$0xff]
        %v8364 = vld [vmem:[%s3861 + $0xb0] sm:$0xff]
        %v8365 = vld [vmem:[%s3861 + $0xb8] sm:$0xff]
        %v8366 = vld [vmem:[%s3861 + $0xc0] sm:$0xff]
        %v8367 = vld [vmem:[%s3861 + $0xc8] sm:$0xff]
        %v8368 = vld [vmem:[%s3861 + $0xd0] sm:$0xff]
        %v8369 = vld [vmem:[%s3861 + $0xd8] sm:$0xff]
        %v8370 = vld [vmem:[%s3861 + $0xe0] sm:$0xff]
        %v8371 = vld [vmem:[%s3861 + $0xe8] sm:$0xff]
        %v8372 = vld [vmem:[%s3861 + $0xf0] sm:$0xff]
        %v8373 = vld [vmem:[%s3861 + $0xf8] sm:$0xff]
        %v8374 = vld [vmem:[%s3861 + $0x100] sm:$0xff]
        %v8375 = vld [vmem:[%s3861 + $0x108] sm:$0xff]
        %v8376 = vld [vmem:[%s3861 + $0x110] sm:$0xff]
        %v8377 = vld [vmem:[%s3861 + $0x118] sm:$0xff]
        %v8378 = vld [vmem:[%s3861 + $0x120] sm:$0xff]
        %v8379 = vld [vmem:[%s3861 + $0x128] sm:$0xff]
        %v8380 = vld [vmem:[%s3861 + $0x130] sm:$0xff]
        %v8381 = vld [vmem:[%s3861 + $0x138] sm:$0xff]
        %v8382 = vld [vmem:[%s3861 + $0x140] sm:$0xff]
        %v8383 = vld [vmem:[%s3861 + $0x148] sm:$0xff]
        %v8384 = vld [vmem:[%s3861 + $0x150] sm:$0xff]
        %v8385 = vld [vmem:[%s3861 + $0x158] sm:$0xff]
        %v8386 = vld [vmem:[%s3861 + $0x160] sm:$0xff]
        %v8387 = vld [vmem:[%s3861 + $0x168] sm:$0xff]
        %v8388 = vld [vmem:[%s3861 + $0x170] sm:$0xff]
        %v8389 = vld [vmem:[%s3861 + $0x178] sm:$0xff]
        %v8390 = vld [vmem:[%s3861 + $0x180] sm:$0xff]
        %v8391 = vld [vmem:[%s3861 + $0x188] sm:$0xff]
        %v8392 = vld [vmem:[%s3861 + $0x190] sm:$0xff]
        %v8393 = vld [vmem:[%s3861 + $0x198] sm:$0xff]
        %v8394 = vld [vmem:[%s3861 + $0x1a0] sm:$0xff]
        %v8395 = vld [vmem:[%s3861 + $0x1a8] sm:$0xff]
        %v8396 = vld [vmem:[%s3861 + $0x1b0] sm:$0xff]
        %v8397 = vld [vmem:[%s3861 + $0x1b8] sm:$0xff]
        %v8398 = vld [vmem:[%s3861 + $0x1c0] sm:$0xff]
        %v8399 = vld [vmem:[%s3861 + $0x1c8] sm:$0xff]
        %v8400 = vld [vmem:[%s3861 + $0x1d0] sm:$0xff]
        %v8401 = vld [vmem:[%s3861 + $0x1d8] sm:$0xff]
        %v8402 = vld [vmem:[%s3861 + $0x1e0] sm:$0xff]
        %v8403 = vld [vmem:[%s3861 + $0x1e8] sm:$0xff]
        %v8404 = vld [vmem:[%s3861 + $0x1f0] sm:$0xff]
        %v8405 = vld [vmem:[%s3861 + $0x1f8] sm:$0xff]
        %v8410 = vunpack.c.l.b16 %v8338
        %v8411 = vunpack.c.h.b16 %v8338
        %v8412 = vunpack.c.l.b16 %v8339
        %v8413 = vunpack.c.h.b16 %v8339
        %v8414 = vunpack.c.l.b16 %v8340
        %v8415 = vunpack.c.h.b16 %v8340
        %v8416 = vunpack.c.l.b16 %v8341
        %v8417 = vunpack.c.h.b16 %v8341
        %v8418 = vpack.c.b16 %v8414, %v8410
        %v8419 = vpack.c.b16 %v8415, %v8411
        %v8420 = vpack.c.b16 %v8416, %v8412
        %v8421 = vpack.c.b16 %v8417, %v8413
        %v8423 = vshrl.u32 %v8418, 16
        %v8425 = vshll.u32 %v8418, 16
        %v8427 = vrot.slane %v8425, 1
        %v8428 = vor.u32 %v8423, %v8427
        %v8430 = vshrl.u32 %v8419, 16
        %v8432 = vshll.u32 %v8419, 16
        %v8434 = vrot.slane %v8432, 1
        %v8435 = vor.u32 %v8430, %v8434
        %v8437 = vshrl.u32 %v8420, 16
        %v8439 = vshll.u32 %v8420, 16
        %v8441 = vrot.slane %v8439, 1
        %v8442 = vor.u32 %v8437, %v8441
        %v8444 = vshrl.u32 %v8421, 16
        %v8446 = vshll.u32 %v8421, 16
        %v8448 = vrot.slane %v8446, 1
        %v8449 = vor.u32 %v8444, %v8448
        %v8518 = vunpack.c.l.b16 %v8342
        %v8519 = vunpack.c.h.b16 %v8342
        %v8520 = vunpack.c.l.b16 %v8343
        %v8521 = vunpack.c.h.b16 %v8343
        %v8522 = vunpack.c.l.b16 %v8344
        %v8523 = vunpack.c.h.b16 %v8344
        %v8524 = vunpack.c.l.b16 %v8345
        %v8525 = vunpack.c.h.b16 %v8345
        %v8526 = vunpack.c.l.b16 %v8346
        %v8527 = vunpack.c.h.b16 %v8346
        %v8528 = vunpack.c.l.b16 %v8347
        %v8529 = vunpack.c.h.b16 %v8347
        %v8530 = vunpack.c.l.b16 %v8348
        %v8531 = vunpack.c.h.b16 %v8348
        %v8532 = vunpack.c.l.b16 %v8349
        %v8533 = vunpack.c.h.b16 %v8349
        %v8534 = vunpack.c.l.b16 %v8350
        %v8535 = vunpack.c.h.b16 %v8350
        %v8536 = vunpack.c.l.b16 %v8351
        %v8537 = vunpack.c.h.b16 %v8351
        %v8538 = vunpack.c.l.b16 %v8352
        %v8539 = vunpack.c.h.b16 %v8352
        %v8540 = vunpack.c.l.b16 %v8353
        %v8541 = vunpack.c.h.b16 %v8353
        %v8542 = vunpack.c.l.b16 %v8354
        %v8543 = vunpack.c.h.b16 %v8354
        %v8544 = vunpack.c.l.b16 %v8355
        %v8545 = vunpack.c.h.b16 %v8355
        %v8546 = vunpack.c.l.b16 %v8356
        %v8547 = vunpack.c.h.b16 %v8356
        %v8548 = vunpack.c.l.b16 %v8357
        %v8549 = vunpack.c.h.b16 %v8357
        %v8550 = vunpack.c.l.b16 %v8358
        %v8551 = vunpack.c.h.b16 %v8358
        %v8552 = vunpack.c.l.b16 %v8359
        %v8553 = vunpack.c.h.b16 %v8359
        %v8554 = vunpack.c.l.b16 %v8360
        %v8555 = vunpack.c.h.b16 %v8360
        %v8556 = vunpack.c.l.b16 %v8361
        %v8557 = vunpack.c.h.b16 %v8361
        %v8558 = vunpack.c.l.b16 %v8362
        %v8559 = vunpack.c.h.b16 %v8362
        %v8560 = vunpack.c.l.b16 %v8363
        %v8561 = vunpack.c.h.b16 %v8363
        %v8562 = vunpack.c.l.b16 %v8364
        %v8563 = vunpack.c.h.b16 %v8364
        %v8564 = vunpack.c.l.b16 %v8365
        %v8565 = vunpack.c.h.b16 %v8365
        %v8566 = vunpack.c.l.b16 %v8366
        %v8567 = vunpack.c.h.b16 %v8366
        %v8568 = vunpack.c.l.b16 %v8367
        %v8569 = vunpack.c.h.b16 %v8367
        %v8570 = vunpack.c.l.b16 %v8368
        %v8571 = vunpack.c.h.b16 %v8368
        %v8572 = vunpack.c.l.b16 %v8369
        %v8573 = vunpack.c.h.b16 %v8369
        %v8574 = vunpack.c.l.b16 %v8370
        %v8575 = vunpack.c.h.b16 %v8370
        %v8576 = vunpack.c.l.b16 %v8371
        %v8577 = vunpack.c.h.b16 %v8371
        %v8578 = vunpack.c.l.b16 %v8372
        %v8579 = vunpack.c.h.b16 %v8372
        %v8580 = vunpack.c.l.b16 %v8373
        %v8581 = vunpack.c.h.b16 %v8373
        %v8582 = vunpack.c.l.b16 %v8374
        %v8583 = vunpack.c.h.b16 %v8374
        %v8584 = vunpack.c.l.b16 %v8375
        %v8585 = vunpack.c.h.b16 %v8375
        %v8586 = vunpack.c.l.b16 %v8376
        %v8587 = vunpack.c.h.b16 %v8376
        %v8588 = vunpack.c.l.b16 %v8377
        %v8589 = vunpack.c.h.b16 %v8377
        %v8590 = vunpack.c.l.b16 %v8378
        %v8591 = vunpack.c.h.b16 %v8378
        %v8592 = vunpack.c.l.b16 %v8379
        %v8593 = vunpack.c.h.b16 %v8379
        %v8594 = vunpack.c.l.b16 %v8380
        %v8595 = vunpack.c.h.b16 %v8380
        %v8596 = vunpack.c.l.b16 %v8381
        %v8597 = vunpack.c.h.b16 %v8381
        %v8598 = vunpack.c.l.b16 %v8382
        %v8599 = vunpack.c.h.b16 %v8382
        %v8600 = vunpack.c.l.b16 %v8383
        %v8601 = vunpack.c.h.b16 %v8383
        %v8602 = vunpack.c.l.b16 %v8384
        %v8603 = vunpack.c.h.b16 %v8384
        %v8604 = vunpack.c.l.b16 %v8385
        %v8605 = vunpack.c.h.b16 %v8385
        %v8606 = vunpack.c.l.b16 %v8386
        %v8607 = vunpack.c.h.b16 %v8386
        %v8608 = vunpack.c.l.b16 %v8387
        %v8609 = vunpack.c.h.b16 %v8387
        %v8610 = vunpack.c.l.b16 %v8388
        %v8611 = vunpack.c.h.b16 %v8388
        %v8612 = vunpack.c.l.b16 %v8389
        %v8613 = vunpack.c.h.b16 %v8389
        %v8614 = vunpack.c.l.b16 %v8390
        %v8615 = vunpack.c.h.b16 %v8390
        %v8616 = vunpack.c.l.b16 %v8391
        %v8617 = vunpack.c.h.b16 %v8391
        %v8618 = vunpack.c.l.b16 %v8392
        %v8619 = vunpack.c.h.b16 %v8392
        %v8620 = vunpack.c.l.b16 %v8393
        %v8621 = vunpack.c.h.b16 %v8393
        %v8622 = vunpack.c.l.b16 %v8394
        %v8623 = vunpack.c.h.b16 %v8394
        %v8624 = vunpack.c.l.b16 %v8395
        %v8625 = vunpack.c.h.b16 %v8395
        %v8626 = vunpack.c.l.b16 %v8396
        %v8627 = vunpack.c.h.b16 %v8396
        %v8628 = vunpack.c.l.b16 %v8397
        %v8629 = vunpack.c.h.b16 %v8397
        %v8630 = vunpack.c.l.b16 %v8398
        %v8631 = vunpack.c.h.b16 %v8398
        %v8632 = vunpack.c.l.b16 %v8399
        %v8633 = vunpack.c.h.b16 %v8399
        %v8634 = vunpack.c.l.b16 %v8400
        %v8635 = vunpack.c.h.b16 %v8400
        %v8636 = vunpack.c.l.b16 %v8401
        %v8637 = vunpack.c.h.b16 %v8401
        %v8638 = vunpack.c.l.b16 %v8402
        %v8639 = vunpack.c.h.b16 %v8402
        %v8640 = vunpack.c.l.b16 %v8403
        %v8641 = vunpack.c.h.b16 %v8403
        %v8642 = vunpack.c.l.b16 %v8404
        %v8643 = vunpack.c.h.b16 %v8404
        %v8644 = vunpack.c.l.b16 %v8405
        %v8645 = vunpack.c.h.b16 %v8405
        %v8646 = vpack.c.b16 %v8520, %v8518
        %v8647 = vpack.c.b16 %v8521, %v8519
        %v8648 = vpack.c.b16 %v8524, %v8522
        %v8649 = vpack.c.b16 %v8525, %v8523
        %v8650 = vpack.c.b16 %v8528, %v8526
        %v8651 = vpack.c.b16 %v8529, %v8527
        %v8652 = vpack.c.b16 %v8532, %v8530
        %v8653 = vpack.c.b16 %v8533, %v8531
        %v8654 = vpack.c.b16 %v8536, %v8534
        %v8655 = vpack.c.b16 %v8537, %v8535
        %v8656 = vpack.c.b16 %v8540, %v8538
        %v8657 = vpack.c.b16 %v8541, %v8539
        %v8658 = vpack.c.b16 %v8544, %v8542
        %v8659 = vpack.c.b16 %v8545, %v8543
        %v8660 = vpack.c.b16 %v8548, %v8546
        %v8661 = vpack.c.b16 %v8549, %v8547
        %v8662 = vpack.c.b16 %v8552, %v8550
        %v8663 = vpack.c.b16 %v8553, %v8551
        %v8664 = vpack.c.b16 %v8556, %v8554
        %v8665 = vpack.c.b16 %v8557, %v8555
        %v8666 = vpack.c.b16 %v8560, %v8558
        %v8667 = vpack.c.b16 %v8561, %v8559
        %v8668 = vpack.c.b16 %v8564, %v8562
        %v8669 = vpack.c.b16 %v8565, %v8563
        %v8670 = vpack.c.b16 %v8568, %v8566
        %v8671 = vpack.c.b16 %v8569, %v8567
        %v8672 = vpack.c.b16 %v8572, %v8570
        %v8673 = vpack.c.b16 %v8573, %v8571
        %v8674 = vpack.c.b16 %v8576, %v8574
        %v8675 = vpack.c.b16 %v8577, %v8575
        %v8676 = vpack.c.b16 %v8580, %v8578
        %v8677 = vpack.c.b16 %v8581, %v8579
        %v8678 = vpack.c.b16 %v8584, %v8582
        %v8679 = vpack.c.b16 %v8585, %v8583
        %v8680 = vpack.c.b16 %v8588, %v8586
        %v8681 = vpack.c.b16 %v8589, %v8587
        %v8682 = vpack.c.b16 %v8592, %v8590
        %v8683 = vpack.c.b16 %v8593, %v8591
        %v8684 = vpack.c.b16 %v8596, %v8594
        %v8685 = vpack.c.b16 %v8597, %v8595
        %v8686 = vpack.c.b16 %v8600, %v8598
        %v8687 = vpack.c.b16 %v8601, %v8599
        %v8688 = vpack.c.b16 %v8604, %v8602
        %v8689 = vpack.c.b16 %v8605, %v8603
        %v8690 = vpack.c.b16 %v8608, %v8606
        %v8691 = vpack.c.b16 %v8609, %v8607
        %v8692 = vpack.c.b16 %v8612, %v8610
        %v8693 = vpack.c.b16 %v8613, %v8611
        %v8694 = vpack.c.b16 %v8616, %v8614
        %v8695 = vpack.c.b16 %v8617, %v8615
        %v8696 = vpack.c.b16 %v8620, %v8618
        %v8697 = vpack.c.b16 %v8621, %v8619
        %v8698 = vpack.c.b16 %v8624, %v8622
        %v8699 = vpack.c.b16 %v8625, %v8623
        %v8700 = vpack.c.b16 %v8628, %v8626
        %v8701 = vpack.c.b16 %v8629, %v8627
        %v8702 = vpack.c.b16 %v8632, %v8630
        %v8703 = vpack.c.b16 %v8633, %v8631
        %v8704 = vpack.c.b16 %v8636, %v8634
        %v8705 = vpack.c.b16 %v8637, %v8635
        %v8706 = vpack.c.b16 %v8640, %v8638
        %v8707 = vpack.c.b16 %v8641, %v8639
        %v8708 = vpack.c.b16 %v8644, %v8642
        %v8709 = vpack.c.b16 %v8645, %v8643
        %8774 = vmatprep.subr.bf16.mxu0 %v8647
        %8775 = vmatpush1.bf16.msra.mxu0 %v8646
        %8776 = vmatprep.subr.bf16.mxu0 %v8649
        %8777 = vmatpush1.bf16.msra.mxu0 %v8648
        %8778 = vmatprep.subr.bf16.mxu0 %v8651
        %8779 = vmatpush1.bf16.msra.mxu0 %v8650
        %8780 = vmatprep.subr.bf16.mxu0 %v8653
        %8781 = vmatpush1.bf16.msra.mxu0 %v8652
        %8782 = vmatprep.subr.bf16.mxu0 %v8655
        %8783 = vmatpush1.bf16.msra.mxu0 %v8654
        %8784 = vmatprep.subr.bf16.mxu0 %v8657
        %8785 = vmatpush1.bf16.msra.mxu0 %v8656
        %8786 = vmatprep.subr.bf16.mxu0 %v8659
        %8787 = vmatpush1.bf16.msra.mxu0 %v8658
        %8788 = vmatprep.subr.bf16.mxu0 %v8661
        %8789 = vmatpush1.bf16.msra.mxu0 %v8660
        %8790 = vmatprep.subr.bf16.mxu0 %v8663
        %8791 = vmatpush1.bf16.msra.mxu0 %v8662
        %8792 = vmatprep.subr.bf16.mxu0 %v8665
        %8793 = vmatpush1.bf16.msra.mxu0 %v8664
        %8794 = vmatprep.subr.bf16.mxu0 %v8667
        %8795 = vmatpush1.bf16.msra.mxu0 %v8666
        %8796 = vmatprep.subr.bf16.mxu0 %v8669
        %8797 = vmatpush1.bf16.msra.mxu0 %v8668
        %8798 = vmatprep.subr.bf16.mxu0 %v8671
        %8799 = vmatpush1.bf16.msra.mxu0 %v8670
        %8800 = vmatprep.subr.bf16.mxu0 %v8673
        %8801 = vmatpush1.bf16.msra.mxu0 %v8672
        %8802 = vmatprep.subr.bf16.mxu0 %v8675
        %8803 = vmatpush1.bf16.msra.mxu0 %v8674
        %8804 = vmatprep.subr.bf16.mxu0 %v8677
        %8805 = vmatpush1.bf16.msra.mxu0 %v8676
        %8806 = vmatprep.mubr.bf16.mxu0 %v8435
        %8807 = vmatmul.mubr.bf16.gmra.mrb[0].mxu0 %v8428
        %v8808 = vpop.f32.mrb[0].mxu0
        %v8809 = vadd.f32 0.0, %v8808
        %v8810 = vpop.f32.mrb[0].mxu0
        %v8811 = vadd.f32 0.0, %v8810
        %v8812 = vpop.f32.mrb[0].mxu0
        %v8813 = vpop.f32.mrb[0].mxu0
        %8814 = vdwg.mxu0
        %8815 = vmatprep.subr.bf16.mxu0 %v8679
        %8816 = vmatpush1.bf16.msra.mxu0 %v8678
        %8817 = vmatprep.subr.bf16.mxu0 %v8681
        %8818 = vmatpush1.bf16.msra.mxu0 %v8680
        %8819 = vmatprep.subr.bf16.mxu0 %v8683
        %8820 = vmatpush1.bf16.msra.mxu0 %v8682
        %8821 = vmatprep.subr.bf16.mxu0 %v8685
        %8822 = vmatpush1.bf16.msra.mxu0 %v8684
        %8823 = vmatprep.subr.bf16.mxu0 %v8687
        %8824 = vmatpush1.bf16.msra.mxu0 %v8686
        %8825 = vmatprep.subr.bf16.mxu0 %v8689
        %8826 = vmatpush1.bf16.msra.mxu0 %v8688
        %8827 = vmatprep.subr.bf16.mxu0 %v8691
        %8828 = vmatpush1.bf16.msra.mxu0 %v8690
        %8829 = vmatprep.subr.bf16.mxu0 %v8693
        %8830 = vmatpush1.bf16.msra.mxu0 %v8692
        %8831 = vmatprep.subr.bf16.mxu0 %v8695
        %8832 = vmatpush1.bf16.msra.mxu0 %v8694
        %8833 = vmatprep.subr.bf16.mxu0 %v8697
        %8834 = vmatpush1.bf16.msra.mxu0 %v8696
        %8835 = vmatprep.subr.bf16.mxu0 %v8699
        %8836 = vmatpush1.bf16.msra.mxu0 %v8698
        %8837 = vmatprep.subr.bf16.mxu0 %v8701
        %8838 = vmatpush1.bf16.msra.mxu0 %v8700
        %8839 = vmatprep.subr.bf16.mxu0 %v8703
        %8840 = vmatpush1.bf16.msra.mxu0 %v8702
        %8841 = vmatprep.subr.bf16.mxu0 %v8705
        %8842 = vmatpush1.bf16.msra.mxu0 %v8704
        %8843 = vmatprep.subr.bf16.mxu0 %v8707
        %8844 = vmatpush1.bf16.msra.mxu0 %v8706
        %8845 = vmatprep.subr.bf16.mxu0 %v8709
        %8846 = vmatpush1.bf16.msra.mxu0 %v8708
        %8847 = vmatprep.mubr.bf16.mxu0 %v8449
        %8848 = vmatmul.mubr.bf16.gmra.mrb[0].mxu0 %v8442
        %v8849 = vpop.f32.mrb[0].mxu0
        %v8850 = vadd.f32 %v8809, %v8849
        %v8851 = vpop.f32.mrb[0].mxu0
        %v8852 = vadd.f32 %v8811, %v8851
        %v8853 = vpop.f32.mrb[0].mxu0
        %v8854 = vpop.f32.mrb[0].mxu0
        %8855 = vdwg.mxu0
        %v8856 = vadd.f32 %v8336, %v8850
        %v8857 = vadd.f32 %v8337, %v8852
        %v8858 = vld [vmem:[%s4873 + $0x10] sm:$0xee]
        %v8859 = vld [vmem:[%s4873 + $0x18] sm:$0xee]
        %v8860 = vld [vmem:[%s4380] sm:$0xff]
        %v8861 = vld [vmem:[%s4380 + $0x8] sm:$0xff]
        %v8862 = vld [vmem:[%s4380 + $0x10] sm:$0xff]
        %v8863 = vld [vmem:[%s4380 + $0x18] sm:$0xff]
        %v8864 = vld [vmem:[%s4380 + $0x20] sm:$0xff]
        %v8865 = vld [vmem:[%s4380 + $0x28] sm:$0xff]
        %v8866 = vld [vmem:[%s4380 + $0x30] sm:$0xff]
        %v8867 = vld [vmem:[%s4380 + $0x38] sm:$0xff]
        %v8868 = vld [vmem:[%s4380 + $0x40] sm:$0xff]
        %v8869 = vld [vmem:[%s4380 + $0x48] sm:$0xff]
        %v8870 = vld [vmem:[%s4380 + $0x50] sm:$0xff]
        %v8871 = vld [vmem:[%s4380 + $0x58] sm:$0xff]
        %v8872 = vld [vmem:[%s4380 + $0x60] sm:$0xff]
        %v8873 = vld [vmem:[%s4380 + $0x68] sm:$0xff]
        %v8874 = vld [vmem:[%s4380 + $0x70] sm:$0xff]
        %v8875 = vld [vmem:[%s4380 + $0x78] sm:$0xff]
        %v8876 = vld [vmem:[%s4380 + $0x80] sm:$0xff]
        %v8877 = vld [vmem:[%s4380 + $0x88] sm:$0xff]
        %v8878 = vld [vmem:[%s4380 + $0x90] sm:$0xff]
        %v8879 = vld [vmem:[%s4380 + $0x98] sm:$0xff]
        %v8880 = vld [vmem:[%s4380 + $0xa0] sm:$0xff]
        %v8881 = vld [vmem:[%s4380 + $0xa8] sm:$0xff]
        %v8882 = vld [vmem:[%s4380 + $0xb0] sm:$0xff]
        %v8883 = vld [vmem:[%s4380 + $0xb8] sm:$0xff]
        %v8884 = vld [vmem:[%s4380 + $0xc0] sm:$0xff]
        %v8885 = vld [vmem:[%s4380 + $0xc8] sm:$0xff]
        %v8886 = vld [vmem:[%s4380 + $0xd0] sm:$0xff]
        %v8887 = vld [vmem:[%s4380 + $0xd8] sm:$0xff]
        %v8888 = vld [vmem:[%s4380 + $0xe0] sm:$0xff]
        %v8889 = vld [vmem:[%s4380 + $0xe8] sm:$0xff]
        %v8890 = vld [vmem:[%s4380 + $0xf0] sm:$0xff]
        %v8891 = vld [vmem:[%s4380 + $0xf8] sm:$0xff]
        %v8892 = vld [vmem:[%s4380 + $0x100] sm:$0xff]
        %v8893 = vld [vmem:[%s4380 + $0x108] sm:$0xff]
        %v8894 = vld [vmem:[%s4380 + $0x110] sm:$0xff]
        %v8895 = vld [vmem:[%s4380 + $0x118] sm:$0xff]
        %v8896 = vld [vmem:[%s4380 + $0x120] sm:$0xff]
        %v8897 = vld [vmem:[%s4380 + $0x128] sm:$0xff]
        %v8898 = vld [vmem:[%s4380 + $0x130] sm:$0xff]
        %v8899 = vld [vmem:[%s4380 + $0x138] sm:$0xff]
        %v8900 = vld [vmem:[%s4380 + $0x140] sm:$0xff]
        %v8901 = vld [vmem:[%s4380 + $0x148] sm:$0xff]
        %v8902 = vld [vmem:[%s4380 + $0x150] sm:$0xff]
        %v8903 = vld [vmem:[%s4380 + $0x158] sm:$0xff]
        %v8904 = vld [vmem:[%s4380 + $0x160] sm:$0xff]
        %v8905 = vld [vmem:[%s4380 + $0x168] sm:$0xff]
        %v8906 = vld [vmem:[%s4380 + $0x170] sm:$0xff]
        %v8907 = vld [vmem:[%s4380 + $0x178] sm:$0xff]
        %v8908 = vld [vmem:[%s4380 + $0x180] sm:$0xff]
        %v8909 = vld [vmem:[%s4380 + $0x188] sm:$0xff]
        %v8910 = vld [vmem:[%s4380 + $0x190] sm:$0xff]
        %v8911 = vld [vmem:[%s4380 + $0x198] sm:$0xff]
        %v8912 = vld [vmem:[%s4380 + $0x1a0] sm:$0xff]
        %v8913 = vld [vmem:[%s4380 + $0x1a8] sm:$0xff]
        %v8914 = vld [vmem:[%s4380 + $0x1b0] sm:$0xff]
        %v8915 = vld [vmem:[%s4380 + $0x1b8] sm:$0xff]
        %v8916 = vld [vmem:[%s4380 + $0x1c0] sm:$0xff]
        %v8917 = vld [vmem:[%s4380 + $0x1c8] sm:$0xff]
        %v8918 = vld [vmem:[%s4380 + $0x1d0] sm:$0xff]
        %v8919 = vld [vmem:[%s4380 + $0x1d8] sm:$0xff]
        %v8920 = vld [vmem:[%s4380 + $0x1e0] sm:$0xff]
        %v8921 = vld [vmem:[%s4380 + $0x1e8] sm:$0xff]
        %v8922 = vld [vmem:[%s4380 + $0x1f0] sm:$0xff]
        %v8923 = vld [vmem:[%s4380 + $0x1f8] sm:$0xff]
        %v8926 = vunpack.c.l.b16 %v8858
        %v8927 = vunpack.c.h.b16 %v8858
        %v8928 = vunpack.c.l.b16 %v8859
        %v8929 = vunpack.c.h.b16 %v8859
        %v8930 = vpack.c.b16 %v8414, %v8926
        %v8931 = vpack.c.b16 %v8415, %v8927
        %v8932 = vpack.c.b16 %v8416, %v8928
        %v8933 = vpack.c.b16 %v8417, %v8929
        %v8934 = vrot.slane %v8930, 1
        %v8935 = vrot.slane %v8931, 1
        %v8936 = vrot.slane %v8932, 1
        %v8937 = vrot.slane %v8933, 1
        %v9006 = vunpack.c.l.b16 %v8860
        %v9007 = vunpack.c.h.b16 %v8860
        %v9008 = vunpack.c.l.b16 %v8861
        %v9009 = vunpack.c.h.b16 %v8861
        %v9010 = vunpack.c.l.b16 %v8862
        %v9011 = vunpack.c.h.b16 %v8862
        %v9012 = vunpack.c.l.b16 %v8863
        %v9013 = vunpack.c.h.b16 %v8863
        %v9014 = vunpack.c.l.b16 %v8864
        %v9015 = vunpack.c.h.b16 %v8864
        %v9016 = vunpack.c.l.b16 %v8865
        %v9017 = vunpack.c.h.b16 %v8865
        %v9018 = vunpack.c.l.b16 %v8866
        %v9019 = vunpack.c.h.b16 %v8866
        %v9020 = vunpack.c.l.b16 %v8867
        %v9021 = vunpack.c.h.b16 %v8867
        %v9022 = vunpack.c.l.b16 %v8868
        %v9023 = vunpack.c.h.b16 %v8868
        %v9024 = vunpack.c.l.b16 %v8869
        %v9025 = vunpack.c.h.b16 %v8869
        %v9026 = vunpack.c.l.b16 %v8870
        %v9027 = vunpack.c.h.b16 %v8870
        %v9028 = vunpack.c.l.b16 %v8871
        %v9029 = vunpack.c.h.b16 %v8871
        %v9030 = vunpack.c.l.b16 %v8872
        %v9031 = vunpack.c.h.b16 %v8872
        %v9032 = vunpack.c.l.b16 %v8873
        %v9033 = vunpack.c.h.b16 %v8873
        %v9034 = vunpack.c.l.b16 %v8874
        %v9035 = vunpack.c.h.b16 %v8874
        %v9036 = vunpack.c.l.b16 %v8875
        %v9037 = vunpack.c.h.b16 %v8875
        %v9038 = vunpack.c.l.b16 %v8876
        %v9039 = vunpack.c.h.b16 %v8876
        %v9040 = vunpack.c.l.b16 %v8877
        %v9041 = vunpack.c.h.b16 %v8877
        %v9042 = vunpack.c.l.b16 %v8878
        %v9043 = vunpack.c.h.b16 %v8878
        %v9044 = vunpack.c.l.b16 %v8879
        %v9045 = vunpack.c.h.b16 %v8879
        %v9046 = vunpack.c.l.b16 %v8880
        %v9047 = vunpack.c.h.b16 %v8880
        %v9048 = vunpack.c.l.b16 %v8881
        %v9049 = vunpack.c.h.b16 %v8881
        %v9050 = vunpack.c.l.b16 %v8882
        %v9051 = vunpack.c.h.b16 %v8882
        %v9052 = vunpack.c.l.b16 %v8883
        %v9053 = vunpack.c.h.b16 %v8883
        %v9054 = vunpack.c.l.b16 %v8884
        %v9055 = vunpack.c.h.b16 %v8884
        %v9056 = vunpack.c.l.b16 %v8885
        %v9057 = vunpack.c.h.b16 %v8885
        %v9058 = vunpack.c.l.b16 %v8886
        %v9059 = vunpack.c.h.b16 %v8886
        %v9060 = vunpack.c.l.b16 %v8887
        %v9061 = vunpack.c.h.b16 %v8887
        %v9062 = vunpack.c.l.b16 %v8888
        %v9063 = vunpack.c.h.b16 %v8888
        %v9064 = vunpack.c.l.b16 %v8889
        %v9065 = vunpack.c.h.b16 %v8889
        %v9066 = vunpack.c.l.b16 %v8890
        %v9067 = vunpack.c.h.b16 %v8890
        %v9068 = vunpack.c.l.b16 %v8891
        %v9069 = vunpack.c.h.b16 %v8891
        %v9070 = vunpack.c.l.b16 %v8892
        %v9071 = vunpack.c.h.b16 %v8892
        %v9072 = vunpack.c.l.b16 %v8893
        %v9073 = vunpack.c.h.b16 %v8893
        %v9074 = vunpack.c.l.b16 %v8894
        %v9075 = vunpack.c.h.b16 %v8894
        %v9076 = vunpack.c.l.b16 %v8895
        %v9077 = vunpack.c.h.b16 %v8895
        %v9078 = vunpack.c.l.b16 %v8896
        %v9079 = vunpack.c.h.b16 %v8896
        %v9080 = vunpack.c.l.b16 %v8897
        %v9081 = vunpack.c.h.b16 %v8897
        %v9082 = vunpack.c.l.b16 %v8898
        %v9083 = vunpack.c.h.b16 %v8898
        %v9084 = vunpack.c.l.b16 %v8899
        %v9085 = vunpack.c.h.b16 %v8899
        %v9086 = vunpack.c.l.b16 %v8900
        %v9087 = vunpack.c.h.b16 %v8900
        %v9088 = vunpack.c.l.b16 %v8901
        %v9089 = vunpack.c.h.b16 %v8901
        %v9090 = vunpack.c.l.b16 %v8902
        %v9091 = vunpack.c.h.b16 %v8902
        %v9092 = vunpack.c.l.b16 %v8903
        %v9093 = vunpack.c.h.b16 %v8903
        %v9094 = vunpack.c.l.b16 %v8904
        %v9095 = vunpack.c.h.b16 %v8904
        %v9096 = vunpack.c.l.b16 %v8905
        %v9097 = vunpack.c.h.b16 %v8905
        %v9098 = vunpack.c.l.b16 %v8906
        %v9099 = vunpack.c.h.b16 %v8906
        %v9100 = vunpack.c.l.b16 %v8907
        %v9101 = vunpack.c.h.b16 %v8907
        %v9102 = vunpack.c.l.b16 %v8908
        %v9103 = vunpack.c.h.b16 %v8908
        %v9104 = vunpack.c.l.b16 %v8909
        %v9105 = vunpack.c.h.b16 %v8909
        %v9106 = vunpack.c.l.b16 %v8910
        %v9107 = vunpack.c.h.b16 %v8910
        %v9108 = vunpack.c.l.b16 %v8911
        %v9109 = vunpack.c.h.b16 %v8911
        %v9110 = vunpack.c.l.b16 %v8912
        %v9111 = vunpack.c.h.b16 %v8912
        %v9112 = vunpack.c.l.b16 %v8913
        %v9113 = vunpack.c.h.b16 %v8913
        %v9114 = vunpack.c.l.b16 %v8914
        %v9115 = vunpack.c.h.b16 %v8914
        %v9116 = vunpack.c.l.b16 %v8915
        %v9117 = vunpack.c.h.b16 %v8915
        %v9118 = vunpack.c.l.b16 %v8916
        %v9119 = vunpack.c.h.b16 %v8916
        %v9120 = vunpack.c.l.b16 %v8917
        %v9121 = vunpack.c.h.b16 %v8917
        %v9122 = vunpack.c.l.b16 %v8918
        %v9123 = vunpack.c.h.b16 %v8918
        %v9124 = vunpack.c.l.b16 %v8919
        %v9125 = vunpack.c.h.b16 %v8919
        %v9126 = vunpack.c.l.b16 %v8920
        %v9127 = vunpack.c.h.b16 %v8920
        %v9128 = vunpack.c.l.b16 %v8921
        %v9129 = vunpack.c.h.b16 %v8921
        %v9130 = vunpack.c.l.b16 %v8922
        %v9131 = vunpack.c.h.b16 %v8922
        %v9132 = vunpack.c.l.b16 %v8923
        %v9133 = vunpack.c.h.b16 %v8923
        %v9134 = vpack.c.b16 %v9008, %v9006
        %v9135 = vpack.c.b16 %v9009, %v9007
        %v9136 = vpack.c.b16 %v9012, %v9010
        %v9137 = vpack.c.b16 %v9013, %v9011
        %v9138 = vpack.c.b16 %v9016, %v9014
        %v9139 = vpack.c.b16 %v9017, %v9015
        %v9140 = vpack.c.b16 %v9020, %v9018
        %v9141 = vpack.c.b16 %v9021, %v9019
        %v9142 = vpack.c.b16 %v9024, %v9022
        %v9143 = vpack.c.b16 %v9025, %v9023
        %v9144 = vpack.c.b16 %v9028, %v9026
        %v9145 = vpack.c.b16 %v9029, %v9027
        %v9146 = vpack.c.b16 %v9032, %v9030
        %v9147 = vpack.c.b16 %v9033, %v9031
        %v9148 = vpack.c.b16 %v9036, %v9034
        %v9149 = vpack.c.b16 %v9037, %v9035
        %v9150 = vpack.c.b16 %v9040, %v9038
        %v9151 = vpack.c.b16 %v9041, %v9039
        %v9152 = vpack.c.b16 %v9044, %v9042
        %v9153 = vpack.c.b16 %v9045, %v9043
        %v9154 = vpack.c.b16 %v9048, %v9046
        %v9155 = vpack.c.b16 %v9049, %v9047
        %v9156 = vpack.c.b16 %v9052, %v9050
        %v9157 = vpack.c.b16 %v9053, %v9051
        %v9158 = vpack.c.b16 %v9056, %v9054
        %v9159 = vpack.c.b16 %v9057, %v9055
        %v9160 = vpack.c.b16 %v9060, %v9058
        %v9161 = vpack.c.b16 %v9061, %v9059
        %v9162 = vpack.c.b16 %v9064, %v9062
        %v9163 = vpack.c.b16 %v9065, %v9063
        %v9164 = vpack.c.b16 %v9068, %v9066
        %v9165 = vpack.c.b16 %v9069, %v9067
        %v9166 = vpack.c.b16 %v9072, %v9070
        %v9167 = vpack.c.b16 %v9073, %v9071
        %v9168 = vpack.c.b16 %v9076, %v9074
        %v9169 = vpack.c.b16 %v9077, %v9075
        %v9170 = vpack.c.b16 %v9080, %v9078
        %v9171 = vpack.c.b16 %v9081, %v9079
        %v9172 = vpack.c.b16 %v9084, %v9082
        %v9173 = vpack.c.b16 %v9085, %v9083
        %v9174 = vpack.c.b16 %v9088, %v9086
        %v9175 = vpack.c.b16 %v9089, %v9087
        %v9176 = vpack.c.b16 %v9092, %v9090
        %v9177 = vpack.c.b16 %v9093, %v9091
        %v9178 = vpack.c.b16 %v9096, %v9094
        %v9179 = vpack.c.b16 %v9097, %v9095
        %v9180 = vpack.c.b16 %v9100, %v9098
        %v9181 = vpack.c.b16 %v9101, %v9099
        %v9182 = vpack.c.b16 %v9104, %v9102
        %v9183 = vpack.c.b16 %v9105, %v9103
        %v9184 = vpack.c.b16 %v9108, %v9106
        %v9185 = vpack.c.b16 %v9109, %v9107
        %v9186 = vpack.c.b16 %v9112, %v9110
        %v9187 = vpack.c.b16 %v9113, %v9111
        %v9188 = vpack.c.b16 %v9116, %v9114
        %v9189 = vpack.c.b16 %v9117, %v9115
        %v9190 = vpack.c.b16 %v9120, %v9118
        %v9191 = vpack.c.b16 %v9121, %v9119
        %v9192 = vpack.c.b16 %v9124, %v9122
        %v9193 = vpack.c.b16 %v9125, %v9123
        %v9194 = vpack.c.b16 %v9128, %v9126
        %v9195 = vpack.c.b16 %v9129, %v9127
        %v9196 = vpack.c.b16 %v9132, %v9130
        %v9197 = vpack.c.b16 %v9133, %v9131
        %9262 = vmatprep.subr.bf16.mxu0 %v9135
        %9263 = vmatpush1.bf16.msra.mxu0 %v9134
        %9264 = vmatprep.subr.bf16.mxu0 %v9137
        %9265 = vmatpush1.bf16.msra.mxu0 %v9136
        %9266 = vmatprep.subr.bf16.mxu0 %v9139
        %9267 = vmatpush1.bf16.msra.mxu0 %v9138
        %9268 = vmatprep.subr.bf16.mxu0 %v9141
        %9269 = vmatpush1.bf16.msra.mxu0 %v9140
        %9270 = vmatprep.subr.bf16.mxu0 %v9143
        %9271 = vmatpush1.bf16.msra.mxu0 %v9142
        %9272 = vmatprep.subr.bf16.mxu0 %v9145
        %9273 = vmatpush1.bf16.msra.mxu0 %v9144
        %9274 = vmatprep.subr.bf16.mxu0 %v9147
        %9275 = vmatpush1.bf16.msra.mxu0 %v9146
        %9276 = vmatprep.subr.bf16.mxu0 %v9149
        %9277 = vmatpush1.bf16.msra.mxu0 %v9148
        %9278 = vmatprep.subr.bf16.mxu0 %v9151
        %9279 = vmatpush1.bf16.msra.mxu0 %v9150
        %9280 = vmatprep.subr.bf16.mxu0 %v9153
        %9281 = vmatpush1.bf16.msra.mxu0 %v9152
        %9282 = vmatprep.subr.bf16.mxu0 %v9155
        %9283 = vmatpush1.bf16.msra.mxu0 %v9154
        %9284 = vmatprep.subr.bf16.mxu0 %v9157
        %9285 = vmatpush1.bf16.msra.mxu0 %v9156
        %9286 = vmatprep.subr.bf16.mxu0 %v9159
        %9287 = vmatpush1.bf16.msra.mxu0 %v9158
        %9288 = vmatprep.subr.bf16.mxu0 %v9161
        %9289 = vmatpush1.bf16.msra.mxu0 %v9160
        %9290 = vmatprep.subr.bf16.mxu0 %v9163
        %9291 = vmatpush1.bf16.msra.mxu0 %v9162
        %9292 = vmatprep.subr.bf16.mxu0 %v9165
        %9293 = vmatpush1.bf16.msra.mxu0 %v9164
        %9294 = vmatprep.mubr.bf16.mxu0 %v8935
        %9295 = vmatmul.mubr.bf16.gmra.mrb[0].mxu0 %v8934
        %v9296 = vpop.f32.mrb[0].mxu0
        %v9297 = vadd.f32 0.0, %v9296
        %v9298 = vpop.f32.mrb[0].mxu0
        %v9299 = vadd.f32 0.0, %v9298
        %v9300 = vpop.f32.mrb[0].mxu0
        %v9301 = vpop.f32.mrb[0].mxu0
        %9302 = vdwg.mxu0
        %9303 = vmatprep.subr.bf16.mxu0 %v9167
        %9304 = vmatpush1.bf16.msra.mxu0 %v9166
        %9305 = vmatprep.subr.bf16.mxu0 %v9169
        %9306 = vmatpush1.bf16.msra.mxu0 %v9168
        %9307 = vmatprep.subr.bf16.mxu0 %v9171
        %9308 = vmatpush1.bf16.msra.mxu0 %v9170
        %9309 = vmatprep.subr.bf16.mxu0 %v9173
        %9310 = vmatpush1.bf16.msra.mxu0 %v9172
        %9311 = vmatprep.subr.bf16.mxu0 %v9175
        %9312 = vmatpush1.bf16.msra.mxu0 %v9174
        %9313 = vmatprep.subr.bf16.mxu0 %v9177
        %9314 = vmatpush1.bf16.msra.mxu0 %v9176
        %9315 = vmatprep.subr.bf16.mxu0 %v9179
        %9316 = vmatpush1.bf16.msra.mxu0 %v9178
        %9317 = vmatprep.subr.bf16.mxu0 %v9181
        %9318 = vmatpush1.bf16.msra.mxu0 %v9180
        %9319 = vmatprep.subr.bf16.mxu0 %v9183
        %9320 = vmatpush1.bf16.msra.mxu0 %v9182
        %9321 = vmatprep.subr.bf16.mxu0 %v9185
        %9322 = vmatpush1.bf16.msra.mxu0 %v9184
        %9323 = vmatprep.subr.bf16.mxu0 %v9187
        %9324 = vmatpush1.bf16.msra.mxu0 %v9186
        %9325 = vmatprep.subr.bf16.mxu0 %v9189
        %9326 = vmatpush1.bf16.msra.mxu0 %v9188
        %9327 = vmatprep.subr.bf16.mxu0 %v9191
        %9328 = vmatpush1.bf16.msra.mxu0 %v9190
        %9329 = vmatprep.subr.bf16.mxu0 %v9193
        %9330 = vmatpush1.bf16.msra.mxu0 %v9192
        %9331 = vmatprep.subr.bf16.mxu0 %v9195
        %9332 = vmatpush1.bf16.msra.mxu0 %v9194
        %9333 = vmatprep.subr.bf16.mxu0 %v9197
        %9334 = vmatpush1.bf16.msra.mxu0 %v9196
        %9335 = vmatprep.mubr.bf16.mxu0 %v8937
        %9336 = vmatmul.mubr.bf16.gmra.mrb[0].mxu0 %v8936
        %v9337 = vpop.f32.mrb[0].mxu0
        %v9338 = vadd.f32 %v9297, %v9337
        %v9339 = vpop.f32.mrb[0].mxu0
        %v9340 = vadd.f32 %v9299, %v9339
        %v9341 = vpop.f32.mrb[0].mxu0
        %v9342 = vpop.f32.mrb[0].mxu0
        %9343 = vdwg.mxu0
        %v9344 = vadd.f32 %v8856, %v9338
        %v9345 = vadd.f32 %v8857, %v9340
        %s9346 = scalar_lea.vmem [#allocation2], 16
        %v9347 = vld [vmem:[%s9346] sm:$0xff]
        %v9348 = vld [vmem:[%s9346 + $0x8] sm:$0xff]
        %v9349 = vadd.f32 %v9347, %v9344
        %v9350 = vadd.f32 %v9348, %v9345
        %9351 = vst [vmem:[%s9346] sm:$0xff] %v9349
        %9352 = vst [vmem:[%s9346 + $0x8] sm:$0xff] %v9350
        %p9353 = scmp.eq.s32.totalorder %s25, 3
        // Predicated region
        $region80: #{tpu_custom_call.1} parent=58 // pred_check
          %p9354 = pneg %p9353
        $region81: #{tpu_custom_call.1} parent=58 // pred_check_branch
          %9356 = sbr.rel (%p9354) target = $region83
        $region82: #{tpu_custom_call.1} parent=58 // pred_region
          %v9357 = vld [vmem:[#allocation2] sm:$0xff]
          %v9358 = vld [vmem:[#allocation2 + $0x8] sm:$0xff]
          %v9359 = vld [vmem:[#allocation6] sm:$0x3]
          %v9361 = vlaneseq
          %v9362 = vshrl.u32 %v9361, 7
          %v9363 = vsub.s32 0, %v9362
          %v9364 = vrot.slane %v9359, %v9363
          %v9365 = vlaneseq
          %v9366 = vshrl.u32 %v9365, 7
          %v9367 = vsub.s32 1, %v9366
          %v9368 = vrot.slane %v9359, %v9367
          %v9371 = vadd.f32 %v9357, %v9364
          %v9372 = vadd.f32 %v9358, %v9368
          %v9373 = vmax.f32 %v9371, 0.0
          %v9374 = vmax.f32 %v9372, 0.0
          %v9375 = vld [vmem:[%s3] sm:$0xff]
          %v9376 = vld [vmem:[%s3 + $0x8] sm:$0xff]
          %v9377 = vld [vmem:[%s3 + $0x10] sm:$0xff]
          %v9378 = vld [vmem:[%s3 + $0x18] sm:$0xff]
          %v9379 = vld [vmem:[%s3 + $0x20] sm:$0xff]
          %v9380 = vld [vmem:[%s3 + $0x28] sm:$0xff]
          %v9381 = vld [vmem:[%s3 + $0x30] sm:$0xff]
          %v9382 = vld [vmem:[%s3 + $0x38] sm:$0xff]
          %v9383 = vld [vmem:[%s3 + $0x40] sm:$0xff]
          %v9384 = vld [vmem:[%s3 + $0x48] sm:$0xff]
          %v9385 = vld [vmem:[%s3 + $0x50] sm:$0xff]
          %v9386 = vld [vmem:[%s3 + $0x58] sm:$0xff]
          %v9387 = vld [vmem:[%s3 + $0x60] sm:$0xff]
          %v9388 = vld [vmem:[%s3 + $0x68] sm:$0xff]
          %v9389 = vld [vmem:[%s3 + $0x70] sm:$0xff]
          %v9390 = vld [vmem:[%s3 + $0x78] sm:$0xff]
          %v9391 = vld [vmem:[%s3 + $0x80] sm:$0xff]
          %v9392 = vld [vmem:[%s3 + $0x88] sm:$0xff]
          %v9393 = vld [vmem:[%s3 + $0x90] sm:$0xff]
          %v9394 = vld [vmem:[%s3 + $0x98] sm:$0xff]
          %v9395 = vld [vmem:[%s3 + $0xa0] sm:$0xff]
          %v9396 = vld [vmem:[%s3 + $0xa8] sm:$0xff]
          %v9397 = vld [vmem:[%s3 + $0xb0] sm:$0xff]
          %v9398 = vld [vmem:[%s3 + $0xb8] sm:$0xff]
          %v9399 = vld [vmem:[%s3 + $0xc0] sm:$0xff]
          %v9400 = vld [vmem:[%s3 + $0xc8] sm:$0xff]
          %v9401 = vld [vmem:[%s3 + $0xd0] sm:$0xff]
          %v9402 = vld [vmem:[%s3 + $0xd8] sm:$0xff]
          %v9403 = vld [vmem:[%s3 + $0xe0] sm:$0xff]
          %v9404 = vld [vmem:[%s3 + $0xe8] sm:$0xff]
          %v9405 = vld [vmem:[%s3 + $0xf0] sm:$0xff]
          %v9406 = vld [vmem:[%s3 + $0xf8] sm:$0xff]
          %v9407 = vld [vmem:[#allocation8] sm:$0x1]
          %v9409 = vlaneseq
          %v9410 = vshrl.u32 %v9409, 7
          %v9411 = vsub.s32 0, %v9410
          %v9412 = vrot.slane %v9407, %v9411
          %9414 = vmatprep.subr.mxu0 0.0
          %9415 = vmatpush1.msra.mxu0 %v9375
          %9416 = vmatprep.subr.mxu0 0.0
          %9417 = vmatpush1.msra.mxu0 %v9376
          %9418 = vmatprep.subr.mxu0 0.0
          %9419 = vmatpush1.msra.mxu0 %v9377
          %9420 = vmatprep.subr.mxu0 0.0
          %9421 = vmatpush1.msra.mxu0 %v9378
          %9422 = vmatprep.subr.mxu0 0.0
          %9423 = vmatpush1.msra.mxu0 %v9379
          %9424 = vmatprep.subr.mxu0 0.0
          %9425 = vmatpush1.msra.mxu0 %v9380
          %9426 = vmatprep.subr.mxu0 0.0
          %9427 = vmatpush1.msra.mxu0 %v9381
          %9428 = vmatprep.subr.mxu0 0.0
          %9429 = vmatpush1.msra.mxu0 %v9382
          %9430 = vmatprep.subr.mxu0 0.0
          %9431 = vmatpush1.msra.mxu0 %v9383
          %9432 = vmatprep.subr.mxu0 0.0
          %9433 = vmatpush1.msra.mxu0 %v9384
          %9434 = vmatprep.subr.mxu0 0.0
          %9435 = vmatpush1.msra.mxu0 %v9385
          %9436 = vmatprep.subr.mxu0 0.0
          %9437 = vmatpush1.msra.mxu0 %v9386
          %9438 = vmatprep.subr.mxu0 0.0
          %9439 = vmatpush1.msra.mxu0 %v9387
          %9440 = vmatprep.subr.mxu0 0.0
          %9441 = vmatpush1.msra.mxu0 %v9388
          %9442 = vmatprep.subr.mxu0 0.0
          %9443 = vmatpush1.msra.mxu0 %v9389
          %9444 = vmatprep.subr.mxu0 0.0
          %9445 = vmatpush1.msra.mxu0 %v9390
          %9446 = vmatprep.subr.mxu0 0.0
          %9447 = vmatpush1.msra.mxu0 %v9391
          %9448 = vmatprep.subr.mxu0 0.0
          %9449 = vmatpush1.msra.mxu0 %v9392
          %9450 = vmatprep.subr.mxu0 0.0
          %9451 = vmatpush1.msra.mxu0 %v9393
          %9452 = vmatprep.subr.mxu0 0.0
          %9453 = vmatpush1.msra.mxu0 %v9394
          %9454 = vmatprep.subr.mxu0 0.0
          %9455 = vmatpush1.msra.mxu0 %v9395
          %9456 = vmatprep.subr.mxu0 0.0
          %9457 = vmatpush1.msra.mxu0 %v9396
          %9458 = vmatprep.subr.mxu0 0.0
          %9459 = vmatpush1.msra.mxu0 %v9397
          %9460 = vmatprep.subr.mxu0 0.0
          %9461 = vmatpush1.msra.mxu0 %v9398
          %9462 = vmatprep.subr.mxu0 0.0
          %9463 = vmatpush1.msra.mxu0 %v9399
          %9464 = vmatprep.subr.mxu0 0.0
          %9465 = vmatpush1.msra.mxu0 %v9400
          %9466 = vmatprep.subr.mxu0 0.0
          %9467 = vmatpush1.msra.mxu0 %v9401
          %9468 = vmatprep.subr.mxu0 0.0
          %9469 = vmatpush1.msra.mxu0 %v9402
          %9470 = vmatprep.subr.mxu0 0.0
          %9471 = vmatpush1.msra.mxu0 %v9403
          %9472 = vmatprep.subr.mxu0 0.0
          %9473 = vmatpush1.msra.mxu0 %v9404
          %9474 = vmatprep.subr.mxu0 0.0
          %9475 = vmatpush1.msra.mxu0 %v9405
          %9476 = vmatprep.subr.mxu0 0.0
          %9477 = vmatpush1.msra.mxu0 %v9406
          %9478 = vmatprep.mubr.f32.mxu0 %v9374
          %9479 = vmatmul.mubr.f32.gmra.mrb[0].mxu0 %v9373
          %v9480 = vpop.f32.mrb[0].mxu0
          %v9481 = vadd.f32 %v9412, %v9480
          %v9482 = vpop.f32.mrb[0].mxu0
          %9483 = vdwg.mxu0
          %vm9484 = vcmask 15360
          %9485 = vst.msk [vmem:[%s377] sm:$0xff] %vm9484, %v9481
          %v9486 = vld [vmem:[%s9346] sm:$0xff]
          %v9487 = vld [vmem:[%s9346 + $0x8] sm:$0xff]
          %v9488 = vld [vmem:[#allocation6] sm:$0x3]
          %v9490 = vlaneseq
          %v9491 = vshrl.u32 %v9490, 7
          %v9492 = vsub.s32 0, %v9491
          %v9493 = vrot.slane %v9488, %v9492
          %v9494 = vlaneseq
          %v9495 = vshrl.u32 %v9494, 7
          %v9496 = vsub.s32 1, %v9495
          %v9497 = vrot.slane %v9488, %v9496
          %v9500 = vadd.f32 %v9486, %v9493
          %v9501 = vadd.f32 %v9487, %v9497
          %v9502 = vmax.f32 %v9500, 0.0
          %v9503 = vmax.f32 %v9501, 0.0
          %v9504 = vld [vmem:[%s3] sm:$0xff]
          %v9505 = vld [vmem:[%s3 + $0x8] sm:$0xff]
          %v9506 = vld [vmem:[%s3 + $0x10] sm:$0xff]
          %v9507 = vld [vmem:[%s3 + $0x18] sm:$0xff]
          %v9508 = vld [vmem:[%s3 + $0x20] sm:$0xff]
          %v9509 = vld [vmem:[%s3 + $0x28] sm:$0xff]
          %v9510 = vld [vmem:[%s3 + $0x30] sm:$0xff]
          %v9511 = vld [vmem:[%s3 + $0x38] sm:$0xff]
          %v9512 = vld [vmem:[%s3 + $0x40] sm:$0xff]
          %v9513 = vld [vmem:[%s3 + $0x48] sm:$0xff]
          %v9514 = vld [vmem:[%s3 + $0x50] sm:$0xff]
          %v9515 = vld [vmem:[%s3 + $0x58] sm:$0xff]
          %v9516 = vld [vmem:[%s3 + $0x60] sm:$0xff]
          %v9517 = vld [vmem:[%s3 + $0x68] sm:$0xff]
          %v9518 = vld [vmem:[%s3 + $0x70] sm:$0xff]
          %v9519 = vld [vmem:[%s3 + $0x78] sm:$0xff]
          %v9520 = vld [vmem:[%s3 + $0x80] sm:$0xff]
          %v9521 = vld [vmem:[%s3 + $0x88] sm:$0xff]
          %v9522 = vld [vmem:[%s3 + $0x90] sm:$0xff]
          %v9523 = vld [vmem:[%s3 + $0x98] sm:$0xff]
          %v9524 = vld [vmem:[%s3 + $0xa0] sm:$0xff]
          %v9525 = vld [vmem:[%s3 + $0xa8] sm:$0xff]
          %v9526 = vld [vmem:[%s3 + $0xb0] sm:$0xff]
          %v9527 = vld [vmem:[%s3 + $0xb8] sm:$0xff]
          %v9528 = vld [vmem:[%s3 + $0xc0] sm:$0xff]
          %v9529 = vld [vmem:[%s3 + $0xc8] sm:$0xff]
          %v9530 = vld [vmem:[%s3 + $0xd0] sm:$0xff]
          %v9531 = vld [vmem:[%s3 + $0xd8] sm:$0xff]
          %v9532 = vld [vmem:[%s3 + $0xe0] sm:$0xff]
          %v9533 = vld [vmem:[%s3 + $0xe8] sm:$0xff]
          %v9534 = vld [vmem:[%s3 + $0xf0] sm:$0xff]
          %v9535 = vld [vmem:[%s3 + $0xf8] sm:$0xff]
          %v9536 = vld [vmem:[#allocation8] sm:$0x1]
          %v9538 = vlaneseq
          %v9539 = vshrl.u32 %v9538, 7
          %v9540 = vsub.s32 0, %v9539
          %v9541 = vrot.slane %v9536, %v9540
          %9543 = vmatprep.subr.mxu0 0.0
          %9544 = vmatpush1.msra.mxu0 %v9504
          %9545 = vmatprep.subr.mxu0 0.0
          %9546 = vmatpush1.msra.mxu0 %v9505
          %9547 = vmatprep.subr.mxu0 0.0
          %9548 = vmatpush1.msra.mxu0 %v9506
          %9549 = vmatprep.subr.mxu0 0.0
          %9550 = vmatpush1.msra.mxu0 %v9507
          %9551 = vmatprep.subr.mxu0 0.0
          %9552 = vmatpush1.msra.mxu0 %v9508
          %9553 = vmatprep.subr.mxu0 0.0
          %9554 = vmatpush1.msra.mxu0 %v9509
          %9555 = vmatprep.subr.mxu0 0.0
          %9556 = vmatpush1.msra.mxu0 %v9510
          %9557 = vmatprep.subr.mxu0 0.0
          %9558 = vmatpush1.msra.mxu0 %v9511
          %9559 = vmatprep.subr.mxu0 0.0
          %9560 = vmatpush1.msra.mxu0 %v9512
          %9561 = vmatprep.subr.mxu0 0.0
          %9562 = vmatpush1.msra.mxu0 %v9513
          %9563 = vmatprep.subr.mxu0 0.0
          %9564 = vmatpush1.msra.mxu0 %v9514
          %9565 = vmatprep.subr.mxu0 0.0
          %9566 = vmatpush1.msra.mxu0 %v9515
          %9567 = vmatprep.subr.mxu0 0.0
          %9568 = vmatpush1.msra.mxu0 %v9516
          %9569 = vmatprep.subr.mxu0 0.0
          %9570 = vmatpush1.msra.mxu0 %v9517
          %9571 = vmatprep.subr.mxu0 0.0
          %9572 = vmatpush1.msra.mxu0 %v9518
          %9573 = vmatprep.subr.mxu0 0.0
          %9574 = vmatpush1.msra.mxu0 %v9519
          %9575 = vmatprep.subr.mxu0 0.0
          %9576 = vmatpush1.msra.mxu0 %v9520
          %9577 = vmatprep.subr.mxu0 0.0
          %9578 = vmatpush1.msra.mxu0 %v9521
          %9579 = vmatprep.subr.mxu0 0.0
          %9580 = vmatpush1.msra.mxu0 %v9522
          %9581 = vmatprep.subr.mxu0 0.0
          %9582 = vmatpush1.msra.mxu0 %v9523
          %9583 = vmatprep.subr.mxu0 0.0
          %9584 = vmatpush1.msra.mxu0 %v9524
          %9585 = vmatprep.subr.mxu0 0.0
          %9586 = vmatpush1.msra.mxu0 %v9525
          %9587 = vmatprep.subr.mxu0 0.0
          %9588 = vmatpush1.msra.mxu0 %v9526
          %9589 = vmatprep.subr.mxu0 0.0
          %9590 = vmatpush1.msra.mxu0 %v9527
          %9591 = vmatprep.subr.mxu0 0.0
          %9592 = vmatpush1.msra.mxu0 %v9528
          %9593 = vmatprep.subr.mxu0 0.0
          %9594 = vmatpush1.msra.mxu0 %v9529
          %9595 = vmatprep.subr.mxu0 0.0
          %9596 = vmatpush1.msra.mxu0 %v9530
          %9597 = vmatprep.subr.mxu0 0.0
          %9598 = vmatpush1.msra.mxu0 %v9531
          %9599 = vmatprep.subr.mxu0 0.0
          %9600 = vmatpush1.msra.mxu0 %v9532
          %9601 = vmatprep.subr.mxu0 0.0
          %9602 = vmatpush1.msra.mxu0 %v9533
          %9603 = vmatprep.subr.mxu0 0.0
          %9604 = vmatpush1.msra.mxu0 %v9534
          %9605 = vmatprep.subr.mxu0 0.0
          %9606 = vmatpush1.msra.mxu0 %v9535
          %9607 = vmatprep.mubr.f32.mxu0 %v9503
          %9608 = vmatmul.mubr.f32.gmra.mrb[0].mxu0 %v9502
          %v9609 = vpop.f32.mrb[0].mxu0
          %v9610 = vadd.f32 %v9541, %v9609
          %v9611 = vpop.f32.mrb[0].mxu0
          %9612 = vdwg.mxu0
          %s9613 = scalar_lea.vmem %s377, 8
          %9614 = vst.msk [vmem:[%s9613] sm:$0xff] %vm9484, %v9610
        $region83: #{tpu_custom_call.1} parent=58 // pred_fallthru
          _
        %s9615 = smul.u32 2, %s24
        %p9616 = scmp.lt.s32.totalorder %s9615, 1
        %s9617 = scalar_select %p9616, %s9615, 1
        %s9618 = smul.addr %s9617, 8
        %s9619 = scalar_lea.vmem %s5, %s9618
        // Predicated region
        $region84: #{tpu_custom_call.1} parent=58 // pred_check
          %p9620 = pneg %p167
        $region85: #{tpu_custom_call.1} parent=58 // pred_check_branch
          %9622 = sbr.rel (%p9620) target = $region87
        $region86: #{tpu_custom_call.1} parent=58 // pred_region
          %s9623 = smul.u32 2, %s24
        $region87: #{tpu_custom_call.1} parent=58 // pred_fallthru
          _
        // Predicated region
        $region88: #{tpu_custom_call.1} parent=58 // pred_check
          %p9624 = pneg %p167
        $region89: #{tpu_custom_call.1} parent=58 // pred_check_branch
          %9626 = sbr.rel (%p9624) target = $region91
        $region90: #{tpu_custom_call.1} parent=58 // pred_region
          %s9627 = smul.u32 2, %s24
          %p9628 = scmp.lt.s32.totalorder %s9627, 1
          %s9629 = scalar_select %p9628, %s9627, 1
          %s9630 = smul.addr %s9629, 8
          %s9631 = scalar_lea.vmem %s5, %s9630
        $region91: #{tpu_custom_call.1} parent=58 // pred_fallthru
          _
      $region59: #{tpu_custom_call.1} parent=5 // pred_fallthru
        _
      %p9632 = scmp.le.s32.totalorder 2, %s15
      // Predicated region
      $region92: #{tpu_custom_call.1} parent=5 // pred_check
        %p9633 = pneg %p9632
      $region93: #{tpu_custom_call.1} parent=5 // pred_check_branch
        %9635 = sbr.rel (%p9633) target = $region95
      $region94: #{tpu_custom_call.1} parent=5 // pred_region
        %s9636 = ssub.s32 %s15, 2
      $region95: #{tpu_custom_call.1} parent=5 // pred_fallthru
        _
    $region6: #{tpu_custom_call.1} parent=1 // loop_footer
      %s19 = sadd.s32 1, %s15
    $region7: #{tpu_custom_call.1} parent=1 // loop_footer_branch
      %14 = sbr.rel target = $region3
    $region8: #{tpu_custom_call.1} parent=1 // loop_exit
      _
    %9637 = vsyncpa [#allocation5], 1
    %s9638 = scalar_lea.sflag [#allocation5], 1
    %9639 = vsyncpa %s9638, 1
    %9640 = vsyncpa [#allocation7], 1

</llo_original>
